<compile_context>
chip_gen: v7x
topology: tpu7x:2x2x1
jax: 0.10.0
libtpu: 0.0.40
codegen_flags: <defaults>
</compile_context>

<pallas_src>
import functools
import math

import jax
import jax.numpy as jnp
from jax.experimental import pallas as pl
from jax.experimental.pallas import tpu as pltpu

# ------------------------- small-model configuration -------------------------
CHANNELS = [8, 16, 32, 64]          # scaled-down version of [64,128,256,512]
BLOCKS = [2, 2, 2, 2]               # resnet18 block counts
STAGE_STRIDES = [1, 2, 2, 2]
NUM_CLASSES = 10                    # scaled-down version of 1000
IMG = (2, 3, 64, 64)                # NCHW input (scaled-down 3x224x224)
BN_EPS = 1e-5
ACT_DTYPE = jnp.bfloat16            # activations / MXU operand dtype


def _rup(x, m):
    return ((x + m - 1) // m) * m


# --------------------------- Pallas kernel bodies ----------------------------
def matmul_bn_act_kernel(a_ref, b_ref, scale_ref, bias_ref, o_ref, *, apply_relu):
    """y = (A @ B) * scale + bias ; optional ReLU.  Single K block, f32 acc."""
    acc = jnp.dot(a_ref[...], b_ref[...], preferred_element_type=jnp.float32)
    y = acc * scale_ref[...] + bias_ref[...]
    if apply_relu:
        y = jnp.maximum(y, 0.0)
    o_ref[...] = y.astype(o_ref.dtype)


def matmul_bn_act_res_kernel(a_ref, b_ref, scale_ref, bias_ref, res_ref, o_ref,
                             *, apply_relu):
    """Same as above with a fused residual add (residual streamed only when present)."""
    acc = jnp.dot(a_ref[...], b_ref[...], preferred_element_type=jnp.float32)
    y = acc * scale_ref[...] + bias_ref[...] + res_ref[...].astype(jnp.float32)
    if apply_relu:
        y = jnp.maximum(y, 0.0)
    o_ref[...] = y.astype(o_ref.dtype)


def maxpool_kernel(p_ref, o_ref):
    """p_ref: (9, TR, 128) stacked 3x3 window taps (lane-dense); max over taps."""
    m = p_ref[0]
    for i in range(1, 9):
        m = jnp.maximum(m, p_ref[i])
    o_ref[...] = m


def head_kernel(x_ref, w_ref, b_ref, o_ref, *, inv_hw):
    """Fused adaptive-avg-pool(1) + flatten + Linear for the classifier head."""
    pooled = jnp.sum(x_ref[...].astype(jnp.float32), axis=1) * inv_hw   # (Np, C)
    y = jnp.dot(pooled, w_ref[...], preferred_element_type=jnp.float32) + b_ref[...]
    o_ref[...] = y


# ------------------------------ Pallas wrappers -------------------------------
def matmul_bn_act(a, b, scale, bias, residual=None, relu=True,
                  out_dtype=ACT_DTYPE):
    """(M,K)@(K,N) with fused per-column scale/bias (+residual) (+ReLU).

    a: (M,K) bf16 im2col patches; b: (K,N) bf16 weights (N = cout, unpadded);
    scale/bias: (1,N) f32; residual: (M,N) activation dtype or None.
    Grid is 1-D over M only (K and N are single full-array blocks).
    """
    M, K = a.shape
    K2, N = b.shape
    assert K == K2

    TM = min(512, _rup(M, 8))
    Mp = _rup(M, TM)
    if Mp != M:
        a = jnp.pad(a, ((0, Mp - M), (0, 0)))
        if residual is not None:
            residual = jnp.pad(residual, ((0, Mp - M), (0, 0)))
    # If M fits in one big block, split it in two so both v7x TensorCores get
    # work (neutral on single-TC v5e/v6e: one extra ~0.35us grid step).
    if Mp // TM == 1 and TM >= 256:
        TM //= 2

    in_specs = [
        pl.BlockSpec((TM, K), lambda i: (i, 0)),
        pl.BlockSpec((K, N), lambda i: (0, 0)),
        pl.BlockSpec((1, N), lambda i: (0, 0)),
        pl.BlockSpec((1, N), lambda i: (0, 0)),
    ]
    if residual is not None:
        in_specs.append(pl.BlockSpec((TM, N), lambda i: (i, 0)))
        kernel = functools.partial(matmul_bn_act_res_kernel, apply_relu=relu)
        args = (a, b, scale, bias, residual)
    else:
        kernel = functools.partial(matmul_bn_act_kernel, apply_relu=relu)
        args = (a, b, scale, bias)

    out = pl.pallas_call(
        kernel,
        out_shape=jax.ShapeDtypeStruct((Mp, N), out_dtype),
        grid_spec=pltpu.PrefetchScalarGridSpec(
            num_scalar_prefetch=0,
            grid=(Mp // TM,),
            in_specs=in_specs,
            out_specs=pl.BlockSpec((TM, N), lambda i: (i, 0)),
        ),
        compiler_params=pltpu.CompilerParams(
            dimension_semantics=("parallel",)),
    )(*args)
    return out[:M] if Mp != M else out


def im2col(x, kh, kw, stride, pad):
    """x: (N,H,W,C) -> patches (N,Ho,Wo,kh*kw*C) in (ky,kx,cin) order."""
    if pad > 0:
        x = jnp.pad(x, ((0, 0), (pad, pad), (pad, pad), (0, 0)))
    N, H, W, C = x.shape
    Ho = (H - kh) // stride + 1
    Wo = (W - kw) // stride + 1
    if kh == 1 and kw == 1:
        patches = x[:, ::stride, ::stride, :]
    else:
        cols = [x[:, ky:ky + stride * (Ho - 1) + 1:stride,
                  kx:kx + stride * (Wo - 1) + 1:stride, :]
                for ky in range(kh) for kx in range(kw)]
        patches = jnp.concatenate(cols, axis=-1)
    return patches, Ho, Wo


def conv_bn_act(x, w2d, scale, bias, *, kh, kw, stride, pad, relu=True,
                residual=None):
    """Conv2d (no bias) + folded BN + optional residual add + optional ReLU."""
    cout = w2d.shape[1]
    patches, Ho, Wo = im2col(x, kh, kw, stride, pad)
    N = x.shape[0]
    M = N * Ho * Wo
    a = patches.reshape(M, kh * kw * x.shape[-1])
    res = residual.reshape(M, cout) if residual is not None else None
    y = matmul_bn_act(a, w2d, scale, bias, residual=res, relu=relu)
    return y.reshape(N, Ho, Wo, cout)


def maxpool_3x3_s2_p1(x):
    """nn.MaxPool2d(3, 2, 1) in NHWC; taps flattened lane-dense (no channel pad)."""
    N, H, W, C = x.shape
    xp = jnp.pad(x, ((0, 0), (1, 1), (1, 1), (0, 0)),
                 constant_values=-jnp.inf)
    Ho = (H + 2 - 3) // 2 + 1
    Wo = (W + 2 - 3) // 2 + 1
    taps = [xp[:, ky:ky + 2 * (Ho - 1) + 1:2,
               kx:kx + 2 * (Wo - 1) + 1:2, :]
            for ky in range(3) for kx in range(3)]
    L = N * Ho * Wo * C
    P = jnp.stack(taps, axis=0).reshape(9, L)

    LANE = 128
    Lp = _rup(L, 8 * LANE)
    if Lp != L:
        P = jnp.pad(P, ((0, 0), (0, Lp - L)), constant_values=-jnp.inf)
    rows = Lp // LANE
    TR = min(rows, 512)
    rows_p = _rup(rows, TR)
    P3 = P.reshape(9, rows, LANE)
    if rows_p != rows:
        P3 = jnp.pad(P3, ((0, 0), (0, rows_p - rows), (0, 0)),
                     constant_values=-jnp.inf)

    out = pl.pallas_call(
        maxpool_kernel,
        out_shape=jax.ShapeDtypeStruct((rows_p, LANE), x.dtype),
        grid_spec=pltpu.PrefetchScalarGridSpec(
            num_scalar_prefetch=0,
            grid=(rows_p // TR,),
            in_specs=[pl.BlockSpec((9, TR, LANE), lambda i: (0, i, 0))],
            out_specs=pl.BlockSpec((TR, LANE), lambda i: (i, 0)),
        ),
        compiler_params=pltpu.CompilerParams(
            dimension_semantics=("parallel",)),
    )(P3)
    return out.reshape(-1)[:L].reshape(N, Ho, Wo, C)


def avgpool_fc(x, fc_w, fc_b):
    """Fused nn.AdaptiveAvgPool2d(1) + flatten + nn.Linear -> (N, NUM_CLASSES)."""
    N, H, W, C = x.shape
    HW = H * W
    Np, HWp = _rup(N, 8), _rup(HW, 8)
    xr = x.reshape(N, HW, C)
    if (Np, HWp) != (N, HW):
        xr = jnp.pad(xr, ((0, Np - N), (0, HWp - HW), (0, 0)))
    NC = fc_w.shape[1]

    out = pl.pallas_call(
        functools.partial(head_kernel, inv_hw=1.0 / HW),
        out_shape=jax.ShapeDtypeStruct((Np, NC), jnp.float32),
        grid_spec=pltpu.PrefetchScalarGridSpec(
            num_scalar_prefetch=0,
            grid=(1,),
            in_specs=[pl.BlockSpec((Np, HWp, C), lambda i: (0, 0, 0)),
                      pl.BlockSpec((C, NC), lambda i: (0, 0)),
                      pl.BlockSpec((1, NC), lambda i: (0, 0))],
            out_specs=pl.BlockSpec((Np, NC), lambda i: (0, 0)),
        ),
    )(xr, fc_w, fc_b)
    return out[:N]


# ----------------------------- parameter creation -----------------------------
def kaiming_conv2d(key, kh, kw, cin, cout):
    """kaiming_normal_(mode='fan_out') conv weight, pre-reshaped to (K, cout) bf16."""
    fan_out = cout * kh * kw
    std = math.sqrt(2.0 / fan_out)
    w = jax.random.normal(key, (kh, kw, cin, cout), jnp.float32) * std
    return w.reshape(kh * kw * cin, cout).astype(ACT_DTYPE)


def bn_identity(c):
    """BatchNorm2d with module init (gamma=1, beta=0, mean=0, var=1), folded."""
    gamma = jnp.ones((c,), jnp.float32)
    beta = jnp.zeros((c,), jnp.float32)
    mean = jnp.zeros((c,), jnp.float32)
    var = jnp.ones((c,), jnp.float32)
    scale = gamma / jnp.sqrt(var + BN_EPS)
    bias = beta - mean * scale
    return scale.reshape(1, c), bias.reshape(1, c)


def make_params(key):
    keys = iter(jax.random.split(key, 64))
    params = {}
    params['stem_w'] = kaiming_conv2d(next(keys), 7, 7, IMG[1], CHANNELS[0])
    params['stem_bn'] = bn_identity(CHANNELS[0])

    stages = []
    in_c = CHANNELS[0]
    for c, nb, st in zip(CHANNELS, BLOCKS, STAGE_STRIDES):
        blocks = []
        for b in range(nb):
            stride = st if b == 0 else 1
            blk = {
                'stride': stride,
                'w1': kaiming_conv2d(next(keys), 3, 3, in_c, c),
                'bn1': bn_identity(c),
                'w2': kaiming_conv2d(next(keys), 3, 3, c, c),
                'bn2': bn_identity(c),
                'dw': None,
                'dbn': None,
            }
            if stride != 1 or in_c != c:
                blk['dw'] = kaiming_conv2d(next(keys), 1, 1, in_c, c)
                blk['dbn'] = bn_identity(c)
            blocks.append(blk)
            in_c = c
        stages.append(blocks)
    params['stages'] = stages

    kf = 1.0 / math.sqrt(in_c)
    params['fc_w'] = jax.random.uniform(next(keys), (in_c, NUM_CLASSES),
                                        jnp.float32, minval=-kf, maxval=kf)
    params['fc_b'] = jax.random.uniform(next(keys), (1, NUM_CLASSES),
                                        jnp.float32, minval=-kf, maxval=kf)
    return params


# --------------------------------- forward ------------------------------------
def basic_block(x, blk):
    stride = blk['stride']
    identity = x
    out = conv_bn_act(x, blk['w1'], *blk['bn1'], kh=3, kw=3, stride=stride,
                      pad=1, relu=True)
    if blk['dw'] is not None:
        identity = conv_bn_act(x, blk['dw'], *blk['dbn'], kh=1, kw=1,
                               stride=stride, pad=0, relu=False)
    # conv2 + bn2 + residual add + relu fused in the matmul epilogue
    out = conv_bn_act(out, blk['w2'], *blk['bn2'], kh=3, kw=3, stride=1,
                      pad=1, relu=True, residual=identity)
    return out


def resnet_forward(x_nchw, params):
    x = jnp.transpose(x_nchw, (0, 2, 3, 1)).astype(ACT_DTYPE)   # NCHW -> NHWC
    # stem: conv7x7 s2 p3 -> bn -> relu -> maxpool 3x3 s2 p1
    x = conv_bn_act(x, params['stem_w'], *params['stem_bn'], kh=7, kw=7,
                    stride=2, pad=3, relu=True)
    x = maxpool_3x3_s2_p1(x)
    # residual stages
    for stage in params['stages']:
        for blk in stage:
            x = basic_block(x, blk)
    # adaptive avg pool(1) + flatten + fc, fused into one head kernel
    logits = avgpool_fc(x, params['fc_w'], params['fc_b'])
    return logits


if __name__ == "__main__":
    key = jax.random.PRNGKey(0)
    k_x, k_p = jax.random.split(key)
    x = jax.random.normal(k_x, IMG, jnp.float32)     # NCHW like PyTorch
    params = make_params(k_p)

    fwd = jax.jit(lambda inp: resnet_forward(inp, params))
    out = fwd(x)
    out = jax.block_until_ready(out)

    assert out.shape == (IMG[0], NUM_CLASSES), out.shape
    assert bool(jnp.all(jnp.isfinite(out)))
    print("KERNEL_OK")
</pallas_src>

<mosaic_0001>
module attributes {stable_mosaic.version = 11 : i64} {
  func.func @matmul_bn_act_kernel(%arg0: i32, %arg1: memref<512x147xbf16, #tpu.memory_space<vmem>>, %arg2: memref<147x8xbf16, #tpu.memory_space<vmem>>, %arg3: memref<1x8xf32, #tpu.memory_space<vmem>>, %arg4: memref<1x8xf32, #tpu.memory_space<vmem>>, %arg5: memref<512x8xbf16, #tpu.memory_space<vmem>>) attributes {dimension_semantics = [#tpu.dimension_semantics<parallel>], iteration_bounds = array<i64: 4>, scalar_prefetch = 0 : i64, scratch_operands = 0 : i64, tpu.core_type = #tpu.core_type<tc>, window_params = [{transform_indices = @transform_0, window_bounds = array<i64: 512, 147>}, {pipeline_mode = #tpu.pipeline_mode<synchronous>, transform_indices = @transform_1, window_bounds = array<i64: 147, 8>}, {pipeline_mode = #tpu.pipeline_mode<synchronous>, transform_indices = @transform_2, window_bounds = array<i64: 1, 8>}, {pipeline_mode = #tpu.pipeline_mode<synchronous>, transform_indices = @transform_3, window_bounds = array<i64: 1, 8>}, {transform_indices = @transform_4, window_bounds = array<i64: 512, 8>}]} {
    %c0 = arith.constant 0 : index
    %c0_0 = arith.constant 0 : index
    %0 = vector.load %arg1[%c0, %c0_0] : memref<512x147xbf16, #tpu.memory_space<vmem>>, vector<512x147xbf16>
    %c0_1 = arith.constant 0 : index
    %c0_2 = arith.constant 0 : index
    %1 = vector.load %arg2[%c0_1, %c0_2] : memref<147x8xbf16, #tpu.memory_space<vmem>>, vector<147x8xbf16>
    %cst = arith.constant dense<0.000000e+00> : vector<512x8xf32>
    %2 = tpu.matmul %0, %1, %cst {dimension_numbers = #tpu.dot_dimension_numbers<[1], [0], [0], [1], [0, 0, 1, 1], [], []>} : vector<512x147xbf16>, vector<147x8xbf16>, vector<512x8xf32> -> vector<512x8xf32>
    %c0_3 = arith.constant 0 : index
    %c0_4 = arith.constant 0 : index
    %3 = vector.load %arg3[%c0_3, %c0_4] : memref<1x8xf32, #tpu.memory_space<vmem>>, vector<1x8xf32>
    %4 = vector.broadcast %3 : vector<1x8xf32> to vector<512x8xf32>
    %5 = arith.mulf %2, %4 : vector<512x8xf32>
    %c0_5 = arith.constant 0 : index
    %c0_6 = arith.constant 0 : index
    %6 = vector.load %arg4[%c0_5, %c0_6] : memref<1x8xf32, #tpu.memory_space<vmem>>, vector<1x8xf32>
    %7 = vector.broadcast %6 : vector<1x8xf32> to vector<512x8xf32>
    %8 = arith.addf %5, %7 : vector<512x8xf32>
    %cst_7 = arith.constant 0.000000e+00 : f32
    %9 = vector.broadcast %cst_7 : f32 to vector<512x8xf32>
    %10 = arith.maximumf %8, %9 : vector<512x8xf32>
    %11 = arith.truncf %10 : vector<512x8xf32> to vector<512x8xbf16>
    %c0_8 = arith.constant 0 : index
    %c0_9 = arith.constant 0 : index
    %12 = vector.load %arg5[%c0_8, %c0_9] : memref<512x8xbf16, #tpu.memory_space<vmem>>, vector<512x8xbf16>
    tpu.vector_store %arg5[%c0_8, %c0_9], %11 {strides = array<i32>} : memref<512x8xbf16, #tpu.memory_space<vmem>>, vector<512x8xbf16>,
    return
  }
  func.func @transform_0(%arg0: i32) -> (i32, i32) {
    %c0_i32 = arith.constant 0 : i32
    %c0_i32_0 = arith.constant 0 : i32
    return %arg0, %c0_i32 : i32, i32
  }
  func.func @transform_1(%arg0: i32) -> (i32, i32) {
    %c0_i32 = arith.constant 0 : i32
    %c0_i32_0 = arith.constant 0 : i32
    %c0_i32_1 = arith.constant 0 : i32
    return %c0_i32, %c0_i32_0 : i32, i32
  }
  func.func @transform_2(%arg0: i32) -> (i32, i32) {
    %c0_i32 = arith.constant 0 : i32
    %c0_i32_0 = arith.constant 0 : i32
    %c0_i32_1 = arith.constant 0 : i32
    return %c0_i32, %c0_i32_0 : i32, i32
  }
  func.func @transform_3(%arg0: i32) -> (i32, i32) {
    %c0_i32 = arith.constant 0 : i32
    %c0_i32_0 = arith.constant 0 : i32
    %c0_i32_1 = arith.constant 0 : i32
    return %c0_i32, %c0_i32_0 : i32, i32
  }
  func.func @transform_4(%arg0: i32) -> (i32, i32) {
    %c0_i32 = arith.constant 0 : i32
    %c0_i32_0 = arith.constant 0 : i32
    return %arg0, %c0_i32 : i32, i32
  }
}

module attributes {stable_mosaic.version = 11 : i64} {
  func.func @maxpool_kernel(%arg0: i32, %arg1: memref<9x32x128xbf16, #tpu.memory_space<vmem>>, %arg2: memref<32x128xbf16, #tpu.memory_space<vmem>>) attributes {dimension_semantics = [#tpu.dimension_semantics<parallel>], iteration_bounds = array<i64: 1>, scalar_prefetch = 0 : i64, scratch_operands = 0 : i64, tpu.core_type = #tpu.core_type<tc>, window_params = [{transform_indices = @transform_0, window_bounds = array<i64: 9, 32, 128>}, {transform_indices = @transform_1, window_bounds = array<i64: 32, 128>}]} {
    %c0 = arith.constant 0 : index
    %c0_0 = arith.constant 0 : index
    %c0_1 = arith.constant 0 : index
    %0 = vector.load %arg1[%c0, %c0_0, %c0_1] : memref<9x32x128xbf16, #tpu.memory_space<vmem>>, vector<1x32x128xbf16>
    %1 = vector.shape_cast %0 : vector<1x32x128xbf16> to vector<32x128xbf16>
    %c1 = arith.constant 1 : index
    %c0_2 = arith.constant 0 : index
    %c0_3 = arith.constant 0 : index
    %2 = vector.load %arg1[%c1, %c0_2, %c0_3] : memref<9x32x128xbf16, #tpu.memory_space<vmem>>, vector<1x32x128xbf16>
    %3 = vector.shape_cast %2 : vector<1x32x128xbf16> to vector<32x128xbf16>
    %4 = arith.maximumf %1, %3 : vector<32x128xbf16>
    %c2 = arith.constant 2 : index
    %c0_4 = arith.constant 0 : index
    %c0_5 = arith.constant 0 : index
    %5 = vector.load %arg1[%c2, %c0_4, %c0_5] : memref<9x32x128xbf16, #tpu.memory_space<vmem>>, vector<1x32x128xbf16>
    %6 = vector.shape_cast %5 : vector<1x32x128xbf16> to vector<32x128xbf16>
    %7 = arith.maximumf %4, %6 : vector<32x128xbf16>
    %c3 = arith.constant 3 : index
    %c0_6 = arith.constant 0 : index
    %c0_7 = arith.constant 0 : index
    %8 = vector.load %arg1[%c3, %c0_6, %c0_7] : memref<9x32x128xbf16, #tpu.memory_space<vmem>>, vector<1x32x128xbf16>
    %9 = vector.shape_cast %8 : vector<1x32x128xbf16> to vector<32x128xbf16>
    %10 = arith.maximumf %7, %9 : vector<32x128xbf16>
    %c4 = arith.constant 4 : index
    %c0_8 = arith.constant 0 : index
    %c0_9 = arith.constant 0 : index
    %11 = vector.load %arg1[%c4, %c0_8, %c0_9] : memref<9x32x128xbf16, #tpu.memory_space<vmem>>, vector<1x32x128xbf16>
    %12 = vector.shape_cast %11 : vector<1x32x128xbf16> to vector<32x128xbf16>
    %13 = arith.maximumf %10, %12 : vector<32x128xbf16>
    %c5 = arith.constant 5 : index
    %c0_10 = arith.constant 0 : index
    %c0_11 = arith.constant 0 : index
    %14 = vector.load %arg1[%c5, %c0_10, %c0_11] : memref<9x32x128xbf16, #tpu.memory_space<vmem>>, vector<1x32x128xbf16>
    %15 = vector.shape_cast %14 : vector<1x32x128xbf16> to vector<32x128xbf16>
    %16 = arith.maximumf %13, %15 : vector<32x128xbf16>
    %c6 = arith.constant 6 : index
    %c0_12 = arith.constant 0 : index
    %c0_13 = arith.constant 0 : index
    %17 = vector.load %arg1[%c6, %c0_12, %c0_13] : memref<9x32x128xbf16, #tpu.memory_space<vmem>>, vector<1x32x128xbf16>
    %18 = vector.shape_cast %17 : vector<1x32x128xbf16> to vector<32x128xbf16>
    %19 = arith.maximumf %16, %18 : vector<32x128xbf16>
    %c7 = arith.constant 7 : index
    %c0_14 = arith.constant 0 : index
    %c0_15 = arith.constant 0 : index
    %20 = vector.load %arg1[%c7, %c0_14, %c0_15] : memref<9x32x128xbf16, #tpu.memory_space<vmem>>, vector<1x32x128xbf16>
    %21 = vector.shape_cast %20 : vector<1x32x128xbf16> to vector<32x128xbf16>
    %22 = arith.maximumf %19, %21 : vector<32x128xbf16>
    %c8 = arith.constant 8 : index
    %c0_16 = arith.constant 0 : index
    %c0_17 = arith.constant 0 : index
    %23 = vector.load %arg1[%c8, %c0_16, %c0_17] : memref<9x32x128xbf16, #tpu.memory_space<vmem>>, vector<1x32x128xbf16>
    %24 = vector.shape_cast %23 : vector<1x32x128xbf16> to vector<32x128xbf16>
    %25 = arith.maximumf %22, %24 : vector<32x128xbf16>
    %c0_18 = arith.constant 0 : index
    %c0_19 = arith.constant 0 : index
    %26 = vector.load %arg2[%c0_18, %c0_19] : memref<32x128xbf16, #tpu.memory_space<vmem>>, vector<32x128xbf16>
    tpu.vector_store %arg2[%c0_18, %c0_19], %25 {strides = array<i32>} : memref<32x128xbf16, #tpu.memory_space<vmem>>, vector<32x128xbf16>,
    return
  }
  func.func @transform_0(%arg0: i32) -> (i32, i32, i32) {
    %c0_i32 = arith.constant 0 : i32
    %c0_i32_0 = arith.constant 0 : i32
    %c0_i32_1 = arith.constant 0 : i32
    return %c0_i32, %arg0, %c0_i32_0 : i32, i32, i32
  }
  func.func @transform_1(%arg0: i32) -> (i32, i32) {
    %c0_i32 = arith.constant 0 : i32
    %c0_i32_0 = arith.constant 0 : i32
    return %arg0, %c0_i32 : i32, i32
  }
}

module attributes {stable_mosaic.version = 11 : i64} {
  func.func @matmul_bn_act_kernel(%arg0: i32, %arg1: memref<256x72xbf16, #tpu.memory_space<vmem>>, %arg2: memref<72x8xbf16, #tpu.memory_space<vmem>>, %arg3: memref<1x8xf32, #tpu.memory_space<vmem>>, %arg4: memref<1x8xf32, #tpu.memory_space<vmem>>, %arg5: memref<256x8xbf16, #tpu.memory_space<vmem>>) attributes {dimension_semantics = [#tpu.dimension_semantics<parallel>], iteration_bounds = array<i64: 2>, scalar_prefetch = 0 : i64, scratch_operands = 0 : i64, tpu.core_type = #tpu.core_type<tc>, window_params = [{transform_indices = @transform_0, window_bounds = array<i64: 256, 72>}, {pipeline_mode = #tpu.pipeline_mode<synchronous>, transform_indices = @transform_1, window_bounds = array<i64: 72, 8>}, {pipeline_mode = #tpu.pipeline_mode<synchronous>, transform_indices = @transform_2, window_bounds = array<i64: 1, 8>}, {pipeline_mode = #tpu.pipeline_mode<synchronous>, transform_indices = @transform_3, window_bounds = array<i64: 1, 8>}, {transform_indices = @transform_4, window_bounds = array<i64: 256, 8>}]} {
    %c0 = arith.constant 0 : index
    %c0_0 = arith.constant 0 : index
    %0 = vector.load %arg1[%c0, %c0_0] : memref<256x72xbf16, #tpu.memory_space<vmem>>, vector<256x72xbf16>
    %c0_1 = arith.constant 0 : index
    %c0_2 = arith.constant 0 : index
    %1 = vector.load %arg2[%c0_1, %c0_2] : memref<72x8xbf16, #tpu.memory_space<vmem>>, vector<72x8xbf16>
    %cst = arith.constant dense<0.000000e+00> : vector<256x8xf32>
    %2 = tpu.matmul %0, %1, %cst {dimension_numbers = #tpu.dot_dimension_numbers<[1], [0], [0], [1], [0, 0, 1, 1], [], []>} : vector<256x72xbf16>, vector<72x8xbf16>, vector<256x8xf32> -> vector<256x8xf32>
    %c0_3 = arith.constant 0 : index
    %c0_4 = arith.constant 0 : index
    %3 = vector.load %arg3[%c0_3, %c0_4] : memref<1x8xf32, #tpu.memory_space<vmem>>, vector<1x8xf32>
    %4 = vector.broadcast %3 : vector<1x8xf32> to vector<256x8xf32>
    %5 = arith.mulf %2, %4 : vector<256x8xf32>
    %c0_5 = arith.constant 0 : index
    %c0_6 = arith.constant 0 : index
    %6 = vector.load %arg4[%c0_5, %c0_6] : memref<1x8xf32, #tpu.memory_space<vmem>>, vector<1x8xf32>
    %7 = vector.broadcast %6 : vector<1x8xf32> to vector<256x8xf32>
    %8 = arith.addf %5, %7 : vector<256x8xf32>
    %cst_7 = arith.constant 0.000000e+00 : f32
    %9 = vector.broadcast %cst_7 : f32 to vector<256x8xf32>
    %10 = arith.maximumf %8, %9 : vector<256x8xf32>
    %11 = arith.truncf %10 : vector<256x8xf32> to vector<256x8xbf16>
    %c0_8 = arith.constant 0 : index
    %c0_9 = arith.constant 0 : index
    %12 = vector.load %arg5[%c0_8, %c0_9] : memref<256x8xbf16, #tpu.memory_space<vmem>>, vector<256x8xbf16>
    tpu.vector_store %arg5[%c0_8, %c0_9], %11 {strides = array<i32>} : memref<256x8xbf16, #tpu.memory_space<vmem>>, vector<256x8xbf16>,
    return
  }
  func.func @transform_0(%arg0: i32) -> (i32, i32) {
    %c0_i32 = arith.constant 0 : i32
    %c0_i32_0 = arith.constant 0 : i32
    return %arg0, %c0_i32 : i32, i32
  }
  func.func @transform_1(%arg0: i32) -> (i32, i32) {
    %c0_i32 = arith.constant 0 : i32
    %c0_i32_0 = arith.constant 0 : i32
    %c0_i32_1 = arith.constant 0 : i32
    return %c0_i32, %c0_i32_0 : i32, i32
  }
  func.func @transform_2(%arg0: i32) -> (i32, i32) {
    %c0_i32 = arith.constant 0 : i32
    %c0_i32_0 = arith.constant 0 : i32
    %c0_i32_1 = arith.constant 0 : i32
    return %c0_i32, %c0_i32_0 : i32, i32
  }
  func.func @transform_3(%arg0: i32) -> (i32, i32) {
    %c0_i32 = arith.constant 0 : i32
    %c0_i32_0 = arith.constant 0 : i32
    %c0_i32_1 = arith.constant 0 : i32
    return %c0_i32, %c0_i32_0 : i32, i32
  }
  func.func @transform_4(%arg0: i32) -> (i32, i32) {
    %c0_i32 = arith.constant 0 : i32
    %c0_i32_0 = arith.constant 0 : i32
    return %arg0, %c0_i32 : i32, i32
  }
}

module attributes {stable_mosaic.version = 11 : i64} {
  func.func @matmul_bn_act_res_kernel(%arg0: i32, %arg1: memref<256x72xbf16, #tpu.memory_space<vmem>>, %arg2: memref<72x8xbf16, #tpu.memory_space<vmem>>, %arg3: memref<1x8xf32, #tpu.memory_space<vmem>>, %arg4: memref<1x8xf32, #tpu.memory_space<vmem>>, %arg5: memref<256x8xbf16, #tpu.memory_space<vmem>>, %arg6: memref<256x8xbf16, #tpu.memory_space<vmem>>) attributes {dimension_semantics = [#tpu.dimension_semantics<parallel>], iteration_bounds = array<i64: 2>, scalar_prefetch = 0 : i64, scratch_operands = 0 : i64, tpu.core_type = #tpu.core_type<tc>, window_params = [{transform_indices = @transform_0, window_bounds = array<i64: 256, 72>}, {pipeline_mode = #tpu.pipeline_mode<synchronous>, transform_indices = @transform_1, window_bounds = array<i64: 72, 8>}, {pipeline_mode = #tpu.pipeline_mode<synchronous>, transform_indices = @transform_2, window_bounds = array<i64: 1, 8>}, {pipeline_mode = #tpu.pipeline_mode<synchronous>, transform_indices = @transform_3, window_bounds = array<i64: 1, 8>}, {transform_indices = @transform_4, window_bounds = array<i64: 256, 8>}, {transform_indices = @transform_5, window_bounds = array<i64: 256, 8>}]} {
    %c0 = arith.constant 0 : index
    %c0_0 = arith.constant 0 : index
    %0 = vector.load %arg1[%c0, %c0_0] : memref<256x72xbf16, #tpu.memory_space<vmem>>, vector<256x72xbf16>
    %c0_1 = arith.constant 0 : index
    %c0_2 = arith.constant 0 : index
    %1 = vector.load %arg2[%c0_1, %c0_2] : memref<72x8xbf16, #tpu.memory_space<vmem>>, vector<72x8xbf16>
    %cst = arith.constant dense<0.000000e+00> : vector<256x8xf32>
    %2 = tpu.matmul %0, %1, %cst {dimension_numbers = #tpu.dot_dimension_numbers<[1], [0], [0], [1], [0, 0, 1, 1], [], []>} : vector<256x72xbf16>, vector<72x8xbf16>, vector<256x8xf32> -> vector<256x8xf32>
    %c0_3 = arith.constant 0 : index
    %c0_4 = arith.constant 0 : index
    %3 = vector.load %arg3[%c0_3, %c0_4] : memref<1x8xf32, #tpu.memory_space<vmem>>, vector<1x8xf32>
    %4 = vector.broadcast %3 : vector<1x8xf32> to vector<256x8xf32>
    %5 = arith.mulf %2, %4 : vector<256x8xf32>
    %c0_5 = arith.constant 0 : index
    %c0_6 = arith.constant 0 : index
    %6 = vector.load %arg4[%c0_5, %c0_6] : memref<1x8xf32, #tpu.memory_space<vmem>>, vector<1x8xf32>
    %7 = vector.broadcast %6 : vector<1x8xf32> to vector<256x8xf32>
    %8 = arith.addf %5, %7 : vector<256x8xf32>
    %c0_7 = arith.constant 0 : index
    %c0_8 = arith.constant 0 : index
    %9 = vector.load %arg5[%c0_7, %c0_8] : memref<256x8xbf16, #tpu.memory_space<vmem>>, vector<256x8xbf16>
    %10 = arith.extf %9 : vector<256x8xbf16> to vector<256x8xf32>
    %11 = arith.addf %8, %10 : vector<256x8xf32>
    %cst_9 = arith.constant 0.000000e+00 : f32
    %12 = vector.broadcast %cst_9 : f32 to vector<256x8xf32>
    %13 = arith.maximumf %11, %12 : vector<256x8xf32>
    %14 = arith.truncf %13 : vector<256x8xf32> to vector<256x8xbf16>
    %c0_10 = arith.constant 0 : index
    %c0_11 = arith.constant 0 : index
    %15 = vector.load %arg6[%c0_10, %c0_11] : memref<256x8xbf16, #tpu.memory_space<vmem>>, vector<256x8xbf16>
    tpu.vector_store %arg6[%c0_10, %c0_11], %14 {strides = array<i32>} : memref<256x8xbf16, #tpu.memory_space<vmem>>, vector<256x8xbf16>,
    return
  }
  func.func @transform_0(%arg0: i32) -> (i32, i32) {
    %c0_i32 = arith.constant 0 : i32
    %c0_i32_0 = arith.constant 0 : i32
    return %arg0, %c0_i32 : i32, i32
  }
  func.func @transform_1(%arg0: i32) -> (i32, i32) {
    %c0_i32 = arith.constant 0 : i32
    %c0_i32_0 = arith.constant 0 : i32
    %c0_i32_1 = arith.constant 0 : i32
    return %c0_i32, %c0_i32_0 : i32, i32
  }
  func.func @transform_2(%arg0: i32) -> (i32, i32) {
    %c0_i32 = arith.constant 0 : i32
    %c0_i32_0 = arith.constant 0 : i32
    %c0_i32_1 = arith.constant 0 : i32
    return %c0_i32, %c0_i32_0 : i32, i32
  }
  func.func @transform_3(%arg0: i32) -> (i32, i32) {
    %c0_i32 = arith.constant 0 : i32
    %c0_i32_0 = arith.constant 0 : i32
    %c0_i32_1 = arith.constant 0 : i32
    return %c0_i32, %c0_i32_0 : i32, i32
  }
  func.func @transform_4(%arg0: i32) -> (i32, i32) {
    %c0_i32 = arith.constant 0 : i32
    %c0_i32_0 = arith.constant 0 : i32
    return %arg0, %c0_i32 : i32, i32
  }
  func.func @transform_5(%arg0: i32) -> (i32, i32) {
    %c0_i32 = arith.constant 0 : i32
    %c0_i32_0 = arith.constant 0 : i32
    return %arg0, %c0_i32 : i32, i32
  }
}

module attributes {stable_mosaic.version = 11 : i64} {
  func.func @matmul_bn_act_kernel(%arg0: i32, %arg1: memref<128x72xbf16, #tpu.memory_space<vmem>>, %arg2: memref<72x16xbf16, #tpu.memory_space<vmem>>, %arg3: memref<1x16xf32, #tpu.memory_space<vmem>>, %arg4: memref<1x16xf32, #tpu.memory_space<vmem>>, %arg5: memref<128x16xbf16, #tpu.memory_space<vmem>>) attributes {dimension_semantics = [#tpu.dimension_semantics<parallel>], iteration_bounds = array<i64: 1>, scalar_prefetch = 0 : i64, scratch_operands = 0 : i64, tpu.core_type = #tpu.core_type<tc>, window_params = [{transform_indices = @transform_0, window_bounds = array<i64: 128, 72>}, {pipeline_mode = #tpu.pipeline_mode<synchronous>, transform_indices = @transform_1, window_bounds = array<i64: 72, 16>}, {pipeline_mode = #tpu.pipeline_mode<synchronous>, transform_indices = @transform_2, window_bounds = array<i64: 1, 16>}, {pipeline_mode = #tpu.pipeline_mode<synchronous>, transform_indices = @transform_3, window_bounds = array<i64: 1, 16>}, {transform_indices = @transform_4, window_bounds = array<i64: 128, 16>}]} {
    %c0 = arith.constant 0 : index
    %c0_0 = arith.constant 0 : index
    %0 = vector.load %arg1[%c0, %c0_0] : memref<128x72xbf16, #tpu.memory_space<vmem>>, vector<128x72xbf16>
    %c0_1 = arith.constant 0 : index
    %c0_2 = arith.constant 0 : index
    %1 = vector.load %arg2[%c0_1, %c0_2] : memref<72x16xbf16, #tpu.memory_space<vmem>>, vector<72x16xbf16>
    %cst = arith.constant dense<0.000000e+00> : vector<128x16xf32>
    %2 = tpu.matmul %0, %1, %cst {dimension_numbers = #tpu.dot_dimension_numbers<[1], [0], [0], [1], [0, 0, 1, 1], [], []>} : vector<128x72xbf16>, vector<72x16xbf16>, vector<128x16xf32> -> vector<128x16xf32>
    %c0_3 = arith.constant 0 : index
    %c0_4 = arith.constant 0 : index
    %3 = vector.load %arg3[%c0_3, %c0_4] : memref<1x16xf32, #tpu.memory_space<vmem>>, vector<1x16xf32>
    %4 = vector.broadcast %3 : vector<1x16xf32> to vector<128x16xf32>
    %5 = arith.mulf %2, %4 : vector<128x16xf32>
    %c0_5 = arith.constant 0 : index
    %c0_6 = arith.constant 0 : index
    %6 = vector.load %arg4[%c0_5, %c0_6] : memref<1x16xf32, #tpu.memory_space<vmem>>, vector<1x16xf32>
    %7 = vector.broadcast %6 : vector<1x16xf32> to vector<128x16xf32>
    %8 = arith.addf %5, %7 : vector<128x16xf32>
    %cst_7 = arith.constant 0.000000e+00 : f32
    %9 = vector.broadcast %cst_7 : f32 to vector<128x16xf32>
    %10 = arith.maximumf %8, %9 : vector<128x16xf32>
    %11 = arith.truncf %10 : vector<128x16xf32> to vector<128x16xbf16>
    %c0_8 = arith.constant 0 : index
    %c0_9 = arith.constant 0 : index
    %12 = vector.load %arg5[%c0_8, %c0_9] : memref<128x16xbf16, #tpu.memory_space<vmem>>, vector<128x16xbf16>
    tpu.vector_store %arg5[%c0_8, %c0_9], %11 {strides = array<i32>} : memref<128x16xbf16, #tpu.memory_space<vmem>>, vector<128x16xbf16>,
    return
  }
  func.func @transform_0(%arg0: i32) -> (i32, i32) {
    %c0_i32 = arith.constant 0 : i32
    %c0_i32_0 = arith.constant 0 : i32
    return %arg0, %c0_i32 : i32, i32
  }
  func.func @transform_1(%arg0: i32) -> (i32, i32) {
    %c0_i32 = arith.constant 0 : i32
    %c0_i32_0 = arith.constant 0 : i32
    %c0_i32_1 = arith.constant 0 : i32
    return %c0_i32, %c0_i32_0 : i32, i32
  }
  func.func @transform_2(%arg0: i32) -> (i32, i32) {
    %c0_i32 = arith.constant 0 : i32
    %c0_i32_0 = arith.constant 0 : i32
    %c0_i32_1 = arith.constant 0 : i32
    return %c0_i32, %c0_i32_0 : i32, i32
  }
  func.func @transform_3(%arg0: i32) -> (i32, i32) {
    %c0_i32 = arith.constant 0 : i32
    %c0_i32_0 = arith.constant 0 : i32
    %c0_i32_1 = arith.constant 0 : i32
    return %c0_i32, %c0_i32_0 : i32, i32
  }
  func.func @transform_4(%arg0: i32) -> (i32, i32) {
    %c0_i32 = arith.constant 0 : i32
    %c0_i32_0 = arith.constant 0 : i32
    return %arg0, %c0_i32 : i32, i32
  }
}

module attributes {stable_mosaic.version = 11 : i64} {
  func.func @matmul_bn_act_kernel(%arg0: i32, %arg1: memref<128x8xbf16, #tpu.memory_space<vmem>>, %arg2: memref<8x16xbf16, #tpu.memory_space<vmem>>, %arg3: memref<1x16xf32, #tpu.memory_space<vmem>>, %arg4: memref<1x16xf32, #tpu.memory_space<vmem>>, %arg5: memref<128x16xbf16, #tpu.memory_space<vmem>>) attributes {dimension_semantics = [#tpu.dimension_semantics<parallel>], iteration_bounds = array<i64: 1>, scalar_prefetch = 0 : i64, scratch_operands = 0 : i64, tpu.core_type = #tpu.core_type<tc>, window_params = [{transform_indices = @transform_0, window_bounds = array<i64: 128, 8>}, {pipeline_mode = #tpu.pipeline_mode<synchronous>, transform_indices = @transform_1, window_bounds = array<i64: 8, 16>}, {pipeline_mode = #tpu.pipeline_mode<synchronous>, transform_indices = @transform_2, window_bounds = array<i64: 1, 16>}, {pipeline_mode = #tpu.pipeline_mode<synchronous>, transform_indices = @transform_3, window_bounds = array<i64: 1, 16>}, {transform_indices = @transform_4, window_bounds = array<i64: 128, 16>}]} {
    %c0 = arith.constant 0 : index
    %c0_0 = arith.constant 0 : index
    %0 = vector.load %arg1[%c0, %c0_0] : memref<128x8xbf16, #tpu.memory_space<vmem>>, vector<128x8xbf16>
    %c0_1 = arith.constant 0 : index
    %c0_2 = arith.constant 0 : index
    %1 = vector.load %arg2[%c0_1, %c0_2] : memref<8x16xbf16, #tpu.memory_space<vmem>>, vector<8x16xbf16>
    %cst = arith.constant dense<0.000000e+00> : vector<128x16xf32>
    %2 = tpu.matmul %0, %1, %cst {dimension_numbers = #tpu.dot_dimension_numbers<[1], [0], [0], [1], [0, 0, 1, 1], [], []>} : vector<128x8xbf16>, vector<8x16xbf16>, vector<128x16xf32> -> vector<128x16xf32>
    %c0_3 = arith.constant 0 : index
    %c0_4 = arith.constant 0 : index
    %3 = vector.load %arg3[%c0_3, %c0_4] : memref<1x16xf32, #tpu.memory_space<vmem>>, vector<1x16xf32>
    %4 = vector.broadcast %3 : vector<1x16xf32> to vector<128x16xf32>
    %5 = arith.mulf %2, %4 : vector<128x16xf32>
    %c0_5 = arith.constant 0 : index
    %c0_6 = arith.constant 0 : index
    %6 = vector.load %arg4[%c0_5, %c0_6] : memref<1x16xf32, #tpu.memory_space<vmem>>, vector<1x16xf32>
    %7 = vector.broadcast %6 : vector<1x16xf32> to vector<128x16xf32>
    %8 = arith.addf %5, %7 : vector<128x16xf32>
    %9 = arith.truncf %8 : vector<128x16xf32> to vector<128x16xbf16>
    %c0_7 = arith.constant 0 : index
    %c0_8 = arith.constant 0 : index
    %10 = vector.load %arg5[%c0_7, %c0_8] : memref<128x16xbf16, #tpu.memory_space<vmem>>, vector<128x16xbf16>
    tpu.vector_store %arg5[%c0_7, %c0_8], %9 {strides = array<i32>} : memref<128x16xbf16, #tpu.memory_space<vmem>>, vector<128x16xbf16>,
    return
  }
  func.func @transform_0(%arg0: i32) -> (i32, i32) {
    %c0_i32 = arith.constant 0 : i32
    %c0_i32_0 = arith.constant 0 : i32
    return %arg0, %c0_i32 : i32, i32
  }
  func.func @transform_1(%arg0: i32) -> (i32, i32) {
    %c0_i32 = arith.constant 0 : i32
    %c0_i32_0 = arith.constant 0 : i32
    %c0_i32_1 = arith.constant 0 : i32
    return %c0_i32, %c0_i32_0 : i32, i32
  }
  func.func @transform_2(%arg0: i32) -> (i32, i32) {
    %c0_i32 = arith.constant 0 : i32
    %c0_i32_0 = arith.constant 0 : i32
    %c0_i32_1 = arith.constant 0 : i32
    return %c0_i32, %c0_i32_0 : i32, i32
  }
  func.func @transform_3(%arg0: i32) -> (i32, i32) {
    %c0_i32 = arith.constant 0 : i32
    %c0_i32_0 = arith.constant 0 : i32
    %c0_i32_1 = arith.constant 0 : i32
    return %c0_i32, %c0_i32_0 : i32, i32
  }
  func.func @transform_4(%arg0: i32) -> (i32, i32) {
    %c0_i32 = arith.constant 0 : i32
    %c0_i32_0 = arith.constant 0 : i32
    return %arg0, %c0_i32 : i32, i32
  }
}

module attributes {stable_mosaic.version = 11 : i64} {
  func.func @matmul_bn_act_res_kernel(%arg0: i32, %arg1: memref<128x144xbf16, #tpu.memory_space<vmem>>, %arg2: memref<144x16xbf16, #tpu.memory_space<vmem>>, %arg3: memref<1x16xf32, #tpu.memory_space<vmem>>, %arg4: memref<1x16xf32, #tpu.memory_space<vmem>>, %arg5: memref<128x16xbf16, #tpu.memory_space<vmem>>, %arg6: memref<128x16xbf16, #tpu.memory_space<vmem>>) attributes {dimension_semantics = [#tpu.dimension_semantics<parallel>], iteration_bounds = array<i64: 1>, scalar_prefetch = 0 : i64, scratch_operands = 0 : i64, tpu.core_type = #tpu.core_type<tc>, window_params = [{transform_indices = @transform_0, window_bounds = array<i64: 128, 144>}, {pipeline_mode = #tpu.pipeline_mode<synchronous>, transform_indices = @transform_1, window_bounds = array<i64: 144, 16>}, {pipeline_mode = #tpu.pipeline_mode<synchronous>, transform_indices = @transform_2, window_bounds = array<i64: 1, 16>}, {pipeline_mode = #tpu.pipeline_mode<synchronous>, transform_indices = @transform_3, window_bounds = array<i64: 1, 16>}, {transform_indices = @transform_4, window_bounds = array<i64: 128, 16>}, {transform_indices = @transform_5, window_bounds = array<i64: 128, 16>}]} {
    %c0 = arith.constant 0 : index
    %c0_0 = arith.constant 0 : index
    %0 = vector.load %arg1[%c0, %c0_0] : memref<128x144xbf16, #tpu.memory_space<vmem>>, vector<128x144xbf16>
    %c0_1 = arith.constant 0 : index
    %c0_2 = arith.constant 0 : index
    %1 = vector.load %arg2[%c0_1, %c0_2] : memref<144x16xbf16, #tpu.memory_space<vmem>>, vector<144x16xbf16>
    %cst = arith.constant dense<0.000000e+00> : vector<128x16xf32>
    %2 = tpu.matmul %0, %1, %cst {dimension_numbers = #tpu.dot_dimension_numbers<[1], [0], [0], [1], [0, 0, 1, 1], [], []>} : vector<128x144xbf16>, vector<144x16xbf16>, vector<128x16xf32> -> vector<128x16xf32>
    %c0_3 = arith.constant 0 : index
    %c0_4 = arith.constant 0 : index
    %3 = vector.load %arg3[%c0_3, %c0_4] : memref<1x16xf32, #tpu.memory_space<vmem>>, vector<1x16xf32>
    %4 = vector.broadcast %3 : vector<1x16xf32> to vector<128x16xf32>
    %5 = arith.mulf %2, %4 : vector<128x16xf32>
    %c0_5 = arith.constant 0 : index
    %c0_6 = arith.constant 0 : index
    %6 = vector.load %arg4[%c0_5, %c0_6] : memref<1x16xf32, #tpu.memory_space<vmem>>, vector<1x16xf32>
    %7 = vector.broadcast %6 : vector<1x16xf32> to vector<128x16xf32>
    %8 = arith.addf %5, %7 : vector<128x16xf32>
    %c0_7 = arith.constant 0 : index
    %c0_8 = arith.constant 0 : index
    %9 = vector.load %arg5[%c0_7, %c0_8] : memref<128x16xbf16, #tpu.memory_space<vmem>>, vector<128x16xbf16>
    %10 = arith.extf %9 : vector<128x16xbf16> to vector<128x16xf32>
    %11 = arith.addf %8, %10 : vector<128x16xf32>
    %cst_9 = arith.constant 0.000000e+00 : f32
    %12 = vector.broadcast %cst_9 : f32 to vector<128x16xf32>
    %13 = arith.maximumf %11, %12 : vector<128x16xf32>
    %14 = arith.truncf %13 : vector<128x16xf32> to vector<128x16xbf16>
    %c0_10 = arith.constant 0 : index
    %c0_11 = arith.constant 0 : index
    %15 = vector.load %arg6[%c0_10, %c0_11] : memref<128x16xbf16, #tpu.memory_space<vmem>>, vector<128x16xbf16>
    tpu.vector_store %arg6[%c0_10, %c0_11], %14 {strides = array<i32>} : memref<128x16xbf16, #tpu.memory_space<vmem>>, vector<128x16xbf16>,
    return
  }
  func.func @transform_0(%arg0: i32) -> (i32, i32) {
    %c0_i32 = arith.constant 0 : i32
    %c0_i32_0 = arith.constant 0 : i32
    return %arg0, %c0_i32 : i32, i32
  }
  func.func @transform_1(%arg0: i32) -> (i32, i32) {
    %c0_i32 = arith.constant 0 : i32
    %c0_i32_0 = arith.constant 0 : i32
    %c0_i32_1 = arith.constant 0 : i32
    return %c0_i32, %c0_i32_0 : i32, i32
  }
  func.func @transform_2(%arg0: i32) -> (i32, i32) {
    %c0_i32 = arith.constant 0 : i32
    %c0_i32_0 = arith.constant 0 : i32
    %c0_i32_1 = arith.constant 0 : i32
    return %c0_i32, %c0_i32_0 : i32, i32
  }
  func.func @transform_3(%arg0: i32) -> (i32, i32) {
    %c0_i32 = arith.constant 0 : i32
    %c0_i32_0 = arith.constant 0 : i32
    %c0_i32_1 = arith.constant 0 : i32
    return %c0_i32, %c0_i32_0 : i32, i32
  }
  func.func @transform_4(%arg0: i32) -> (i32, i32) {
    %c0_i32 = arith.constant 0 : i32
    %c0_i32_0 = arith.constant 0 : i32
    return %arg0, %c0_i32 : i32, i32
  }
  func.func @transform_5(%arg0: i32) -> (i32, i32) {
    %c0_i32 = arith.constant 0 : i32
    %c0_i32_0 = arith.constant 0 : i32
    return %arg0, %c0_i32 : i32, i32
  }
}

module attributes {stable_mosaic.version = 11 : i64} {
  func.func @matmul_bn_act_kernel(%arg0: i32, %arg1: memref<128x144xbf16, #tpu.memory_space<vmem>>, %arg2: memref<144x16xbf16, #tpu.memory_space<vmem>>, %arg3: memref<1x16xf32, #tpu.memory_space<vmem>>, %arg4: memref<1x16xf32, #tpu.memory_space<vmem>>, %arg5: memref<128x16xbf16, #tpu.memory_space<vmem>>) attributes {dimension_semantics = [#tpu.dimension_semantics<parallel>], iteration_bounds = array<i64: 1>, scalar_prefetch = 0 : i64, scratch_operands = 0 : i64, tpu.core_type = #tpu.core_type<tc>, window_params = [{transform_indices = @transform_0, window_bounds = array<i64: 128, 144>}, {pipeline_mode = #tpu.pipeline_mode<synchronous>, transform_indices = @transform_1, window_bounds = array<i64: 144, 16>}, {pipeline_mode = #tpu.pipeline_mode<synchronous>, transform_indices = @transform_2, window_bounds = array<i64: 1, 16>}, {pipeline_mode = #tpu.pipeline_mode<synchronous>, transform_indices = @transform_3, window_bounds = array<i64: 1, 16>}, {transform_indices = @transform_4, window_bounds = array<i64: 128, 16>}]} {
    %c0 = arith.constant 0 : index
    %c0_0 = arith.constant 0 : index
    %0 = vector.load %arg1[%c0, %c0_0] : memref<128x144xbf16, #tpu.memory_space<vmem>>, vector<128x144xbf16>
    %c0_1 = arith.constant 0 : index
    %c0_2 = arith.constant 0 : index
    %1 = vector.load %arg2[%c0_1, %c0_2] : memref<144x16xbf16, #tpu.memory_space<vmem>>, vector<144x16xbf16>
    %cst = arith.constant dense<0.000000e+00> : vector<128x16xf32>
    %2 = tpu.matmul %0, %1, %cst {dimension_numbers = #tpu.dot_dimension_numbers<[1], [0], [0], [1], [0, 0, 1, 1], [], []>} : vector<128x144xbf16>, vector<144x16xbf16>, vector<128x16xf32> -> vector<128x16xf32>
    %c0_3 = arith.constant 0 : index
    %c0_4 = arith.constant 0 : index
    %3 = vector.load %arg3[%c0_3, %c0_4] : memref<1x16xf32, #tpu.memory_space<vmem>>, vector<1x16xf32>
    %4 = vector.broadcast %3 : vector<1x16xf32> to vector<128x16xf32>
    %5 = arith.mulf %2, %4 : vector<128x16xf32>
    %c0_5 = arith.constant 0 : index
    %c0_6 = arith.constant 0 : index
    %6 = vector.load %arg4[%c0_5, %c0_6] : memref<1x16xf32, #tpu.memory_space<vmem>>, vector<1x16xf32>
    %7 = vector.broadcast %6 : vector<1x16xf32> to vector<128x16xf32>
    %8 = arith.addf %5, %7 : vector<128x16xf32>
    %cst_7 = arith.constant 0.000000e+00 : f32
    %9 = vector.broadcast %cst_7 : f32 to vector<128x16xf32>
    %10 = arith.maximumf %8, %9 : vector<128x16xf32>
    %11 = arith.truncf %10 : vector<128x16xf32> to vector<128x16xbf16>
    %c0_8 = arith.constant 0 : index
    %c0_9 = arith.constant 0 : index
    %12 = vector.load %arg5[%c0_8, %c0_9] : memref<128x16xbf16, #tpu.memory_space<vmem>>, vector<128x16xbf16>
    tpu.vector_store %arg5[%c0_8, %c0_9], %11 {strides = array<i32>} : memref<128x16xbf16, #tpu.memory_space<vmem>>, vector<128x16xbf16>,
    return
  }
  func.func @transform_0(%arg0: i32) -> (i32, i32) {
    %c0_i32 = arith.constant 0 : i32
    %c0_i32_0 = arith.constant 0 : i32
    return %arg0, %c0_i32 : i32, i32
  }
  func.func @transform_1(%arg0: i32) -> (i32, i32) {
    %c0_i32 = arith.constant 0 : i32
    %c0_i32_0 = arith.constant 0 : i32
    %c0_i32_1 = arith.constant 0 : i32
    return %c0_i32, %c0_i32_0 : i32, i32
  }
  func.func @transform_2(%arg0: i32) -> (i32, i32) {
    %c0_i32 = arith.constant 0 : i32
    %c0_i32_0 = arith.constant 0 : i32
    %c0_i32_1 = arith.constant 0 : i32
    return %c0_i32, %c0_i32_0 : i32, i32
  }
  func.func @transform_3(%arg0: i32) -> (i32, i32) {
    %c0_i32 = arith.constant 0 : i32
    %c0_i32_0 = arith.constant 0 : i32
    %c0_i32_1 = arith.constant 0 : i32
    return %c0_i32, %c0_i32_0 : i32, i32
  }
  func.func @transform_4(%arg0: i32) -> (i32, i32) {
    %c0_i32 = arith.constant 0 : i32
    %c0_i32_0 = arith.constant 0 : i32
    return %arg0, %c0_i32 : i32, i32
  }
}

module attributes {stable_mosaic.version = 11 : i64} {
  func.func @matmul_bn_act_kernel(%arg0: i32, %arg1: memref<32x144xbf16, #tpu.memory_space<vmem>>, %arg2: memref<144x32xbf16, #tpu.memory_space<vmem>>, %arg3: memref<1x32xf32, #tpu.memory_space<vmem>>, %arg4: memref<1x32xf32, #tpu.memory_space<vmem>>, %arg5: memref<32x32xbf16, #tpu.memory_space<vmem>>) attributes {dimension_semantics = [#tpu.dimension_semantics<parallel>], iteration_bounds = array<i64: 1>, scalar_prefetch = 0 : i64, scratch_operands = 0 : i64, tpu.core_type = #tpu.core_type<tc>, window_params = [{transform_indices = @transform_0, window_bounds = array<i64: 32, 144>}, {pipeline_mode = #tpu.pipeline_mode<synchronous>, transform_indices = @transform_1, window_bounds = array<i64: 144, 32>}, {pipeline_mode = #tpu.pipeline_mode<synchronous>, transform_indices = @transform_2, window_bounds = array<i64: 1, 32>}, {pipeline_mode = #tpu.pipeline_mode<synchronous>, transform_indices = @transform_3, window_bounds = array<i64: 1, 32>}, {transform_indices = @transform_4, window_bounds = array<i64: 32, 32>}]} {
    %c0 = arith.constant 0 : index
    %c0_0 = arith.constant 0 : index
    %0 = vector.load %arg1[%c0, %c0_0] : memref<32x144xbf16, #tpu.memory_space<vmem>>, vector<32x144xbf16>
    %c0_1 = arith.constant 0 : index
    %c0_2 = arith.constant 0 : index
    %1 = vector.load %arg2[%c0_1, %c0_2] : memref<144x32xbf16, #tpu.memory_space<vmem>>, vector<144x32xbf16>
    %cst = arith.constant dense<0.000000e+00> : vector<32x32xf32>
    %2 = tpu.matmul %0, %1, %cst {dimension_numbers = #tpu.dot_dimension_numbers<[1], [0], [0], [1], [0, 0, 1, 1], [], []>} : vector<32x144xbf16>, vector<144x32xbf16>, vector<32x32xf32> -> vector<32x32xf32>
    %c0_3 = arith.constant 0 : index
    %c0_4 = arith.constant 0 : index
    %3 = vector.load %arg3[%c0_3, %c0_4] : memref<1x32xf32, #tpu.memory_space<vmem>>, vector<1x32xf32>
    %4 = vector.broadcast %3 : vector<1x32xf32> to vector<32x32xf32>
    %5 = arith.mulf %2, %4 : vector<32x32xf32>
    %c0_5 = arith.constant 0 : index
    %c0_6 = arith.constant 0 : index
    %6 = vector.load %arg4[%c0_5, %c0_6] : memref<1x32xf32, #tpu.memory_space<vmem>>, vector<1x32xf32>
    %7 = vector.broadcast %6 : vector<1x32xf32> to vector<32x32xf32>
    %8 = arith.addf %5, %7 : vector<32x32xf32>
    %cst_7 = arith.constant 0.000000e+00 : f32
    %9 = vector.broadcast %cst_7 : f32 to vector<32x32xf32>
    %10 = arith.maximumf %8, %9 : vector<32x32xf32>
    %11 = arith.truncf %10 : vector<32x32xf32> to vector<32x32xbf16>
    %c0_8 = arith.constant 0 : index
    %c0_9 = arith.constant 0 : index
    %12 = vector.load %arg5[%c0_8, %c0_9] : memref<32x32xbf16, #tpu.memory_space<vmem>>, vector<32x32xbf16>
    tpu.vector_store %arg5[%c0_8, %c0_9], %11 {strides = array<i32>} : memref<32x32xbf16, #tpu.memory_space<vmem>>, vector<32x32xbf16>,
    return
  }
  func.func @transform_0(%arg0: i32) -> (i32, i32) {
    %c0_i32 = arith.constant 0 : i32
    %c0_i32_0 = arith.constant 0 : i32
    return %arg0, %c0_i32 : i32, i32
  }
  func.func @transform_1(%arg0: i32) -> (i32, i32) {
    %c0_i32 = arith.constant 0 : i32
    %c0_i32_0 = arith.constant 0 : i32
    %c0_i32_1 = arith.constant 0 : i32
    return %c0_i32, %c0_i32_0 : i32, i32
  }
  func.func @transform_2(%arg0: i32) -> (i32, i32) {
    %c0_i32 = arith.constant 0 : i32
    %c0_i32_0 = arith.constant 0 : i32
    %c0_i32_1 = arith.constant 0 : i32
    return %c0_i32, %c0_i32_0 : i32, i32
  }
  func.func @transform_3(%arg0: i32) -> (i32, i32) {
    %c0_i32 = arith.constant 0 : i32
    %c0_i32_0 = arith.constant 0 : i32
    %c0_i32_1 = arith.constant 0 : i32
    return %c0_i32, %c0_i32_0 : i32, i32
  }
  func.func @transform_4(%arg0: i32) -> (i32, i32) {
    %c0_i32 = arith.constant 0 : i32
    %c0_i32_0 = arith.constant 0 : i32
    return %arg0, %c0_i32 : i32, i32
  }
}

module attributes {stable_mosaic.version = 11 : i64} {
  func.func @matmul_bn_act_kernel(%arg0: i32, %arg1: memref<32x16xbf16, #tpu.memory_space<vmem>>, %arg2: memref<16x32xbf16, #tpu.memory_space<vmem>>, %arg3: memref<1x32xf32, #tpu.memory_space<vmem>>, %arg4: memref<1x32xf32, #tpu.memory_space<vmem>>, %arg5: memref<32x32xbf16, #tpu.memory_space<vmem>>) attributes {dimension_semantics = [#tpu.dimension_semantics<parallel>], iteration_bounds = array<i64: 1>, scalar_prefetch = 0 : i64, scratch_operands = 0 : i64, tpu.core_type = #tpu.core_type<tc>, window_params = [{transform_indices = @transform_0, window_bounds = array<i64: 32, 16>}, {pipeline_mode = #tpu.pipeline_mode<synchronous>, transform_indices = @transform_1, window_bounds = array<i64: 16, 32>}, {pipeline_mode = #tpu.pipeline_mode<synchronous>, transform_indices = @transform_2, window_bounds = array<i64: 1, 32>}, {pipeline_mode = #tpu.pipeline_mode<synchronous>, transform_indices = @transform_3, window_bounds = array<i64: 1, 32>}, {transform_indices = @transform_4, window_bounds = array<i64: 32, 32>}]} {
    %c0 = arith.constant 0 : index
    %c0_0 = arith.constant 0 : index
    %0 = vector.load %arg1[%c0, %c0_0] : memref<32x16xbf16, #tpu.memory_space<vmem>>, vector<32x16xbf16>
    %c0_1 = arith.constant 0 : index
    %c0_2 = arith.constant 0 : index
    %1 = vector.load %arg2[%c0_1, %c0_2] : memref<16x32xbf16, #tpu.memory_space<vmem>>, vector<16x32xbf16>
    %cst = arith.constant dense<0.000000e+00> : vector<32x32xf32>
    %2 = tpu.matmul %0, %1, %cst {dimension_numbers = #tpu.dot_dimension_numbers<[1], [0], [0], [1], [0, 0, 1, 1], [], []>} : vector<32x16xbf16>, vector<16x32xbf16>, vector<32x32xf32> -> vector<32x32xf32>
    %c0_3 = arith.constant 0 : index
    %c0_4 = arith.constant 0 : index
    %3 = vector.load %arg3[%c0_3, %c0_4] : memref<1x32xf32, #tpu.memory_space<vmem>>, vector<1x32xf32>
    %4 = vector.broadcast %3 : vector<1x32xf32> to vector<32x32xf32>
    %5 = arith.mulf %2, %4 : vector<32x32xf32>
    %c0_5 = arith.constant 0 : index
    %c0_6 = arith.constant 0 : index
    %6 = vector.load %arg4[%c0_5, %c0_6] : memref<1x32xf32, #tpu.memory_space<vmem>>, vector<1x32xf32>
    %7 = vector.broadcast %6 : vector<1x32xf32> to vector<32x32xf32>
    %8 = arith.addf %5, %7 : vector<32x32xf32>
    %9 = arith.truncf %8 : vector<32x32xf32> to vector<32x32xbf16>
    %c0_7 = arith.constant 0 : index
    %c0_8 = arith.constant 0 : index
    %10 = vector.load %arg5[%c0_7, %c0_8] : memref<32x32xbf16, #tpu.memory_space<vmem>>, vector<32x32xbf16>
    tpu.vector_store %arg5[%c0_7, %c0_8], %9 {strides = array<i32>} : memref<32x32xbf16, #tpu.memory_space<vmem>>, vector<32x32xbf16>,
    return
  }
  func.func @transform_0(%arg0: i32) -> (i32, i32) {
    %c0_i32 = arith.constant 0 : i32
    %c0_i32_0 = arith.constant 0 : i32
    return %arg0, %c0_i32 : i32, i32
  }
  func.func @transform_1(%arg0: i32) -> (i32, i32) {
    %c0_i32 = arith.constant 0 : i32
    %c0_i32_0 = arith.constant 0 : i32
    %c0_i32_1 = arith.constant 0 : i32
    return %c0_i32, %c0_i32_0 : i32, i32
  }
  func.func @transform_2(%arg0: i32) -> (i32, i32) {
    %c0_i32 = arith.constant 0 : i32
    %c0_i32_0 = arith.constant 0 : i32
    %c0_i32_1 = arith.constant 0 : i32
    return %c0_i32, %c0_i32_0 : i32, i32
  }
  func.func @transform_3(%arg0: i32) -> (i32, i32) {
    %c0_i32 = arith.constant 0 : i32
    %c0_i32_0 = arith.constant 0 : i32
    %c0_i32_1 = arith.constant 0 : i32
    return %c0_i32, %c0_i32_0 : i32, i32
  }
  func.func @transform_4(%arg0: i32) -> (i32, i32) {
    %c0_i32 = arith.constant 0 : i32
    %c0_i32_0 = arith.constant 0 : i32
    return %arg0, %c0_i32 : i32, i32
  }
}

module attributes {stable_mosaic.version = 11 : i64} {
  func.func @matmul_bn_act_res_kernel(%arg0: i32, %arg1: memref<32x288xbf16, #tpu.memory_space<vmem>>, %arg2: memref<288x32xbf16, #tpu.memory_space<vmem>>, %arg3: memref<1x32xf32, #tpu.memory_space<vmem>>, %arg4: memref<1x32xf32, #tpu.memory_space<vmem>>, %arg5: memref<32x32xbf16, #tpu.memory_space<vmem>>, %arg6: memref<32x32xbf16, #tpu.memory_space<vmem>>) attributes {dimension_semantics = [#tpu.dimension_semantics<parallel>], iteration_bounds = array<i64: 1>, scalar_prefetch = 0 : i64, scratch_operands = 0 : i64, tpu.core_type = #tpu.core_type<tc>, window_params = [{transform_indices = @transform_0, window_bounds = array<i64: 32, 288>}, {pipeline_mode = #tpu.pipeline_mode<synchronous>, transform_indices = @transform_1, window_bounds = array<i64: 288, 32>}, {pipeline_mode = #tpu.pipeline_mode<synchronous>, transform_indices = @transform_2, window_bounds = array<i64: 1, 32>}, {pipeline_mode = #tpu.pipeline_mode<synchronous>, transform_indices = @transform_3, window_bounds = array<i64: 1, 32>}, {transform_indices = @transform_4, window_bounds = array<i64: 32, 32>}, {transform_indices = @transform_5, window_bounds = array<i64: 32, 32>}]} {
    %c0 = arith.constant 0 : index
    %c0_0 = arith.constant 0 : index
    %0 = vector.load %arg1[%c0, %c0_0] : memref<32x288xbf16, #tpu.memory_space<vmem>>, vector<32x288xbf16>
    %c0_1 = arith.constant 0 : index
    %c0_2 = arith.constant 0 : index
    %1 = vector.load %arg2[%c0_1, %c0_2] : memref<288x32xbf16, #tpu.memory_space<vmem>>, vector<288x32xbf16>
    %cst = arith.constant dense<0.000000e+00> : vector<32x32xf32>
    %2 = tpu.matmul %0, %1, %cst {dimension_numbers = #tpu.dot_dimension_numbers<[1], [0], [0], [1], [0, 0, 1, 1], [], []>} : vector<32x288xbf16>, vector<288x32xbf16>, vector<32x32xf32> -> vector<32x32xf32>
    %c0_3 = arith.constant 0 : index
    %c0_4 = arith.constant 0 : index
    %3 = vector.load %arg3[%c0_3, %c0_4] : memref<1x32xf32, #tpu.memory_space<vmem>>, vector<1x32xf32>
    %4 = vector.broadcast %3 : vector<1x32xf32> to vector<32x32xf32>
    %5 = arith.mulf %2, %4 : vector<32x32xf32>
    %c0_5 = arith.constant 0 : index
    %c0_6 = arith.constant 0 : index
    %6 = vector.load %arg4[%c0_5, %c0_6] : memref<1x32xf32, #tpu.memory_space<vmem>>, vector<1x32xf32>
    %7 = vector.broadcast %6 : vector<1x32xf32> to vector<32x32xf32>
    %8 = arith.addf %5, %7 : vector<32x32xf32>
    %c0_7 = arith.constant 0 : index
    %c0_8 = arith.constant 0 : index
    %9 = vector.load %arg5[%c0_7, %c0_8] : memref<32x32xbf16, #tpu.memory_space<vmem>>, vector<32x32xbf16>
    %10 = arith.extf %9 : vector<32x32xbf16> to vector<32x32xf32>
    %11 = arith.addf %8, %10 : vector<32x32xf32>
    %cst_9 = arith.constant 0.000000e+00 : f32
    %12 = vector.broadcast %cst_9 : f32 to vector<32x32xf32>
    %13 = arith.maximumf %11, %12 : vector<32x32xf32>
    %14 = arith.truncf %13 : vector<32x32xf32> to vector<32x32xbf16>
    %c0_10 = arith.constant 0 : index
    %c0_11 = arith.constant 0 : index
    %15 = vector.load %arg6[%c0_10, %c0_11] : memref<32x32xbf16, #tpu.memory_space<vmem>>, vector<32x32xbf16>
    tpu.vector_store %arg6[%c0_10, %c0_11], %14 {strides = array<i32>} : memref<32x32xbf16, #tpu.memory_space<vmem>>, vector<32x32xbf16>,
    return
  }
  func.func @transform_0(%arg0: i32) -> (i32, i32) {
    %c0_i32 = arith.constant 0 : i32
    %c0_i32_0 = arith.constant 0 : i32
    return %arg0, %c0_i32 : i32, i32
  }
  func.func @transform_1(%arg0: i32) -> (i32, i32) {
    %c0_i32 = arith.constant 0 : i32
    %c0_i32_0 = arith.constant 0 : i32
    %c0_i32_1 = arith.constant 0 : i32
    return %c0_i32, %c0_i32_0 : i32, i32
  }
  func.func @transform_2(%arg0: i32) -> (i32, i32) {
    %c0_i32 = arith.constant 0 : i32
    %c0_i32_0 = arith.constant 0 : i32
    %c0_i32_1 = arith.constant 0 : i32
    return %c0_i32, %c0_i32_0 : i32, i32
  }
  func.func @transform_3(%arg0: i32) -> (i32, i32) {
    %c0_i32 = arith.constant 0 : i32
    %c0_i32_0 = arith.constant 0 : i32
    %c0_i32_1 = arith.constant 0 : i32
    return %c0_i32, %c0_i32_0 : i32, i32
  }
  func.func @transform_4(%arg0: i32) -> (i32, i32) {
    %c0_i32 = arith.constant 0 : i32
    %c0_i32_0 = arith.constant 0 : i32
    return %arg0, %c0_i32 : i32, i32
  }
  func.func @transform_5(%arg0: i32) -> (i32, i32) {
    %c0_i32 = arith.constant 0 : i32
    %c0_i32_0 = arith.constant 0 : i32
    return %arg0, %c0_i32 : i32, i32
  }
}

module attributes {stable_mosaic.version = 11 : i64} {
  func.func @matmul_bn_act_kernel(%arg0: i32, %arg1: memref<32x288xbf16, #tpu.memory_space<vmem>>, %arg2: memref<288x32xbf16, #tpu.memory_space<vmem>>, %arg3: memref<1x32xf32, #tpu.memory_space<vmem>>, %arg4: memref<1x32xf32, #tpu.memory_space<vmem>>, %arg5: memref<32x32xbf16, #tpu.memory_space<vmem>>) attributes {dimension_semantics = [#tpu.dimension_semantics<parallel>], iteration_bounds = array<i64: 1>, scalar_prefetch = 0 : i64, scratch_operands = 0 : i64, tpu.core_type = #tpu.core_type<tc>, window_params = [{transform_indices = @transform_0, window_bounds = array<i64: 32, 288>}, {pipeline_mode = #tpu.pipeline_mode<synchronous>, transform_indices = @transform_1, window_bounds = array<i64: 288, 32>}, {pipeline_mode = #tpu.pipeline_mode<synchronous>, transform_indices = @transform_2, window_bounds = array<i64: 1, 32>}, {pipeline_mode = #tpu.pipeline_mode<synchronous>, transform_indices = @transform_3, window_bounds = array<i64: 1, 32>}, {transform_indices = @transform_4, window_bounds = array<i64: 32, 32>}]} {
    %c0 = arith.constant 0 : index
    %c0_0 = arith.constant 0 : index
    %0 = vector.load %arg1[%c0, %c0_0] : memref<32x288xbf16, #tpu.memory_space<vmem>>, vector<32x288xbf16>
    %c0_1 = arith.constant 0 : index
    %c0_2 = arith.constant 0 : index
    %1 = vector.load %arg2[%c0_1, %c0_2] : memref<288x32xbf16, #tpu.memory_space<vmem>>, vector<288x32xbf16>
    %cst = arith.constant dense<0.000000e+00> : vector<32x32xf32>
    %2 = tpu.matmul %0, %1, %cst {dimension_numbers = #tpu.dot_dimension_numbers<[1], [0], [0], [1], [0, 0, 1, 1], [], []>} : vector<32x288xbf16>, vector<288x32xbf16>, vector<32x32xf32> -> vector<32x32xf32>
    %c0_3 = arith.constant 0 : index
    %c0_4 = arith.constant 0 : index
    %3 = vector.load %arg3[%c0_3, %c0_4] : memref<1x32xf32, #tpu.memory_space<vmem>>, vector<1x32xf32>
    %4 = vector.broadcast %3 : vector<1x32xf32> to vector<32x32xf32>
    %5 = arith.mulf %2, %4 : vector<32x32xf32>
    %c0_5 = arith.constant 0 : index
    %c0_6 = arith.constant 0 : index
    %6 = vector.load %arg4[%c0_5, %c0_6] : memref<1x32xf32, #tpu.memory_space<vmem>>, vector<1x32xf32>
    %7 = vector.broadcast %6 : vector<1x32xf32> to vector<32x32xf32>
    %8 = arith.addf %5, %7 : vector<32x32xf32>
    %cst_7 = arith.constant 0.000000e+00 : f32
    %9 = vector.broadcast %cst_7 : f32 to vector<32x32xf32>
    %10 = arith.maximumf %8, %9 : vector<32x32xf32>
    %11 = arith.truncf %10 : vector<32x32xf32> to vector<32x32xbf16>
    %c0_8 = arith.constant 0 : index
    %c0_9 = arith.constant 0 : index
    %12 = vector.load %arg5[%c0_8, %c0_9] : memref<32x32xbf16, #tpu.memory_space<vmem>>, vector<32x32xbf16>
    tpu.vector_store %arg5[%c0_8, %c0_9], %11 {strides = array<i32>} : memref<32x32xbf16, #tpu.memory_space<vmem>>, vector<32x32xbf16>,
    return
  }
  func.func @transform_0(%arg0: i32) -> (i32, i32) {
    %c0_i32 = arith.constant 0 : i32
    %c0_i32_0 = arith.constant 0 : i32
    return %arg0, %c0_i32 : i32, i32
  }
  func.func @transform_1(%arg0: i32) -> (i32, i32) {
    %c0_i32 = arith.constant 0 : i32
    %c0_i32_0 = arith.constant 0 : i32
    %c0_i32_1 = arith.constant 0 : i32
    return %c0_i32, %c0_i32_0 : i32, i32
  }
  func.func @transform_2(%arg0: i32) -> (i32, i32) {
    %c0_i32 = arith.constant 0 : i32
    %c0_i32_0 = arith.constant 0 : i32
    %c0_i32_1 = arith.constant 0 : i32
    return %c0_i32, %c0_i32_0 : i32, i32
  }
  func.func @transform_3(%arg0: i32) -> (i32, i32) {
    %c0_i32 = arith.constant 0 : i32
    %c0_i32_0 = arith.constant 0 : i32
    %c0_i32_1 = arith.constant 0 : i32
    return %c0_i32, %c0_i32_0 : i32, i32
  }
  func.func @transform_4(%arg0: i32) -> (i32, i32) {
    %c0_i32 = arith.constant 0 : i32
    %c0_i32_0 = arith.constant 0 : i32
    return %arg0, %c0_i32 : i32, i32
  }
}

module attributes {stable_mosaic.version = 11 : i64} {
  func.func @matmul_bn_act_kernel(%arg0: i32, %arg1: memref<8x288xbf16, #tpu.memory_space<vmem>>, %arg2: memref<288x64xbf16, #tpu.memory_space<vmem>>, %arg3: memref<1x64xf32, #tpu.memory_space<vmem>>, %arg4: memref<1x64xf32, #tpu.memory_space<vmem>>, %arg5: memref<8x64xbf16, #tpu.memory_space<vmem>>) attributes {dimension_semantics = [#tpu.dimension_semantics<parallel>], iteration_bounds = array<i64: 1>, scalar_prefetch = 0 : i64, scratch_operands = 0 : i64, tpu.core_type = #tpu.core_type<tc>, window_params = [{transform_indices = @transform_0, window_bounds = array<i64: 8, 288>}, {pipeline_mode = #tpu.pipeline_mode<synchronous>, transform_indices = @transform_1, window_bounds = array<i64: 288, 64>}, {pipeline_mode = #tpu.pipeline_mode<synchronous>, transform_indices = @transform_2, window_bounds = array<i64: 1, 64>}, {pipeline_mode = #tpu.pipeline_mode<synchronous>, transform_indices = @transform_3, window_bounds = array<i64: 1, 64>}, {transform_indices = @transform_4, window_bounds = array<i64: 8, 64>}]} {
    %c0 = arith.constant 0 : index
    %c0_0 = arith.constant 0 : index
    %0 = vector.load %arg1[%c0, %c0_0] : memref<8x288xbf16, #tpu.memory_space<vmem>>, vector<8x288xbf16>
    %c0_1 = arith.constant 0 : index
    %c0_2 = arith.constant 0 : index
    %1 = vector.load %arg2[%c0_1, %c0_2] : memref<288x64xbf16, #tpu.memory_space<vmem>>, vector<288x64xbf16>
    %cst = arith.constant dense<0.000000e+00> : vector<8x64xf32>
    %2 = tpu.matmul %0, %1, %cst {dimension_numbers = #tpu.dot_dimension_numbers<[1], [0], [0], [1], [0, 0, 1, 1], [], []>} : vector<8x288xbf16>, vector<288x64xbf16>, vector<8x64xf32> -> vector<8x64xf32>
    %c0_3 = arith.constant 0 : index
    %c0_4 = arith.constant 0 : index
    %3 = vector.load %arg3[%c0_3, %c0_4] : memref<1x64xf32, #tpu.memory_space<vmem>>, vector<1x64xf32>
    %4 = vector.broadcast %3 : vector<1x64xf32> to vector<8x64xf32>
    %5 = arith.mulf %2, %4 : vector<8x64xf32>
    %c0_5 = arith.constant 0 : index
    %c0_6 = arith.constant 0 : index
    %6 = vector.load %arg4[%c0_5, %c0_6] : memref<1x64xf32, #tpu.memory_space<vmem>>, vector<1x64xf32>
    %7 = vector.broadcast %6 : vector<1x64xf32> to vector<8x64xf32>
    %8 = arith.addf %5, %7 : vector<8x64xf32>
    %cst_7 = arith.constant 0.000000e+00 : f32
    %9 = vector.broadcast %cst_7 : f32 to vector<8x64xf32>
    %10 = arith.maximumf %8, %9 : vector<8x64xf32>
    %11 = arith.truncf %10 : vector<8x64xf32> to vector<8x64xbf16>
    %c0_8 = arith.constant 0 : index
    %c0_9 = arith.constant 0 : index
    %12 = vector.load %arg5[%c0_8, %c0_9] : memref<8x64xbf16, #tpu.memory_space<vmem>>, vector<8x64xbf16>
    tpu.vector_store %arg5[%c0_8, %c0_9], %11 {strides = array<i32>} : memref<8x64xbf16, #tpu.memory_space<vmem>>, vector<8x64xbf16>,
    return
  }
  func.func @transform_0(%arg0: i32) -> (i32, i32) {
    %c0_i32 = arith.constant 0 : i32
    %c0_i32_0 = arith.constant 0 : i32
    return %arg0, %c0_i32 : i32, i32
  }
  func.func @transform_1(%arg0: i32) -> (i32, i32) {
    %c0_i32 = arith.constant 0 : i32
    %c0_i32_0 = arith.constant 0 : i32
    %c0_i32_1 = arith.constant 0 : i32
    return %c0_i32, %c0_i32_0 : i32, i32
  }
  func.func @transform_2(%arg0: i32) -> (i32, i32) {
    %c0_i32 = arith.constant 0 : i32
    %c0_i32_0 = arith.constant 0 : i32
    %c0_i32_1 = arith.constant 0 : i32
    return %c0_i32, %c0_i32_0 : i32, i32
  }
  func.func @transform_3(%arg0: i32) -> (i32, i32) {
    %c0_i32 = arith.constant 0 : i32
    %c0_i32_0 = arith.constant 0 : i32
    %c0_i32_1 = arith.constant 0 : i32
    return %c0_i32, %c0_i32_0 : i32, i32
  }
  func.func @transform_4(%arg0: i32) -> (i32, i32) {
    %c0_i32 = arith.constant 0 : i32
    %c0_i32_0 = arith.constant 0 : i32
    return %arg0, %c0_i32 : i32, i32
  }
}

module attributes {stable_mosaic.version = 11 : i64} {
  func.func @matmul_bn_act_res_kernel(%arg0: i32, %arg1: memref<8x576xbf16, #tpu.memory_space<vmem>>, %arg2: memref<576x64xbf16, #tpu.memory_space<vmem>>, %arg3: memref<1x64xf32, #tpu.memory_space<vmem>>, %arg4: memref<1x64xf32, #tpu.memory_space<vmem>>, %arg5: memref<8x64xbf16, #tpu.memory_space<vmem>>, %arg6: memref<8x64xbf16, #tpu.memory_space<vmem>>) attributes {dimension_semantics = [#tpu.dimension_semantics<parallel>], iteration_bounds = array<i64: 1>, scalar_prefetch = 0 : i64, scratch_operands = 0 : i64, tpu.core_type = #tpu.core_type<tc>, window_params = [{transform_indices = @transform_0, window_bounds = array<i64: 8, 576>}, {pipeline_mode = #tpu.pipeline_mode<synchronous>, transform_indices = @transform_1, window_bounds = array<i64: 576, 64>}, {pipeline_mode = #tpu.pipeline_mode<synchronous>, transform_indices = @transform_2, window_bounds = array<i64: 1, 64>}, {pipeline_mode = #tpu.pipeline_mode<synchronous>, transform_indices = @transform_3, window_bounds = array<i64: 1, 64>}, {transform_indices = @transform_4, window_bounds = array<i64: 8, 64>}, {transform_indices = @transform_5, window_bounds = array<i64: 8, 64>}]} {
    %c0 = arith.constant 0 : index
    %c0_0 = arith.constant 0 : index
    %0 = vector.load %arg1[%c0, %c0_0] : memref<8x576xbf16, #tpu.memory_space<vmem>>, vector<8x576xbf16>
    %c0_1 = arith.constant 0 : index
    %c0_2 = arith.constant 0 : index
    %1 = vector.load %arg2[%c0_1, %c0_2] : memref<576x64xbf16, #tpu.memory_space<vmem>>, vector<576x64xbf16>
    %cst = arith.constant dense<0.000000e+00> : vector<8x64xf32>
    %2 = tpu.matmul %0, %1, %cst {dimension_numbers = #tpu.dot_dimension_numbers<[1], [0], [0], [1], [0, 0, 1, 1], [], []>} : vector<8x576xbf16>, vector<576x64xbf16>, vector<8x64xf32> -> vector<8x64xf32>
    %c0_3 = arith.constant 0 : index
    %c0_4 = arith.constant 0 : index
    %3 = vector.load %arg3[%c0_3, %c0_4] : memref<1x64xf32, #tpu.memory_space<vmem>>, vector<1x64xf32>
    %4 = vector.broadcast %3 : vector<1x64xf32> to vector<8x64xf32>
    %5 = arith.mulf %2, %4 : vector<8x64xf32>
    %c0_5 = arith.constant 0 : index
    %c0_6 = arith.constant 0 : index
    %6 = vector.load %arg4[%c0_5, %c0_6] : memref<1x64xf32, #tpu.memory_space<vmem>>, vector<1x64xf32>
    %7 = vector.broadcast %6 : vector<1x64xf32> to vector<8x64xf32>
    %8 = arith.addf %5, %7 : vector<8x64xf32>
    %c0_7 = arith.constant 0 : index
    %c0_8 = arith.constant 0 : index
    %9 = vector.load %arg5[%c0_7, %c0_8] : memref<8x64xbf16, #tpu.memory_space<vmem>>, vector<8x64xbf16>
    %10 = arith.extf %9 : vector<8x64xbf16> to vector<8x64xf32>
    %11 = arith.addf %8, %10 : vector<8x64xf32>
    %cst_9 = arith.constant 0.000000e+00 : f32
    %12 = vector.broadcast %cst_9 : f32 to vector<8x64xf32>
    %13 = arith.maximumf %11, %12 : vector<8x64xf32>
    %14 = arith.truncf %13 : vector<8x64xf32> to vector<8x64xbf16>
    %c0_10 = arith.constant 0 : index
    %c0_11 = arith.constant 0 : index
    %15 = vector.load %arg6[%c0_10, %c0_11] : memref<8x64xbf16, #tpu.memory_space<vmem>>, vector<8x64xbf16>
    tpu.vector_store %arg6[%c0_10, %c0_11], %14 {strides = array<i32>} : memref<8x64xbf16, #tpu.memory_space<vmem>>, vector<8x64xbf16>,
    return
  }
  func.func @transform_0(%arg0: i32) -> (i32, i32) {
    %c0_i32 = arith.constant 0 : i32
    %c0_i32_0 = arith.constant 0 : i32
    return %arg0, %c0_i32 : i32, i32
  }
  func.func @transform_1(%arg0: i32) -> (i32, i32) {
    %c0_i32 = arith.constant 0 : i32
    %c0_i32_0 = arith.constant 0 : i32
    %c0_i32_1 = arith.constant 0 : i32
    return %c0_i32, %c0_i32_0 : i32, i32
  }
  func.func @transform_2(%arg0: i32) -> (i32, i32) {
    %c0_i32 = arith.constant 0 : i32
    %c0_i32_0 = arith.constant 0 : i32
    %c0_i32_1 = arith.constant 0 : i32
    return %c0_i32, %c0_i32_0 : i32, i32
  }
  func.func @transform_3(%arg0: i32) -> (i32, i32) {
    %c0_i32 = arith.constant 0 : i32
    %c0_i32_0 = arith.constant 0 : i32
    %c0_i32_1 = arith.constant 0 : i32
    return %c0_i32, %c0_i32_0 : i32, i32
  }
  func.func @transform_4(%arg0: i32) -> (i32, i32) {
    %c0_i32 = arith.constant 0 : i32
    %c0_i32_0 = arith.constant 0 : i32
    return %arg0, %c0_i32 : i32, i32
  }
  func.func @transform_5(%arg0: i32) -> (i32, i32) {
    %c0_i32 = arith.constant 0 : i32
    %c0_i32_0 = arith.constant 0 : i32
    return %arg0, %c0_i32 : i32, i32
  }
}

module attributes {stable_mosaic.version = 11 : i64} {
  func.func @matmul_bn_act_kernel(%arg0: i32, %arg1: memref<8x576xbf16, #tpu.memory_space<vmem>>, %arg2: memref<576x64xbf16, #tpu.memory_space<vmem>>, %arg3: memref<1x64xf32, #tpu.memory_space<vmem>>, %arg4: memref<1x64xf32, #tpu.memory_space<vmem>>, %arg5: memref<8x64xbf16, #tpu.memory_space<vmem>>) attributes {dimension_semantics = [#tpu.dimension_semantics<parallel>], iteration_bounds = array<i64: 1>, scalar_prefetch = 0 : i64, scratch_operands = 0 : i64, tpu.core_type = #tpu.core_type<tc>, window_params = [{transform_indices = @transform_0, window_bounds = array<i64: 8, 576>}, {pipeline_mode = #tpu.pipeline_mode<synchronous>, transform_indices = @transform_1, window_bounds = array<i64: 576, 64>}, {pipeline_mode = #tpu.pipeline_mode<synchronous>, transform_indices = @transform_2, window_bounds = array<i64: 1, 64>}, {pipeline_mode = #tpu.pipeline_mode<synchronous>, transform_indices = @transform_3, window_bounds = array<i64: 1, 64>}, {transform_indices = @transform_4, window_bounds = array<i64: 8, 64>}]} {
    %c0 = arith.constant 0 : index
    %c0_0 = arith.constant 0 : index
    %0 = vector.load %arg1[%c0, %c0_0] : memref<8x576xbf16, #tpu.memory_space<vmem>>, vector<8x576xbf16>
    %c0_1 = arith.constant 0 : index
    %c0_2 = arith.constant 0 : index
    %1 = vector.load %arg2[%c0_1, %c0_2] : memref<576x64xbf16, #tpu.memory_space<vmem>>, vector<576x64xbf16>
    %cst = arith.constant dense<0.000000e+00> : vector<8x64xf32>
    %2 = tpu.matmul %0, %1, %cst {dimension_numbers = #tpu.dot_dimension_numbers<[1], [0], [0], [1], [0, 0, 1, 1], [], []>} : vector<8x576xbf16>, vector<576x64xbf16>, vector<8x64xf32> -> vector<8x64xf32>
    %c0_3 = arith.constant 0 : index
    %c0_4 = arith.constant 0 : index
    %3 = vector.load %arg3[%c0_3, %c0_4] : memref<1x64xf32, #tpu.memory_space<vmem>>, vector<1x64xf32>
    %4 = vector.broadcast %3 : vector<1x64xf32> to vector<8x64xf32>
    %5 = arith.mulf %2, %4 : vector<8x64xf32>
    %c0_5 = arith.constant 0 : index
    %c0_6 = arith.constant 0 : index
    %6 = vector.load %arg4[%c0_5, %c0_6] : memref<1x64xf32, #tpu.memory_space<vmem>>, vector<1x64xf32>
    %7 = vector.broadcast %6 : vector<1x64xf32> to vector<8x64xf32>
    %8 = arith.addf %5, %7 : vector<8x64xf32>
    %cst_7 = arith.constant 0.000000e+00 : f32
    %9 = vector.broadcast %cst_7 : f32 to vector<8x64xf32>
    %10 = arith.maximumf %8, %9 : vector<8x64xf32>
    %11 = arith.truncf %10 : vector<8x64xf32> to vector<8x64xbf16>
    %c0_8 = arith.constant 0 : index
    %c0_9 = arith.constant 0 : index
    %12 = vector.load %arg5[%c0_8, %c0_9] : memref<8x64xbf16, #tpu.memory_space<vmem>>, vector<8x64xbf16>
    tpu.vector_store %arg5[%c0_8, %c0_9], %11 {strides = array<i32>} : memref<8x64xbf16, #tpu.memory_space<vmem>>, vector<8x64xbf16>,
    return
  }
  func.func @transform_0(%arg0: i32) -> (i32, i32) {
    %c0_i32 = arith.constant 0 : i32
    %c0_i32_0 = arith.constant 0 : i32
    return %arg0, %c0_i32 : i32, i32
  }
  func.func @transform_1(%arg0: i32) -> (i32, i32) {
    %c0_i32 = arith.constant 0 : i32
    %c0_i32_0 = arith.constant 0 : i32
    %c0_i32_1 = arith.constant 0 : i32
    return %c0_i32, %c0_i32_0 : i32, i32
  }
  func.func @transform_2(%arg0: i32) -> (i32, i32) {
    %c0_i32 = arith.constant 0 : i32
    %c0_i32_0 = arith.constant 0 : i32
    %c0_i32_1 = arith.constant 0 : i32
    return %c0_i32, %c0_i32_0 : i32, i32
  }
  func.func @transform_3(%arg0: i32) -> (i32, i32) {
    %c0_i32 = arith.constant 0 : i32
    %c0_i32_0 = arith.constant 0 : i32
    %c0_i32_1 = arith.constant 0 : i32
    return %c0_i32, %c0_i32_0 : i32, i32
  }
  func.func @transform_4(%arg0: i32) -> (i32, i32) {
    %c0_i32 = arith.constant 0 : i32
    %c0_i32_0 = arith.constant 0 : i32
    return %arg0, %c0_i32 : i32, i32
  }
}

module attributes {stable_mosaic.version = 11 : i64} {
  func.func @matmul_bn_act_kernel(%arg0: i32, %arg1: memref<8x32xbf16, #tpu.memory_space<vmem>>, %arg2: memref<32x64xbf16, #tpu.memory_space<vmem>>, %arg3: memref<1x64xf32, #tpu.memory_space<vmem>>, %arg4: memref<1x64xf32, #tpu.memory_space<vmem>>, %arg5: memref<8x64xbf16, #tpu.memory_space<vmem>>) attributes {dimension_semantics = [#tpu.dimension_semantics<parallel>], iteration_bounds = array<i64: 1>, scalar_prefetch = 0 : i64, scratch_operands = 0 : i64, tpu.core_type = #tpu.core_type<tc>, window_params = [{transform_indices = @transform_0, window_bounds = array<i64: 8, 32>}, {pipeline_mode = #tpu.pipeline_mode<synchronous>, transform_indices = @transform_1, window_bounds = array<i64: 32, 64>}, {pipeline_mode = #tpu.pipeline_mode<synchronous>, transform_indices = @transform_2, window_bounds = array<i64: 1, 64>}, {pipeline_mode = #tpu.pipeline_mode<synchronous>, transform_indices = @transform_3, window_bounds = array<i64: 1, 64>}, {transform_indices = @transform_4, window_bounds = array<i64: 8, 64>}]} {
    %c0 = arith.constant 0 : index
    %c0_0 = arith.constant 0 : index
    %0 = vector.load %arg1[%c0, %c0_0] : memref<8x32xbf16, #tpu.memory_space<vmem>>, vector<8x32xbf16>
    %c0_1 = arith.constant 0 : index
    %c0_2 = arith.constant 0 : index
    %1 = vector.load %arg2[%c0_1, %c0_2] : memref<32x64xbf16, #tpu.memory_space<vmem>>, vector<32x64xbf16>
    %cst = arith.constant dense<0.000000e+00> : vector<8x64xf32>
    %2 = tpu.matmul %0, %1, %cst {dimension_numbers = #tpu.dot_dimension_numbers<[1], [0], [0], [1], [0, 0, 1, 1], [], []>} : vector<8x32xbf16>, vector<32x64xbf16>, vector<8x64xf32> -> vector<8x64xf32>
    %c0_3 = arith.constant 0 : index
    %c0_4 = arith.constant 0 : index
    %3 = vector.load %arg3[%c0_3, %c0_4] : memref<1x64xf32, #tpu.memory_space<vmem>>, vector<1x64xf32>
    %4 = vector.broadcast %3 : vector<1x64xf32> to vector<8x64xf32>
    %5 = arith.mulf %2, %4 : vector<8x64xf32>
    %c0_5 = arith.constant 0 : index
    %c0_6 = arith.constant 0 : index
    %6 = vector.load %arg4[%c0_5, %c0_6] : memref<1x64xf32, #tpu.memory_space<vmem>>, vector<1x64xf32>
    %7 = vector.broadcast %6 : vector<1x64xf32> to vector<8x64xf32>
    %8 = arith.addf %5, %7 : vector<8x64xf32>
    %9 = arith.truncf %8 : vector<8x64xf32> to vector<8x64xbf16>
    %c0_7 = arith.constant 0 : index
    %c0_8 = arith.constant 0 : index
    %10 = vector.load %arg5[%c0_7, %c0_8] : memref<8x64xbf16, #tpu.memory_space<vmem>>, vector<8x64xbf16>
    tpu.vector_store %arg5[%c0_7, %c0_8], %9 {strides = array<i32>} : memref<8x64xbf16, #tpu.memory_space<vmem>>, vector<8x64xbf16>,
    return
  }
  func.func @transform_0(%arg0: i32) -> (i32, i32) {
    %c0_i32 = arith.constant 0 : i32
    %c0_i32_0 = arith.constant 0 : i32
    return %arg0, %c0_i32 : i32, i32
  }
  func.func @transform_1(%arg0: i32) -> (i32, i32) {
    %c0_i32 = arith.constant 0 : i32
    %c0_i32_0 = arith.constant 0 : i32
    %c0_i32_1 = arith.constant 0 : i32
    return %c0_i32, %c0_i32_0 : i32, i32
  }
  func.func @transform_2(%arg0: i32) -> (i32, i32) {
    %c0_i32 = arith.constant 0 : i32
    %c0_i32_0 = arith.constant 0 : i32
    %c0_i32_1 = arith.constant 0 : i32
    return %c0_i32, %c0_i32_0 : i32, i32
  }
  func.func @transform_3(%arg0: i32) -> (i32, i32) {
    %c0_i32 = arith.constant 0 : i32
    %c0_i32_0 = arith.constant 0 : i32
    %c0_i32_1 = arith.constant 0 : i32
    return %c0_i32, %c0_i32_0 : i32, i32
  }
  func.func @transform_4(%arg0: i32) -> (i32, i32) {
    %c0_i32 = arith.constant 0 : i32
    %c0_i32_0 = arith.constant 0 : i32
    return %arg0, %c0_i32 : i32, i32
  }
}

module attributes {stable_mosaic.version = 11 : i64} {
  func.func @head_kernel(%arg0: i32, %arg1: memref<8x8x64xbf16, #tpu.memory_space<vmem>>, %arg2: memref<64x10xf32, #tpu.memory_space<vmem>>, %arg3: memref<1x10xf32, #tpu.memory_space<vmem>>, %arg4: memref<8x10xf32, #tpu.memory_space<vmem>>) attributes {dimension_semantics = [#tpu.dimension_semantics<arbitrary>], iteration_bounds = array<i64: 1>, scalar_prefetch = 0 : i64, scratch_operands = 0 : i64, tpu.core_type = #tpu.core_type<tc>, window_params = [{pipeline_mode = #tpu.pipeline_mode<synchronous>, transform_indices = @transform_0, window_bounds = array<i64: 8, 8, 64>}, {pipeline_mode = #tpu.pipeline_mode<synchronous>, transform_indices = @transform_1, window_bounds = array<i64: 64, 10>}, {pipeline_mode = #tpu.pipeline_mode<synchronous>, transform_indices = @transform_2, window_bounds = array<i64: 1, 10>}, {pipeline_mode = #tpu.pipeline_mode<synchronous>, transform_indices = @transform_3, window_bounds = array<i64: 8, 10>}]} {
    %c0 = arith.constant 0 : index
    %c0_0 = arith.constant 0 : index
    %c0_1 = arith.constant 0 : index
    %0 = vector.load %arg1[%c0, %c0_0, %c0_1] : memref<8x8x64xbf16, #tpu.memory_space<vmem>>, vector<8x8x64xbf16>
    %1 = arith.extf %0 : vector<8x8x64xbf16> to vector<8x8x64xf32>
    %cst = arith.constant dense<0.000000e+00> : vector<8x64xf32>
    %2 = vector.multi_reduction <add>, %1, %cst [1] : vector<8x8x64xf32> to vector<8x64xf32>
    %cst_2 = arith.constant 2.500000e-01 : f32
    %3 = vector.broadcast %cst_2 : f32 to vector<8x64xf32>
    %4 = arith.mulf %2, %3 : vector<8x64xf32>
    %c0_3 = arith.constant 0 : index
    %c0_4 = arith.constant 0 : index
    %5 = vector.load %arg2[%c0_3, %c0_4] : memref<64x10xf32, #tpu.memory_space<vmem>>, vector<64x10xf32>
    %cst_5 = arith.constant dense<0.000000e+00> : vector<8x10xf32>
    %6 = tpu.matmul %4, %5, %cst_5 {dimension_numbers = #tpu.dot_dimension_numbers<[1], [0], [0], [1], [0, 0, 1, 1], [], []>} : vector<8x64xf32>, vector<64x10xf32>, vector<8x10xf32> -> vector<8x10xf32>
    %c0_6 = arith.constant 0 : index
    %c0_7 = arith.constant 0 : index
    %7 = vector.load %arg3[%c0_6, %c0_7] : memref<1x10xf32, #tpu.memory_space<vmem>>, vector<1x10xf32>
    %8 = vector.broadcast %7 : vector<1x10xf32> to vector<8x10xf32>
    %9 = arith.addf %6, %8 : vector<8x10xf32>
    %c0_8 = arith.constant 0 : index
    %c0_9 = arith.constant 0 : index
    %10 = vector.load %arg4[%c0_8, %c0_9] : memref<8x10xf32, #tpu.memory_space<vmem>>, vector<8x10xf32>
    tpu.vector_store %arg4[%c0_8, %c0_9], %9 {strides = array<i32>} : memref<8x10xf32, #tpu.memory_space<vmem>>, vector<8x10xf32>,
    return
  }
  func.func @transform_0(%arg0: i32) -> (i32, i32, i32) {
    %c0_i32 = arith.constant 0 : i32
    %c0_i32_0 = arith.constant 0 : i32
    %c0_i32_1 = arith.constant 0 : i32
    %c0_i32_2 = arith.constant 0 : i32
    return %c0_i32, %c0_i32_0, %c0_i32_1 : i32, i32, i32
  }
  func.func @transform_1(%arg0: i32) -> (i32, i32) {
    %c0_i32 = arith.constant 0 : i32
    %c0_i32_0 = arith.constant 0 : i32
    %c0_i32_1 = arith.constant 0 : i32
    return %c0_i32, %c0_i32_0 : i32, i32
  }
  func.func @transform_2(%arg0: i32) -> (i32, i32) {
    %c0_i32 = arith.constant 0 : i32
    %c0_i32_0 = arith.constant 0 : i32
    %c0_i32_1 = arith.constant 0 : i32
    return %c0_i32, %c0_i32_0 : i32, i32
  }
  func.func @transform_3(%arg0: i32) -> (i32, i32) {
    %c0_i32 = arith.constant 0 : i32
    %c0_i32_0 = arith.constant 0 : i32
    %c0_i32_1 = arith.constant 0 : i32
    return %c0_i32, %c0_i32_0 : i32, i32
  }
}

</mosaic_0001>

<llo_original>
// kernel: _lambda_.22
$region0: #{_lambda_.22}
  #allocation0 [shape = 'u32[]', space=smem, size = 0x4, offset = 0x4, fixed_abs, tag = 'smem constant byte address 0x4 - core index']
  #allocation1 [shape = 'u32[144,128]{1,0:T(1,128)}', space=vmem, size = 0x12000, scoped, tag = 'internal scratch']
  %s0 = inlined_call_operand.vmem [shape: bf16[2048,147], index: 0, kind: input, shape index: {}]
  %s1 = inlined_call_operand.vmem [shape: bf16[147,8], index: 1, kind: input, shape index: {}]
  %s2 = inlined_call_operand.vmem [shape: f32[1,8], index: 2, kind: input, shape index: {}]
  %s3 = inlined_call_operand.vmem [shape: f32[1,8], index: 3, kind: input, shape index: {}]
  %s4 = inlined_call_operand.vmem [shape: bf16[2048,8], index: 4, kind: output, shape index: {}]
  %s5 = sld [smem:[#allocation0]]
  $region49: #{_lambda_.22} parent=0
    _
  %s7 = ssub.s32 1, %s5
  %s8 = scalar_select 0, %s7, %s5
  loop: start=0, step=1, limit=6
  $region2: #{_lambda_.22} parent=0 // loop_pre_header
    _
  $region3: #{_lambda_.22} parent=0 // loop_header
    %s10 = sphi 0, %s14
    %p11 = scmp.ge.s32.totalorder %s10, 6
    %s20 = sphi 0, %s22
    %s23 = sphi 0, %s20
    %s24 = sphi 0, %s23
    %s40 = sphi 0, %s24
    %s44 = sphi 0, %s44
    %s46 = sphi 0, %s44
    %s47 = sphi 0, %s46
    %s61 = sphi 0, %s47
    %s65 = sphi 0, %s65
    %s67 = sphi 0, %s65
    %s68 = sphi 0, %s67
    %s82 = sphi 0, %s68
    %s86 = sphi 0, %s86
    %s88 = sphi 0, %s86
    %s89 = sphi 0, %s88
    %s103 = sphi 0, %s89
    %s109 = sphi 0, %s111
    %s112 = sphi 0, %s109
    %s113 = sphi 0, %s112
    %s129 = sphi 0, %s113
  $region4: #{_lambda_.22} parent=0 // loop_header_branch
    %13 = sbr.rel (%p11) target = $region8
  $region5: #{_lambda_.22} parent=0 // loop_body
    %s15 = ssub.s32 %s10, 1
    %s16 = ssub.s32 %s10, 2
    %s17 = sadd.s32 %s10, 1
    %s18 = ssub.s32 %s10, %s17
    %p19 = scmp.eq.s32.totalorder %s18, 0
    %s21 = sadd.s32 %s20, 1
    %s22 = scalar_select %p19, %s20, %s21
    %p25 = pneg %p19
    %p26 = scmp.eq.s32.totalorder %s10, 3
    %p27 = por %p25, %p26
    %p28 = scmp.ne.s32.totalorder %s20, %s23
    %p29 = scmp.eq.s32.totalorder %s10, 0
    %p30 = por %p28, %p29
    %p31 = scmp.ne.s32.totalorder %s20, %s23
    %p32 = scmp.eq.s32.totalorder %s15, 3
    %p33 = por %p31, %p32
    %p34 = scmp.ne.s32.totalorder %s23, %s24
    %p35 = scmp.eq.s32.totalorder %s15, 0
    %p36 = por %p34, %p35
    %p37 = scmp.ne.s32.totalorder %s23, %s24
    %p38 = scmp.eq.s32.totalorder %s16, 3
    %p39 = por %p37, %p38
    %p41 = scmp.ne.s32.totalorder %s24, %s40
    %p42 = scmp.eq.s32.totalorder %s16, 0
    %p43 = por %p41, %p42
    %s45 = sadd.s32 %s44, 1
    %p48 = scmp.eq.s32.totalorder %s10, 3
    %p49 = scmp.ne.s32.totalorder %s44, %s46
    %p50 = scmp.eq.s32.totalorder %s10, 0
    %p51 = por %p49, %p50
    %p52 = scmp.ne.s32.totalorder %s44, %s46
    %p53 = scmp.eq.s32.totalorder %s15, 3
    %p54 = por %p52, %p53
    %p55 = scmp.ne.s32.totalorder %s46, %s47
    %p56 = scmp.eq.s32.totalorder %s15, 0
    %p57 = por %p55, %p56
    %p58 = scmp.ne.s32.totalorder %s46, %s47
    %p59 = scmp.eq.s32.totalorder %s16, 3
    %p60 = por %p58, %p59
    %p62 = scmp.ne.s32.totalorder %s47, %s61
    %p63 = scmp.eq.s32.totalorder %s16, 0
    %p64 = por %p62, %p63
    %s66 = sadd.s32 %s65, 1
    %p69 = scmp.eq.s32.totalorder %s10, 3
    %p70 = scmp.ne.s32.totalorder %s65, %s67
    %p71 = scmp.eq.s32.totalorder %s10, 0
    %p72 = por %p70, %p71
    %p73 = scmp.ne.s32.totalorder %s65, %s67
    %p74 = scmp.eq.s32.totalorder %s15, 3
    %p75 = por %p73, %p74
    %p76 = scmp.ne.s32.totalorder %s67, %s68
    %p77 = scmp.eq.s32.totalorder %s15, 0
    %p78 = por %p76, %p77
    %p79 = scmp.ne.s32.totalorder %s67, %s68
    %p80 = scmp.eq.s32.totalorder %s16, 3
    %p81 = por %p79, %p80
    %p83 = scmp.ne.s32.totalorder %s68, %s82
    %p84 = scmp.eq.s32.totalorder %s16, 0
    %p85 = por %p83, %p84
    %s87 = sadd.s32 %s86, 1
    %p90 = scmp.eq.s32.totalorder %s10, 3
    %p91 = scmp.ne.s32.totalorder %s86, %s88
    %p92 = scmp.eq.s32.totalorder %s10, 0
    %p93 = por %p91, %p92
    %p94 = scmp.ne.s32.totalorder %s86, %s88
    %p95 = scmp.eq.s32.totalorder %s15, 3
    %p96 = por %p94, %p95
    %p97 = scmp.ne.s32.totalorder %s88, %s89
    %p98 = scmp.eq.s32.totalorder %s15, 0
    %p99 = por %p97, %p98
    %p100 = scmp.ne.s32.totalorder %s88, %s89
    %p101 = scmp.eq.s32.totalorder %s16, 3
    %p102 = por %p100, %p101
    %p104 = scmp.ne.s32.totalorder %s89, %s103
    %p105 = scmp.eq.s32.totalorder %s16, 0
    %p106 = por %p104, %p105
    %s107 = ssub.s32 %s10, %s17
    %p108 = scmp.eq.s32.totalorder %s107, 0
    %s110 = sadd.s32 %s109, 1
    %s111 = scalar_select %p108, %s109, %s110
    %p114 = pneg %p108
    %p115 = scmp.eq.s32.totalorder %s10, 3
    %p116 = por %p114, %p115
    %p117 = scmp.ne.s32.totalorder %s109, %s112
    %p118 = scmp.eq.s32.totalorder %s10, 0
    %p119 = por %p117, %p118
    %p120 = scmp.ne.s32.totalorder %s109, %s112
    %p121 = scmp.eq.s32.totalorder %s15, 3
    %p122 = por %p120, %p121
    %p123 = scmp.ne.s32.totalorder %s112, %s113
    %p124 = scmp.eq.s32.totalorder %s15, 0
    %p125 = por %p123, %p124
    %p126 = scmp.ne.s32.totalorder %s112, %s113
    %p127 = scmp.eq.s32.totalorder %s16, 3
    %p128 = por %p126, %p127
    %p130 = scmp.ne.s32.totalorder %s113, %s129
    %p131 = scmp.eq.s32.totalorder %s16, 0
    %p132 = por %p130, %p131
    %p133 = scmp.le.s32.totalorder 1, %s10
    %p134 = scmp.lt.s32.totalorder %s10, 5
    %p135 = pnand %p133, %p134
    %p136 = pneg %p135
    // Predicated region
    $region9: #{_lambda_.22} parent=5 // pred_check
      _
    $region10: #{_lambda_.22} parent=5 // pred_check_branch
      %138 = sbr.rel (%p135) target = $region12
    $region11: #{_lambda_.22} parent=5 // pred_region
      %s139 = ssub.s32 %s10, 1
      // Predicated region
      $region13: #{_lambda_.22} parent=11 // pred_check
        %p140 = pneg %p57
      $region14: #{_lambda_.22} parent=11 // pred_check_branch
        %142 = sbr.rel (%p140) target = $region16
      $region15: #{_lambda_.22} parent=11 // pred_region
        _
      $region16: #{_lambda_.22} parent=11 // pred_fallthru
        _
      // Predicated region
      $region17: #{_lambda_.22} parent=11 // pred_check
        %p143 = pneg %p78
      $region18: #{_lambda_.22} parent=11 // pred_check_branch
        %145 = sbr.rel (%p143) target = $region20
      $region19: #{_lambda_.22} parent=11 // pred_region
        _
      $region20: #{_lambda_.22} parent=11 // pred_fallthru
        _
      // Predicated region
      $region21: #{_lambda_.22} parent=11 // pred_check
        %p146 = pneg %p99
      $region22: #{_lambda_.22} parent=11 // pred_check_branch
        %148 = sbr.rel (%p146) target = $region24
      $region23: #{_lambda_.22} parent=11 // pred_region
        _
      $region24: #{_lambda_.22} parent=11 // pred_fallthru
        _
    $region12: #{_lambda_.22} parent=5 // pred_fallthru
      _
    %p149 = scmp.lt.s32.totalorder %s10, 4
    // Predicated region
    $region25: #{_lambda_.22} parent=5 // pred_check
      %p150 = pneg %p149
    $region26: #{_lambda_.22} parent=5 // pred_check_branch
      %152 = sbr.rel (%p150) target = $region28
    $region27: #{_lambda_.22} parent=5 // pred_region
      // Predicated region
      $region29: #{_lambda_.22} parent=27 // pred_check
        %p153 = pneg %p30
      $region30: #{_lambda_.22} parent=27 // pred_check_branch
        %155 = sbr.rel (%p153) target = $region32
      $region31: #{_lambda_.22} parent=27 // pred_region
        %s156 = smul.u32 64, %s10
        %p157 = scmp.lt.s32.totalorder %s156, 255
        %s158 = scalar_select %p157, %s156, 255
        %s159 = smul.addr %s158, 2
        %s160 = smul.addr %s159, 4
        %s161 = scalar_lea.vmem %s0, %s160
        %s162 = smul.u32 64, %s10
      $region32: #{_lambda_.22} parent=27 // pred_fallthru
        _
    $region28: #{_lambda_.22} parent=5 // pred_fallthru
      _
    %p163 = scmp.le.s32.totalorder 1, %s10
    %p164 = scmp.lt.s32.totalorder %s10, 5
    %p165 = pnand %p163, %p164
    %p166 = pneg %p165
    // Predicated region
    $region33: #{_lambda_.22} parent=5 // pred_check
      _
    $region34: #{_lambda_.22} parent=5 // pred_check_branch
      %168 = sbr.rel (%p165) target = $region36
    $region35: #{_lambda_.22} parent=5 // pred_region
      %s169 = ssub.s32 %s10, 1
      %s170 = smul.u32 64, %s15
      %p171 = scmp.lt.s32.totalorder %s170, 255
      %s172 = scalar_select %p171, %s170, 255
      %s173 = smul.addr %s172, 2
      %s174 = smul.addr %s173, 4
      %s175 = scalar_lea.vmem %s0, %s174
      %p176 = pneg %p36
      %p177 = pneg %p33
      %p178 = pneg %p57
      %p179 = pneg %p54
      %p180 = pneg %p78
      %p181 = pneg %p75
      %p182 = pneg %p99
      %p183 = pneg %p96
      %p184 = pneg %p125
      %p185 = pneg %p122
      %s186 = smul.u32 64, %s15
      %p187 = scmp.lt.s32.totalorder %s186, 255
      %s188 = scalar_select %p187, %s186, 255
      %s189 = smul.addr %s188, 4
      %s190 = scalar_lea.vmem %s4, %s189
      %s191 = smul.u32 64, %s15
      %p192 = scmp.lt.s32.totalorder %s191, 255
      %s193 = scalar_select %p192, %s191, 255
      %s194 = smul.addr %s193, 2
      %s195 = smul.addr %s194, 4
      %s196 = scalar_lea.vmem %s0, %s195
      %s197 = smul.u32 64, %s15
      %s198 = smul.u32 64, %s15
      %p199 = scmp.lt.s32.totalorder %s198, 255
      %s200 = scalar_select %p199, %s198, 255
      %s201 = smul.addr %s200, 4
      %s202 = scalar_lea.vmem %s4, %s201
      %s203 = smul.u32 64, %s15
      %v205 = vld [vmem:[%s196] sm:$0xff]
      %v206 = vld [vmem:[%s196 + $0x8] sm:$0xff]
      %v207 = vld [vmem:[%s196 + $0x10] sm:$0xff]
      %v208 = vld [vmem:[%s196 + $0x18] sm:$0xff]
      %v209 = vld [vmem:[%s196 + $0x20] sm:$0xff]
      %v210 = vld [vmem:[%s196 + $0x28] sm:$0xff]
      %v211 = vld [vmem:[%s196 + $0x30] sm:$0xff]
      %v212 = vld [vmem:[%s196 + $0x38] sm:$0xff]
      %v213 = vld [vmem:[%s196 + $0x40] sm:$0xff]
      %v214 = vld [vmem:[%s196 + $0x48] sm:$0xff]
      %v215 = vld [vmem:[%s196 + $0x50] sm:$0xff]
      %v216 = vld [vmem:[%s196 + $0x58] sm:$0xff]
      %v217 = vld [vmem:[%s196 + $0x60] sm:$0xff]
      %v218 = vld [vmem:[%s196 + $0x68] sm:$0xff]
      %v219 = vld [vmem:[%s196 + $0x70] sm:$0xff]
      %v220 = vld [vmem:[%s196 + $0x78] sm:$0xff]
      %v221 = vld [vmem:[%s196 + $0x80] sm:$0xff]
      %v222 = vld [vmem:[%s196 + $0x88] sm:$0xff]
      %v223 = vld [vmem:[%s196 + $0x90] sm:$0xff]
      %v224 = vld [vmem:[%s196 + $0x98] sm:$0xff]
      %v225 = vld [vmem:[%s196 + $0xa0] sm:$0xff]
      %v226 = vld [vmem:[%s196 + $0xa8] sm:$0xff]
      %v227 = vld [vmem:[%s196 + $0xb0] sm:$0xff]
      %v228 = vld [vmem:[%s196 + $0xb8] sm:$0xff]
      %v229 = vld [vmem:[%s196 + $0xc0] sm:$0xff]
      %v230 = vld [vmem:[%s196 + $0xc8] sm:$0xff]
      %v231 = vld [vmem:[%s196 + $0xd0] sm:$0xff]
      %v232 = vld [vmem:[%s196 + $0xd8] sm:$0xff]
      %v233 = vld [vmem:[%s196 + $0xe0] sm:$0xff]
      %v234 = vld [vmem:[%s196 + $0xe8] sm:$0xff]
      %v235 = vld [vmem:[%s196 + $0xf0] sm:$0xff]
      %v236 = vld [vmem:[%s196 + $0xf8] sm:$0xff]
      %v237 = vld [vmem:[%s196 + $0x100] sm:$0xff]
      %v238 = vld [vmem:[%s196 + $0x108] sm:$0xff]
      %v239 = vld [vmem:[%s196 + $0x110] sm:$0xff]
      %v240 = vld [vmem:[%s196 + $0x118] sm:$0xff]
      %v241 = vld [vmem:[%s196 + $0x120] sm:$0xff]
      %v242 = vld [vmem:[%s196 + $0x128] sm:$0xff]
      %v243 = vld [vmem:[%s196 + $0x130] sm:$0xff]
      %v244 = vld [vmem:[%s196 + $0x138] sm:$0xff]
      %v245 = vld [vmem:[%s196 + $0x140] sm:$0xff]
      %v246 = vld [vmem:[%s196 + $0x148] sm:$0xff]
      %v247 = vld [vmem:[%s196 + $0x150] sm:$0xff]
      %v248 = vld [vmem:[%s196 + $0x158] sm:$0xff]
      %v249 = vld [vmem:[%s196 + $0x160] sm:$0xff]
      %v250 = vld [vmem:[%s196 + $0x168] sm:$0xff]
      %v251 = vld [vmem:[%s196 + $0x170] sm:$0xff]
      %v252 = vld [vmem:[%s196 + $0x178] sm:$0xff]
      %v253 = vld [vmem:[%s196 + $0x180] sm:$0xff]
      %v254 = vld [vmem:[%s196 + $0x188] sm:$0xff]
      %v255 = vld [vmem:[%s196 + $0x190] sm:$0xff]
      %v256 = vld [vmem:[%s196 + $0x198] sm:$0xff]
      %v257 = vld [vmem:[%s196 + $0x1a0] sm:$0xff]
      %v258 = vld [vmem:[%s196 + $0x1a8] sm:$0xff]
      %v259 = vld [vmem:[%s196 + $0x1b0] sm:$0xff]
      %v260 = vld [vmem:[%s196 + $0x1b8] sm:$0xff]
      %v261 = vld [vmem:[%s196 + $0x1c0] sm:$0xff]
      %v262 = vld [vmem:[%s196 + $0x1c8] sm:$0xff]
      %v263 = vld [vmem:[%s196 + $0x1d0] sm:$0xff]
      %v264 = vld [vmem:[%s196 + $0x1d8] sm:$0xff]
      %v265 = vld [vmem:[%s196 + $0x1e0] sm:$0xff]
      %v266 = vld [vmem:[%s196 + $0x1e8] sm:$0xff]
      %v267 = vld [vmem:[%s196 + $0x1f0] sm:$0xff]
      %v268 = vld [vmem:[%s196 + $0x1f8] sm:$0xff]
      %v269 = vld [vmem:[%s1] sm:$0xf]
      %v270 = vld [vmem:[%s1 + $0x4] sm:$0xf]
      %v271 = vld [vmem:[%s1 + $0x8] sm:$0xf]
      %v272 = vld [vmem:[%s1 + $0xc] sm:$0xf]
      %v273 = vld [vmem:[%s1 + $0x10] sm:$0xf]
      %v274 = vld [vmem:[%s1 + $0x14] sm:$0xf]
      %v275 = vld [vmem:[%s1 + $0x18] sm:$0xf]
      %v276 = vld [vmem:[%s1 + $0x1c] sm:$0xf]
      %v277 = vld [vmem:[%s1 + $0x20] sm:$0xf]
      %v278 = vld [vmem:[%s1 + $0x24] sm:$0xf]
      %v279 = vld [vmem:[%s1 + $0x28] sm:$0xf]
      %v280 = vld [vmem:[%s1 + $0x2c] sm:$0xf]
      %v281 = vld [vmem:[%s1 + $0x30] sm:$0xf]
      %v282 = vld [vmem:[%s1 + $0x34] sm:$0xf]
      %v283 = vld [vmem:[%s1 + $0x38] sm:$0xf]
      %v284 = vld [vmem:[%s1 + $0x3c] sm:$0xf]
      %v285 = vld [vmem:[%s1 + $0x40] sm:$0xf]
      %v286 = vld [vmem:[%s1 + $0x44] sm:$0xf]
      %v287 = vld [vmem:[%s1 + $0x48] sm:$0x3]
      %v352 = vunpack.c.l.b16 %v205
      %v353 = vunpack.c.h.b16 %v205
      %v354 = vunpack.c.l.b16 %v206
      %v355 = vunpack.c.h.b16 %v206
      %v356 = vunpack.c.l.b16 %v207
      %v357 = vunpack.c.h.b16 %v207
      %v358 = vunpack.c.l.b16 %v208
      %v359 = vunpack.c.h.b16 %v208
      %v360 = vunpack.c.l.b16 %v209
      %v361 = vunpack.c.h.b16 %v209
      %v362 = vunpack.c.l.b16 %v210
      %v363 = vunpack.c.h.b16 %v210
      %v364 = vunpack.c.l.b16 %v211
      %v365 = vunpack.c.h.b16 %v211
      %v366 = vunpack.c.l.b16 %v212
      %v367 = vunpack.c.h.b16 %v212
      %v368 = vunpack.c.l.b16 %v213
      %v369 = vunpack.c.h.b16 %v213
      %v370 = vunpack.c.l.b16 %v214
      %v371 = vunpack.c.h.b16 %v214
      %v372 = vunpack.c.l.b16 %v215
      %v373 = vunpack.c.h.b16 %v215
      %v374 = vunpack.c.l.b16 %v216
      %v375 = vunpack.c.h.b16 %v216
      %v376 = vunpack.c.l.b16 %v217
      %v377 = vunpack.c.h.b16 %v217
      %v378 = vunpack.c.l.b16 %v218
      %v379 = vunpack.c.h.b16 %v218
      %v380 = vunpack.c.l.b16 %v219
      %v381 = vunpack.c.h.b16 %v219
      %v382 = vunpack.c.l.b16 %v220
      %v383 = vunpack.c.h.b16 %v220
      %v384 = vunpack.c.l.b16 %v221
      %v385 = vunpack.c.h.b16 %v221
      %v386 = vunpack.c.l.b16 %v222
      %v387 = vunpack.c.h.b16 %v222
      %v388 = vunpack.c.l.b16 %v223
      %v389 = vunpack.c.h.b16 %v223
      %v390 = vunpack.c.l.b16 %v224
      %v391 = vunpack.c.h.b16 %v224
      %v392 = vunpack.c.l.b16 %v225
      %v393 = vunpack.c.h.b16 %v225
      %v394 = vunpack.c.l.b16 %v226
      %v395 = vunpack.c.h.b16 %v226
      %v396 = vunpack.c.l.b16 %v227
      %v397 = vunpack.c.h.b16 %v227
      %v398 = vunpack.c.l.b16 %v228
      %v399 = vunpack.c.h.b16 %v228
      %v400 = vunpack.c.l.b16 %v229
      %v401 = vunpack.c.h.b16 %v229
      %v402 = vunpack.c.l.b16 %v230
      %v403 = vunpack.c.h.b16 %v230
      %v404 = vunpack.c.l.b16 %v231
      %v405 = vunpack.c.h.b16 %v231
      %v406 = vunpack.c.l.b16 %v232
      %v407 = vunpack.c.h.b16 %v232
      %v408 = vunpack.c.l.b16 %v233
      %v409 = vunpack.c.h.b16 %v233
      %v410 = vunpack.c.l.b16 %v234
      %v411 = vunpack.c.h.b16 %v234
      %v412 = vunpack.c.l.b16 %v235
      %v413 = vunpack.c.h.b16 %v235
      %v414 = vunpack.c.l.b16 %v236
      %v415 = vunpack.c.h.b16 %v236
      %v416 = vunpack.c.l.b16 %v237
      %v417 = vunpack.c.h.b16 %v237
      %v418 = vunpack.c.l.b16 %v238
      %v419 = vunpack.c.h.b16 %v238
      %v420 = vunpack.c.l.b16 %v239
      %v421 = vunpack.c.h.b16 %v239
      %v422 = vunpack.c.l.b16 %v240
      %v423 = vunpack.c.h.b16 %v240
      %v424 = vunpack.c.l.b16 %v241
      %v425 = vunpack.c.h.b16 %v241
      %v426 = vunpack.c.l.b16 %v242
      %v427 = vunpack.c.h.b16 %v242
      %v428 = vunpack.c.l.b16 %v243
      %v429 = vunpack.c.h.b16 %v243
      %v430 = vunpack.c.l.b16 %v244
      %v431 = vunpack.c.h.b16 %v244
      %v432 = vunpack.c.l.b16 %v245
      %v433 = vunpack.c.h.b16 %v245
      %v434 = vunpack.c.l.b16 %v246
      %v435 = vunpack.c.h.b16 %v246
      %v436 = vunpack.c.l.b16 %v247
      %v437 = vunpack.c.h.b16 %v247
      %v438 = vunpack.c.l.b16 %v248
      %v439 = vunpack.c.h.b16 %v248
      %v440 = vunpack.c.l.b16 %v249
      %v441 = vunpack.c.h.b16 %v249
      %v442 = vunpack.c.l.b16 %v250
      %v443 = vunpack.c.h.b16 %v250
      %v444 = vunpack.c.l.b16 %v251
      %v445 = vunpack.c.h.b16 %v251
      %v446 = vunpack.c.l.b16 %v252
      %v447 = vunpack.c.h.b16 %v252
      %v448 = vunpack.c.l.b16 %v253
      %v449 = vunpack.c.h.b16 %v253
      %v450 = vunpack.c.l.b16 %v254
      %v451 = vunpack.c.h.b16 %v254
      %v452 = vunpack.c.l.b16 %v255
      %v453 = vunpack.c.h.b16 %v255
      %v454 = vunpack.c.l.b16 %v256
      %v455 = vunpack.c.h.b16 %v256
      %v456 = vunpack.c.l.b16 %v257
      %v457 = vunpack.c.h.b16 %v257
      %v458 = vunpack.c.l.b16 %v258
      %v459 = vunpack.c.h.b16 %v258
      %v460 = vunpack.c.l.b16 %v259
      %v461 = vunpack.c.h.b16 %v259
      %v462 = vunpack.c.l.b16 %v260
      %v463 = vunpack.c.h.b16 %v260
      %v464 = vunpack.c.l.b16 %v261
      %v465 = vunpack.c.h.b16 %v261
      %v466 = vunpack.c.l.b16 %v262
      %v467 = vunpack.c.h.b16 %v262
      %v468 = vunpack.c.l.b16 %v263
      %v469 = vunpack.c.h.b16 %v263
      %v470 = vunpack.c.l.b16 %v264
      %v471 = vunpack.c.h.b16 %v264
      %v472 = vunpack.c.l.b16 %v265
      %v473 = vunpack.c.h.b16 %v265
      %v474 = vunpack.c.l.b16 %v266
      %v475 = vunpack.c.h.b16 %v266
      %v476 = vunpack.c.l.b16 %v267
      %v477 = vunpack.c.h.b16 %v267
      %v478 = vunpack.c.l.b16 %v268
      %v479 = vunpack.c.h.b16 %v268
      %v480 = vpack.c.b16 %v354, %v352
      %v481 = vpack.c.b16 %v355, %v353
      %v482 = vpack.c.b16 %v358, %v356
      %v483 = vpack.c.b16 %v359, %v357
      %v484 = vpack.c.b16 %v362, %v360
      %v485 = vpack.c.b16 %v363, %v361
      %v486 = vpack.c.b16 %v366, %v364
      %v487 = vpack.c.b16 %v367, %v365
      %v488 = vpack.c.b16 %v370, %v368
      %v489 = vpack.c.b16 %v371, %v369
      %v490 = vpack.c.b16 %v374, %v372
      %v491 = vpack.c.b16 %v375, %v373
      %v492 = vpack.c.b16 %v378, %v376
      %v493 = vpack.c.b16 %v379, %v377
      %v494 = vpack.c.b16 %v382, %v380
      %v495 = vpack.c.b16 %v383, %v381
      %v496 = vpack.c.b16 %v386, %v384
      %v497 = vpack.c.b16 %v387, %v385
      %v498 = vpack.c.b16 %v390, %v388
      %v499 = vpack.c.b16 %v391, %v389
      %v500 = vpack.c.b16 %v394, %v392
      %v501 = vpack.c.b16 %v395, %v393
      %v502 = vpack.c.b16 %v398, %v396
      %v503 = vpack.c.b16 %v399, %v397
      %v504 = vpack.c.b16 %v402, %v400
      %v505 = vpack.c.b16 %v403, %v401
      %v506 = vpack.c.b16 %v406, %v404
      %v507 = vpack.c.b16 %v407, %v405
      %v508 = vpack.c.b16 %v410, %v408
      %v509 = vpack.c.b16 %v411, %v409
      %v510 = vpack.c.b16 %v414, %v412
      %v511 = vpack.c.b16 %v415, %v413
      %v512 = vpack.c.b16 %v418, %v416
      %v513 = vpack.c.b16 %v419, %v417
      %v514 = vpack.c.b16 %v422, %v420
      %v515 = vpack.c.b16 %v423, %v421
      %v516 = vpack.c.b16 %v426, %v424
      %v517 = vpack.c.b16 %v427, %v425
      %v518 = vpack.c.b16 %v430, %v428
      %v519 = vpack.c.b16 %v431, %v429
      %v520 = vpack.c.b16 %v434, %v432
      %v521 = vpack.c.b16 %v435, %v433
      %v522 = vpack.c.b16 %v438, %v436
      %v523 = vpack.c.b16 %v439, %v437
      %v524 = vpack.c.b16 %v442, %v440
      %v525 = vpack.c.b16 %v443, %v441
      %v526 = vpack.c.b16 %v446, %v444
      %v527 = vpack.c.b16 %v447, %v445
      %v528 = vpack.c.b16 %v450, %v448
      %v529 = vpack.c.b16 %v451, %v449
      %v530 = vpack.c.b16 %v454, %v452
      %v531 = vpack.c.b16 %v455, %v453
      %v532 = vpack.c.b16 %v458, %v456
      %v533 = vpack.c.b16 %v459, %v457
      %v534 = vpack.c.b16 %v462, %v460
      %v535 = vpack.c.b16 %v463, %v461
      %v536 = vpack.c.b16 %v466, %v464
      %v537 = vpack.c.b16 %v467, %v465
      %v538 = vpack.c.b16 %v470, %v468
      %v539 = vpack.c.b16 %v471, %v469
      %v540 = vpack.c.b16 %v474, %v472
      %v541 = vpack.c.b16 %v475, %v473
      %v542 = vpack.c.b16 %v478, %v476
      %v543 = vpack.c.b16 %v479, %v477
      %v595 = vunpack.c.l.b16 %v269
      %v596 = vunpack.c.l.b16 %v270
      %v597 = vunpack.c.l.b16 %v271
      %v598 = vunpack.c.l.b16 %v272
      %v599 = vunpack.c.l.b16 %v273
      %v600 = vunpack.c.l.b16 %v274
      %v601 = vunpack.c.l.b16 %v275
      %v602 = vunpack.c.l.b16 %v276
      %v603 = vunpack.c.l.b16 %v277
      %v604 = vunpack.c.l.b16 %v278
      %v605 = vunpack.c.l.b16 %v279
      %v606 = vunpack.c.l.b16 %v280
      %v607 = vunpack.c.l.b16 %v281
      %v608 = vunpack.c.l.b16 %v282
      %v609 = vunpack.c.l.b16 %v283
      %v610 = vunpack.c.l.b16 %v284
      %v611 = vunpack.c.l.b16 %v285
      %v612 = vunpack.c.l.b16 %v286
      %v613 = vunpack.c.l.b16 %v287
      %v614 = vpack.c.b16 %v596, %v595
      %v615 = vpack.c.b16 %v598, %v597
      %v616 = vpack.c.b16 %v600, %v599
      %v617 = vpack.c.b16 %v602, %v601
      %v618 = vpack.c.b16 %v604, %v603
      %v619 = vpack.c.b16 %v606, %v605
      %v620 = vpack.c.b16 %v608, %v607
      %v621 = vpack.c.b16 %v610, %v609
      %v622 = vpack.c.b16 %v612, %v611
      %v623 = vpack.c.b16 %v613, %v613
      %vm633 = vcmask 154624
      %v635 = vsel %vm633, %v481, 0
      %v638 = vsel %vm633, %v483, 0
      %v641 = vsel %vm633, %v485, 0
      %v644 = vsel %vm633, %v487, 0
      %v647 = vsel %vm633, %v489, 0
      %v650 = vsel %vm633, %v491, 0
      %v653 = vsel %vm633, %v493, 0
      %v656 = vsel %vm633, %v495, 0
      %v659 = vsel %vm633, %v497, 0
      %v662 = vsel %vm633, %v499, 0
      %v665 = vsel %vm633, %v501, 0
      %v668 = vsel %vm633, %v503, 0
      %v671 = vsel %vm633, %v505, 0
      %v674 = vsel %vm633, %v507, 0
      %v677 = vsel %vm633, %v509, 0
      %v680 = vsel %vm633, %v511, 0
      %v683 = vsel %vm633, %v513, 0
      %v686 = vsel %vm633, %v515, 0
      %v689 = vsel %vm633, %v517, 0
      %v692 = vsel %vm633, %v519, 0
      %v695 = vsel %vm633, %v521, 0
      %v698 = vsel %vm633, %v523, 0
      %v701 = vsel %vm633, %v525, 0
      %v704 = vsel %vm633, %v527, 0
      %v707 = vsel %vm633, %v529, 0
      %v710 = vsel %vm633, %v531, 0
      %v713 = vsel %vm633, %v533, 0
      %v716 = vsel %vm633, %v535, 0
      %v719 = vsel %vm633, %v537, 0
      %v722 = vsel %vm633, %v539, 0
      %v725 = vsel %vm633, %v541, 0
      %v728 = vsel %vm633, %v543, 0
      %vm730 = vcmask 1040384
      %vm731 = vcmask 1041408
      %v732 = vsel %vm730, 4294967295, 65535
      %v733 = vsel %vm731, %v732, 0
      %v735 = vand.u32 %v623, %v733
      %737 = vmatprep.subr.bf16.mxu0 0
      %738 = vmatpush1.bf16.msra.mxu0 %v614
      %739 = vmatprep.subr.bf16.mxu0 0
      %740 = vmatpush1.bf16.msra.mxu0 %v615
      %741 = vmatprep.subr.bf16.mxu0 0
      %742 = vmatpush1.bf16.msra.mxu0 %v616
      %743 = vmatprep.subr.bf16.mxu0 0
      %744 = vmatpush1.bf16.msra.mxu0 %v617
      %745 = vmatprep.subr.bf16.mxu0 0
      %746 = vmatpush1.bf16.msra.mxu0 %v618
      %747 = vmatprep.subr.bf16.mxu0 0
      %748 = vmatpush1.bf16.msra.mxu0 %v619
      %749 = vmatprep.subr.bf16.mxu0 0
      %750 = vmatpush1.bf16.msra.mxu0 %v620
      %751 = vmatprep.subr.bf16.mxu0 0
      %752 = vmatpush1.bf16.msra.mxu0 %v621
      %753 = vmatprep.subr.bf16.mxu0 0
      %754 = vmatpush1.bf16.msra.mxu0 %v622
      %755 = vmatprep.subr.bf16.mxu0 0
      %756 = vmatpush1.bf16.msra.mxu0 %v735
      %757 = vmatprep.subr.bf16.mxu0 0
      %758 = vmatpush1.bf16.msra.mxu0 0
      %759 = vmatprep.subr.bf16.mxu0 0
      %760 = vmatpush1.bf16.msra.mxu0 0
      %761 = vmatprep.subr.bf16.mxu0 0
      %762 = vmatpush1.bf16.msra.mxu0 0
      %763 = vmatprep.subr.bf16.mxu0 0
      %764 = vmatpush1.bf16.msra.mxu0 0
      %765 = vmatprep.subr.bf16.mxu0 0
      %766 = vmatpush1.bf16.msra.mxu0 0
      %767 = vmatprep.subr.bf16.mxu0 0
      %768 = vmatpush1.bf16.msra.mxu0 0
      %769 = vmatprep.mubr.bf16.mxu0 %v635
      %770 = vmatmul.mubr.bf16.gmra.mrb[0].mxu0 %v480
      %v771 = vpop.f32.mrb[0].mxu0
      %v772 = vadd.f32 0.0, %v771
      %v773 = vpop.f32.mrb[0].mxu0
      %v774 = vpop.f32.mrb[0].mxu0
      %v775 = vadd.f32 0.0, %v774
      %v776 = vpop.f32.mrb[0].mxu0
      %777 = vmatprep.mubr.bf16.mxu0 %v638
      %778 = vmatmul.mubr.bf16.gmra.mrb[0].mxu0 %v482
      %v779 = vpop.f32.mrb[0].mxu0
      %v780 = vadd.f32 0.0, %v779
      %v781 = vpop.f32.mrb[0].mxu0
      %v782 = vpop.f32.mrb[0].mxu0
      %v783 = vadd.f32 0.0, %v782
      %v784 = vpop.f32.mrb[0].mxu0
      %785 = vmatprep.mubr.bf16.mxu0 %v641
      %786 = vmatmul.mubr.bf16.gmra.mrb[0].mxu0 %v484
      %v787 = vpop.f32.mrb[0].mxu0
      %v788 = vadd.f32 0.0, %v787
      %v789 = vpop.f32.mrb[0].mxu0
      %v790 = vpop.f32.mrb[0].mxu0
      %v791 = vadd.f32 0.0, %v790
      %v792 = vpop.f32.mrb[0].mxu0
      %793 = vmatprep.mubr.bf16.mxu0 %v644
      %794 = vmatmul.mubr.bf16.gmra.mrb[0].mxu0 %v486
      %v795 = vpop.f32.mrb[0].mxu0
      %v796 = vadd.f32 0.0, %v795
      %v797 = vpop.f32.mrb[0].mxu0
      %v798 = vpop.f32.mrb[0].mxu0
      %v799 = vadd.f32 0.0, %v798
      %v800 = vpop.f32.mrb[0].mxu0
      %801 = vmatprep.mubr.bf16.mxu0 %v647
      %802 = vmatmul.mubr.bf16.gmra.mrb[0].mxu0 %v488
      %v803 = vpop.f32.mrb[0].mxu0
      %v804 = vadd.f32 0.0, %v803
      %v805 = vpop.f32.mrb[0].mxu0
      %v806 = vpop.f32.mrb[0].mxu0
      %v807 = vadd.f32 0.0, %v806
      %v808 = vpop.f32.mrb[0].mxu0
      %809 = vmatprep.mubr.bf16.mxu0 %v650
      %810 = vmatmul.mubr.bf16.gmra.mrb[0].mxu0 %v490
      %v811 = vpop.f32.mrb[0].mxu0
      %v812 = vadd.f32 0.0, %v811
      %v813 = vpop.f32.mrb[0].mxu0
      %v814 = vpop.f32.mrb[0].mxu0
      %v815 = vadd.f32 0.0, %v814
      %v816 = vpop.f32.mrb[0].mxu0
      %817 = vmatprep.mubr.bf16.mxu0 %v653
      %818 = vmatmul.mubr.bf16.gmra.mrb[0].mxu0 %v492
      %v819 = vpop.f32.mrb[0].mxu0
      %v820 = vadd.f32 0.0, %v819
      %v821 = vpop.f32.mrb[0].mxu0
      %v822 = vpop.f32.mrb[0].mxu0
      %v823 = vadd.f32 0.0, %v822
      %v824 = vpop.f32.mrb[0].mxu0
      %825 = vmatprep.mubr.bf16.mxu0 %v656
      %826 = vmatmul.mubr.bf16.gmra.mrb[0].mxu0 %v494
      %v827 = vpop.f32.mrb[0].mxu0
      %v828 = vadd.f32 0.0, %v827
      %v829 = vpop.f32.mrb[0].mxu0
      %v830 = vpop.f32.mrb[0].mxu0
      %v831 = vadd.f32 0.0, %v830
      %v832 = vpop.f32.mrb[0].mxu0
      %833 = vmatprep.mubr.bf16.mxu0 %v659
      %834 = vmatmul.mubr.bf16.gmra.mrb[0].mxu0 %v496
      %v835 = vpop.f32.mrb[0].mxu0
      %v836 = vadd.f32 0.0, %v835
      %v837 = vpop.f32.mrb[0].mxu0
      %v838 = vpop.f32.mrb[0].mxu0
      %v839 = vadd.f32 0.0, %v838
      %v840 = vpop.f32.mrb[0].mxu0
      %841 = vmatprep.mubr.bf16.mxu0 %v662
      %842 = vmatmul.mubr.bf16.gmra.mrb[0].mxu0 %v498
      %v843 = vpop.f32.mrb[0].mxu0
      %v844 = vadd.f32 0.0, %v843
      %v845 = vpop.f32.mrb[0].mxu0
      %v846 = vpop.f32.mrb[0].mxu0
      %v847 = vadd.f32 0.0, %v846
      %v848 = vpop.f32.mrb[0].mxu0
      %849 = vmatprep.mubr.bf16.mxu0 %v665
      %850 = vmatmul.mubr.bf16.gmra.mrb[0].mxu0 %v500
      %v851 = vpop.f32.mrb[0].mxu0
      %v852 = vadd.f32 0.0, %v851
      %v853 = vpop.f32.mrb[0].mxu0
      %v854 = vpop.f32.mrb[0].mxu0
      %v855 = vadd.f32 0.0, %v854
      %v856 = vpop.f32.mrb[0].mxu0
      %857 = vmatprep.mubr.bf16.mxu0 %v668
      %858 = vmatmul.mubr.bf16.gmra.mrb[0].mxu0 %v502
      %v859 = vpop.f32.mrb[0].mxu0
      %v860 = vadd.f32 0.0, %v859
      %v861 = vpop.f32.mrb[0].mxu0
      %v862 = vpop.f32.mrb[0].mxu0
      %v863 = vadd.f32 0.0, %v862
      %v864 = vpop.f32.mrb[0].mxu0
      %865 = vmatprep.mubr.bf16.mxu0 %v671
      %866 = vmatmul.mubr.bf16.gmra.mrb[0].mxu0 %v504
      %v867 = vpop.f32.mrb[0].mxu0
      %v868 = vadd.f32 0.0, %v867
      %v869 = vpop.f32.mrb[0].mxu0
      %v870 = vpop.f32.mrb[0].mxu0
      %v871 = vadd.f32 0.0, %v870
      %v872 = vpop.f32.mrb[0].mxu0
      %873 = vmatprep.mubr.bf16.mxu0 %v674
      %874 = vmatmul.mubr.bf16.gmra.mrb[0].mxu0 %v506
      %v875 = vpop.f32.mrb[0].mxu0
      %v876 = vadd.f32 0.0, %v875
      %v877 = vpop.f32.mrb[0].mxu0
      %v878 = vpop.f32.mrb[0].mxu0
      %v879 = vadd.f32 0.0, %v878
      %v880 = vpop.f32.mrb[0].mxu0
      %881 = vmatprep.mubr.bf16.mxu0 %v677
      %882 = vmatmul.mubr.bf16.gmra.mrb[0].mxu0 %v508
      %v883 = vpop.f32.mrb[0].mxu0
      %v884 = vadd.f32 0.0, %v883
      %v885 = vpop.f32.mrb[0].mxu0
      %v886 = vpop.f32.mrb[0].mxu0
      %v887 = vadd.f32 0.0, %v886
      %v888 = vpop.f32.mrb[0].mxu0
      %889 = vmatprep.mubr.bf16.mxu0 %v680
      %890 = vmatmul.mubr.bf16.gmra.mrb[0].mxu0 %v510
      %v891 = vpop.f32.mrb[0].mxu0
      %v892 = vadd.f32 0.0, %v891
      %v893 = vpop.f32.mrb[0].mxu0
      %v894 = vpop.f32.mrb[0].mxu0
      %v895 = vadd.f32 0.0, %v894
      %v896 = vpop.f32.mrb[0].mxu0
      %897 = vmatprep.mubr.bf16.mxu0 %v683
      %898 = vmatmul.mubr.bf16.gmra.mrb[0].mxu0 %v512
      %v899 = vpop.f32.mrb[0].mxu0
      %v900 = vadd.f32 0.0, %v899
      %v901 = vpop.f32.mrb[0].mxu0
      %v902 = vpop.f32.mrb[0].mxu0
      %v903 = vadd.f32 0.0, %v902
      %v904 = vpop.f32.mrb[0].mxu0
      %905 = vmatprep.mubr.bf16.mxu0 %v686
      %906 = vmatmul.mubr.bf16.gmra.mrb[0].mxu0 %v514
      %v907 = vpop.f32.mrb[0].mxu0
      %v908 = vadd.f32 0.0, %v907
      %v909 = vpop.f32.mrb[0].mxu0
      %v910 = vpop.f32.mrb[0].mxu0
      %v911 = vadd.f32 0.0, %v910
      %v912 = vpop.f32.mrb[0].mxu0
      %913 = vmatprep.mubr.bf16.mxu0 %v689
      %914 = vmatmul.mubr.bf16.gmra.mrb[0].mxu0 %v516
      %v915 = vpop.f32.mrb[0].mxu0
      %v916 = vadd.f32 0.0, %v915
      %v917 = vpop.f32.mrb[0].mxu0
      %v918 = vpop.f32.mrb[0].mxu0
      %v919 = vadd.f32 0.0, %v918
      %v920 = vpop.f32.mrb[0].mxu0
      %921 = vmatprep.mubr.bf16.mxu0 %v692
      %922 = vmatmul.mubr.bf16.gmra.mrb[0].mxu0 %v518
      %v923 = vpop.f32.mrb[0].mxu0
      %v924 = vadd.f32 0.0, %v923
      %v925 = vpop.f32.mrb[0].mxu0
      %v926 = vpop.f32.mrb[0].mxu0
      %v927 = vadd.f32 0.0, %v926
      %v928 = vpop.f32.mrb[0].mxu0
      %929 = vmatprep.mubr.bf16.mxu0 %v695
      %930 = vmatmul.mubr.bf16.gmra.mrb[0].mxu0 %v520
      %v931 = vpop.f32.mrb[0].mxu0
      %v932 = vadd.f32 0.0, %v931
      %v933 = vpop.f32.mrb[0].mxu0
      %v934 = vpop.f32.mrb[0].mxu0
      %v935 = vadd.f32 0.0, %v934
      %v936 = vpop.f32.mrb[0].mxu0
      %937 = vmatprep.mubr.bf16.mxu0 %v698
      %938 = vmatmul.mubr.bf16.gmra.mrb[0].mxu0 %v522
      %v939 = vpop.f32.mrb[0].mxu0
      %v940 = vadd.f32 0.0, %v939
      %v941 = vpop.f32.mrb[0].mxu0
      %v942 = vpop.f32.mrb[0].mxu0
      %v943 = vadd.f32 0.0, %v942
      %v944 = vpop.f32.mrb[0].mxu0
      %945 = vmatprep.mubr.bf16.mxu0 %v701
      %946 = vmatmul.mubr.bf16.gmra.mrb[0].mxu0 %v524
      %v947 = vpop.f32.mrb[0].mxu0
      %v948 = vadd.f32 0.0, %v947
      %v949 = vpop.f32.mrb[0].mxu0
      %v950 = vpop.f32.mrb[0].mxu0
      %v951 = vadd.f32 0.0, %v950
      %v952 = vpop.f32.mrb[0].mxu0
      %953 = vmatprep.mubr.bf16.mxu0 %v704
      %954 = vmatmul.mubr.bf16.gmra.mrb[0].mxu0 %v526
      %v955 = vpop.f32.mrb[0].mxu0
      %v956 = vadd.f32 0.0, %v955
      %v957 = vpop.f32.mrb[0].mxu0
      %v958 = vpop.f32.mrb[0].mxu0
      %v959 = vadd.f32 0.0, %v958
      %v960 = vpop.f32.mrb[0].mxu0
      %961 = vmatprep.mubr.bf16.mxu0 %v707
      %962 = vmatmul.mubr.bf16.gmra.mrb[0].mxu0 %v528
      %v963 = vpop.f32.mrb[0].mxu0
      %v964 = vadd.f32 0.0, %v963
      %v965 = vpop.f32.mrb[0].mxu0
      %v966 = vpop.f32.mrb[0].mxu0
      %v967 = vadd.f32 0.0, %v966
      %v968 = vpop.f32.mrb[0].mxu0
      %969 = vmatprep.mubr.bf16.mxu0 %v710
      %970 = vmatmul.mubr.bf16.gmra.mrb[0].mxu0 %v530
      %v971 = vpop.f32.mrb[0].mxu0
      %v972 = vadd.f32 0.0, %v971
      %v973 = vpop.f32.mrb[0].mxu0
      %v974 = vpop.f32.mrb[0].mxu0
      %v975 = vadd.f32 0.0, %v974
      %v976 = vpop.f32.mrb[0].mxu0
      %977 = vmatprep.mubr.bf16.mxu0 %v713
      %978 = vmatmul.mubr.bf16.gmra.mrb[0].mxu0 %v532
      %v979 = vpop.f32.mrb[0].mxu0
      %v980 = vadd.f32 0.0, %v979
      %v981 = vpop.f32.mrb[0].mxu0
      %v982 = vpop.f32.mrb[0].mxu0
      %v983 = vadd.f32 0.0, %v982
      %v984 = vpop.f32.mrb[0].mxu0
      %985 = vmatprep.mubr.bf16.mxu0 %v716
      %986 = vmatmul.mubr.bf16.gmra.mrb[0].mxu0 %v534
      %v987 = vpop.f32.mrb[0].mxu0
      %v988 = vadd.f32 0.0, %v987
      %v989 = vpop.f32.mrb[0].mxu0
      %v990 = vpop.f32.mrb[0].mxu0
      %v991 = vadd.f32 0.0, %v990
      %v992 = vpop.f32.mrb[0].mxu0
      %993 = vmatprep.mubr.bf16.mxu0 %v719
      %994 = vmatmul.mubr.bf16.gmra.mrb[0].mxu0 %v536
      %v995 = vpop.f32.mrb[0].mxu0
      %v996 = vadd.f32 0.0, %v995
      %v997 = vpop.f32.mrb[0].mxu0
      %v998 = vpop.f32.mrb[0].mxu0
      %v999 = vadd.f32 0.0, %v998
      %v1000 = vpop.f32.mrb[0].mxu0
      %1001 = vmatprep.mubr.bf16.mxu0 %v722
      %1002 = vmatmul.mubr.bf16.gmra.mrb[0].mxu0 %v538
      %v1003 = vpop.f32.mrb[0].mxu0
      %v1004 = vadd.f32 0.0, %v1003
      %v1005 = vpop.f32.mrb[0].mxu0
      %v1006 = vpop.f32.mrb[0].mxu0
      %v1007 = vadd.f32 0.0, %v1006
      %v1008 = vpop.f32.mrb[0].mxu0
      %1009 = vmatprep.mubr.bf16.mxu0 %v725
      %1010 = vmatmul.mubr.bf16.gmra.mrb[0].mxu0 %v540
      %v1011 = vpop.f32.mrb[0].mxu0
      %v1012 = vadd.f32 0.0, %v1011
      %v1013 = vpop.f32.mrb[0].mxu0
      %v1014 = vpop.f32.mrb[0].mxu0
      %v1015 = vadd.f32 0.0, %v1014
      %v1016 = vpop.f32.mrb[0].mxu0
      %1017 = vmatprep.mubr.bf16.mxu0 %v728
      %1018 = vmatmul.mubr.bf16.gmra.mrb[0].mxu0 %v542
      %v1019 = vpop.f32.mrb[0].mxu0
      %v1020 = vadd.f32 0.0, %v1019
      %v1021 = vpop.f32.mrb[0].mxu0
      %v1022 = vpop.f32.mrb[0].mxu0
      %v1023 = vadd.f32 0.0, %v1022
      %v1024 = vpop.f32.mrb[0].mxu0
      %1025 = vdwg.mxu0
      %v1026 = vld [vmem:[%s2] sm:$0x1]
      %v1028 = vlaneseq
      %v1029 = vshrl.u32 %v1028, 7
      %v1030 = vsub.s32 0, %v1029
      %v1031 = vrot.slane %v1026, %v1030
      %v1033 = vmul.f32 %v772, %v1031
      %v1034 = vmul.f32 %v775, %v1031
      %v1035 = vmul.f32 %v780, %v1031
      %v1036 = vmul.f32 %v783, %v1031
      %v1037 = vmul.f32 %v788, %v1031
      %v1038 = vmul.f32 %v791, %v1031
      %v1039 = vmul.f32 %v796, %v1031
      %v1040 = vmul.f32 %v799, %v1031
      %v1041 = vmul.f32 %v804, %v1031
      %v1042 = vmul.f32 %v807, %v1031
      %v1043 = vmul.f32 %v812, %v1031
      %v1044 = vmul.f32 %v815, %v1031
      %v1045 = vmul.f32 %v820, %v1031
      %v1046 = vmul.f32 %v823, %v1031
      %v1047 = vmul.f32 %v828, %v1031
      %v1048 = vmul.f32 %v831, %v1031
      %v1049 = vmul.f32 %v836, %v1031
      %v1050 = vmul.f32 %v839, %v1031
      %v1051 = vmul.f32 %v844, %v1031
      %v1052 = vmul.f32 %v847, %v1031
      %v1053 = vmul.f32 %v852, %v1031
      %v1054 = vmul.f32 %v855, %v1031
      %v1055 = vmul.f32 %v860, %v1031
      %v1056 = vmul.f32 %v863, %v1031
      %v1057 = vmul.f32 %v868, %v1031
      %v1058 = vmul.f32 %v871, %v1031
      %v1059 = vmul.f32 %v876, %v1031
      %v1060 = vmul.f32 %v879, %v1031
      %v1061 = vmul.f32 %v884, %v1031
      %v1062 = vmul.f32 %v887, %v1031
      %v1063 = vmul.f32 %v892, %v1031
      %v1064 = vmul.f32 %v895, %v1031
      %v1065 = vmul.f32 %v900, %v1031
      %v1066 = vmul.f32 %v903, %v1031
      %v1067 = vmul.f32 %v908, %v1031
      %v1068 = vmul.f32 %v911, %v1031
      %v1069 = vmul.f32 %v916, %v1031
      %v1070 = vmul.f32 %v919, %v1031
      %v1071 = vmul.f32 %v924, %v1031
      %v1072 = vmul.f32 %v927, %v1031
      %v1073 = vmul.f32 %v932, %v1031
      %v1074 = vmul.f32 %v935, %v1031
      %v1075 = vmul.f32 %v940, %v1031
      %v1076 = vmul.f32 %v943, %v1031
      %v1077 = vmul.f32 %v948, %v1031
      %v1078 = vmul.f32 %v951, %v1031
      %v1079 = vmul.f32 %v956, %v1031
      %v1080 = vmul.f32 %v959, %v1031
      %v1081 = vmul.f32 %v964, %v1031
      %v1082 = vmul.f32 %v967, %v1031
      %v1083 = vmul.f32 %v972, %v1031
      %v1084 = vmul.f32 %v975, %v1031
      %v1085 = vmul.f32 %v980, %v1031
      %v1086 = vmul.f32 %v983, %v1031
      %v1087 = vmul.f32 %v988, %v1031
      %v1088 = vmul.f32 %v991, %v1031
      %v1089 = vmul.f32 %v996, %v1031
      %v1090 = vmul.f32 %v999, %v1031
      %v1091 = vmul.f32 %v1004, %v1031
      %v1092 = vmul.f32 %v1007, %v1031
      %v1093 = vmul.f32 %v1012, %v1031
      %v1094 = vmul.f32 %v1015, %v1031
      %v1095 = vmul.f32 %v1020, %v1031
      %v1096 = vmul.f32 %v1023, %v1031
      %v1097 = vld [vmem:[%s3] sm:$0x1]
      %v1099 = vlaneseq
      %v1100 = vshrl.u32 %v1099, 7
      %v1101 = vsub.s32 0, %v1100
      %v1102 = vrot.slane %v1097, %v1101
      %v1104 = vadd.f32 %v1033, %v1102
      %v1105 = vadd.f32 %v1034, %v1102
      %v1106 = vadd.f32 %v1035, %v1102
      %v1107 = vadd.f32 %v1036, %v1102
      %v1108 = vadd.f32 %v1037, %v1102
      %v1109 = vadd.f32 %v1038, %v1102
      %v1110 = vadd.f32 %v1039, %v1102
      %v1111 = vadd.f32 %v1040, %v1102
      %v1112 = vadd.f32 %v1041, %v1102
      %v1113 = vadd.f32 %v1042, %v1102
      %v1114 = vadd.f32 %v1043, %v1102
      %v1115 = vadd.f32 %v1044, %v1102
      %v1116 = vadd.f32 %v1045, %v1102
      %v1117 = vadd.f32 %v1046, %v1102
      %v1118 = vadd.f32 %v1047, %v1102
      %v1119 = vadd.f32 %v1048, %v1102
      %v1120 = vadd.f32 %v1049, %v1102
      %v1121 = vadd.f32 %v1050, %v1102
      %v1122 = vadd.f32 %v1051, %v1102
      %v1123 = vadd.f32 %v1052, %v1102
      %v1124 = vadd.f32 %v1053, %v1102
      %v1125 = vadd.f32 %v1054, %v1102
      %v1126 = vadd.f32 %v1055, %v1102
      %v1127 = vadd.f32 %v1056, %v1102
      %v1128 = vadd.f32 %v1057, %v1102
      %v1129 = vadd.f32 %v1058, %v1102
      %v1130 = vadd.f32 %v1059, %v1102
      %v1131 = vadd.f32 %v1060, %v1102
      %v1132 = vadd.f32 %v1061, %v1102
      %v1133 = vadd.f32 %v1062, %v1102
      %v1134 = vadd.f32 %v1063, %v1102
      %v1135 = vadd.f32 %v1064, %v1102
      %v1136 = vadd.f32 %v1065, %v1102
      %v1137 = vadd.f32 %v1066, %v1102
      %v1138 = vadd.f32 %v1067, %v1102
      %v1139 = vadd.f32 %v1068, %v1102
      %v1140 = vadd.f32 %v1069, %v1102
      %v1141 = vadd.f32 %v1070, %v1102
      %v1142 = vadd.f32 %v1071, %v1102
      %v1143 = vadd.f32 %v1072, %v1102
      %v1144 = vadd.f32 %v1073, %v1102
      %v1145 = vadd.f32 %v1074, %v1102
      %v1146 = vadd.f32 %v1075, %v1102
      %v1147 = vadd.f32 %v1076, %v1102
      %v1148 = vadd.f32 %v1077, %v1102
      %v1149 = vadd.f32 %v1078, %v1102
      %v1150 = vadd.f32 %v1079, %v1102
      %v1151 = vadd.f32 %v1080, %v1102
      %v1152 = vadd.f32 %v1081, %v1102
      %v1153 = vadd.f32 %v1082, %v1102
      %v1154 = vadd.f32 %v1083, %v1102
      %v1155 = vadd.f32 %v1084, %v1102
      %v1156 = vadd.f32 %v1085, %v1102
      %v1157 = vadd.f32 %v1086, %v1102
      %v1158 = vadd.f32 %v1087, %v1102
      %v1159 = vadd.f32 %v1088, %v1102
      %v1160 = vadd.f32 %v1089, %v1102
      %v1161 = vadd.f32 %v1090, %v1102
      %v1162 = vadd.f32 %v1091, %v1102
      %v1163 = vadd.f32 %v1092, %v1102
      %v1164 = vadd.f32 %v1093, %v1102
      %v1165 = vadd.f32 %v1094, %v1102
      %v1166 = vadd.f32 %v1095, %v1102
      %v1167 = vadd.f32 %v1096, %v1102
      %v1168 = vmax.f32 %v1104, 0.0
      %v1169 = vmax.f32 %v1105, 0.0
      %v1170 = vmax.f32 %v1106, 0.0
      %v1171 = vmax.f32 %v1107, 0.0
      %v1172 = vmax.f32 %v1108, 0.0
      %v1173 = vmax.f32 %v1109, 0.0
      %v1174 = vmax.f32 %v1110, 0.0
      %v1175 = vmax.f32 %v1111, 0.0
      %v1176 = vmax.f32 %v1112, 0.0
      %v1177 = vmax.f32 %v1113, 0.0
      %v1178 = vmax.f32 %v1114, 0.0
      %v1179 = vmax.f32 %v1115, 0.0
      %v1180 = vmax.f32 %v1116, 0.0
      %v1181 = vmax.f32 %v1117, 0.0
      %v1182 = vmax.f32 %v1118, 0.0
      %v1183 = vmax.f32 %v1119, 0.0
      %v1184 = vmax.f32 %v1120, 0.0
      %v1185 = vmax.f32 %v1121, 0.0
      %v1186 = vmax.f32 %v1122, 0.0
      %v1187 = vmax.f32 %v1123, 0.0
      %v1188 = vmax.f32 %v1124, 0.0
      %v1189 = vmax.f32 %v1125, 0.0
      %v1190 = vmax.f32 %v1126, 0.0
      %v1191 = vmax.f32 %v1127, 0.0
      %v1192 = vmax.f32 %v1128, 0.0
      %v1193 = vmax.f32 %v1129, 0.0
      %v1194 = vmax.f32 %v1130, 0.0
      %v1195 = vmax.f32 %v1131, 0.0
      %v1196 = vmax.f32 %v1132, 0.0
      %v1197 = vmax.f32 %v1133, 0.0
      %v1198 = vmax.f32 %v1134, 0.0
      %v1199 = vmax.f32 %v1135, 0.0
      %v1200 = vmax.f32 %v1136, 0.0
      %v1201 = vmax.f32 %v1137, 0.0
      %v1202 = vmax.f32 %v1138, 0.0
      %v1203 = vmax.f32 %v1139, 0.0
      %v1204 = vmax.f32 %v1140, 0.0
      %v1205 = vmax.f32 %v1141, 0.0
      %v1206 = vmax.f32 %v1142, 0.0
      %v1207 = vmax.f32 %v1143, 0.0
      %v1208 = vmax.f32 %v1144, 0.0
      %v1209 = vmax.f32 %v1145, 0.0
      %v1210 = vmax.f32 %v1146, 0.0
      %v1211 = vmax.f32 %v1147, 0.0
      %v1212 = vmax.f32 %v1148, 0.0
      %v1213 = vmax.f32 %v1149, 0.0
      %v1214 = vmax.f32 %v1150, 0.0
      %v1215 = vmax.f32 %v1151, 0.0
      %v1216 = vmax.f32 %v1152, 0.0
      %v1217 = vmax.f32 %v1153, 0.0
      %v1218 = vmax.f32 %v1154, 0.0
      %v1219 = vmax.f32 %v1155, 0.0
      %v1220 = vmax.f32 %v1156, 0.0
      %v1221 = vmax.f32 %v1157, 0.0
      %v1222 = vmax.f32 %v1158, 0.0
      %v1223 = vmax.f32 %v1159, 0.0
      %v1224 = vmax.f32 %v1160, 0.0
      %v1225 = vmax.f32 %v1161, 0.0
      %v1226 = vmax.f32 %v1162, 0.0
      %v1227 = vmax.f32 %v1163, 0.0
      %v1228 = vmax.f32 %v1164, 0.0
      %v1229 = vmax.f32 %v1165, 0.0
      %v1230 = vmax.f32 %v1166, 0.0
      %v1231 = vmax.f32 %v1167, 0.0
      %v1232 = vpack.c.bf16 %v1169, %v1168
      %v1233 = vpack.c.bf16 %v1171, %v1170
      %v1234 = vpack.c.bf16 %v1173, %v1172
      %v1235 = vpack.c.bf16 %v1175, %v1174
      %v1236 = vpack.c.bf16 %v1177, %v1176
      %v1237 = vpack.c.bf16 %v1179, %v1178
      %v1238 = vpack.c.bf16 %v1181, %v1180
      %v1239 = vpack.c.bf16 %v1183, %v1182
      %v1240 = vpack.c.bf16 %v1185, %v1184
      %v1241 = vpack.c.bf16 %v1187, %v1186
      %v1242 = vpack.c.bf16 %v1189, %v1188
      %v1243 = vpack.c.bf16 %v1191, %v1190
      %v1244 = vpack.c.bf16 %v1193, %v1192
      %v1245 = vpack.c.bf16 %v1195, %v1194
      %v1246 = vpack.c.bf16 %v1197, %v1196
      %v1247 = vpack.c.bf16 %v1199, %v1198
      %v1248 = vpack.c.bf16 %v1201, %v1200
      %v1249 = vpack.c.bf16 %v1203, %v1202
      %v1250 = vpack.c.bf16 %v1205, %v1204
      %v1251 = vpack.c.bf16 %v1207, %v1206
      %v1252 = vpack.c.bf16 %v1209, %v1208
      %v1253 = vpack.c.bf16 %v1211, %v1210
      %v1254 = vpack.c.bf16 %v1213, %v1212
      %v1255 = vpack.c.bf16 %v1215, %v1214
      %v1256 = vpack.c.bf16 %v1217, %v1216
      %v1257 = vpack.c.bf16 %v1219, %v1218
      %v1258 = vpack.c.bf16 %v1221, %v1220
      %v1259 = vpack.c.bf16 %v1223, %v1222
      %v1260 = vpack.c.bf16 %v1225, %v1224
      %v1261 = vpack.c.bf16 %v1227, %v1226
      %v1262 = vpack.c.bf16 %v1229, %v1228
      %v1263 = vpack.c.bf16 %v1231, %v1230
      %v1296 = vunpack.c.l.b16 %v1232
      %v1297 = vunpack.c.h.b16 %v1232
      %v1298 = vunpack.c.l.b16 %v1233
      %v1299 = vunpack.c.h.b16 %v1233
      %v1300 = vunpack.c.l.b16 %v1234
      %v1301 = vunpack.c.h.b16 %v1234
      %v1302 = vunpack.c.l.b16 %v1235
      %v1303 = vunpack.c.h.b16 %v1235
      %v1304 = vunpack.c.l.b16 %v1236
      %v1305 = vunpack.c.h.b16 %v1236
      %v1306 = vunpack.c.l.b16 %v1237
      %v1307 = vunpack.c.h.b16 %v1237
      %v1308 = vunpack.c.l.b16 %v1238
      %v1309 = vunpack.c.h.b16 %v1238
      %v1310 = vunpack.c.l.b16 %v1239
      %v1311 = vunpack.c.h.b16 %v1239
      %v1312 = vunpack.c.l.b16 %v1240
      %v1313 = vunpack.c.h.b16 %v1240
      %v1314 = vunpack.c.l.b16 %v1241
      %v1315 = vunpack.c.h.b16 %v1241
      %v1316 = vunpack.c.l.b16 %v1242
      %v1317 = vunpack.c.h.b16 %v1242
      %v1318 = vunpack.c.l.b16 %v1243
      %v1319 = vunpack.c.h.b16 %v1243
      %v1320 = vunpack.c.l.b16 %v1244
      %v1321 = vunpack.c.h.b16 %v1244
      %v1322 = vunpack.c.l.b16 %v1245
      %v1323 = vunpack.c.h.b16 %v1245
      %v1324 = vunpack.c.l.b16 %v1246
      %v1325 = vunpack.c.h.b16 %v1246
      %v1326 = vunpack.c.l.b16 %v1247
      %v1327 = vunpack.c.h.b16 %v1247
      %v1328 = vunpack.c.l.b16 %v1248
      %v1329 = vunpack.c.h.b16 %v1248
      %v1330 = vunpack.c.l.b16 %v1249
      %v1331 = vunpack.c.h.b16 %v1249
      %v1332 = vunpack.c.l.b16 %v1250
      %v1333 = vunpack.c.h.b16 %v1250
      %v1334 = vunpack.c.l.b16 %v1251
      %v1335 = vunpack.c.h.b16 %v1251
      %v1336 = vunpack.c.l.b16 %v1252
      %v1337 = vunpack.c.h.b16 %v1252
      %v1338 = vunpack.c.l.b16 %v1253
      %v1339 = vunpack.c.h.b16 %v1253
      %v1340 = vunpack.c.l.b16 %v1254
      %v1341 = vunpack.c.h.b16 %v1254
      %v1342 = vunpack.c.l.b16 %v1255
      %v1343 = vunpack.c.h.b16 %v1255
      %v1344 = vunpack.c.l.b16 %v1256
      %v1345 = vunpack.c.h.b16 %v1256
      %v1346 = vunpack.c.l.b16 %v1257
      %v1347 = vunpack.c.h.b16 %v1257
      %v1348 = vunpack.c.l.b16 %v1258
      %v1349 = vunpack.c.h.b16 %v1258
      %v1350 = vunpack.c.l.b16 %v1259
      %v1351 = vunpack.c.h.b16 %v1259
      %v1352 = vunpack.c.l.b16 %v1260
      %v1353 = vunpack.c.h.b16 %v1260
      %v1354 = vunpack.c.l.b16 %v1261
      %v1355 = vunpack.c.h.b16 %v1261
      %v1356 = vunpack.c.l.b16 %v1262
      %v1357 = vunpack.c.h.b16 %v1262
      %v1358 = vunpack.c.l.b16 %v1263
      %v1359 = vunpack.c.h.b16 %v1263
      %v1360 = vpack.c.b16 %v1296, %v1296
      %v1361 = vpack.c.b16 %v1297, %v1297
      %v1362 = vpack.c.b16 %v1298, %v1298
      %v1363 = vpack.c.b16 %v1299, %v1299
      %v1364 = vpack.c.b16 %v1300, %v1300
      %v1365 = vpack.c.b16 %v1301, %v1301
      %v1366 = vpack.c.b16 %v1302, %v1302
      %v1367 = vpack.c.b16 %v1303, %v1303
      %v1368 = vpack.c.b16 %v1304, %v1304
      %v1369 = vpack.c.b16 %v1305, %v1305
      %v1370 = vpack.c.b16 %v1306, %v1306
      %v1371 = vpack.c.b16 %v1307, %v1307
      %v1372 = vpack.c.b16 %v1308, %v1308
      %v1373 = vpack.c.b16 %v1309, %v1309
      %v1374 = vpack.c.b16 %v1310, %v1310
      %v1375 = vpack.c.b16 %v1311, %v1311
      %v1376 = vpack.c.b16 %v1312, %v1312
      %v1377 = vpack.c.b16 %v1313, %v1313
      %v1378 = vpack.c.b16 %v1314, %v1314
      %v1379 = vpack.c.b16 %v1315, %v1315
      %v1380 = vpack.c.b16 %v1316, %v1316
      %v1381 = vpack.c.b16 %v1317, %v1317
      %v1382 = vpack.c.b16 %v1318, %v1318
      %v1383 = vpack.c.b16 %v1319, %v1319
      %v1384 = vpack.c.b16 %v1320, %v1320
      %v1385 = vpack.c.b16 %v1321, %v1321
      %v1386 = vpack.c.b16 %v1322, %v1322
      %v1387 = vpack.c.b16 %v1323, %v1323
      %v1388 = vpack.c.b16 %v1324, %v1324
      %v1389 = vpack.c.b16 %v1325, %v1325
      %v1390 = vpack.c.b16 %v1326, %v1326
      %v1391 = vpack.c.b16 %v1327, %v1327
      %v1392 = vpack.c.b16 %v1328, %v1328
      %v1393 = vpack.c.b16 %v1329, %v1329
      %v1394 = vpack.c.b16 %v1330, %v1330
      %v1395 = vpack.c.b16 %v1331, %v1331
      %v1396 = vpack.c.b16 %v1332, %v1332
      %v1397 = vpack.c.b16 %v1333, %v1333
      %v1398 = vpack.c.b16 %v1334, %v1334
      %v1399 = vpack.c.b16 %v1335, %v1335
      %v1400 = vpack.c.b16 %v1336, %v1336
      %v1401 = vpack.c.b16 %v1337, %v1337
      %v1402 = vpack.c.b16 %v1338, %v1338
      %v1403 = vpack.c.b16 %v1339, %v1339
      %v1404 = vpack.c.b16 %v1340, %v1340
      %v1405 = vpack.c.b16 %v1341, %v1341
      %v1406 = vpack.c.b16 %v1342, %v1342
      %v1407 = vpack.c.b16 %v1343, %v1343
      %v1408 = vpack.c.b16 %v1344, %v1344
      %v1409 = vpack.c.b16 %v1345, %v1345
      %v1410 = vpack.c.b16 %v1346, %v1346
      %v1411 = vpack.c.b16 %v1347, %v1347
      %v1412 = vpack.c.b16 %v1348, %v1348
      %v1413 = vpack.c.b16 %v1349, %v1349
      %v1414 = vpack.c.b16 %v1350, %v1350
      %v1415 = vpack.c.b16 %v1351, %v1351
      %v1416 = vpack.c.b16 %v1352, %v1352
      %v1417 = vpack.c.b16 %v1353, %v1353
      %v1418 = vpack.c.b16 %v1354, %v1354
      %v1419 = vpack.c.b16 %v1355, %v1355
      %v1420 = vpack.c.b16 %v1356, %v1356
      %v1421 = vpack.c.b16 %v1357, %v1357
      %v1422 = vpack.c.b16 %v1358, %v1358
      %v1423 = vpack.c.b16 %v1359, %v1359
      %vm1488 = vcmask 60416
      %1489 = vst.msk [vmem:[%s202] sm:$0xf] %vm1488, %v1360
      %1490 = vst.msk [vmem:[%s202 + $0x4] sm:$0xf] %vm1488, %v1361
      %1491 = vst.msk [vmem:[%s202 + $0x8] sm:$0xf] %vm1488, %v1362
      %1492 = vst.msk [vmem:[%s202 + $0xc] sm:$0xf] %vm1488, %v1363
      %1493 = vst.msk [vmem:[%s202 + $0x10] sm:$0xf] %vm1488, %v1364
      %1494 = vst.msk [vmem:[%s202 + $0x14] sm:$0xf] %vm1488, %v1365
      %1495 = vst.msk [vmem:[%s202 + $0x18] sm:$0xf] %vm1488, %v1366
      %1496 = vst.msk [vmem:[%s202 + $0x1c] sm:$0xf] %vm1488, %v1367
      %1497 = vst.msk [vmem:[%s202 + $0x20] sm:$0xf] %vm1488, %v1368
      %1498 = vst.msk [vmem:[%s202 + $0x24] sm:$0xf] %vm1488, %v1369
      %1499 = vst.msk [vmem:[%s202 + $0x28] sm:$0xf] %vm1488, %v1370
      %1500 = vst.msk [vmem:[%s202 + $0x2c] sm:$0xf] %vm1488, %v1371
      %1501 = vst.msk [vmem:[%s202 + $0x30] sm:$0xf] %vm1488, %v1372
      %1502 = vst.msk [vmem:[%s202 + $0x34] sm:$0xf] %vm1488, %v1373
      %1503 = vst.msk [vmem:[%s202 + $0x38] sm:$0xf] %vm1488, %v1374
      %1504 = vst.msk [vmem:[%s202 + $0x3c] sm:$0xf] %vm1488, %v1375
      %1505 = vst.msk [vmem:[%s202 + $0x40] sm:$0xf] %vm1488, %v1376
      %1506 = vst.msk [vmem:[%s202 + $0x44] sm:$0xf] %vm1488, %v1377
      %1507 = vst.msk [vmem:[%s202 + $0x48] sm:$0xf] %vm1488, %v1378
      %1508 = vst.msk [vmem:[%s202 + $0x4c] sm:$0xf] %vm1488, %v1379
      %1509 = vst.msk [vmem:[%s202 + $0x50] sm:$0xf] %vm1488, %v1380
      %1510 = vst.msk [vmem:[%s202 + $0x54] sm:$0xf] %vm1488, %v1381
      %1511 = vst.msk [vmem:[%s202 + $0x58] sm:$0xf] %vm1488, %v1382
      %1512 = vst.msk [vmem:[%s202 + $0x5c] sm:$0xf] %vm1488, %v1383
      %1513 = vst.msk [vmem:[%s202 + $0x60] sm:$0xf] %vm1488, %v1384
      %1514 = vst.msk [vmem:[%s202 + $0x64] sm:$0xf] %vm1488, %v1385
      %1515 = vst.msk [vmem:[%s202 + $0x68] sm:$0xf] %vm1488, %v1386
      %1516 = vst.msk [vmem:[%s202 + $0x6c] sm:$0xf] %vm1488, %v1387
      %1517 = vst.msk [vmem:[%s202 + $0x70] sm:$0xf] %vm1488, %v1388
      %1518 = vst.msk [vmem:[%s202 + $0x74] sm:$0xf] %vm1488, %v1389
      %1519 = vst.msk [vmem:[%s202 + $0x78] sm:$0xf] %vm1488, %v1390
      %1520 = vst.msk [vmem:[%s202 + $0x7c] sm:$0xf] %vm1488, %v1391
      %1521 = vst.msk [vmem:[%s202 + $0x80] sm:$0xf] %vm1488, %v1392
      %1522 = vst.msk [vmem:[%s202 + $0x84] sm:$0xf] %vm1488, %v1393
      %1523 = vst.msk [vmem:[%s202 + $0x88] sm:$0xf] %vm1488, %v1394
      %1524 = vst.msk [vmem:[%s202 + $0x8c] sm:$0xf] %vm1488, %v1395
      %1525 = vst.msk [vmem:[%s202 + $0x90] sm:$0xf] %vm1488, %v1396
      %1526 = vst.msk [vmem:[%s202 + $0x94] sm:$0xf] %vm1488, %v1397
      %1527 = vst.msk [vmem:[%s202 + $0x98] sm:$0xf] %vm1488, %v1398
      %1528 = vst.msk [vmem:[%s202 + $0x9c] sm:$0xf] %vm1488, %v1399
      %1529 = vst.msk [vmem:[%s202 + $0xa0] sm:$0xf] %vm1488, %v1400
      %1530 = vst.msk [vmem:[%s202 + $0xa4] sm:$0xf] %vm1488, %v1401
      %1531 = vst.msk [vmem:[%s202 + $0xa8] sm:$0xf] %vm1488, %v1402
      %1532 = vst.msk [vmem:[%s202 + $0xac] sm:$0xf] %vm1488, %v1403
      %1533 = vst.msk [vmem:[%s202 + $0xb0] sm:$0xf] %vm1488, %v1404
      %1534 = vst.msk [vmem:[%s202 + $0xb4] sm:$0xf] %vm1488, %v1405
      %1535 = vst.msk [vmem:[%s202 + $0xb8] sm:$0xf] %vm1488, %v1406
      %1536 = vst.msk [vmem:[%s202 + $0xbc] sm:$0xf] %vm1488, %v1407
      %1537 = vst.msk [vmem:[%s202 + $0xc0] sm:$0xf] %vm1488, %v1408
      %1538 = vst.msk [vmem:[%s202 + $0xc4] sm:$0xf] %vm1488, %v1409
      %1539 = vst.msk [vmem:[%s202 + $0xc8] sm:$0xf] %vm1488, %v1410
      %1540 = vst.msk [vmem:[%s202 + $0xcc] sm:$0xf] %vm1488, %v1411
      %1541 = vst.msk [vmem:[%s202 + $0xd0] sm:$0xf] %vm1488, %v1412
      %1542 = vst.msk [vmem:[%s202 + $0xd4] sm:$0xf] %vm1488, %v1413
      %1543 = vst.msk [vmem:[%s202 + $0xd8] sm:$0xf] %vm1488, %v1414
      %1544 = vst.msk [vmem:[%s202 + $0xdc] sm:$0xf] %vm1488, %v1415
      %1545 = vst.msk [vmem:[%s202 + $0xe0] sm:$0xf] %vm1488, %v1416
      %1546 = vst.msk [vmem:[%s202 + $0xe4] sm:$0xf] %vm1488, %v1417
      %1547 = vst.msk [vmem:[%s202 + $0xe8] sm:$0xf] %vm1488, %v1418
      %1548 = vst.msk [vmem:[%s202 + $0xec] sm:$0xf] %vm1488, %v1419
      %1549 = vst.msk [vmem:[%s202 + $0xf0] sm:$0xf] %vm1488, %v1420
      %1550 = vst.msk [vmem:[%s202 + $0xf4] sm:$0xf] %vm1488, %v1421
      %1551 = vst.msk [vmem:[%s202 + $0xf8] sm:$0xf] %vm1488, %v1422
      %1552 = vst.msk [vmem:[%s202 + $0xfc] sm:$0xf] %vm1488, %v1423
      %s1553 = smul.u32 64, %s15
      %p1554 = scmp.lt.s32.totalorder %s1553, 255
      %s1555 = scalar_select %p1554, %s1553, 255
      %s1556 = smul.addr %s1555, 4
      %s1557 = scalar_lea.vmem %s4, %s1556
      // Predicated region
      $region37: #{_lambda_.22} parent=35 // pred_check
        %p1558 = pneg %p122
      $region38: #{_lambda_.22} parent=35 // pred_check_branch
        %1560 = sbr.rel (%p1558) target = $region40
      $region39: #{_lambda_.22} parent=35 // pred_region
        %s1561 = smul.u32 64, %s15
      $region40: #{_lambda_.22} parent=35 // pred_fallthru
        _
    $region36: #{_lambda_.22} parent=5 // pred_fallthru
      _
    %p1562 = scmp.le.s32.totalorder 2, %s10
    // Predicated region
    $region41: #{_lambda_.22} parent=5 // pred_check
      %p1563 = pneg %p1562
    $region42: #{_lambda_.22} parent=5 // pred_check_branch
      %1565 = sbr.rel (%p1563) target = $region44
    $region43: #{_lambda_.22} parent=5 // pred_region
      %s1566 = ssub.s32 %s10, 2
      // Predicated region
      $region45: #{_lambda_.22} parent=43 // pred_check
        %p1567 = pneg %p128
      $region46: #{_lambda_.22} parent=43 // pred_check_branch
        %1569 = sbr.rel (%p1567) target = $region48
      $region47: #{_lambda_.22} parent=43 // pred_region
        %s1570 = smul.u32 64, %s16
        %p1571 = scmp.lt.s32.totalorder %s1570, 255
        %s1572 = scalar_select %p1571, %s1570, 255
        %s1573 = smul.addr %s1572, 4
        %s1574 = scalar_lea.vmem %s4, %s1573
      $region48: #{_lambda_.22} parent=43 // pred_fallthru
        _
    $region44: #{_lambda_.22} parent=5 // pred_fallthru
      _
  $region6: #{_lambda_.22} parent=0 // loop_footer
    %s14 = sadd.s32 1, %s10
  $region7: #{_lambda_.22} parent=0 // loop_footer_branch
    %9 = sbr.rel target = $region3
  $region8: #{_lambda_.22} parent=0 // loop_exit
    _

// kernel: _lambda_.23
$region0: #{_lambda_.23}
  #allocation0 [shape = 'u32[]', space=smem, size = 0x4, offset = 0x4, fixed_abs, tag = 'smem constant byte address 0x4 - core index']
  #allocation1 [shape = 'u32[144,128]{1,0:T(1,128)}', space=vmem, size = 0x12000, scoped, tag = 'internal scratch']
  %s0 = inlined_call_operand.vmem [shape: bf16[9,32,128], index: 0, kind: input, shape index: {}]
  %s1 = inlined_call_operand.vmem [shape: bf16[32,128], index: 1, kind: output, shape index: {}]
  %s2 = sld [smem:[#allocation0]]
  $region14: #{_lambda_.23} parent=0
    _
  %s4 = ssub.s32 1, %s2
  %s5 = scalar_select 0, %s4, %s2
  // Predicated region
  $region2: #{_lambda_.23} parent=0 // pred_check
    _
  $region3: #{_lambda_.23} parent=0 // pred_check_branch
    %7 = sbr.rel (0) target = $region5
  $region4: #{_lambda_.23} parent=0 // pred_region
    _
  $region5: #{_lambda_.23} parent=0 // pred_fallthru
    _
  %v8 = vld [vmem:[%s0] sm:$0xf]
  %v9 = vld [vmem:[%s0 + $0x4] sm:$0xf]
  %v10 = vld [vmem:[%s0 + $0x8] sm:$0xf]
  %v11 = vld [vmem:[%s0 + $0xc] sm:$0xf]
  %s12 = scalar_lea.vmem %s0, 16
  %v13 = vld [vmem:[%s12] sm:$0xf]
  %v14 = vld [vmem:[%s12 + $0x4] sm:$0xf]
  %v15 = vld [vmem:[%s12 + $0x8] sm:$0xf]
  %v16 = vld [vmem:[%s12 + $0xc] sm:$0xf]
  %v17 = vmax.bf16 %v8, %v13
  %v18 = vmax.bf16 %v9, %v14
  %v19 = vmax.bf16 %v10, %v15
  %v20 = vmax.bf16 %v11, %v16
  %s21 = scalar_lea.vmem %s0, 32
  %v22 = vld [vmem:[%s21] sm:$0xf]
  %v23 = vld [vmem:[%s21 + $0x4] sm:$0xf]
  %v24 = vld [vmem:[%s21 + $0x8] sm:$0xf]
  %v25 = vld [vmem:[%s21 + $0xc] sm:$0xf]
  %v26 = vmax.bf16 %v17, %v22
  %v27 = vmax.bf16 %v18, %v23
  %v28 = vmax.bf16 %v19, %v24
  %v29 = vmax.bf16 %v20, %v25
  %s30 = scalar_lea.vmem %s0, 48
  %v31 = vld [vmem:[%s30] sm:$0xf]
  %v32 = vld [vmem:[%s30 + $0x4] sm:$0xf]
  %v33 = vld [vmem:[%s30 + $0x8] sm:$0xf]
  %v34 = vld [vmem:[%s30 + $0xc] sm:$0xf]
  %v35 = vmax.bf16 %v26, %v31
  %v36 = vmax.bf16 %v27, %v32
  %v37 = vmax.bf16 %v28, %v33
  %v38 = vmax.bf16 %v29, %v34
  %s39 = scalar_lea.vmem %s0, 64
  %v40 = vld [vmem:[%s39] sm:$0xf]
  %v41 = vld [vmem:[%s39 + $0x4] sm:$0xf]
  %v42 = vld [vmem:[%s39 + $0x8] sm:$0xf]
  %v43 = vld [vmem:[%s39 + $0xc] sm:$0xf]
  %v44 = vmax.bf16 %v35, %v40
  %v45 = vmax.bf16 %v36, %v41
  %v46 = vmax.bf16 %v37, %v42
  %v47 = vmax.bf16 %v38, %v43
  %s48 = scalar_lea.vmem %s0, 80
  %v49 = vld [vmem:[%s48] sm:$0xf]
  %v50 = vld [vmem:[%s48 + $0x4] sm:$0xf]
  %v51 = vld [vmem:[%s48 + $0x8] sm:$0xf]
  %v52 = vld [vmem:[%s48 + $0xc] sm:$0xf]
  %v53 = vmax.bf16 %v44, %v49
  %v54 = vmax.bf16 %v45, %v50
  %v55 = vmax.bf16 %v46, %v51
  %v56 = vmax.bf16 %v47, %v52
  %s57 = scalar_lea.vmem %s0, 96
  %v58 = vld [vmem:[%s57] sm:$0xf]
  %v59 = vld [vmem:[%s57 + $0x4] sm:$0xf]
  %v60 = vld [vmem:[%s57 + $0x8] sm:$0xf]
  %v61 = vld [vmem:[%s57 + $0xc] sm:$0xf]
  %v62 = vmax.bf16 %v53, %v58
  %v63 = vmax.bf16 %v54, %v59
  %v64 = vmax.bf16 %v55, %v60
  %v65 = vmax.bf16 %v56, %v61
  %s66 = scalar_lea.vmem %s0, 112
  %v67 = vld [vmem:[%s66] sm:$0xf]
  %v68 = vld [vmem:[%s66 + $0x4] sm:$0xf]
  %v69 = vld [vmem:[%s66 + $0x8] sm:$0xf]
  %v70 = vld [vmem:[%s66 + $0xc] sm:$0xf]
  %v71 = vmax.bf16 %v62, %v67
  %v72 = vmax.bf16 %v63, %v68
  %v73 = vmax.bf16 %v64, %v69
  %v74 = vmax.bf16 %v65, %v70
  %s75 = scalar_lea.vmem %s0, 128
  %v76 = vld [vmem:[%s75] sm:$0xf]
  %v77 = vld [vmem:[%s75 + $0x4] sm:$0xf]
  %v78 = vld [vmem:[%s75 + $0x8] sm:$0xf]
  %v79 = vld [vmem:[%s75 + $0xc] sm:$0xf]
  %v80 = vmax.bf16 %v71, %v76
  %v81 = vmax.bf16 %v72, %v77
  %v82 = vmax.bf16 %v73, %v78
  %v83 = vmax.bf16 %v74, %v79
  %84 = vst [vmem:[%s1] sm:$0xf] %v80
  %85 = vst [vmem:[%s1 + $0x4] sm:$0xf] %v81
  %86 = vst [vmem:[%s1 + $0x8] sm:$0xf] %v82
  %87 = vst [vmem:[%s1 + $0xc] sm:$0xf] %v83
  // Predicated region
  $region6: #{_lambda_.23} parent=0 // pred_check
    _
  $region7: #{_lambda_.23} parent=0 // pred_check_branch
    %89 = sbr.rel (0) target = $region9
  $region8: #{_lambda_.23} parent=0 // pred_region
    _
  $region9: #{_lambda_.23} parent=0 // pred_fallthru
    _
  // Predicated region
  $region10: #{_lambda_.23} parent=0 // pred_check
    _
  $region11: #{_lambda_.23} parent=0 // pred_check_branch
    %91 = sbr.rel (0) target = $region13
  $region12: #{_lambda_.23} parent=0 // pred_region
    _
  $region13: #{_lambda_.23} parent=0 // pred_fallthru
    _

// kernel: _lambda_.24
$region0: #{_lambda_.24}
  #allocation0 [shape = 'u32[]', space=smem, size = 0x4, offset = 0x4, fixed_abs, tag = 'smem constant byte address 0x4 - core index']
  #allocation1 [shape = 'u32[144,128]{1,0:T(1,128)}', space=vmem, size = 0x12000, scoped, tag = 'internal scratch']
  %s0 = inlined_call_operand.vmem [shape: bf16[512,72], index: 0, kind: input, shape index: {}]
  %s1 = inlined_call_operand.vmem [shape: bf16[72,8], index: 1, kind: input, shape index: {}]
  %s2 = inlined_call_operand.vmem [shape: f32[1,8], index: 2, kind: input, shape index: {}]
  %s3 = inlined_call_operand.vmem [shape: f32[1,8], index: 3, kind: input, shape index: {}]
  %s4 = inlined_call_operand.vmem [shape: bf16[512,8], index: 4, kind: output, shape index: {}]
  %s5 = sld [smem:[#allocation0]]
  $region49: #{_lambda_.24} parent=0
    _
  %s7 = ssub.s32 1, %s5
  %s8 = scalar_select 0, %s7, %s5
  loop: start=0, step=1, limit=4
  $region2: #{_lambda_.24} parent=0 // loop_pre_header
    _
  $region3: #{_lambda_.24} parent=0 // loop_header
    %s10 = sphi 0, %s14
    %p11 = scmp.ge.s32.totalorder %s10, 4
    %s20 = sphi 0, %s22
    %s23 = sphi 0, %s20
    %s24 = sphi 0, %s23
    %s40 = sphi 0, %s24
    %s44 = sphi 0, %s44
    %s46 = sphi 0, %s44
    %s47 = sphi 0, %s46
    %s61 = sphi 0, %s47
    %s65 = sphi 0, %s65
    %s67 = sphi 0, %s65
    %s68 = sphi 0, %s67
    %s82 = sphi 0, %s68
    %s86 = sphi 0, %s86
    %s88 = sphi 0, %s86
    %s89 = sphi 0, %s88
    %s103 = sphi 0, %s89
    %s109 = sphi 0, %s111
    %s112 = sphi 0, %s109
    %s113 = sphi 0, %s112
    %s129 = sphi 0, %s113
  $region4: #{_lambda_.24} parent=0 // loop_header_branch
    %13 = sbr.rel (%p11) target = $region8
  $region5: #{_lambda_.24} parent=0 // loop_body
    %s15 = ssub.s32 %s10, 1
    %s16 = ssub.s32 %s10, 2
    %s17 = sadd.s32 %s10, 1
    %s18 = ssub.s32 %s10, %s17
    %p19 = scmp.eq.s32.totalorder %s18, 0
    %s21 = sadd.s32 %s20, 1
    %s22 = scalar_select %p19, %s20, %s21
    %p25 = pneg %p19
    %p26 = scmp.eq.s32.totalorder %s10, 1
    %p27 = por %p25, %p26
    %p28 = scmp.ne.s32.totalorder %s20, %s23
    %p29 = scmp.eq.s32.totalorder %s10, 0
    %p30 = por %p28, %p29
    %p31 = scmp.ne.s32.totalorder %s20, %s23
    %p32 = scmp.eq.s32.totalorder %s15, 1
    %p33 = por %p31, %p32
    %p34 = scmp.ne.s32.totalorder %s23, %s24
    %p35 = scmp.eq.s32.totalorder %s15, 0
    %p36 = por %p34, %p35
    %p37 = scmp.ne.s32.totalorder %s23, %s24
    %p38 = scmp.eq.s32.totalorder %s16, 1
    %p39 = por %p37, %p38
    %p41 = scmp.ne.s32.totalorder %s24, %s40
    %p42 = scmp.eq.s32.totalorder %s16, 0
    %p43 = por %p41, %p42
    %s45 = sadd.s32 %s44, 1
    %p48 = scmp.eq.s32.totalorder %s10, 1
    %p49 = scmp.ne.s32.totalorder %s44, %s46
    %p50 = scmp.eq.s32.totalorder %s10, 0
    %p51 = por %p49, %p50
    %p52 = scmp.ne.s32.totalorder %s44, %s46
    %p53 = scmp.eq.s32.totalorder %s15, 1
    %p54 = por %p52, %p53
    %p55 = scmp.ne.s32.totalorder %s46, %s47
    %p56 = scmp.eq.s32.totalorder %s15, 0
    %p57 = por %p55, %p56
    %p58 = scmp.ne.s32.totalorder %s46, %s47
    %p59 = scmp.eq.s32.totalorder %s16, 1
    %p60 = por %p58, %p59
    %p62 = scmp.ne.s32.totalorder %s47, %s61
    %p63 = scmp.eq.s32.totalorder %s16, 0
    %p64 = por %p62, %p63
    %s66 = sadd.s32 %s65, 1
    %p69 = scmp.eq.s32.totalorder %s10, 1
    %p70 = scmp.ne.s32.totalorder %s65, %s67
    %p71 = scmp.eq.s32.totalorder %s10, 0
    %p72 = por %p70, %p71
    %p73 = scmp.ne.s32.totalorder %s65, %s67
    %p74 = scmp.eq.s32.totalorder %s15, 1
    %p75 = por %p73, %p74
    %p76 = scmp.ne.s32.totalorder %s67, %s68
    %p77 = scmp.eq.s32.totalorder %s15, 0
    %p78 = por %p76, %p77
    %p79 = scmp.ne.s32.totalorder %s67, %s68
    %p80 = scmp.eq.s32.totalorder %s16, 1
    %p81 = por %p79, %p80
    %p83 = scmp.ne.s32.totalorder %s68, %s82
    %p84 = scmp.eq.s32.totalorder %s16, 0
    %p85 = por %p83, %p84
    %s87 = sadd.s32 %s86, 1
    %p90 = scmp.eq.s32.totalorder %s10, 1
    %p91 = scmp.ne.s32.totalorder %s86, %s88
    %p92 = scmp.eq.s32.totalorder %s10, 0
    %p93 = por %p91, %p92
    %p94 = scmp.ne.s32.totalorder %s86, %s88
    %p95 = scmp.eq.s32.totalorder %s15, 1
    %p96 = por %p94, %p95
    %p97 = scmp.ne.s32.totalorder %s88, %s89
    %p98 = scmp.eq.s32.totalorder %s15, 0
    %p99 = por %p97, %p98
    %p100 = scmp.ne.s32.totalorder %s88, %s89
    %p101 = scmp.eq.s32.totalorder %s16, 1
    %p102 = por %p100, %p101
    %p104 = scmp.ne.s32.totalorder %s89, %s103
    %p105 = scmp.eq.s32.totalorder %s16, 0
    %p106 = por %p104, %p105
    %s107 = ssub.s32 %s10, %s17
    %p108 = scmp.eq.s32.totalorder %s107, 0
    %s110 = sadd.s32 %s109, 1
    %s111 = scalar_select %p108, %s109, %s110
    %p114 = pneg %p108
    %p115 = scmp.eq.s32.totalorder %s10, 1
    %p116 = por %p114, %p115
    %p117 = scmp.ne.s32.totalorder %s109, %s112
    %p118 = scmp.eq.s32.totalorder %s10, 0
    %p119 = por %p117, %p118
    %p120 = scmp.ne.s32.totalorder %s109, %s112
    %p121 = scmp.eq.s32.totalorder %s15, 1
    %p122 = por %p120, %p121
    %p123 = scmp.ne.s32.totalorder %s112, %s113
    %p124 = scmp.eq.s32.totalorder %s15, 0
    %p125 = por %p123, %p124
    %p126 = scmp.ne.s32.totalorder %s112, %s113
    %p127 = scmp.eq.s32.totalorder %s16, 1
    %p128 = por %p126, %p127
    %p130 = scmp.ne.s32.totalorder %s113, %s129
    %p131 = scmp.eq.s32.totalorder %s16, 0
    %p132 = por %p130, %p131
    %p133 = scmp.le.s32.totalorder 1, %s10
    %p134 = scmp.lt.s32.totalorder %s10, 3
    %p135 = pnand %p133, %p134
    %p136 = pneg %p135
    // Predicated region
    $region9: #{_lambda_.24} parent=5 // pred_check
      _
    $region10: #{_lambda_.24} parent=5 // pred_check_branch
      %138 = sbr.rel (%p135) target = $region12
    $region11: #{_lambda_.24} parent=5 // pred_region
      %s139 = ssub.s32 %s10, 1
      // Predicated region
      $region13: #{_lambda_.24} parent=11 // pred_check
        %p140 = pneg %p57
      $region14: #{_lambda_.24} parent=11 // pred_check_branch
        %142 = sbr.rel (%p140) target = $region16
      $region15: #{_lambda_.24} parent=11 // pred_region
        _
      $region16: #{_lambda_.24} parent=11 // pred_fallthru
        _
      // Predicated region
      $region17: #{_lambda_.24} parent=11 // pred_check
        %p143 = pneg %p78
      $region18: #{_lambda_.24} parent=11 // pred_check_branch
        %145 = sbr.rel (%p143) target = $region20
      $region19: #{_lambda_.24} parent=11 // pred_region
        _
      $region20: #{_lambda_.24} parent=11 // pred_fallthru
        _
      // Predicated region
      $region21: #{_lambda_.24} parent=11 // pred_check
        %p146 = pneg %p99
      $region22: #{_lambda_.24} parent=11 // pred_check_branch
        %148 = sbr.rel (%p146) target = $region24
      $region23: #{_lambda_.24} parent=11 // pred_region
        _
      $region24: #{_lambda_.24} parent=11 // pred_fallthru
        _
    $region12: #{_lambda_.24} parent=5 // pred_fallthru
      _
    %p149 = scmp.lt.s32.totalorder %s10, 2
    // Predicated region
    $region25: #{_lambda_.24} parent=5 // pred_check
      %p150 = pneg %p149
    $region26: #{_lambda_.24} parent=5 // pred_check_branch
      %152 = sbr.rel (%p150) target = $region28
    $region27: #{_lambda_.24} parent=5 // pred_region
      // Predicated region
      $region29: #{_lambda_.24} parent=27 // pred_check
        %p153 = pneg %p30
      $region30: #{_lambda_.24} parent=27 // pred_check_branch
        %155 = sbr.rel (%p153) target = $region32
      $region31: #{_lambda_.24} parent=27 // pred_region
        %s156 = smul.u32 32, %s10
        %p157 = scmp.lt.s32.totalorder %s156, 63
        %s158 = scalar_select %p157, %s156, 63
        %s159 = smul.addr %s158, 4
        %s160 = scalar_lea.vmem %s0, %s159
        %s161 = smul.u32 32, %s10
      $region32: #{_lambda_.24} parent=27 // pred_fallthru
        _
    $region28: #{_lambda_.24} parent=5 // pred_fallthru
      _
    %p162 = scmp.le.s32.totalorder 1, %s10
    %p163 = scmp.lt.s32.totalorder %s10, 3
    %p164 = pnand %p162, %p163
    %p165 = pneg %p164
    // Predicated region
    $region33: #{_lambda_.24} parent=5 // pred_check
      _
    $region34: #{_lambda_.24} parent=5 // pred_check_branch
      %167 = sbr.rel (%p164) target = $region36
    $region35: #{_lambda_.24} parent=5 // pred_region
      %s168 = ssub.s32 %s10, 1
      %s169 = smul.u32 32, %s15
      %p170 = scmp.lt.s32.totalorder %s169, 63
      %s171 = scalar_select %p170, %s169, 63
      %s172 = smul.addr %s171, 4
      %s173 = scalar_lea.vmem %s0, %s172
      %p174 = pneg %p36
      %p175 = pneg %p33
      %p176 = pneg %p57
      %p177 = pneg %p54
      %p178 = pneg %p78
      %p179 = pneg %p75
      %p180 = pneg %p99
      %p181 = pneg %p96
      %p182 = pneg %p125
      %p183 = pneg %p122
      %s184 = smul.u32 32, %s15
      %p185 = scmp.lt.s32.totalorder %s184, 63
      %s186 = scalar_select %p185, %s184, 63
      %s187 = smul.addr %s186, 4
      %s188 = scalar_lea.vmem %s4, %s187
      %s189 = smul.u32 32, %s15
      %p190 = scmp.lt.s32.totalorder %s189, 63
      %s191 = scalar_select %p190, %s189, 63
      %s192 = smul.addr %s191, 4
      %s193 = scalar_lea.vmem %s0, %s192
      %s194 = smul.u32 32, %s15
      %s195 = smul.u32 32, %s15
      %p196 = scmp.lt.s32.totalorder %s195, 63
      %s197 = scalar_select %p196, %s195, 63
      %s198 = smul.addr %s197, 4
      %s199 = scalar_lea.vmem %s4, %s198
      %s200 = smul.u32 32, %s15
      %v202 = vld [vmem:[%s193] sm:$0xf]
      %v203 = vld [vmem:[%s193 + $0x4] sm:$0xf]
      %v204 = vld [vmem:[%s193 + $0x8] sm:$0xf]
      %v205 = vld [vmem:[%s193 + $0xc] sm:$0xf]
      %v206 = vld [vmem:[%s193 + $0x10] sm:$0xf]
      %v207 = vld [vmem:[%s193 + $0x14] sm:$0xf]
      %v208 = vld [vmem:[%s193 + $0x18] sm:$0xf]
      %v209 = vld [vmem:[%s193 + $0x1c] sm:$0xf]
      %v210 = vld [vmem:[%s193 + $0x20] sm:$0xf]
      %v211 = vld [vmem:[%s193 + $0x24] sm:$0xf]
      %v212 = vld [vmem:[%s193 + $0x28] sm:$0xf]
      %v213 = vld [vmem:[%s193 + $0x2c] sm:$0xf]
      %v214 = vld [vmem:[%s193 + $0x30] sm:$0xf]
      %v215 = vld [vmem:[%s193 + $0x34] sm:$0xf]
      %v216 = vld [vmem:[%s193 + $0x38] sm:$0xf]
      %v217 = vld [vmem:[%s193 + $0x3c] sm:$0xf]
      %v218 = vld [vmem:[%s193 + $0x40] sm:$0xf]
      %v219 = vld [vmem:[%s193 + $0x44] sm:$0xf]
      %v220 = vld [vmem:[%s193 + $0x48] sm:$0xf]
      %v221 = vld [vmem:[%s193 + $0x4c] sm:$0xf]
      %v222 = vld [vmem:[%s193 + $0x50] sm:$0xf]
      %v223 = vld [vmem:[%s193 + $0x54] sm:$0xf]
      %v224 = vld [vmem:[%s193 + $0x58] sm:$0xf]
      %v225 = vld [vmem:[%s193 + $0x5c] sm:$0xf]
      %v226 = vld [vmem:[%s193 + $0x60] sm:$0xf]
      %v227 = vld [vmem:[%s193 + $0x64] sm:$0xf]
      %v228 = vld [vmem:[%s193 + $0x68] sm:$0xf]
      %v229 = vld [vmem:[%s193 + $0x6c] sm:$0xf]
      %v230 = vld [vmem:[%s193 + $0x70] sm:$0xf]
      %v231 = vld [vmem:[%s193 + $0x74] sm:$0xf]
      %v232 = vld [vmem:[%s193 + $0x78] sm:$0xf]
      %v233 = vld [vmem:[%s193 + $0x7c] sm:$0xf]
      %v234 = vld [vmem:[%s1] sm:$0xf]
      %v235 = vld [vmem:[%s1 + $0x4] sm:$0xf]
      %v236 = vld [vmem:[%s1 + $0x8] sm:$0xf]
      %v237 = vld [vmem:[%s1 + $0xc] sm:$0xf]
      %v238 = vld [vmem:[%s1 + $0x10] sm:$0xf]
      %v239 = vld [vmem:[%s1 + $0x14] sm:$0xf]
      %v240 = vld [vmem:[%s1 + $0x18] sm:$0xf]
      %v241 = vld [vmem:[%s1 + $0x1c] sm:$0xf]
      %v242 = vld [vmem:[%s1 + $0x20] sm:$0xf]
      %v275 = vunpack.c.l.b16 %v202
      %v276 = vunpack.c.l.b16 %v203
      %v277 = vunpack.c.l.b16 %v204
      %v278 = vunpack.c.l.b16 %v205
      %v279 = vunpack.c.l.b16 %v206
      %v280 = vunpack.c.l.b16 %v207
      %v281 = vunpack.c.l.b16 %v208
      %v282 = vunpack.c.l.b16 %v209
      %v283 = vunpack.c.l.b16 %v210
      %v284 = vunpack.c.l.b16 %v211
      %v285 = vunpack.c.l.b16 %v212
      %v286 = vunpack.c.l.b16 %v213
      %v287 = vunpack.c.l.b16 %v214
      %v288 = vunpack.c.l.b16 %v215
      %v289 = vunpack.c.l.b16 %v216
      %v290 = vunpack.c.l.b16 %v217
      %v291 = vunpack.c.l.b16 %v218
      %v292 = vunpack.c.l.b16 %v219
      %v293 = vunpack.c.l.b16 %v220
      %v294 = vunpack.c.l.b16 %v221
      %v295 = vunpack.c.l.b16 %v222
      %v296 = vunpack.c.l.b16 %v223
      %v297 = vunpack.c.l.b16 %v224
      %v298 = vunpack.c.l.b16 %v225
      %v299 = vunpack.c.l.b16 %v226
      %v300 = vunpack.c.l.b16 %v227
      %v301 = vunpack.c.l.b16 %v228
      %v302 = vunpack.c.l.b16 %v229
      %v303 = vunpack.c.l.b16 %v230
      %v304 = vunpack.c.l.b16 %v231
      %v305 = vunpack.c.l.b16 %v232
      %v306 = vunpack.c.l.b16 %v233
      %v307 = vpack.c.b16 %v276, %v275
      %v308 = vpack.c.b16 %v278, %v277
      %v309 = vpack.c.b16 %v280, %v279
      %v310 = vpack.c.b16 %v282, %v281
      %v311 = vpack.c.b16 %v284, %v283
      %v312 = vpack.c.b16 %v286, %v285
      %v313 = vpack.c.b16 %v288, %v287
      %v314 = vpack.c.b16 %v290, %v289
      %v315 = vpack.c.b16 %v292, %v291
      %v316 = vpack.c.b16 %v294, %v293
      %v317 = vpack.c.b16 %v296, %v295
      %v318 = vpack.c.b16 %v298, %v297
      %v319 = vpack.c.b16 %v300, %v299
      %v320 = vpack.c.b16 %v302, %v301
      %v321 = vpack.c.b16 %v304, %v303
      %v322 = vpack.c.b16 %v306, %v305
      %v332 = vunpack.c.l.b16 %v234
      %v333 = vunpack.c.l.b16 %v235
      %v334 = vunpack.c.l.b16 %v236
      %v335 = vunpack.c.l.b16 %v237
      %v336 = vunpack.c.l.b16 %v238
      %v337 = vunpack.c.l.b16 %v239
      %v338 = vunpack.c.l.b16 %v240
      %v339 = vunpack.c.l.b16 %v241
      %v340 = vunpack.c.l.b16 %v242
      %v341 = vpack.c.b16 %v333, %v332
      %v342 = vpack.c.b16 %v335, %v334
      %v343 = vpack.c.b16 %v337, %v336
      %v344 = vpack.c.b16 %v339, %v338
      %v345 = vpack.c.b16 %v340, %v340
      %vm350 = vcmask 588800
      %v352 = vsel %vm350, %v307, 0
      %v355 = vsel %vm350, %v308, 0
      %v358 = vsel %vm350, %v309, 0
      %v361 = vsel %vm350, %v310, 0
      %v364 = vsel %vm350, %v311, 0
      %v367 = vsel %vm350, %v312, 0
      %v370 = vsel %vm350, %v313, 0
      %v373 = vsel %vm350, %v314, 0
      %v376 = vsel %vm350, %v315, 0
      %v379 = vsel %vm350, %v316, 0
      %v382 = vsel %vm350, %v317, 0
      %v385 = vsel %vm350, %v318, 0
      %v388 = vsel %vm350, %v319, 0
      %v391 = vsel %vm350, %v320, 0
      %v394 = vsel %vm350, %v321, 0
      %v397 = vsel %vm350, %v322, 0
      %vm399 = vcmask 1043456
      %v401 = vsel %vm399, %v345, 0
      %403 = vmatprep.subr.bf16.mxu0 0
      %404 = vmatpush1.bf16.msra.mxu0 %v341
      %405 = vmatprep.subr.bf16.mxu0 0
      %406 = vmatpush1.bf16.msra.mxu0 %v342
      %407 = vmatprep.subr.bf16.mxu0 0
      %408 = vmatpush1.bf16.msra.mxu0 %v343
      %409 = vmatprep.subr.bf16.mxu0 0
      %410 = vmatpush1.bf16.msra.mxu0 %v344
      %411 = vmatprep.subr.bf16.mxu0 0
      %412 = vmatpush1.bf16.msra.mxu0 %v401
      %413 = vmatprep.subr.bf16.mxu0 0
      %414 = vmatpush1.bf16.msra.mxu0 0
      %415 = vmatprep.subr.bf16.mxu0 0
      %416 = vmatpush1.bf16.msra.mxu0 0
      %417 = vmatprep.subr.bf16.mxu0 0
      %418 = vmatpush1.bf16.msra.mxu0 0
      %419 = vmatprep.subr.bf16.mxu0 0
      %420 = vmatpush1.bf16.msra.mxu0 0
      %421 = vmatprep.subr.bf16.mxu0 0
      %422 = vmatpush1.bf16.msra.mxu0 0
      %423 = vmatprep.subr.bf16.mxu0 0
      %424 = vmatpush1.bf16.msra.mxu0 0
      %425 = vmatprep.subr.bf16.mxu0 0
      %426 = vmatpush1.bf16.msra.mxu0 0
      %427 = vmatprep.subr.bf16.mxu0 0
      %428 = vmatpush1.bf16.msra.mxu0 0
      %429 = vmatprep.subr.bf16.mxu0 0
      %430 = vmatpush1.bf16.msra.mxu0 0
      %431 = vmatprep.subr.bf16.mxu0 0
      %432 = vmatpush1.bf16.msra.mxu0 0
      %433 = vmatprep.subr.bf16.mxu0 0
      %434 = vmatpush1.bf16.msra.mxu0 0
      %435 = vmatprep.mubr.bf16.mxu0 0
      %436 = vmatmul.mubr.bf16.gmra.mrb[0].mxu0 %v352
      %v437 = vpop.f32.mrb[0].mxu0
      %v438 = vadd.f32 0.0, %v437
      %v439 = vpop.f32.mrb[0].mxu0
      %v440 = vpop.f32.mrb[0].mxu0
      %v441 = vadd.f32 0.0, %v440
      %v442 = vpop.f32.mrb[0].mxu0
      %443 = vmatprep.mubr.bf16.mxu0 0
      %444 = vmatmul.mubr.bf16.gmra.mrb[0].mxu0 %v355
      %v445 = vpop.f32.mrb[0].mxu0
      %v446 = vadd.f32 0.0, %v445
      %v447 = vpop.f32.mrb[0].mxu0
      %v448 = vpop.f32.mrb[0].mxu0
      %v449 = vadd.f32 0.0, %v448
      %v450 = vpop.f32.mrb[0].mxu0
      %451 = vmatprep.mubr.bf16.mxu0 0
      %452 = vmatmul.mubr.bf16.gmra.mrb[0].mxu0 %v358
      %v453 = vpop.f32.mrb[0].mxu0
      %v454 = vadd.f32 0.0, %v453
      %v455 = vpop.f32.mrb[0].mxu0
      %v456 = vpop.f32.mrb[0].mxu0
      %v457 = vadd.f32 0.0, %v456
      %v458 = vpop.f32.mrb[0].mxu0
      %459 = vmatprep.mubr.bf16.mxu0 0
      %460 = vmatmul.mubr.bf16.gmra.mrb[0].mxu0 %v361
      %v461 = vpop.f32.mrb[0].mxu0
      %v462 = vadd.f32 0.0, %v461
      %v463 = vpop.f32.mrb[0].mxu0
      %v464 = vpop.f32.mrb[0].mxu0
      %v465 = vadd.f32 0.0, %v464
      %v466 = vpop.f32.mrb[0].mxu0
      %467 = vmatprep.mubr.bf16.mxu0 0
      %468 = vmatmul.mubr.bf16.gmra.mrb[0].mxu0 %v364
      %v469 = vpop.f32.mrb[0].mxu0
      %v470 = vadd.f32 0.0, %v469
      %v471 = vpop.f32.mrb[0].mxu0
      %v472 = vpop.f32.mrb[0].mxu0
      %v473 = vadd.f32 0.0, %v472
      %v474 = vpop.f32.mrb[0].mxu0
      %475 = vmatprep.mubr.bf16.mxu0 0
      %476 = vmatmul.mubr.bf16.gmra.mrb[0].mxu0 %v367
      %v477 = vpop.f32.mrb[0].mxu0
      %v478 = vadd.f32 0.0, %v477
      %v479 = vpop.f32.mrb[0].mxu0
      %v480 = vpop.f32.mrb[0].mxu0
      %v481 = vadd.f32 0.0, %v480
      %v482 = vpop.f32.mrb[0].mxu0
      %483 = vmatprep.mubr.bf16.mxu0 0
      %484 = vmatmul.mubr.bf16.gmra.mrb[0].mxu0 %v370
      %v485 = vpop.f32.mrb[0].mxu0
      %v486 = vadd.f32 0.0, %v485
      %v487 = vpop.f32.mrb[0].mxu0
      %v488 = vpop.f32.mrb[0].mxu0
      %v489 = vadd.f32 0.0, %v488
      %v490 = vpop.f32.mrb[0].mxu0
      %491 = vmatprep.mubr.bf16.mxu0 0
      %492 = vmatmul.mubr.bf16.gmra.mrb[0].mxu0 %v373
      %v493 = vpop.f32.mrb[0].mxu0
      %v494 = vadd.f32 0.0, %v493
      %v495 = vpop.f32.mrb[0].mxu0
      %v496 = vpop.f32.mrb[0].mxu0
      %v497 = vadd.f32 0.0, %v496
      %v498 = vpop.f32.mrb[0].mxu0
      %499 = vmatprep.mubr.bf16.mxu0 0
      %500 = vmatmul.mubr.bf16.gmra.mrb[0].mxu0 %v376
      %v501 = vpop.f32.mrb[0].mxu0
      %v502 = vadd.f32 0.0, %v501
      %v503 = vpop.f32.mrb[0].mxu0
      %v504 = vpop.f32.mrb[0].mxu0
      %v505 = vadd.f32 0.0, %v504
      %v506 = vpop.f32.mrb[0].mxu0
      %507 = vmatprep.mubr.bf16.mxu0 0
      %508 = vmatmul.mubr.bf16.gmra.mrb[0].mxu0 %v379
      %v509 = vpop.f32.mrb[0].mxu0
      %v510 = vadd.f32 0.0, %v509
      %v511 = vpop.f32.mrb[0].mxu0
      %v512 = vpop.f32.mrb[0].mxu0
      %v513 = vadd.f32 0.0, %v512
      %v514 = vpop.f32.mrb[0].mxu0
      %515 = vmatprep.mubr.bf16.mxu0 0
      %516 = vmatmul.mubr.bf16.gmra.mrb[0].mxu0 %v382
      %v517 = vpop.f32.mrb[0].mxu0
      %v518 = vadd.f32 0.0, %v517
      %v519 = vpop.f32.mrb[0].mxu0
      %v520 = vpop.f32.mrb[0].mxu0
      %v521 = vadd.f32 0.0, %v520
      %v522 = vpop.f32.mrb[0].mxu0
      %523 = vmatprep.mubr.bf16.mxu0 0
      %524 = vmatmul.mubr.bf16.gmra.mrb[0].mxu0 %v385
      %v525 = vpop.f32.mrb[0].mxu0
      %v526 = vadd.f32 0.0, %v525
      %v527 = vpop.f32.mrb[0].mxu0
      %v528 = vpop.f32.mrb[0].mxu0
      %v529 = vadd.f32 0.0, %v528
      %v530 = vpop.f32.mrb[0].mxu0
      %531 = vmatprep.mubr.bf16.mxu0 0
      %532 = vmatmul.mubr.bf16.gmra.mrb[0].mxu0 %v388
      %v533 = vpop.f32.mrb[0].mxu0
      %v534 = vadd.f32 0.0, %v533
      %v535 = vpop.f32.mrb[0].mxu0
      %v536 = vpop.f32.mrb[0].mxu0
      %v537 = vadd.f32 0.0, %v536
      %v538 = vpop.f32.mrb[0].mxu0
      %539 = vmatprep.mubr.bf16.mxu0 0
      %540 = vmatmul.mubr.bf16.gmra.mrb[0].mxu0 %v391
      %v541 = vpop.f32.mrb[0].mxu0
      %v542 = vadd.f32 0.0, %v541
      %v543 = vpop.f32.mrb[0].mxu0
      %v544 = vpop.f32.mrb[0].mxu0
      %v545 = vadd.f32 0.0, %v544
      %v546 = vpop.f32.mrb[0].mxu0
      %547 = vmatprep.mubr.bf16.mxu0 0
      %548 = vmatmul.mubr.bf16.gmra.mrb[0].mxu0 %v394
      %v549 = vpop.f32.mrb[0].mxu0
      %v550 = vadd.f32 0.0, %v549
      %v551 = vpop.f32.mrb[0].mxu0
      %v552 = vpop.f32.mrb[0].mxu0
      %v553 = vadd.f32 0.0, %v552
      %v554 = vpop.f32.mrb[0].mxu0
      %555 = vmatprep.mubr.bf16.mxu0 0
      %556 = vmatmul.mubr.bf16.gmra.mrb[0].mxu0 %v397
      %v557 = vpop.f32.mrb[0].mxu0
      %v558 = vadd.f32 0.0, %v557
      %v559 = vpop.f32.mrb[0].mxu0
      %v560 = vpop.f32.mrb[0].mxu0
      %v561 = vadd.f32 0.0, %v560
      %v562 = vpop.f32.mrb[0].mxu0
      %563 = vdwg.mxu0
      %v564 = vld [vmem:[%s2] sm:$0x1]
      %v566 = vlaneseq
      %v567 = vshrl.u32 %v566, 7
      %v568 = vsub.s32 0, %v567
      %v569 = vrot.slane %v564, %v568
      %v571 = vmul.f32 %v438, %v569
      %v572 = vmul.f32 %v441, %v569
      %v573 = vmul.f32 %v446, %v569
      %v574 = vmul.f32 %v449, %v569
      %v575 = vmul.f32 %v454, %v569
      %v576 = vmul.f32 %v457, %v569
      %v577 = vmul.f32 %v462, %v569
      %v578 = vmul.f32 %v465, %v569
      %v579 = vmul.f32 %v470, %v569
      %v580 = vmul.f32 %v473, %v569
      %v581 = vmul.f32 %v478, %v569
      %v582 = vmul.f32 %v481, %v569
      %v583 = vmul.f32 %v486, %v569
      %v584 = vmul.f32 %v489, %v569
      %v585 = vmul.f32 %v494, %v569
      %v586 = vmul.f32 %v497, %v569
      %v587 = vmul.f32 %v502, %v569
      %v588 = vmul.f32 %v505, %v569
      %v589 = vmul.f32 %v510, %v569
      %v590 = vmul.f32 %v513, %v569
      %v591 = vmul.f32 %v518, %v569
      %v592 = vmul.f32 %v521, %v569
      %v593 = vmul.f32 %v526, %v569
      %v594 = vmul.f32 %v529, %v569
      %v595 = vmul.f32 %v534, %v569
      %v596 = vmul.f32 %v537, %v569
      %v597 = vmul.f32 %v542, %v569
      %v598 = vmul.f32 %v545, %v569
      %v599 = vmul.f32 %v550, %v569
      %v600 = vmul.f32 %v553, %v569
      %v601 = vmul.f32 %v558, %v569
      %v602 = vmul.f32 %v561, %v569
      %v603 = vld [vmem:[%s3] sm:$0x1]
      %v605 = vlaneseq
      %v606 = vshrl.u32 %v605, 7
      %v607 = vsub.s32 0, %v606
      %v608 = vrot.slane %v603, %v607
      %v610 = vadd.f32 %v571, %v608
      %v611 = vadd.f32 %v572, %v608
      %v612 = vadd.f32 %v573, %v608
      %v613 = vadd.f32 %v574, %v608
      %v614 = vadd.f32 %v575, %v608
      %v615 = vadd.f32 %v576, %v608
      %v616 = vadd.f32 %v577, %v608
      %v617 = vadd.f32 %v578, %v608
      %v618 = vadd.f32 %v579, %v608
      %v619 = vadd.f32 %v580, %v608
      %v620 = vadd.f32 %v581, %v608
      %v621 = vadd.f32 %v582, %v608
      %v622 = vadd.f32 %v583, %v608
      %v623 = vadd.f32 %v584, %v608
      %v624 = vadd.f32 %v585, %v608
      %v625 = vadd.f32 %v586, %v608
      %v626 = vadd.f32 %v587, %v608
      %v627 = vadd.f32 %v588, %v608
      %v628 = vadd.f32 %v589, %v608
      %v629 = vadd.f32 %v590, %v608
      %v630 = vadd.f32 %v591, %v608
      %v631 = vadd.f32 %v592, %v608
      %v632 = vadd.f32 %v593, %v608
      %v633 = vadd.f32 %v594, %v608
      %v634 = vadd.f32 %v595, %v608
      %v635 = vadd.f32 %v596, %v608
      %v636 = vadd.f32 %v597, %v608
      %v637 = vadd.f32 %v598, %v608
      %v638 = vadd.f32 %v599, %v608
      %v639 = vadd.f32 %v600, %v608
      %v640 = vadd.f32 %v601, %v608
      %v641 = vadd.f32 %v602, %v608
      %v642 = vmax.f32 %v610, 0.0
      %v643 = vmax.f32 %v611, 0.0
      %v644 = vmax.f32 %v612, 0.0
      %v645 = vmax.f32 %v613, 0.0
      %v646 = vmax.f32 %v614, 0.0
      %v647 = vmax.f32 %v615, 0.0
      %v648 = vmax.f32 %v616, 0.0
      %v649 = vmax.f32 %v617, 0.0
      %v650 = vmax.f32 %v618, 0.0
      %v651 = vmax.f32 %v619, 0.0
      %v652 = vmax.f32 %v620, 0.0
      %v653 = vmax.f32 %v621, 0.0
      %v654 = vmax.f32 %v622, 0.0
      %v655 = vmax.f32 %v623, 0.0
      %v656 = vmax.f32 %v624, 0.0
      %v657 = vmax.f32 %v625, 0.0
      %v658 = vmax.f32 %v626, 0.0
      %v659 = vmax.f32 %v627, 0.0
      %v660 = vmax.f32 %v628, 0.0
      %v661 = vmax.f32 %v629, 0.0
      %v662 = vmax.f32 %v630, 0.0
      %v663 = vmax.f32 %v631, 0.0
      %v664 = vmax.f32 %v632, 0.0
      %v665 = vmax.f32 %v633, 0.0
      %v666 = vmax.f32 %v634, 0.0
      %v667 = vmax.f32 %v635, 0.0
      %v668 = vmax.f32 %v636, 0.0
      %v669 = vmax.f32 %v637, 0.0
      %v670 = vmax.f32 %v638, 0.0
      %v671 = vmax.f32 %v639, 0.0
      %v672 = vmax.f32 %v640, 0.0
      %v673 = vmax.f32 %v641, 0.0
      %v674 = vpack.c.bf16 %v643, %v642
      %v675 = vpack.c.bf16 %v645, %v644
      %v676 = vpack.c.bf16 %v647, %v646
      %v677 = vpack.c.bf16 %v649, %v648
      %v678 = vpack.c.bf16 %v651, %v650
      %v679 = vpack.c.bf16 %v653, %v652
      %v680 = vpack.c.bf16 %v655, %v654
      %v681 = vpack.c.bf16 %v657, %v656
      %v682 = vpack.c.bf16 %v659, %v658
      %v683 = vpack.c.bf16 %v661, %v660
      %v684 = vpack.c.bf16 %v663, %v662
      %v685 = vpack.c.bf16 %v665, %v664
      %v686 = vpack.c.bf16 %v667, %v666
      %v687 = vpack.c.bf16 %v669, %v668
      %v688 = vpack.c.bf16 %v671, %v670
      %v689 = vpack.c.bf16 %v673, %v672
      %v706 = vunpack.c.l.b16 %v674
      %v707 = vunpack.c.h.b16 %v674
      %v708 = vunpack.c.l.b16 %v675
      %v709 = vunpack.c.h.b16 %v675
      %v710 = vunpack.c.l.b16 %v676
      %v711 = vunpack.c.h.b16 %v676
      %v712 = vunpack.c.l.b16 %v677
      %v713 = vunpack.c.h.b16 %v677
      %v714 = vunpack.c.l.b16 %v678
      %v715 = vunpack.c.h.b16 %v678
      %v716 = vunpack.c.l.b16 %v679
      %v717 = vunpack.c.h.b16 %v679
      %v718 = vunpack.c.l.b16 %v680
      %v719 = vunpack.c.h.b16 %v680
      %v720 = vunpack.c.l.b16 %v681
      %v721 = vunpack.c.h.b16 %v681
      %v722 = vunpack.c.l.b16 %v682
      %v723 = vunpack.c.h.b16 %v682
      %v724 = vunpack.c.l.b16 %v683
      %v725 = vunpack.c.h.b16 %v683
      %v726 = vunpack.c.l.b16 %v684
      %v727 = vunpack.c.h.b16 %v684
      %v728 = vunpack.c.l.b16 %v685
      %v729 = vunpack.c.h.b16 %v685
      %v730 = vunpack.c.l.b16 %v686
      %v731 = vunpack.c.h.b16 %v686
      %v732 = vunpack.c.l.b16 %v687
      %v733 = vunpack.c.h.b16 %v687
      %v734 = vunpack.c.l.b16 %v688
      %v735 = vunpack.c.h.b16 %v688
      %v736 = vunpack.c.l.b16 %v689
      %v737 = vunpack.c.h.b16 %v689
      %v738 = vpack.c.b16 %v706, %v706
      %v739 = vpack.c.b16 %v707, %v707
      %v740 = vpack.c.b16 %v708, %v708
      %v741 = vpack.c.b16 %v709, %v709
      %v742 = vpack.c.b16 %v710, %v710
      %v743 = vpack.c.b16 %v711, %v711
      %v744 = vpack.c.b16 %v712, %v712
      %v745 = vpack.c.b16 %v713, %v713
      %v746 = vpack.c.b16 %v714, %v714
      %v747 = vpack.c.b16 %v715, %v715
      %v748 = vpack.c.b16 %v716, %v716
      %v749 = vpack.c.b16 %v717, %v717
      %v750 = vpack.c.b16 %v718, %v718
      %v751 = vpack.c.b16 %v719, %v719
      %v752 = vpack.c.b16 %v720, %v720
      %v753 = vpack.c.b16 %v721, %v721
      %v754 = vpack.c.b16 %v722, %v722
      %v755 = vpack.c.b16 %v723, %v723
      %v756 = vpack.c.b16 %v724, %v724
      %v757 = vpack.c.b16 %v725, %v725
      %v758 = vpack.c.b16 %v726, %v726
      %v759 = vpack.c.b16 %v727, %v727
      %v760 = vpack.c.b16 %v728, %v728
      %v761 = vpack.c.b16 %v729, %v729
      %v762 = vpack.c.b16 %v730, %v730
      %v763 = vpack.c.b16 %v731, %v731
      %v764 = vpack.c.b16 %v732, %v732
      %v765 = vpack.c.b16 %v733, %v733
      %v766 = vpack.c.b16 %v734, %v734
      %v767 = vpack.c.b16 %v735, %v735
      %v768 = vpack.c.b16 %v736, %v736
      %v769 = vpack.c.b16 %v737, %v737
      %vm802 = vcmask 60416
      %803 = vst.msk [vmem:[%s199] sm:$0xf] %vm802, %v738
      %804 = vst.msk [vmem:[%s199 + $0x4] sm:$0xf] %vm802, %v739
      %805 = vst.msk [vmem:[%s199 + $0x8] sm:$0xf] %vm802, %v740
      %806 = vst.msk [vmem:[%s199 + $0xc] sm:$0xf] %vm802, %v741
      %807 = vst.msk [vmem:[%s199 + $0x10] sm:$0xf] %vm802, %v742
      %808 = vst.msk [vmem:[%s199 + $0x14] sm:$0xf] %vm802, %v743
      %809 = vst.msk [vmem:[%s199 + $0x18] sm:$0xf] %vm802, %v744
      %810 = vst.msk [vmem:[%s199 + $0x1c] sm:$0xf] %vm802, %v745
      %811 = vst.msk [vmem:[%s199 + $0x20] sm:$0xf] %vm802, %v746
      %812 = vst.msk [vmem:[%s199 + $0x24] sm:$0xf] %vm802, %v747
      %813 = vst.msk [vmem:[%s199 + $0x28] sm:$0xf] %vm802, %v748
      %814 = vst.msk [vmem:[%s199 + $0x2c] sm:$0xf] %vm802, %v749
      %815 = vst.msk [vmem:[%s199 + $0x30] sm:$0xf] %vm802, %v750
      %816 = vst.msk [vmem:[%s199 + $0x34] sm:$0xf] %vm802, %v751
      %817 = vst.msk [vmem:[%s199 + $0x38] sm:$0xf] %vm802, %v752
      %818 = vst.msk [vmem:[%s199 + $0x3c] sm:$0xf] %vm802, %v753
      %819 = vst.msk [vmem:[%s199 + $0x40] sm:$0xf] %vm802, %v754
      %820 = vst.msk [vmem:[%s199 + $0x44] sm:$0xf] %vm802, %v755
      %821 = vst.msk [vmem:[%s199 + $0x48] sm:$0xf] %vm802, %v756
      %822 = vst.msk [vmem:[%s199 + $0x4c] sm:$0xf] %vm802, %v757
      %823 = vst.msk [vmem:[%s199 + $0x50] sm:$0xf] %vm802, %v758
      %824 = vst.msk [vmem:[%s199 + $0x54] sm:$0xf] %vm802, %v759
      %825 = vst.msk [vmem:[%s199 + $0x58] sm:$0xf] %vm802, %v760
      %826 = vst.msk [vmem:[%s199 + $0x5c] sm:$0xf] %vm802, %v761
      %827 = vst.msk [vmem:[%s199 + $0x60] sm:$0xf] %vm802, %v762
      %828 = vst.msk [vmem:[%s199 + $0x64] sm:$0xf] %vm802, %v763
      %829 = vst.msk [vmem:[%s199 + $0x68] sm:$0xf] %vm802, %v764
      %830 = vst.msk [vmem:[%s199 + $0x6c] sm:$0xf] %vm802, %v765
      %831 = vst.msk [vmem:[%s199 + $0x70] sm:$0xf] %vm802, %v766
      %832 = vst.msk [vmem:[%s199 + $0x74] sm:$0xf] %vm802, %v767
      %833 = vst.msk [vmem:[%s199 + $0x78] sm:$0xf] %vm802, %v768
      %834 = vst.msk [vmem:[%s199 + $0x7c] sm:$0xf] %vm802, %v769
      %s835 = smul.u32 32, %s15
      %p836 = scmp.lt.s32.totalorder %s835, 63
      %s837 = scalar_select %p836, %s835, 63
      %s838 = smul.addr %s837, 4
      %s839 = scalar_lea.vmem %s4, %s838
      // Predicated region
      $region37: #{_lambda_.24} parent=35 // pred_check
        %p840 = pneg %p122
      $region38: #{_lambda_.24} parent=35 // pred_check_branch
        %842 = sbr.rel (%p840) target = $region40
      $region39: #{_lambda_.24} parent=35 // pred_region
        %s843 = smul.u32 32, %s15
      $region40: #{_lambda_.24} parent=35 // pred_fallthru
        _
    $region36: #{_lambda_.24} parent=5 // pred_fallthru
      _
    %p844 = scmp.le.s32.totalorder 2, %s10
    // Predicated region
    $region41: #{_lambda_.24} parent=5 // pred_check
      %p845 = pneg %p844
    $region42: #{_lambda_.24} parent=5 // pred_check_branch
      %847 = sbr.rel (%p845) target = $region44
    $region43: #{_lambda_.24} parent=5 // pred_region
      %s848 = ssub.s32 %s10, 2
      // Predicated region
      $region45: #{_lambda_.24} parent=43 // pred_check
        %p849 = pneg %p128
      $region46: #{_lambda_.24} parent=43 // pred_check_branch
        %851 = sbr.rel (%p849) target = $region48
      $region47: #{_lambda_.24} parent=43 // pred_region
        %s852 = smul.u32 32, %s16
        %p853 = scmp.lt.s32.totalorder %s852, 63
        %s854 = scalar_select %p853, %s852, 63
        %s855 = smul.addr %s854, 4
        %s856 = scalar_lea.vmem %s4, %s855
      $region48: #{_lambda_.24} parent=43 // pred_fallthru
        _
    $region44: #{_lambda_.24} parent=5 // pred_fallthru
      _
  $region6: #{_lambda_.24} parent=0 // loop_footer
    %s14 = sadd.s32 1, %s10
  $region7: #{_lambda_.24} parent=0 // loop_footer_branch
    %9 = sbr.rel target = $region3
  $region8: #{_lambda_.24} parent=0 // loop_exit
    _

// kernel: _lambda_.25
$region0: #{_lambda_.25}
  #allocation0 [shape = 'u32[]', space=smem, size = 0x4, offset = 0x4, fixed_abs, tag = 'smem constant byte address 0x4 - core index']
  #allocation1 [shape = 'u32[144,128]{1,0:T(1,128)}', space=vmem, size = 0x12000, scoped, tag = 'internal scratch']
  %s0 = inlined_call_operand.vmem [shape: bf16[512,72], index: 0, kind: input, shape index: {}]
  %s1 = inlined_call_operand.vmem [shape: bf16[72,8], index: 1, kind: input, shape index: {}]
  %s2 = inlined_call_operand.vmem [shape: f32[1,8], index: 2, kind: input, shape index: {}]
  %s3 = inlined_call_operand.vmem [shape: f32[1,8], index: 3, kind: input, shape index: {}]
  %s4 = inlined_call_operand.vmem [shape: bf16[512,8], index: 4, kind: input, shape index: {}]
  %s5 = inlined_call_operand.vmem [shape: bf16[512,8], index: 5, kind: output, shape index: {}]
  %s6 = sld [smem:[#allocation0]]
  $region53: #{_lambda_.25} parent=0
    _
  %s8 = ssub.s32 1, %s6
  %s9 = scalar_select 0, %s8, %s6
  loop: start=0, step=1, limit=4
  $region2: #{_lambda_.25} parent=0 // loop_pre_header
    _
  $region3: #{_lambda_.25} parent=0 // loop_header
    %s11 = sphi 0, %s15
    %p12 = scmp.ge.s32.totalorder %s11, 4
    %s21 = sphi 0, %s23
    %s24 = sphi 0, %s21
    %s25 = sphi 0, %s24
    %s41 = sphi 0, %s25
    %s45 = sphi 0, %s45
    %s47 = sphi 0, %s45
    %s48 = sphi 0, %s47
    %s62 = sphi 0, %s48
    %s66 = sphi 0, %s66
    %s68 = sphi 0, %s66
    %s69 = sphi 0, %s68
    %s83 = sphi 0, %s69
    %s87 = sphi 0, %s87
    %s89 = sphi 0, %s87
    %s90 = sphi 0, %s89
    %s104 = sphi 0, %s90
    %s110 = sphi 0, %s112
    %s113 = sphi 0, %s110
    %s114 = sphi 0, %s113
    %s130 = sphi 0, %s114
    %s136 = sphi 0, %s138
    %s139 = sphi 0, %s136
    %s140 = sphi 0, %s139
    %s156 = sphi 0, %s140
  $region4: #{_lambda_.25} parent=0 // loop_header_branch
    %14 = sbr.rel (%p12) target = $region8
  $region5: #{_lambda_.25} parent=0 // loop_body
    %s16 = ssub.s32 %s11, 1
    %s17 = ssub.s32 %s11, 2
    %s18 = sadd.s32 %s11, 1
    %s19 = ssub.s32 %s11, %s18
    %p20 = scmp.eq.s32.totalorder %s19, 0
    %s22 = sadd.s32 %s21, 1
    %s23 = scalar_select %p20, %s21, %s22
    %p26 = pneg %p20
    %p27 = scmp.eq.s32.totalorder %s11, 1
    %p28 = por %p26, %p27
    %p29 = scmp.ne.s32.totalorder %s21, %s24
    %p30 = scmp.eq.s32.totalorder %s11, 0
    %p31 = por %p29, %p30
    %p32 = scmp.ne.s32.totalorder %s21, %s24
    %p33 = scmp.eq.s32.totalorder %s16, 1
    %p34 = por %p32, %p33
    %p35 = scmp.ne.s32.totalorder %s24, %s25
    %p36 = scmp.eq.s32.totalorder %s16, 0
    %p37 = por %p35, %p36
    %p38 = scmp.ne.s32.totalorder %s24, %s25
    %p39 = scmp.eq.s32.totalorder %s17, 1
    %p40 = por %p38, %p39
    %p42 = scmp.ne.s32.totalorder %s25, %s41
    %p43 = scmp.eq.s32.totalorder %s17, 0
    %p44 = por %p42, %p43
    %s46 = sadd.s32 %s45, 1
    %p49 = scmp.eq.s32.totalorder %s11, 1
    %p50 = scmp.ne.s32.totalorder %s45, %s47
    %p51 = scmp.eq.s32.totalorder %s11, 0
    %p52 = por %p50, %p51
    %p53 = scmp.ne.s32.totalorder %s45, %s47
    %p54 = scmp.eq.s32.totalorder %s16, 1
    %p55 = por %p53, %p54
    %p56 = scmp.ne.s32.totalorder %s47, %s48
    %p57 = scmp.eq.s32.totalorder %s16, 0
    %p58 = por %p56, %p57
    %p59 = scmp.ne.s32.totalorder %s47, %s48
    %p60 = scmp.eq.s32.totalorder %s17, 1
    %p61 = por %p59, %p60
    %p63 = scmp.ne.s32.totalorder %s48, %s62
    %p64 = scmp.eq.s32.totalorder %s17, 0
    %p65 = por %p63, %p64
    %s67 = sadd.s32 %s66, 1
    %p70 = scmp.eq.s32.totalorder %s11, 1
    %p71 = scmp.ne.s32.totalorder %s66, %s68
    %p72 = scmp.eq.s32.totalorder %s11, 0
    %p73 = por %p71, %p72
    %p74 = scmp.ne.s32.totalorder %s66, %s68
    %p75 = scmp.eq.s32.totalorder %s16, 1
    %p76 = por %p74, %p75
    %p77 = scmp.ne.s32.totalorder %s68, %s69
    %p78 = scmp.eq.s32.totalorder %s16, 0
    %p79 = por %p77, %p78
    %p80 = scmp.ne.s32.totalorder %s68, %s69
    %p81 = scmp.eq.s32.totalorder %s17, 1
    %p82 = por %p80, %p81
    %p84 = scmp.ne.s32.totalorder %s69, %s83
    %p85 = scmp.eq.s32.totalorder %s17, 0
    %p86 = por %p84, %p85
    %s88 = sadd.s32 %s87, 1
    %p91 = scmp.eq.s32.totalorder %s11, 1
    %p92 = scmp.ne.s32.totalorder %s87, %s89
    %p93 = scmp.eq.s32.totalorder %s11, 0
    %p94 = por %p92, %p93
    %p95 = scmp.ne.s32.totalorder %s87, %s89
    %p96 = scmp.eq.s32.totalorder %s16, 1
    %p97 = por %p95, %p96
    %p98 = scmp.ne.s32.totalorder %s89, %s90
    %p99 = scmp.eq.s32.totalorder %s16, 0
    %p100 = por %p98, %p99
    %p101 = scmp.ne.s32.totalorder %s89, %s90
    %p102 = scmp.eq.s32.totalorder %s17, 1
    %p103 = por %p101, %p102
    %p105 = scmp.ne.s32.totalorder %s90, %s104
    %p106 = scmp.eq.s32.totalorder %s17, 0
    %p107 = por %p105, %p106
    %s108 = ssub.s32 %s11, %s18
    %p109 = scmp.eq.s32.totalorder %s108, 0
    %s111 = sadd.s32 %s110, 1
    %s112 = scalar_select %p109, %s110, %s111
    %p115 = pneg %p109
    %p116 = scmp.eq.s32.totalorder %s11, 1
    %p117 = por %p115, %p116
    %p118 = scmp.ne.s32.totalorder %s110, %s113
    %p119 = scmp.eq.s32.totalorder %s11, 0
    %p120 = por %p118, %p119
    %p121 = scmp.ne.s32.totalorder %s110, %s113
    %p122 = scmp.eq.s32.totalorder %s16, 1
    %p123 = por %p121, %p122
    %p124 = scmp.ne.s32.totalorder %s113, %s114
    %p125 = scmp.eq.s32.totalorder %s16, 0
    %p126 = por %p124, %p125
    %p127 = scmp.ne.s32.totalorder %s113, %s114
    %p128 = scmp.eq.s32.totalorder %s17, 1
    %p129 = por %p127, %p128
    %p131 = scmp.ne.s32.totalorder %s114, %s130
    %p132 = scmp.eq.s32.totalorder %s17, 0
    %p133 = por %p131, %p132
    %s134 = ssub.s32 %s11, %s18
    %p135 = scmp.eq.s32.totalorder %s134, 0
    %s137 = sadd.s32 %s136, 1
    %s138 = scalar_select %p135, %s136, %s137
    %p141 = pneg %p135
    %p142 = scmp.eq.s32.totalorder %s11, 1
    %p143 = por %p141, %p142
    %p144 = scmp.ne.s32.totalorder %s136, %s139
    %p145 = scmp.eq.s32.totalorder %s11, 0
    %p146 = por %p144, %p145
    %p147 = scmp.ne.s32.totalorder %s136, %s139
    %p148 = scmp.eq.s32.totalorder %s16, 1
    %p149 = por %p147, %p148
    %p150 = scmp.ne.s32.totalorder %s139, %s140
    %p151 = scmp.eq.s32.totalorder %s16, 0
    %p152 = por %p150, %p151
    %p153 = scmp.ne.s32.totalorder %s139, %s140
    %p154 = scmp.eq.s32.totalorder %s17, 1
    %p155 = por %p153, %p154
    %p157 = scmp.ne.s32.totalorder %s140, %s156
    %p158 = scmp.eq.s32.totalorder %s17, 0
    %p159 = por %p157, %p158
    %p160 = scmp.le.s32.totalorder 1, %s11
    %p161 = scmp.lt.s32.totalorder %s11, 3
    %p162 = pnand %p160, %p161
    %p163 = pneg %p162
    // Predicated region
    $region9: #{_lambda_.25} parent=5 // pred_check
      _
    $region10: #{_lambda_.25} parent=5 // pred_check_branch
      %165 = sbr.rel (%p162) target = $region12
    $region11: #{_lambda_.25} parent=5 // pred_region
      %s166 = ssub.s32 %s11, 1
      // Predicated region
      $region13: #{_lambda_.25} parent=11 // pred_check
        %p167 = pneg %p58
      $region14: #{_lambda_.25} parent=11 // pred_check_branch
        %169 = sbr.rel (%p167) target = $region16
      $region15: #{_lambda_.25} parent=11 // pred_region
        _
      $region16: #{_lambda_.25} parent=11 // pred_fallthru
        _
      // Predicated region
      $region17: #{_lambda_.25} parent=11 // pred_check
        %p170 = pneg %p79
      $region18: #{_lambda_.25} parent=11 // pred_check_branch
        %172 = sbr.rel (%p170) target = $region20
      $region19: #{_lambda_.25} parent=11 // pred_region
        _
      $region20: #{_lambda_.25} parent=11 // pred_fallthru
        _
      // Predicated region
      $region21: #{_lambda_.25} parent=11 // pred_check
        %p173 = pneg %p100
      $region22: #{_lambda_.25} parent=11 // pred_check_branch
        %175 = sbr.rel (%p173) target = $region24
      $region23: #{_lambda_.25} parent=11 // pred_region
        _
      $region24: #{_lambda_.25} parent=11 // pred_fallthru
        _
    $region12: #{_lambda_.25} parent=5 // pred_fallthru
      _
    %p176 = scmp.lt.s32.totalorder %s11, 2
    // Predicated region
    $region25: #{_lambda_.25} parent=5 // pred_check
      %p177 = pneg %p176
    $region26: #{_lambda_.25} parent=5 // pred_check_branch
      %179 = sbr.rel (%p177) target = $region28
    $region27: #{_lambda_.25} parent=5 // pred_region
      // Predicated region
      $region29: #{_lambda_.25} parent=27 // pred_check
        %p180 = pneg %p31
      $region30: #{_lambda_.25} parent=27 // pred_check_branch
        %182 = sbr.rel (%p180) target = $region32
      $region31: #{_lambda_.25} parent=27 // pred_region
        %s183 = smul.u32 32, %s11
        %p184 = scmp.lt.s32.totalorder %s183, 63
        %s185 = scalar_select %p184, %s183, 63
        %s186 = smul.addr %s185, 4
        %s187 = scalar_lea.vmem %s0, %s186
        %s188 = smul.u32 32, %s11
      $region32: #{_lambda_.25} parent=27 // pred_fallthru
        _
      // Predicated region
      $region33: #{_lambda_.25} parent=27 // pred_check
        %p189 = pneg %p120
      $region34: #{_lambda_.25} parent=27 // pred_check_branch
        %191 = sbr.rel (%p189) target = $region36
      $region35: #{_lambda_.25} parent=27 // pred_region
        %s192 = smul.u32 32, %s11
        %p193 = scmp.lt.s32.totalorder %s192, 63
        %s194 = scalar_select %p193, %s192, 63
        %s195 = smul.addr %s194, 4
        %s196 = scalar_lea.vmem %s4, %s195
        %s197 = smul.u32 32, %s11
      $region36: #{_lambda_.25} parent=27 // pred_fallthru
        _
    $region28: #{_lambda_.25} parent=5 // pred_fallthru
      _
    %p198 = scmp.le.s32.totalorder 1, %s11
    %p199 = scmp.lt.s32.totalorder %s11, 3
    %p200 = pnand %p198, %p199
    %p201 = pneg %p200
    // Predicated region
    $region37: #{_lambda_.25} parent=5 // pred_check
      _
    $region38: #{_lambda_.25} parent=5 // pred_check_branch
      %203 = sbr.rel (%p200) target = $region40
    $region39: #{_lambda_.25} parent=5 // pred_region
      %s204 = ssub.s32 %s11, 1
      %s205 = smul.u32 32, %s16
      %p206 = scmp.lt.s32.totalorder %s205, 63
      %s207 = scalar_select %p206, %s205, 63
      %s208 = smul.addr %s207, 4
      %s209 = scalar_lea.vmem %s0, %s208
      %p210 = pneg %p37
      %p211 = pneg %p34
      %p212 = pneg %p58
      %p213 = pneg %p55
      %p214 = pneg %p79
      %p215 = pneg %p76
      %p216 = pneg %p100
      %p217 = pneg %p97
      %s218 = smul.u32 32, %s16
      %p219 = scmp.lt.s32.totalorder %s218, 63
      %s220 = scalar_select %p219, %s218, 63
      %s221 = smul.addr %s220, 4
      %s222 = scalar_lea.vmem %s4, %s221
      %p223 = pneg %p126
      %p224 = pneg %p123
      %p225 = pneg %p152
      %p226 = pneg %p149
      %s227 = smul.u32 32, %s16
      %p228 = scmp.lt.s32.totalorder %s227, 63
      %s229 = scalar_select %p228, %s227, 63
      %s230 = smul.addr %s229, 4
      %s231 = scalar_lea.vmem %s5, %s230
      %s232 = smul.u32 32, %s16
      %p233 = scmp.lt.s32.totalorder %s232, 63
      %s234 = scalar_select %p233, %s232, 63
      %s235 = smul.addr %s234, 4
      %s236 = scalar_lea.vmem %s0, %s235
      %s237 = smul.u32 32, %s16
      %s238 = smul.u32 32, %s16
      %p239 = scmp.lt.s32.totalorder %s238, 63
      %s240 = scalar_select %p239, %s238, 63
      %s241 = smul.addr %s240, 4
      %s242 = scalar_lea.vmem %s4, %s241
      %s243 = smul.u32 32, %s16
      %s244 = smul.u32 32, %s16
      %p245 = scmp.lt.s32.totalorder %s244, 63
      %s246 = scalar_select %p245, %s244, 63
      %s247 = smul.addr %s246, 4
      %s248 = scalar_lea.vmem %s5, %s247
      %s249 = smul.u32 32, %s16
      %v251 = vld [vmem:[%s236] sm:$0xf]
      %v252 = vld [vmem:[%s236 + $0x4] sm:$0xf]
      %v253 = vld [vmem:[%s236 + $0x8] sm:$0xf]
      %v254 = vld [vmem:[%s236 + $0xc] sm:$0xf]
      %v255 = vld [vmem:[%s236 + $0x10] sm:$0xf]
      %v256 = vld [vmem:[%s236 + $0x14] sm:$0xf]
      %v257 = vld [vmem:[%s236 + $0x18] sm:$0xf]
      %v258 = vld [vmem:[%s236 + $0x1c] sm:$0xf]
      %v259 = vld [vmem:[%s236 + $0x20] sm:$0xf]
      %v260 = vld [vmem:[%s236 + $0x24] sm:$0xf]
      %v261 = vld [vmem:[%s236 + $0x28] sm:$0xf]
      %v262 = vld [vmem:[%s236 + $0x2c] sm:$0xf]
      %v263 = vld [vmem:[%s236 + $0x30] sm:$0xf]
      %v264 = vld [vmem:[%s236 + $0x34] sm:$0xf]
      %v265 = vld [vmem:[%s236 + $0x38] sm:$0xf]
      %v266 = vld [vmem:[%s236 + $0x3c] sm:$0xf]
      %v267 = vld [vmem:[%s236 + $0x40] sm:$0xf]
      %v268 = vld [vmem:[%s236 + $0x44] sm:$0xf]
      %v269 = vld [vmem:[%s236 + $0x48] sm:$0xf]
      %v270 = vld [vmem:[%s236 + $0x4c] sm:$0xf]
      %v271 = vld [vmem:[%s236 + $0x50] sm:$0xf]
      %v272 = vld [vmem:[%s236 + $0x54] sm:$0xf]
      %v273 = vld [vmem:[%s236 + $0x58] sm:$0xf]
      %v274 = vld [vmem:[%s236 + $0x5c] sm:$0xf]
      %v275 = vld [vmem:[%s236 + $0x60] sm:$0xf]
      %v276 = vld [vmem:[%s236 + $0x64] sm:$0xf]
      %v277 = vld [vmem:[%s236 + $0x68] sm:$0xf]
      %v278 = vld [vmem:[%s236 + $0x6c] sm:$0xf]
      %v279 = vld [vmem:[%s236 + $0x70] sm:$0xf]
      %v280 = vld [vmem:[%s236 + $0x74] sm:$0xf]
      %v281 = vld [vmem:[%s236 + $0x78] sm:$0xf]
      %v282 = vld [vmem:[%s236 + $0x7c] sm:$0xf]
      %v283 = vld [vmem:[%s1] sm:$0xf]
      %v284 = vld [vmem:[%s1 + $0x4] sm:$0xf]
      %v285 = vld [vmem:[%s1 + $0x8] sm:$0xf]
      %v286 = vld [vmem:[%s1 + $0xc] sm:$0xf]
      %v287 = vld [vmem:[%s1 + $0x10] sm:$0xf]
      %v288 = vld [vmem:[%s1 + $0x14] sm:$0xf]
      %v289 = vld [vmem:[%s1 + $0x18] sm:$0xf]
      %v290 = vld [vmem:[%s1 + $0x1c] sm:$0xf]
      %v291 = vld [vmem:[%s1 + $0x20] sm:$0xf]
      %v324 = vunpack.c.l.b16 %v251
      %v325 = vunpack.c.l.b16 %v252
      %v326 = vunpack.c.l.b16 %v253
      %v327 = vunpack.c.l.b16 %v254
      %v328 = vunpack.c.l.b16 %v255
      %v329 = vunpack.c.l.b16 %v256
      %v330 = vunpack.c.l.b16 %v257
      %v331 = vunpack.c.l.b16 %v258
      %v332 = vunpack.c.l.b16 %v259
      %v333 = vunpack.c.l.b16 %v260
      %v334 = vunpack.c.l.b16 %v261
      %v335 = vunpack.c.l.b16 %v262
      %v336 = vunpack.c.l.b16 %v263
      %v337 = vunpack.c.l.b16 %v264
      %v338 = vunpack.c.l.b16 %v265
      %v339 = vunpack.c.l.b16 %v266
      %v340 = vunpack.c.l.b16 %v267
      %v341 = vunpack.c.l.b16 %v268
      %v342 = vunpack.c.l.b16 %v269
      %v343 = vunpack.c.l.b16 %v270
      %v344 = vunpack.c.l.b16 %v271
      %v345 = vunpack.c.l.b16 %v272
      %v346 = vunpack.c.l.b16 %v273
      %v347 = vunpack.c.l.b16 %v274
      %v348 = vunpack.c.l.b16 %v275
      %v349 = vunpack.c.l.b16 %v276
      %v350 = vunpack.c.l.b16 %v277
      %v351 = vunpack.c.l.b16 %v278
      %v352 = vunpack.c.l.b16 %v279
      %v353 = vunpack.c.l.b16 %v280
      %v354 = vunpack.c.l.b16 %v281
      %v355 = vunpack.c.l.b16 %v282
      %v356 = vpack.c.b16 %v325, %v324
      %v357 = vpack.c.b16 %v327, %v326
      %v358 = vpack.c.b16 %v329, %v328
      %v359 = vpack.c.b16 %v331, %v330
      %v360 = vpack.c.b16 %v333, %v332
      %v361 = vpack.c.b16 %v335, %v334
      %v362 = vpack.c.b16 %v337, %v336
      %v363 = vpack.c.b16 %v339, %v338
      %v364 = vpack.c.b16 %v341, %v340
      %v365 = vpack.c.b16 %v343, %v342
      %v366 = vpack.c.b16 %v345, %v344
      %v367 = vpack.c.b16 %v347, %v346
      %v368 = vpack.c.b16 %v349, %v348
      %v369 = vpack.c.b16 %v351, %v350
      %v370 = vpack.c.b16 %v353, %v352
      %v371 = vpack.c.b16 %v355, %v354
      %v381 = vunpack.c.l.b16 %v283
      %v382 = vunpack.c.l.b16 %v284
      %v383 = vunpack.c.l.b16 %v285
      %v384 = vunpack.c.l.b16 %v286
      %v385 = vunpack.c.l.b16 %v287
      %v386 = vunpack.c.l.b16 %v288
      %v387 = vunpack.c.l.b16 %v289
      %v388 = vunpack.c.l.b16 %v290
      %v389 = vunpack.c.l.b16 %v291
      %v390 = vpack.c.b16 %v382, %v381
      %v391 = vpack.c.b16 %v384, %v383
      %v392 = vpack.c.b16 %v386, %v385
      %v393 = vpack.c.b16 %v388, %v387
      %v394 = vpack.c.b16 %v389, %v389
      %vm399 = vcmask 588800
      %v401 = vsel %vm399, %v356, 0
      %v404 = vsel %vm399, %v357, 0
      %v407 = vsel %vm399, %v358, 0
      %v410 = vsel %vm399, %v359, 0
      %v413 = vsel %vm399, %v360, 0
      %v416 = vsel %vm399, %v361, 0
      %v419 = vsel %vm399, %v362, 0
      %v422 = vsel %vm399, %v363, 0
      %v425 = vsel %vm399, %v364, 0
      %v428 = vsel %vm399, %v365, 0
      %v431 = vsel %vm399, %v366, 0
      %v434 = vsel %vm399, %v367, 0
      %v437 = vsel %vm399, %v368, 0
      %v440 = vsel %vm399, %v369, 0
      %v443 = vsel %vm399, %v370, 0
      %v446 = vsel %vm399, %v371, 0
      %vm448 = vcmask 1043456
      %v450 = vsel %vm448, %v394, 0
      %452 = vmatprep.subr.bf16.mxu0 0
      %453 = vmatpush1.bf16.msra.mxu0 %v390
      %454 = vmatprep.subr.bf16.mxu0 0
      %455 = vmatpush1.bf16.msra.mxu0 %v391
      %456 = vmatprep.subr.bf16.mxu0 0
      %457 = vmatpush1.bf16.msra.mxu0 %v392
      %458 = vmatprep.subr.bf16.mxu0 0
      %459 = vmatpush1.bf16.msra.mxu0 %v393
      %460 = vmatprep.subr.bf16.mxu0 0
      %461 = vmatpush1.bf16.msra.mxu0 %v450
      %462 = vmatprep.subr.bf16.mxu0 0
      %463 = vmatpush1.bf16.msra.mxu0 0
      %464 = vmatprep.subr.bf16.mxu0 0
      %465 = vmatpush1.bf16.msra.mxu0 0
      %466 = vmatprep.subr.bf16.mxu0 0
      %467 = vmatpush1.bf16.msra.mxu0 0
      %468 = vmatprep.subr.bf16.mxu0 0
      %469 = vmatpush1.bf16.msra.mxu0 0
      %470 = vmatprep.subr.bf16.mxu0 0
      %471 = vmatpush1.bf16.msra.mxu0 0
      %472 = vmatprep.subr.bf16.mxu0 0
      %473 = vmatpush1.bf16.msra.mxu0 0
      %474 = vmatprep.subr.bf16.mxu0 0
      %475 = vmatpush1.bf16.msra.mxu0 0
      %476 = vmatprep.subr.bf16.mxu0 0
      %477 = vmatpush1.bf16.msra.mxu0 0
      %478 = vmatprep.subr.bf16.mxu0 0
      %479 = vmatpush1.bf16.msra.mxu0 0
      %480 = vmatprep.subr.bf16.mxu0 0
      %481 = vmatpush1.bf16.msra.mxu0 0
      %482 = vmatprep.subr.bf16.mxu0 0
      %483 = vmatpush1.bf16.msra.mxu0 0
      %484 = vmatprep.mubr.bf16.mxu0 0
      %485 = vmatmul.mubr.bf16.gmra.mrb[0].mxu0 %v401
      %v486 = vpop.f32.mrb[0].mxu0
      %v487 = vadd.f32 0.0, %v486
      %v488 = vpop.f32.mrb[0].mxu0
      %v489 = vpop.f32.mrb[0].mxu0
      %v490 = vadd.f32 0.0, %v489
      %v491 = vpop.f32.mrb[0].mxu0
      %492 = vmatprep.mubr.bf16.mxu0 0
      %493 = vmatmul.mubr.bf16.gmra.mrb[0].mxu0 %v404
      %v494 = vpop.f32.mrb[0].mxu0
      %v495 = vadd.f32 0.0, %v494
      %v496 = vpop.f32.mrb[0].mxu0
      %v497 = vpop.f32.mrb[0].mxu0
      %v498 = vadd.f32 0.0, %v497
      %v499 = vpop.f32.mrb[0].mxu0
      %500 = vmatprep.mubr.bf16.mxu0 0
      %501 = vmatmul.mubr.bf16.gmra.mrb[0].mxu0 %v407
      %v502 = vpop.f32.mrb[0].mxu0
      %v503 = vadd.f32 0.0, %v502
      %v504 = vpop.f32.mrb[0].mxu0
      %v505 = vpop.f32.mrb[0].mxu0
      %v506 = vadd.f32 0.0, %v505
      %v507 = vpop.f32.mrb[0].mxu0
      %508 = vmatprep.mubr.bf16.mxu0 0
      %509 = vmatmul.mubr.bf16.gmra.mrb[0].mxu0 %v410
      %v510 = vpop.f32.mrb[0].mxu0
      %v511 = vadd.f32 0.0, %v510
      %v512 = vpop.f32.mrb[0].mxu0
      %v513 = vpop.f32.mrb[0].mxu0
      %v514 = vadd.f32 0.0, %v513
      %v515 = vpop.f32.mrb[0].mxu0
      %516 = vmatprep.mubr.bf16.mxu0 0
      %517 = vmatmul.mubr.bf16.gmra.mrb[0].mxu0 %v413
      %v518 = vpop.f32.mrb[0].mxu0
      %v519 = vadd.f32 0.0, %v518
      %v520 = vpop.f32.mrb[0].mxu0
      %v521 = vpop.f32.mrb[0].mxu0
      %v522 = vadd.f32 0.0, %v521
      %v523 = vpop.f32.mrb[0].mxu0
      %524 = vmatprep.mubr.bf16.mxu0 0
      %525 = vmatmul.mubr.bf16.gmra.mrb[0].mxu0 %v416
      %v526 = vpop.f32.mrb[0].mxu0
      %v527 = vadd.f32 0.0, %v526
      %v528 = vpop.f32.mrb[0].mxu0
      %v529 = vpop.f32.mrb[0].mxu0
      %v530 = vadd.f32 0.0, %v529
      %v531 = vpop.f32.mrb[0].mxu0
      %532 = vmatprep.mubr.bf16.mxu0 0
      %533 = vmatmul.mubr.bf16.gmra.mrb[0].mxu0 %v419
      %v534 = vpop.f32.mrb[0].mxu0
      %v535 = vadd.f32 0.0, %v534
      %v536 = vpop.f32.mrb[0].mxu0
      %v537 = vpop.f32.mrb[0].mxu0
      %v538 = vadd.f32 0.0, %v537
      %v539 = vpop.f32.mrb[0].mxu0
      %540 = vmatprep.mubr.bf16.mxu0 0
      %541 = vmatmul.mubr.bf16.gmra.mrb[0].mxu0 %v422
      %v542 = vpop.f32.mrb[0].mxu0
      %v543 = vadd.f32 0.0, %v542
      %v544 = vpop.f32.mrb[0].mxu0
      %v545 = vpop.f32.mrb[0].mxu0
      %v546 = vadd.f32 0.0, %v545
      %v547 = vpop.f32.mrb[0].mxu0
      %548 = vmatprep.mubr.bf16.mxu0 0
      %549 = vmatmul.mubr.bf16.gmra.mrb[0].mxu0 %v425
      %v550 = vpop.f32.mrb[0].mxu0
      %v551 = vadd.f32 0.0, %v550
      %v552 = vpop.f32.mrb[0].mxu0
      %v553 = vpop.f32.mrb[0].mxu0
      %v554 = vadd.f32 0.0, %v553
      %v555 = vpop.f32.mrb[0].mxu0
      %556 = vmatprep.mubr.bf16.mxu0 0
      %557 = vmatmul.mubr.bf16.gmra.mrb[0].mxu0 %v428
      %v558 = vpop.f32.mrb[0].mxu0
      %v559 = vadd.f32 0.0, %v558
      %v560 = vpop.f32.mrb[0].mxu0
      %v561 = vpop.f32.mrb[0].mxu0
      %v562 = vadd.f32 0.0, %v561
      %v563 = vpop.f32.mrb[0].mxu0
      %564 = vmatprep.mubr.bf16.mxu0 0
      %565 = vmatmul.mubr.bf16.gmra.mrb[0].mxu0 %v431
      %v566 = vpop.f32.mrb[0].mxu0
      %v567 = vadd.f32 0.0, %v566
      %v568 = vpop.f32.mrb[0].mxu0
      %v569 = vpop.f32.mrb[0].mxu0
      %v570 = vadd.f32 0.0, %v569
      %v571 = vpop.f32.mrb[0].mxu0
      %572 = vmatprep.mubr.bf16.mxu0 0
      %573 = vmatmul.mubr.bf16.gmra.mrb[0].mxu0 %v434
      %v574 = vpop.f32.mrb[0].mxu0
      %v575 = vadd.f32 0.0, %v574
      %v576 = vpop.f32.mrb[0].mxu0
      %v577 = vpop.f32.mrb[0].mxu0
      %v578 = vadd.f32 0.0, %v577
      %v579 = vpop.f32.mrb[0].mxu0
      %580 = vmatprep.mubr.bf16.mxu0 0
      %581 = vmatmul.mubr.bf16.gmra.mrb[0].mxu0 %v437
      %v582 = vpop.f32.mrb[0].mxu0
      %v583 = vadd.f32 0.0, %v582
      %v584 = vpop.f32.mrb[0].mxu0
      %v585 = vpop.f32.mrb[0].mxu0
      %v586 = vadd.f32 0.0, %v585
      %v587 = vpop.f32.mrb[0].mxu0
      %588 = vmatprep.mubr.bf16.mxu0 0
      %589 = vmatmul.mubr.bf16.gmra.mrb[0].mxu0 %v440
      %v590 = vpop.f32.mrb[0].mxu0
      %v591 = vadd.f32 0.0, %v590
      %v592 = vpop.f32.mrb[0].mxu0
      %v593 = vpop.f32.mrb[0].mxu0
      %v594 = vadd.f32 0.0, %v593
      %v595 = vpop.f32.mrb[0].mxu0
      %596 = vmatprep.mubr.bf16.mxu0 0
      %597 = vmatmul.mubr.bf16.gmra.mrb[0].mxu0 %v443
      %v598 = vpop.f32.mrb[0].mxu0
      %v599 = vadd.f32 0.0, %v598
      %v600 = vpop.f32.mrb[0].mxu0
      %v601 = vpop.f32.mrb[0].mxu0
      %v602 = vadd.f32 0.0, %v601
      %v603 = vpop.f32.mrb[0].mxu0
      %604 = vmatprep.mubr.bf16.mxu0 0
      %605 = vmatmul.mubr.bf16.gmra.mrb[0].mxu0 %v446
      %v606 = vpop.f32.mrb[0].mxu0
      %v607 = vadd.f32 0.0, %v606
      %v608 = vpop.f32.mrb[0].mxu0
      %v609 = vpop.f32.mrb[0].mxu0
      %v610 = vadd.f32 0.0, %v609
      %v611 = vpop.f32.mrb[0].mxu0
      %612 = vdwg.mxu0
      %v613 = vld [vmem:[%s2] sm:$0x1]
      %v615 = vlaneseq
      %v616 = vshrl.u32 %v615, 7
      %v617 = vsub.s32 0, %v616
      %v618 = vrot.slane %v613, %v617
      %v620 = vmul.f32 %v487, %v618
      %v621 = vmul.f32 %v490, %v618
      %v622 = vmul.f32 %v495, %v618
      %v623 = vmul.f32 %v498, %v618
      %v624 = vmul.f32 %v503, %v618
      %v625 = vmul.f32 %v506, %v618
      %v626 = vmul.f32 %v511, %v618
      %v627 = vmul.f32 %v514, %v618
      %v628 = vmul.f32 %v519, %v618
      %v629 = vmul.f32 %v522, %v618
      %v630 = vmul.f32 %v527, %v618
      %v631 = vmul.f32 %v530, %v618
      %v632 = vmul.f32 %v535, %v618
      %v633 = vmul.f32 %v538, %v618
      %v634 = vmul.f32 %v543, %v618
      %v635 = vmul.f32 %v546, %v618
      %v636 = vmul.f32 %v551, %v618
      %v637 = vmul.f32 %v554, %v618
      %v638 = vmul.f32 %v559, %v618
      %v639 = vmul.f32 %v562, %v618
      %v640 = vmul.f32 %v567, %v618
      %v641 = vmul.f32 %v570, %v618
      %v642 = vmul.f32 %v575, %v618
      %v643 = vmul.f32 %v578, %v618
      %v644 = vmul.f32 %v583, %v618
      %v645 = vmul.f32 %v586, %v618
      %v646 = vmul.f32 %v591, %v618
      %v647 = vmul.f32 %v594, %v618
      %v648 = vmul.f32 %v599, %v618
      %v649 = vmul.f32 %v602, %v618
      %v650 = vmul.f32 %v607, %v618
      %v651 = vmul.f32 %v610, %v618
      %v652 = vld [vmem:[%s3] sm:$0x1]
      %v654 = vlaneseq
      %v655 = vshrl.u32 %v654, 7
      %v656 = vsub.s32 0, %v655
      %v657 = vrot.slane %v652, %v656
      %v659 = vadd.f32 %v620, %v657
      %v660 = vadd.f32 %v621, %v657
      %v661 = vadd.f32 %v622, %v657
      %v662 = vadd.f32 %v623, %v657
      %v663 = vadd.f32 %v624, %v657
      %v664 = vadd.f32 %v625, %v657
      %v665 = vadd.f32 %v626, %v657
      %v666 = vadd.f32 %v627, %v657
      %v667 = vadd.f32 %v628, %v657
      %v668 = vadd.f32 %v629, %v657
      %v669 = vadd.f32 %v630, %v657
      %v670 = vadd.f32 %v631, %v657
      %v671 = vadd.f32 %v632, %v657
      %v672 = vadd.f32 %v633, %v657
      %v673 = vadd.f32 %v634, %v657
      %v674 = vadd.f32 %v635, %v657
      %v675 = vadd.f32 %v636, %v657
      %v676 = vadd.f32 %v637, %v657
      %v677 = vadd.f32 %v638, %v657
      %v678 = vadd.f32 %v639, %v657
      %v679 = vadd.f32 %v640, %v657
      %v680 = vadd.f32 %v641, %v657
      %v681 = vadd.f32 %v642, %v657
      %v682 = vadd.f32 %v643, %v657
      %v683 = vadd.f32 %v644, %v657
      %v684 = vadd.f32 %v645, %v657
      %v685 = vadd.f32 %v646, %v657
      %v686 = vadd.f32 %v647, %v657
      %v687 = vadd.f32 %v648, %v657
      %v688 = vadd.f32 %v649, %v657
      %v689 = vadd.f32 %v650, %v657
      %v690 = vadd.f32 %v651, %v657
      %v691 = vld [vmem:[%s242] sm:$0xf]
      %v692 = vld [vmem:[%s242 + $0x4] sm:$0xf]
      %v693 = vld [vmem:[%s242 + $0x8] sm:$0xf]
      %v694 = vld [vmem:[%s242 + $0xc] sm:$0xf]
      %v695 = vld [vmem:[%s242 + $0x10] sm:$0xf]
      %v696 = vld [vmem:[%s242 + $0x14] sm:$0xf]
      %v697 = vld [vmem:[%s242 + $0x18] sm:$0xf]
      %v698 = vld [vmem:[%s242 + $0x1c] sm:$0xf]
      %v699 = vld [vmem:[%s242 + $0x20] sm:$0xf]
      %v700 = vld [vmem:[%s242 + $0x24] sm:$0xf]
      %v701 = vld [vmem:[%s242 + $0x28] sm:$0xf]
      %v702 = vld [vmem:[%s242 + $0x2c] sm:$0xf]
      %v703 = vld [vmem:[%s242 + $0x30] sm:$0xf]
      %v704 = vld [vmem:[%s242 + $0x34] sm:$0xf]
      %v705 = vld [vmem:[%s242 + $0x38] sm:$0xf]
      %v706 = vld [vmem:[%s242 + $0x3c] sm:$0xf]
      %v707 = vld [vmem:[%s242 + $0x40] sm:$0xf]
      %v708 = vld [vmem:[%s242 + $0x44] sm:$0xf]
      %v709 = vld [vmem:[%s242 + $0x48] sm:$0xf]
      %v710 = vld [vmem:[%s242 + $0x4c] sm:$0xf]
      %v711 = vld [vmem:[%s242 + $0x50] sm:$0xf]
      %v712 = vld [vmem:[%s242 + $0x54] sm:$0xf]
      %v713 = vld [vmem:[%s242 + $0x58] sm:$0xf]
      %v714 = vld [vmem:[%s242 + $0x5c] sm:$0xf]
      %v715 = vld [vmem:[%s242 + $0x60] sm:$0xf]
      %v716 = vld [vmem:[%s242 + $0x64] sm:$0xf]
      %v717 = vld [vmem:[%s242 + $0x68] sm:$0xf]
      %v718 = vld [vmem:[%s242 + $0x6c] sm:$0xf]
      %v719 = vld [vmem:[%s242 + $0x70] sm:$0xf]
      %v720 = vld [vmem:[%s242 + $0x74] sm:$0xf]
      %v721 = vld [vmem:[%s242 + $0x78] sm:$0xf]
      %v722 = vld [vmem:[%s242 + $0x7c] sm:$0xf]
      %v723 = vunpack.c.l.bf16 %v691
      %v724 = vunpack.c.l.bf16 %v692
      %v725 = vunpack.c.l.bf16 %v693
      %v726 = vunpack.c.l.bf16 %v694
      %v727 = vunpack.c.l.bf16 %v695
      %v728 = vunpack.c.l.bf16 %v696
      %v729 = vunpack.c.l.bf16 %v697
      %v730 = vunpack.c.l.bf16 %v698
      %v731 = vunpack.c.l.bf16 %v699
      %v732 = vunpack.c.l.bf16 %v700
      %v733 = vunpack.c.l.bf16 %v701
      %v734 = vunpack.c.l.bf16 %v702
      %v735 = vunpack.c.l.bf16 %v703
      %v736 = vunpack.c.l.bf16 %v704
      %v737 = vunpack.c.l.bf16 %v705
      %v738 = vunpack.c.l.bf16 %v706
      %v739 = vunpack.c.l.bf16 %v707
      %v740 = vunpack.c.l.bf16 %v708
      %v741 = vunpack.c.l.bf16 %v709
      %v742 = vunpack.c.l.bf16 %v710
      %v743 = vunpack.c.l.bf16 %v711
      %v744 = vunpack.c.l.bf16 %v712
      %v745 = vunpack.c.l.bf16 %v713
      %v746 = vunpack.c.l.bf16 %v714
      %v747 = vunpack.c.l.bf16 %v715
      %v748 = vunpack.c.l.bf16 %v716
      %v749 = vunpack.c.l.bf16 %v717
      %v750 = vunpack.c.l.bf16 %v718
      %v751 = vunpack.c.l.bf16 %v719
      %v752 = vunpack.c.l.bf16 %v720
      %v753 = vunpack.c.l.bf16 %v721
      %v754 = vunpack.c.l.bf16 %v722
      %v755 = vadd.f32 %v659, %v723
      %v756 = vadd.f32 %v660, %v724
      %v757 = vadd.f32 %v661, %v725
      %v758 = vadd.f32 %v662, %v726
      %v759 = vadd.f32 %v663, %v727
      %v760 = vadd.f32 %v664, %v728
      %v761 = vadd.f32 %v665, %v729
      %v762 = vadd.f32 %v666, %v730
      %v763 = vadd.f32 %v667, %v731
      %v764 = vadd.f32 %v668, %v732
      %v765 = vadd.f32 %v669, %v733
      %v766 = vadd.f32 %v670, %v734
      %v767 = vadd.f32 %v671, %v735
      %v768 = vadd.f32 %v672, %v736
      %v769 = vadd.f32 %v673, %v737
      %v770 = vadd.f32 %v674, %v738
      %v771 = vadd.f32 %v675, %v739
      %v772 = vadd.f32 %v676, %v740
      %v773 = vadd.f32 %v677, %v741
      %v774 = vadd.f32 %v678, %v742
      %v775 = vadd.f32 %v679, %v743
      %v776 = vadd.f32 %v680, %v744
      %v777 = vadd.f32 %v681, %v745
      %v778 = vadd.f32 %v682, %v746
      %v779 = vadd.f32 %v683, %v747
      %v780 = vadd.f32 %v684, %v748
      %v781 = vadd.f32 %v685, %v749
      %v782 = vadd.f32 %v686, %v750
      %v783 = vadd.f32 %v687, %v751
      %v784 = vadd.f32 %v688, %v752
      %v785 = vadd.f32 %v689, %v753
      %v786 = vadd.f32 %v690, %v754
      %v787 = vmax.f32 %v755, 0.0
      %v788 = vmax.f32 %v756, 0.0
      %v789 = vmax.f32 %v757, 0.0
      %v790 = vmax.f32 %v758, 0.0
      %v791 = vmax.f32 %v759, 0.0
      %v792 = vmax.f32 %v760, 0.0
      %v793 = vmax.f32 %v761, 0.0
      %v794 = vmax.f32 %v762, 0.0
      %v795 = vmax.f32 %v763, 0.0
      %v796 = vmax.f32 %v764, 0.0
      %v797 = vmax.f32 %v765, 0.0
      %v798 = vmax.f32 %v766, 0.0
      %v799 = vmax.f32 %v767, 0.0
      %v800 = vmax.f32 %v768, 0.0
      %v801 = vmax.f32 %v769, 0.0
      %v802 = vmax.f32 %v770, 0.0
      %v803 = vmax.f32 %v771, 0.0
      %v804 = vmax.f32 %v772, 0.0
      %v805 = vmax.f32 %v773, 0.0
      %v806 = vmax.f32 %v774, 0.0
      %v807 = vmax.f32 %v775, 0.0
      %v808 = vmax.f32 %v776, 0.0
      %v809 = vmax.f32 %v777, 0.0
      %v810 = vmax.f32 %v778, 0.0
      %v811 = vmax.f32 %v779, 0.0
      %v812 = vmax.f32 %v780, 0.0
      %v813 = vmax.f32 %v781, 0.0
      %v814 = vmax.f32 %v782, 0.0
      %v815 = vmax.f32 %v783, 0.0
      %v816 = vmax.f32 %v784, 0.0
      %v817 = vmax.f32 %v785, 0.0
      %v818 = vmax.f32 %v786, 0.0
      %v819 = vpack.c.bf16 %v788, %v787
      %v820 = vpack.c.bf16 %v790, %v789
      %v821 = vpack.c.bf16 %v792, %v791
      %v822 = vpack.c.bf16 %v794, %v793
      %v823 = vpack.c.bf16 %v796, %v795
      %v824 = vpack.c.bf16 %v798, %v797
      %v825 = vpack.c.bf16 %v800, %v799
      %v826 = vpack.c.bf16 %v802, %v801
      %v827 = vpack.c.bf16 %v804, %v803
      %v828 = vpack.c.bf16 %v806, %v805
      %v829 = vpack.c.bf16 %v808, %v807
      %v830 = vpack.c.bf16 %v810, %v809
      %v831 = vpack.c.bf16 %v812, %v811
      %v832 = vpack.c.bf16 %v814, %v813
      %v833 = vpack.c.bf16 %v816, %v815
      %v834 = vpack.c.bf16 %v818, %v817
      %v851 = vunpack.c.l.b16 %v819
      %v852 = vunpack.c.h.b16 %v819
      %v853 = vunpack.c.l.b16 %v820
      %v854 = vunpack.c.h.b16 %v820
      %v855 = vunpack.c.l.b16 %v821
      %v856 = vunpack.c.h.b16 %v821
      %v857 = vunpack.c.l.b16 %v822
      %v858 = vunpack.c.h.b16 %v822
      %v859 = vunpack.c.l.b16 %v823
      %v860 = vunpack.c.h.b16 %v823
      %v861 = vunpack.c.l.b16 %v824
      %v862 = vunpack.c.h.b16 %v824
      %v863 = vunpack.c.l.b16 %v825
      %v864 = vunpack.c.h.b16 %v825
      %v865 = vunpack.c.l.b16 %v826
      %v866 = vunpack.c.h.b16 %v826
      %v867 = vunpack.c.l.b16 %v827
      %v868 = vunpack.c.h.b16 %v827
      %v869 = vunpack.c.l.b16 %v828
      %v870 = vunpack.c.h.b16 %v828
      %v871 = vunpack.c.l.b16 %v829
      %v872 = vunpack.c.h.b16 %v829
      %v873 = vunpack.c.l.b16 %v830
      %v874 = vunpack.c.h.b16 %v830
      %v875 = vunpack.c.l.b16 %v831
      %v876 = vunpack.c.h.b16 %v831
      %v877 = vunpack.c.l.b16 %v832
      %v878 = vunpack.c.h.b16 %v832
      %v879 = vunpack.c.l.b16 %v833
      %v880 = vunpack.c.h.b16 %v833
      %v881 = vunpack.c.l.b16 %v834
      %v882 = vunpack.c.h.b16 %v834
      %v883 = vpack.c.b16 %v851, %v851
      %v884 = vpack.c.b16 %v852, %v852
      %v885 = vpack.c.b16 %v853, %v853
      %v886 = vpack.c.b16 %v854, %v854
      %v887 = vpack.c.b16 %v855, %v855
      %v888 = vpack.c.b16 %v856, %v856
      %v889 = vpack.c.b16 %v857, %v857
      %v890 = vpack.c.b16 %v858, %v858
      %v891 = vpack.c.b16 %v859, %v859
      %v892 = vpack.c.b16 %v860, %v860
      %v893 = vpack.c.b16 %v861, %v861
      %v894 = vpack.c.b16 %v862, %v862
      %v895 = vpack.c.b16 %v863, %v863
      %v896 = vpack.c.b16 %v864, %v864
      %v897 = vpack.c.b16 %v865, %v865
      %v898 = vpack.c.b16 %v866, %v866
      %v899 = vpack.c.b16 %v867, %v867
      %v900 = vpack.c.b16 %v868, %v868
      %v901 = vpack.c.b16 %v869, %v869
      %v902 = vpack.c.b16 %v870, %v870
      %v903 = vpack.c.b16 %v871, %v871
      %v904 = vpack.c.b16 %v872, %v872
      %v905 = vpack.c.b16 %v873, %v873
      %v906 = vpack.c.b16 %v874, %v874
      %v907 = vpack.c.b16 %v875, %v875
      %v908 = vpack.c.b16 %v876, %v876
      %v909 = vpack.c.b16 %v877, %v877
      %v910 = vpack.c.b16 %v878, %v878
      %v911 = vpack.c.b16 %v879, %v879
      %v912 = vpack.c.b16 %v880, %v880
      %v913 = vpack.c.b16 %v881, %v881
      %v914 = vpack.c.b16 %v882, %v882
      %vm947 = vcmask 60416
      %948 = vst.msk [vmem:[%s248] sm:$0xf] %vm947, %v883
      %949 = vst.msk [vmem:[%s248 + $0x4] sm:$0xf] %vm947, %v884
      %950 = vst.msk [vmem:[%s248 + $0x8] sm:$0xf] %vm947, %v885
      %951 = vst.msk [vmem:[%s248 + $0xc] sm:$0xf] %vm947, %v886
      %952 = vst.msk [vmem:[%s248 + $0x10] sm:$0xf] %vm947, %v887
      %953 = vst.msk [vmem:[%s248 + $0x14] sm:$0xf] %vm947, %v888
      %954 = vst.msk [vmem:[%s248 + $0x18] sm:$0xf] %vm947, %v889
      %955 = vst.msk [vmem:[%s248 + $0x1c] sm:$0xf] %vm947, %v890
      %956 = vst.msk [vmem:[%s248 + $0x20] sm:$0xf] %vm947, %v891
      %957 = vst.msk [vmem:[%s248 + $0x24] sm:$0xf] %vm947, %v892
      %958 = vst.msk [vmem:[%s248 + $0x28] sm:$0xf] %vm947, %v893
      %959 = vst.msk [vmem:[%s248 + $0x2c] sm:$0xf] %vm947, %v894
      %960 = vst.msk [vmem:[%s248 + $0x30] sm:$0xf] %vm947, %v895
      %961 = vst.msk [vmem:[%s248 + $0x34] sm:$0xf] %vm947, %v896
      %962 = vst.msk [vmem:[%s248 + $0x38] sm:$0xf] %vm947, %v897
      %963 = vst.msk [vmem:[%s248 + $0x3c] sm:$0xf] %vm947, %v898
      %964 = vst.msk [vmem:[%s248 + $0x40] sm:$0xf] %vm947, %v899
      %965 = vst.msk [vmem:[%s248 + $0x44] sm:$0xf] %vm947, %v900
      %966 = vst.msk [vmem:[%s248 + $0x48] sm:$0xf] %vm947, %v901
      %967 = vst.msk [vmem:[%s248 + $0x4c] sm:$0xf] %vm947, %v902
      %968 = vst.msk [vmem:[%s248 + $0x50] sm:$0xf] %vm947, %v903
      %969 = vst.msk [vmem:[%s248 + $0x54] sm:$0xf] %vm947, %v904
      %970 = vst.msk [vmem:[%s248 + $0x58] sm:$0xf] %vm947, %v905
      %971 = vst.msk [vmem:[%s248 + $0x5c] sm:$0xf] %vm947, %v906
      %972 = vst.msk [vmem:[%s248 + $0x60] sm:$0xf] %vm947, %v907
      %973 = vst.msk [vmem:[%s248 + $0x64] sm:$0xf] %vm947, %v908
      %974 = vst.msk [vmem:[%s248 + $0x68] sm:$0xf] %vm947, %v909
      %975 = vst.msk [vmem:[%s248 + $0x6c] sm:$0xf] %vm947, %v910
      %976 = vst.msk [vmem:[%s248 + $0x70] sm:$0xf] %vm947, %v911
      %977 = vst.msk [vmem:[%s248 + $0x74] sm:$0xf] %vm947, %v912
      %978 = vst.msk [vmem:[%s248 + $0x78] sm:$0xf] %vm947, %v913
      %979 = vst.msk [vmem:[%s248 + $0x7c] sm:$0xf] %vm947, %v914
      %s980 = smul.u32 32, %s16
      %p981 = scmp.lt.s32.totalorder %s980, 63
      %s982 = scalar_select %p981, %s980, 63
      %s983 = smul.addr %s982, 4
      %s984 = scalar_lea.vmem %s5, %s983
      // Predicated region
      $region41: #{_lambda_.25} parent=39 // pred_check
        %p985 = pneg %p149
      $region42: #{_lambda_.25} parent=39 // pred_check_branch
        %987 = sbr.rel (%p985) target = $region44
      $region43: #{_lambda_.25} parent=39 // pred_region
        %s988 = smul.u32 32, %s16
      $region44: #{_lambda_.25} parent=39 // pred_fallthru
        _
    $region40: #{_lambda_.25} parent=5 // pred_fallthru
      _
    %p989 = scmp.le.s32.totalorder 2, %s11
    // Predicated region
    $region45: #{_lambda_.25} parent=5 // pred_check
      %p990 = pneg %p989
    $region46: #{_lambda_.25} parent=5 // pred_check_branch
      %992 = sbr.rel (%p990) target = $region48
    $region47: #{_lambda_.25} parent=5 // pred_region
      %s993 = ssub.s32 %s11, 2
      // Predicated region
      $region49: #{_lambda_.25} parent=47 // pred_check
        %p994 = pneg %p155
      $region50: #{_lambda_.25} parent=47 // pred_check_branch
        %996 = sbr.rel (%p994) target = $region52
      $region51: #{_lambda_.25} parent=47 // pred_region
        %s997 = smul.u32 32, %s17
        %p998 = scmp.lt.s32.totalorder %s997, 63
        %s999 = scalar_select %p998, %s997, 63
        %s1000 = smul.addr %s999, 4
        %s1001 = scalar_lea.vmem %s5, %s1000
      $region52: #{_lambda_.25} parent=47 // pred_fallthru
        _
    $region48: #{_lambda_.25} parent=5 // pred_fallthru
      _
  $region6: #{_lambda_.25} parent=0 // loop_footer
    %s15 = sadd.s32 1, %s11
  $region7: #{_lambda_.25} parent=0 // loop_footer_branch
    %10 = sbr.rel target = $region3
  $region8: #{_lambda_.25} parent=0 // loop_exit
    _

// kernel: _lambda_.28
$region0: #{_lambda_.28}
  #allocation0 [shape = 'u32[]', space=smem, size = 0x4, offset = 0x4, fixed_abs, tag = 'smem constant byte address 0x4 - core index']
  #allocation1 [shape = 'u32[144,128]{1,0:T(1,128)}', space=vmem, size = 0x12000, scoped, tag = 'internal scratch']
  %s0 = inlined_call_operand.vmem [shape: bf16[128,72], index: 0, kind: input, shape index: {}]
  %s1 = inlined_call_operand.vmem [shape: bf16[72,16], index: 1, kind: input, shape index: {}]
  %s2 = inlined_call_operand.vmem [shape: f32[1,16], index: 2, kind: input, shape index: {}]
  %s3 = inlined_call_operand.vmem [shape: f32[1,16], index: 3, kind: input, shape index: {}]
  %s4 = inlined_call_operand.vmem [shape: bf16[128,16], index: 4, kind: output, shape index: {}]
  %s5 = sld [smem:[#allocation0]]
  $region26: #{_lambda_.28} parent=0
    _
  %s7 = ssub.s32 1, %s5
  %s8 = scalar_select 0, %s7, %s5
  // Predicated region
  $region2: #{_lambda_.28} parent=0 // pred_check
    _
  $region3: #{_lambda_.28} parent=0 // pred_check_branch
    %10 = sbr.rel (0) target = $region5
  $region4: #{_lambda_.28} parent=0 // pred_region
    _
  $region5: #{_lambda_.28} parent=0 // pred_fallthru
    _
  // Predicated region
  $region6: #{_lambda_.28} parent=0 // pred_check
    _
  $region7: #{_lambda_.28} parent=0 // pred_check_branch
    %12 = sbr.rel (0) target = $region9
  $region8: #{_lambda_.28} parent=0 // pred_region
    _
  $region9: #{_lambda_.28} parent=0 // pred_fallthru
    _
  // Predicated region
  $region10: #{_lambda_.28} parent=0 // pred_check
    _
  $region11: #{_lambda_.28} parent=0 // pred_check_branch
    %14 = sbr.rel (0) target = $region13
  $region12: #{_lambda_.28} parent=0 // pred_region
    _
  $region13: #{_lambda_.28} parent=0 // pred_fallthru
    _
  // Predicated region
  $region14: #{_lambda_.28} parent=0 // pred_check
    _
  $region15: #{_lambda_.28} parent=0 // pred_check_branch
    %16 = sbr.rel (0) target = $region17
  $region16: #{_lambda_.28} parent=0 // pred_region
    _
  $region17: #{_lambda_.28} parent=0 // pred_fallthru
    _
  %v18 = vld [vmem:[%s0] sm:$0xf]
  %v19 = vld [vmem:[%s0 + $0x4] sm:$0xf]
  %v20 = vld [vmem:[%s0 + $0x8] sm:$0xf]
  %v21 = vld [vmem:[%s0 + $0xc] sm:$0xf]
  %v22 = vld [vmem:[%s0 + $0x10] sm:$0xf]
  %v23 = vld [vmem:[%s0 + $0x14] sm:$0xf]
  %v24 = vld [vmem:[%s0 + $0x18] sm:$0xf]
  %v25 = vld [vmem:[%s0 + $0x1c] sm:$0xf]
  %v26 = vld [vmem:[%s0 + $0x20] sm:$0xf]
  %v27 = vld [vmem:[%s0 + $0x24] sm:$0xf]
  %v28 = vld [vmem:[%s0 + $0x28] sm:$0xf]
  %v29 = vld [vmem:[%s0 + $0x2c] sm:$0xf]
  %v30 = vld [vmem:[%s0 + $0x30] sm:$0xf]
  %v31 = vld [vmem:[%s0 + $0x34] sm:$0xf]
  %v32 = vld [vmem:[%s0 + $0x38] sm:$0xf]
  %v33 = vld [vmem:[%s0 + $0x3c] sm:$0xf]
  %v34 = vld [vmem:[%s1] sm:$0xf]
  %v35 = vld [vmem:[%s1 + $0x4] sm:$0xf]
  %v36 = vld [vmem:[%s1 + $0x8] sm:$0xf]
  %v37 = vld [vmem:[%s1 + $0xc] sm:$0xf]
  %v38 = vld [vmem:[%s1 + $0x10] sm:$0xf]
  %v39 = vld [vmem:[%s1 + $0x14] sm:$0xf]
  %v40 = vld [vmem:[%s1 + $0x18] sm:$0xf]
  %v41 = vld [vmem:[%s1 + $0x1c] sm:$0xf]
  %v42 = vld [vmem:[%s1 + $0x20] sm:$0xf]
  %v59 = vunpack.c.l.b16 %v18
  %v60 = vunpack.c.l.b16 %v19
  %v61 = vunpack.c.l.b16 %v20
  %v62 = vunpack.c.l.b16 %v21
  %v63 = vunpack.c.l.b16 %v22
  %v64 = vunpack.c.l.b16 %v23
  %v65 = vunpack.c.l.b16 %v24
  %v66 = vunpack.c.l.b16 %v25
  %v67 = vunpack.c.l.b16 %v26
  %v68 = vunpack.c.l.b16 %v27
  %v69 = vunpack.c.l.b16 %v28
  %v70 = vunpack.c.l.b16 %v29
  %v71 = vunpack.c.l.b16 %v30
  %v72 = vunpack.c.l.b16 %v31
  %v73 = vunpack.c.l.b16 %v32
  %v74 = vunpack.c.l.b16 %v33
  %v75 = vpack.c.b16 %v60, %v59
  %v76 = vpack.c.b16 %v62, %v61
  %v77 = vpack.c.b16 %v64, %v63
  %v78 = vpack.c.b16 %v66, %v65
  %v79 = vpack.c.b16 %v68, %v67
  %v80 = vpack.c.b16 %v70, %v69
  %v81 = vpack.c.b16 %v72, %v71
  %v82 = vpack.c.b16 %v74, %v73
  %v92 = vunpack.c.l.b16 %v34
  %v93 = vunpack.c.l.b16 %v35
  %v94 = vunpack.c.l.b16 %v36
  %v95 = vunpack.c.l.b16 %v37
  %v96 = vunpack.c.l.b16 %v38
  %v97 = vunpack.c.l.b16 %v39
  %v98 = vunpack.c.l.b16 %v40
  %v99 = vunpack.c.l.b16 %v41
  %v100 = vunpack.c.l.b16 %v42
  %v101 = vpack.c.b16 %v93, %v92
  %v102 = vpack.c.b16 %v95, %v94
  %v103 = vpack.c.b16 %v97, %v96
  %v104 = vpack.c.b16 %v99, %v98
  %v105 = vpack.c.b16 %v100, %v100
  %vm110 = vcmask 588800
  %v112 = vsel %vm110, %v75, 0
  %v115 = vsel %vm110, %v76, 0
  %v118 = vsel %vm110, %v77, 0
  %v121 = vsel %vm110, %v78, 0
  %v124 = vsel %vm110, %v79, 0
  %v127 = vsel %vm110, %v80, 0
  %v130 = vsel %vm110, %v81, 0
  %v133 = vsel %vm110, %v82, 0
  %vm135 = vcmask 1043456
  %v137 = vsel %vm135, %v105, 0
  %139 = vmatprep.subr.bf16.mxu0 0
  %140 = vmatpush1.bf16.msra.mxu0 %v101
  %141 = vmatprep.subr.bf16.mxu0 0
  %142 = vmatpush1.bf16.msra.mxu0 %v102
  %143 = vmatprep.subr.bf16.mxu0 0
  %144 = vmatpush1.bf16.msra.mxu0 %v103
  %145 = vmatprep.subr.bf16.mxu0 0
  %146 = vmatpush1.bf16.msra.mxu0 %v104
  %147 = vmatprep.subr.bf16.mxu0 0
  %148 = vmatpush1.bf16.msra.mxu0 %v137
  %149 = vmatprep.subr.bf16.mxu0 0
  %150 = vmatpush1.bf16.msra.mxu0 0
  %151 = vmatprep.subr.bf16.mxu0 0
  %152 = vmatpush1.bf16.msra.mxu0 0
  %153 = vmatprep.subr.bf16.mxu0 0
  %154 = vmatpush1.bf16.msra.mxu0 0
  %155 = vmatprep.subr.bf16.mxu0 0
  %156 = vmatpush1.bf16.msra.mxu0 0
  %157 = vmatprep.subr.bf16.mxu0 0
  %158 = vmatpush1.bf16.msra.mxu0 0
  %159 = vmatprep.subr.bf16.mxu0 0
  %160 = vmatpush1.bf16.msra.mxu0 0
  %161 = vmatprep.subr.bf16.mxu0 0
  %162 = vmatpush1.bf16.msra.mxu0 0
  %163 = vmatprep.subr.bf16.mxu0 0
  %164 = vmatpush1.bf16.msra.mxu0 0
  %165 = vmatprep.subr.bf16.mxu0 0
  %166 = vmatpush1.bf16.msra.mxu0 0
  %167 = vmatprep.subr.bf16.mxu0 0
  %168 = vmatpush1.bf16.msra.mxu0 0
  %169 = vmatprep.subr.bf16.mxu0 0
  %170 = vmatpush1.bf16.msra.mxu0 0
  %171 = vmatprep.mubr.bf16.mxu0 0
  %172 = vmatmul.mubr.bf16.gmra.mrb[0].mxu0 %v112
  %v173 = vpop.f32.mrb[0].mxu0
  %v174 = vadd.f32 0.0, %v173
  %v175 = vpop.f32.mrb[0].mxu0
  %v176 = vpop.f32.mrb[0].mxu0
  %v177 = vadd.f32 0.0, %v176
  %v178 = vpop.f32.mrb[0].mxu0
  %179 = vmatprep.mubr.bf16.mxu0 0
  %180 = vmatmul.mubr.bf16.gmra.mrb[0].mxu0 %v115
  %v181 = vpop.f32.mrb[0].mxu0
  %v182 = vadd.f32 0.0, %v181
  %v183 = vpop.f32.mrb[0].mxu0
  %v184 = vpop.f32.mrb[0].mxu0
  %v185 = vadd.f32 0.0, %v184
  %v186 = vpop.f32.mrb[0].mxu0
  %187 = vmatprep.mubr.bf16.mxu0 0
  %188 = vmatmul.mubr.bf16.gmra.mrb[0].mxu0 %v118
  %v189 = vpop.f32.mrb[0].mxu0
  %v190 = vadd.f32 0.0, %v189
  %v191 = vpop.f32.mrb[0].mxu0
  %v192 = vpop.f32.mrb[0].mxu0
  %v193 = vadd.f32 0.0, %v192
  %v194 = vpop.f32.mrb[0].mxu0
  %195 = vmatprep.mubr.bf16.mxu0 0
  %196 = vmatmul.mubr.bf16.gmra.mrb[0].mxu0 %v121
  %v197 = vpop.f32.mrb[0].mxu0
  %v198 = vadd.f32 0.0, %v197
  %v199 = vpop.f32.mrb[0].mxu0
  %v200 = vpop.f32.mrb[0].mxu0
  %v201 = vadd.f32 0.0, %v200
  %v202 = vpop.f32.mrb[0].mxu0
  %203 = vmatprep.mubr.bf16.mxu0 0
  %204 = vmatmul.mubr.bf16.gmra.mrb[0].mxu0 %v124
  %v205 = vpop.f32.mrb[0].mxu0
  %v206 = vadd.f32 0.0, %v205
  %v207 = vpop.f32.mrb[0].mxu0
  %v208 = vpop.f32.mrb[0].mxu0
  %v209 = vadd.f32 0.0, %v208
  %v210 = vpop.f32.mrb[0].mxu0
  %211 = vmatprep.mubr.bf16.mxu0 0
  %212 = vmatmul.mubr.bf16.gmra.mrb[0].mxu0 %v127
  %v213 = vpop.f32.mrb[0].mxu0
  %v214 = vadd.f32 0.0, %v213
  %v215 = vpop.f32.mrb[0].mxu0
  %v216 = vpop.f32.mrb[0].mxu0
  %v217 = vadd.f32 0.0, %v216
  %v218 = vpop.f32.mrb[0].mxu0
  %219 = vmatprep.mubr.bf16.mxu0 0
  %220 = vmatmul.mubr.bf16.gmra.mrb[0].mxu0 %v130
  %v221 = vpop.f32.mrb[0].mxu0
  %v222 = vadd.f32 0.0, %v221
  %v223 = vpop.f32.mrb[0].mxu0
  %v224 = vpop.f32.mrb[0].mxu0
  %v225 = vadd.f32 0.0, %v224
  %v226 = vpop.f32.mrb[0].mxu0
  %227 = vmatprep.mubr.bf16.mxu0 0
  %228 = vmatmul.mubr.bf16.gmra.mrb[0].mxu0 %v133
  %v229 = vpop.f32.mrb[0].mxu0
  %v230 = vadd.f32 0.0, %v229
  %v231 = vpop.f32.mrb[0].mxu0
  %v232 = vpop.f32.mrb[0].mxu0
  %v233 = vadd.f32 0.0, %v232
  %v234 = vpop.f32.mrb[0].mxu0
  %235 = vdwg.mxu0
  %v236 = vld [vmem:[%s2] sm:$0x1]
  %v238 = vlaneseq
  %v239 = vshrl.u32 %v238, 7
  %v240 = vsub.s32 0, %v239
  %v241 = vrot.slane %v236, %v240
  %v243 = vmul.f32 %v174, %v241
  %v244 = vmul.f32 %v177, %v241
  %v245 = vmul.f32 %v182, %v241
  %v246 = vmul.f32 %v185, %v241
  %v247 = vmul.f32 %v190, %v241
  %v248 = vmul.f32 %v193, %v241
  %v249 = vmul.f32 %v198, %v241
  %v250 = vmul.f32 %v201, %v241
  %v251 = vmul.f32 %v206, %v241
  %v252 = vmul.f32 %v209, %v241
  %v253 = vmul.f32 %v214, %v241
  %v254 = vmul.f32 %v217, %v241
  %v255 = vmul.f32 %v222, %v241
  %v256 = vmul.f32 %v225, %v241
  %v257 = vmul.f32 %v230, %v241
  %v258 = vmul.f32 %v233, %v241
  %v259 = vld [vmem:[%s3] sm:$0x1]
  %v261 = vlaneseq
  %v262 = vshrl.u32 %v261, 7
  %v263 = vsub.s32 0, %v262
  %v264 = vrot.slane %v259, %v263
  %v266 = vadd.f32 %v243, %v264
  %v267 = vadd.f32 %v244, %v264
  %v268 = vadd.f32 %v245, %v264
  %v269 = vadd.f32 %v246, %v264
  %v270 = vadd.f32 %v247, %v264
  %v271 = vadd.f32 %v248, %v264
  %v272 = vadd.f32 %v249, %v264
  %v273 = vadd.f32 %v250, %v264
  %v274 = vadd.f32 %v251, %v264
  %v275 = vadd.f32 %v252, %v264
  %v276 = vadd.f32 %v253, %v264
  %v277 = vadd.f32 %v254, %v264
  %v278 = vadd.f32 %v255, %v264
  %v279 = vadd.f32 %v256, %v264
  %v280 = vadd.f32 %v257, %v264
  %v281 = vadd.f32 %v258, %v264
  %v282 = vmax.f32 %v266, 0.0
  %v283 = vmax.f32 %v267, 0.0
  %v284 = vmax.f32 %v268, 0.0
  %v285 = vmax.f32 %v269, 0.0
  %v286 = vmax.f32 %v270, 0.0
  %v287 = vmax.f32 %v271, 0.0
  %v288 = vmax.f32 %v272, 0.0
  %v289 = vmax.f32 %v273, 0.0
  %v290 = vmax.f32 %v274, 0.0
  %v291 = vmax.f32 %v275, 0.0
  %v292 = vmax.f32 %v276, 0.0
  %v293 = vmax.f32 %v277, 0.0
  %v294 = vmax.f32 %v278, 0.0
  %v295 = vmax.f32 %v279, 0.0
  %v296 = vmax.f32 %v280, 0.0
  %v297 = vmax.f32 %v281, 0.0
  %v298 = vpack.c.bf16 %v283, %v282
  %v299 = vpack.c.bf16 %v285, %v284
  %v300 = vpack.c.bf16 %v287, %v286
  %v301 = vpack.c.bf16 %v289, %v288
  %v302 = vpack.c.bf16 %v291, %v290
  %v303 = vpack.c.bf16 %v293, %v292
  %v304 = vpack.c.bf16 %v295, %v294
  %v305 = vpack.c.bf16 %v297, %v296
  %v314 = vunpack.c.l.b16 %v298
  %v315 = vunpack.c.h.b16 %v298
  %v316 = vunpack.c.l.b16 %v299
  %v317 = vunpack.c.h.b16 %v299
  %v318 = vunpack.c.l.b16 %v300
  %v319 = vunpack.c.h.b16 %v300
  %v320 = vunpack.c.l.b16 %v301
  %v321 = vunpack.c.h.b16 %v301
  %v322 = vunpack.c.l.b16 %v302
  %v323 = vunpack.c.h.b16 %v302
  %v324 = vunpack.c.l.b16 %v303
  %v325 = vunpack.c.h.b16 %v303
  %v326 = vunpack.c.l.b16 %v304
  %v327 = vunpack.c.h.b16 %v304
  %v328 = vunpack.c.l.b16 %v305
  %v329 = vunpack.c.h.b16 %v305
  %v330 = vpack.c.b16 %v314, %v314
  %v331 = vpack.c.b16 %v315, %v315
  %v332 = vpack.c.b16 %v316, %v316
  %v333 = vpack.c.b16 %v317, %v317
  %v334 = vpack.c.b16 %v318, %v318
  %v335 = vpack.c.b16 %v319, %v319
  %v336 = vpack.c.b16 %v320, %v320
  %v337 = vpack.c.b16 %v321, %v321
  %v338 = vpack.c.b16 %v322, %v322
  %v339 = vpack.c.b16 %v323, %v323
  %v340 = vpack.c.b16 %v324, %v324
  %v341 = vpack.c.b16 %v325, %v325
  %v342 = vpack.c.b16 %v326, %v326
  %v343 = vpack.c.b16 %v327, %v327
  %v344 = vpack.c.b16 %v328, %v328
  %v345 = vpack.c.b16 %v329, %v329
  %vm362 = vcmask 125952
  %363 = vst.msk [vmem:[%s4] sm:$0xf] %vm362, %v330
  %364 = vst.msk [vmem:[%s4 + $0x4] sm:$0xf] %vm362, %v331
  %365 = vst.msk [vmem:[%s4 + $0x8] sm:$0xf] %vm362, %v332
  %366 = vst.msk [vmem:[%s4 + $0xc] sm:$0xf] %vm362, %v333
  %367 = vst.msk [vmem:[%s4 + $0x10] sm:$0xf] %vm362, %v334
  %368 = vst.msk [vmem:[%s4 + $0x14] sm:$0xf] %vm362, %v335
  %369 = vst.msk [vmem:[%s4 + $0x18] sm:$0xf] %vm362, %v336
  %370 = vst.msk [vmem:[%s4 + $0x1c] sm:$0xf] %vm362, %v337
  %371 = vst.msk [vmem:[%s4 + $0x20] sm:$0xf] %vm362, %v338
  %372 = vst.msk [vmem:[%s4 + $0x24] sm:$0xf] %vm362, %v339
  %373 = vst.msk [vmem:[%s4 + $0x28] sm:$0xf] %vm362, %v340
  %374 = vst.msk [vmem:[%s4 + $0x2c] sm:$0xf] %vm362, %v341
  %375 = vst.msk [vmem:[%s4 + $0x30] sm:$0xf] %vm362, %v342
  %376 = vst.msk [vmem:[%s4 + $0x34] sm:$0xf] %vm362, %v343
  %377 = vst.msk [vmem:[%s4 + $0x38] sm:$0xf] %vm362, %v344
  %378 = vst.msk [vmem:[%s4 + $0x3c] sm:$0xf] %vm362, %v345
  // Predicated region
  $region18: #{_lambda_.28} parent=0 // pred_check
    _
  $region19: #{_lambda_.28} parent=0 // pred_check_branch
    %380 = sbr.rel (0) target = $region21
  $region20: #{_lambda_.28} parent=0 // pred_region
    _
  $region21: #{_lambda_.28} parent=0 // pred_fallthru
    _
  // Predicated region
  $region22: #{_lambda_.28} parent=0 // pred_check
    _
  $region23: #{_lambda_.28} parent=0 // pred_check_branch
    %382 = sbr.rel (0) target = $region25
  $region24: #{_lambda_.28} parent=0 // pred_region
    _
  $region25: #{_lambda_.28} parent=0 // pred_fallthru
    _

// kernel: _lambda_.29
$region0: #{_lambda_.29}
  #allocation0 [shape = 'u32[]', space=smem, size = 0x4, offset = 0x4, fixed_abs, tag = 'smem constant byte address 0x4 - core index']
  #allocation1 [shape = 'u32[144,128]{1,0:T(1,128)}', space=vmem, size = 0x12000, scoped, tag = 'internal scratch']
  %s0 = inlined_call_operand.vmem [shape: bf16[128,8], index: 0, kind: input, shape index: {}]
  %s1 = inlined_call_operand.vmem [shape: bf16[8,16], index: 1, kind: input, shape index: {}]
  %s2 = inlined_call_operand.vmem [shape: f32[1,16], index: 2, kind: input, shape index: {}]
  %s3 = inlined_call_operand.vmem [shape: f32[1,16], index: 3, kind: input, shape index: {}]
  %s4 = inlined_call_operand.vmem [shape: bf16[128,16], index: 4, kind: output, shape index: {}]
  %s5 = sld [smem:[#allocation0]]
  $region26: #{_lambda_.29} parent=0
    _
  %s7 = ssub.s32 1, %s5
  %s8 = scalar_select 0, %s7, %s5
  // Predicated region
  $region2: #{_lambda_.29} parent=0 // pred_check
    _
  $region3: #{_lambda_.29} parent=0 // pred_check_branch
    %10 = sbr.rel (0) target = $region5
  $region4: #{_lambda_.29} parent=0 // pred_region
    _
  $region5: #{_lambda_.29} parent=0 // pred_fallthru
    _
  // Predicated region
  $region6: #{_lambda_.29} parent=0 // pred_check
    _
  $region7: #{_lambda_.29} parent=0 // pred_check_branch
    %12 = sbr.rel (0) target = $region9
  $region8: #{_lambda_.29} parent=0 // pred_region
    _
  $region9: #{_lambda_.29} parent=0 // pred_fallthru
    _
  // Predicated region
  $region10: #{_lambda_.29} parent=0 // pred_check
    _
  $region11: #{_lambda_.29} parent=0 // pred_check_branch
    %14 = sbr.rel (0) target = $region13
  $region12: #{_lambda_.29} parent=0 // pred_region
    _
  $region13: #{_lambda_.29} parent=0 // pred_fallthru
    _
  // Predicated region
  $region14: #{_lambda_.29} parent=0 // pred_check
    _
  $region15: #{_lambda_.29} parent=0 // pred_check_branch
    %16 = sbr.rel (0) target = $region17
  $region16: #{_lambda_.29} parent=0 // pred_region
    _
  $region17: #{_lambda_.29} parent=0 // pred_fallthru
    _
  %v18 = vld [vmem:[%s0] sm:$0xf]
  %v19 = vld [vmem:[%s0 + $0x4] sm:$0xf]
  %v20 = vld [vmem:[%s0 + $0x8] sm:$0xf]
  %v21 = vld [vmem:[%s0 + $0xc] sm:$0xf]
  %v22 = vld [vmem:[%s0 + $0x10] sm:$0xf]
  %v23 = vld [vmem:[%s0 + $0x14] sm:$0xf]
  %v24 = vld [vmem:[%s0 + $0x18] sm:$0xf]
  %v25 = vld [vmem:[%s0 + $0x1c] sm:$0xf]
  %v26 = vld [vmem:[%s0 + $0x20] sm:$0xf]
  %v27 = vld [vmem:[%s0 + $0x24] sm:$0xf]
  %v28 = vld [vmem:[%s0 + $0x28] sm:$0xf]
  %v29 = vld [vmem:[%s0 + $0x2c] sm:$0xf]
  %v30 = vld [vmem:[%s0 + $0x30] sm:$0xf]
  %v31 = vld [vmem:[%s0 + $0x34] sm:$0xf]
  %v32 = vld [vmem:[%s0 + $0x38] sm:$0xf]
  %v33 = vld [vmem:[%s0 + $0x3c] sm:$0xf]
  %v34 = vld [vmem:[%s1] sm:$0xf]
  %v51 = vunpack.c.l.b16 %v18
  %v52 = vunpack.c.l.b16 %v19
  %v53 = vunpack.c.l.b16 %v20
  %v54 = vunpack.c.l.b16 %v21
  %v55 = vunpack.c.l.b16 %v22
  %v56 = vunpack.c.l.b16 %v23
  %v57 = vunpack.c.l.b16 %v24
  %v58 = vunpack.c.l.b16 %v25
  %v59 = vunpack.c.l.b16 %v26
  %v60 = vunpack.c.l.b16 %v27
  %v61 = vunpack.c.l.b16 %v28
  %v62 = vunpack.c.l.b16 %v29
  %v63 = vunpack.c.l.b16 %v30
  %v64 = vunpack.c.l.b16 %v31
  %v65 = vunpack.c.l.b16 %v32
  %v66 = vunpack.c.l.b16 %v33
  %v67 = vpack.c.b16 %v52, %v51
  %v68 = vpack.c.b16 %v54, %v53
  %v69 = vpack.c.b16 %v56, %v55
  %v70 = vpack.c.b16 %v58, %v57
  %v71 = vpack.c.b16 %v60, %v59
  %v72 = vpack.c.b16 %v62, %v61
  %v73 = vpack.c.b16 %v64, %v63
  %v74 = vpack.c.b16 %v66, %v65
  %vm75 = vcmask 64512
  %v77 = vsel %vm75, %v67, 0
  %v80 = vsel %vm75, %v68, 0
  %v83 = vsel %vm75, %v69, 0
  %v86 = vsel %vm75, %v70, 0
  %v89 = vsel %vm75, %v71, 0
  %v92 = vsel %vm75, %v72, 0
  %v95 = vsel %vm75, %v73, 0
  %v98 = vsel %vm75, %v74, 0
  %vm100 = vcmask 1043456
  %v102 = vsel %vm100, %v34, 0
  %104 = vmatprep.subr.bf16.mxu0 0
  %105 = vmatpush1.bf16.msra.mxu0 %v102
  %106 = vmatprep.subr.bf16.mxu0 0
  %107 = vmatpush1.bf16.msra.mxu0 0
  %108 = vmatprep.subr.bf16.mxu0 0
  %109 = vmatpush1.bf16.msra.mxu0 0
  %110 = vmatprep.subr.bf16.mxu0 0
  %111 = vmatpush1.bf16.msra.mxu0 0
  %112 = vmatprep.subr.bf16.mxu0 0
  %113 = vmatpush1.bf16.msra.mxu0 0
  %114 = vmatprep.subr.bf16.mxu0 0
  %115 = vmatpush1.bf16.msra.mxu0 0
  %116 = vmatprep.subr.bf16.mxu0 0
  %117 = vmatpush1.bf16.msra.mxu0 0
  %118 = vmatprep.subr.bf16.mxu0 0
  %119 = vmatpush1.bf16.msra.mxu0 0
  %120 = vmatprep.subr.bf16.mxu0 0
  %121 = vmatpush1.bf16.msra.mxu0 0
  %122 = vmatprep.subr.bf16.mxu0 0
  %123 = vmatpush1.bf16.msra.mxu0 0
  %124 = vmatprep.subr.bf16.mxu0 0
  %125 = vmatpush1.bf16.msra.mxu0 0
  %126 = vmatprep.subr.bf16.mxu0 0
  %127 = vmatpush1.bf16.msra.mxu0 0
  %128 = vmatprep.subr.bf16.mxu0 0
  %129 = vmatpush1.bf16.msra.mxu0 0
  %130 = vmatprep.subr.bf16.mxu0 0
  %131 = vmatpush1.bf16.msra.mxu0 0
  %132 = vmatprep.subr.bf16.mxu0 0
  %133 = vmatpush1.bf16.msra.mxu0 0
  %134 = vmatprep.subr.bf16.mxu0 0
  %135 = vmatpush1.bf16.msra.mxu0 0
  %136 = vmatprep.mubr.bf16.mxu0 0
  %137 = vmatmul.mubr.bf16.gmra.mrb[0].mxu0 %v77
  %v138 = vpop.f32.mrb[0].mxu0
  %v139 = vadd.f32 0.0, %v138
  %v140 = vpop.f32.mrb[0].mxu0
  %v141 = vpop.f32.mrb[0].mxu0
  %v142 = vadd.f32 0.0, %v141
  %v143 = vpop.f32.mrb[0].mxu0
  %144 = vmatprep.mubr.bf16.mxu0 0
  %145 = vmatmul.mubr.bf16.gmra.mrb[0].mxu0 %v80
  %v146 = vpop.f32.mrb[0].mxu0
  %v147 = vadd.f32 0.0, %v146
  %v148 = vpop.f32.mrb[0].mxu0
  %v149 = vpop.f32.mrb[0].mxu0
  %v150 = vadd.f32 0.0, %v149
  %v151 = vpop.f32.mrb[0].mxu0
  %152 = vmatprep.mubr.bf16.mxu0 0
  %153 = vmatmul.mubr.bf16.gmra.mrb[0].mxu0 %v83
  %v154 = vpop.f32.mrb[0].mxu0
  %v155 = vadd.f32 0.0, %v154
  %v156 = vpop.f32.mrb[0].mxu0
  %v157 = vpop.f32.mrb[0].mxu0
  %v158 = vadd.f32 0.0, %v157
  %v159 = vpop.f32.mrb[0].mxu0
  %160 = vmatprep.mubr.bf16.mxu0 0
  %161 = vmatmul.mubr.bf16.gmra.mrb[0].mxu0 %v86
  %v162 = vpop.f32.mrb[0].mxu0
  %v163 = vadd.f32 0.0, %v162
  %v164 = vpop.f32.mrb[0].mxu0
  %v165 = vpop.f32.mrb[0].mxu0
  %v166 = vadd.f32 0.0, %v165
  %v167 = vpop.f32.mrb[0].mxu0
  %168 = vmatprep.mubr.bf16.mxu0 0
  %169 = vmatmul.mubr.bf16.gmra.mrb[0].mxu0 %v89
  %v170 = vpop.f32.mrb[0].mxu0
  %v171 = vadd.f32 0.0, %v170
  %v172 = vpop.f32.mrb[0].mxu0
  %v173 = vpop.f32.mrb[0].mxu0
  %v174 = vadd.f32 0.0, %v173
  %v175 = vpop.f32.mrb[0].mxu0
  %176 = vmatprep.mubr.bf16.mxu0 0
  %177 = vmatmul.mubr.bf16.gmra.mrb[0].mxu0 %v92
  %v178 = vpop.f32.mrb[0].mxu0
  %v179 = vadd.f32 0.0, %v178
  %v180 = vpop.f32.mrb[0].mxu0
  %v181 = vpop.f32.mrb[0].mxu0
  %v182 = vadd.f32 0.0, %v181
  %v183 = vpop.f32.mrb[0].mxu0
  %184 = vmatprep.mubr.bf16.mxu0 0
  %185 = vmatmul.mubr.bf16.gmra.mrb[0].mxu0 %v95
  %v186 = vpop.f32.mrb[0].mxu0
  %v187 = vadd.f32 0.0, %v186
  %v188 = vpop.f32.mrb[0].mxu0
  %v189 = vpop.f32.mrb[0].mxu0
  %v190 = vadd.f32 0.0, %v189
  %v191 = vpop.f32.mrb[0].mxu0
  %192 = vmatprep.mubr.bf16.mxu0 0
  %193 = vmatmul.mubr.bf16.gmra.mrb[0].mxu0 %v98
  %v194 = vpop.f32.mrb[0].mxu0
  %v195 = vadd.f32 0.0, %v194
  %v196 = vpop.f32.mrb[0].mxu0
  %v197 = vpop.f32.mrb[0].mxu0
  %v198 = vadd.f32 0.0, %v197
  %v199 = vpop.f32.mrb[0].mxu0
  %200 = vdwg.mxu0
  %v201 = vld [vmem:[%s2] sm:$0x1]
  %v203 = vlaneseq
  %v204 = vshrl.u32 %v203, 7
  %v205 = vsub.s32 0, %v204
  %v206 = vrot.slane %v201, %v205
  %v208 = vmul.f32 %v139, %v206
  %v209 = vmul.f32 %v142, %v206
  %v210 = vmul.f32 %v147, %v206
  %v211 = vmul.f32 %v150, %v206
  %v212 = vmul.f32 %v155, %v206
  %v213 = vmul.f32 %v158, %v206
  %v214 = vmul.f32 %v163, %v206
  %v215 = vmul.f32 %v166, %v206
  %v216 = vmul.f32 %v171, %v206
  %v217 = vmul.f32 %v174, %v206
  %v218 = vmul.f32 %v179, %v206
  %v219 = vmul.f32 %v182, %v206
  %v220 = vmul.f32 %v187, %v206
  %v221 = vmul.f32 %v190, %v206
  %v222 = vmul.f32 %v195, %v206
  %v223 = vmul.f32 %v198, %v206
  %v224 = vld [vmem:[%s3] sm:$0x1]
  %v226 = vlaneseq
  %v227 = vshrl.u32 %v226, 7
  %v228 = vsub.s32 0, %v227
  %v229 = vrot.slane %v224, %v228
  %v231 = vadd.f32 %v208, %v229
  %v232 = vadd.f32 %v209, %v229
  %v233 = vadd.f32 %v210, %v229
  %v234 = vadd.f32 %v211, %v229
  %v235 = vadd.f32 %v212, %v229
  %v236 = vadd.f32 %v213, %v229
  %v237 = vadd.f32 %v214, %v229
  %v238 = vadd.f32 %v215, %v229
  %v239 = vadd.f32 %v216, %v229
  %v240 = vadd.f32 %v217, %v229
  %v241 = vadd.f32 %v218, %v229
  %v242 = vadd.f32 %v219, %v229
  %v243 = vadd.f32 %v220, %v229
  %v244 = vadd.f32 %v221, %v229
  %v245 = vadd.f32 %v222, %v229
  %v246 = vadd.f32 %v223, %v229
  %v247 = vpack.c.bf16 %v232, %v231
  %v248 = vpack.c.bf16 %v234, %v233
  %v249 = vpack.c.bf16 %v236, %v235
  %v250 = vpack.c.bf16 %v238, %v237
  %v251 = vpack.c.bf16 %v240, %v239
  %v252 = vpack.c.bf16 %v242, %v241
  %v253 = vpack.c.bf16 %v244, %v243
  %v254 = vpack.c.bf16 %v246, %v245
  %v263 = vunpack.c.l.b16 %v247
  %v264 = vunpack.c.h.b16 %v247
  %v265 = vunpack.c.l.b16 %v248
  %v266 = vunpack.c.h.b16 %v248
  %v267 = vunpack.c.l.b16 %v249
  %v268 = vunpack.c.h.b16 %v249
  %v269 = vunpack.c.l.b16 %v250
  %v270 = vunpack.c.h.b16 %v250
  %v271 = vunpack.c.l.b16 %v251
  %v272 = vunpack.c.h.b16 %v251
  %v273 = vunpack.c.l.b16 %v252
  %v274 = vunpack.c.h.b16 %v252
  %v275 = vunpack.c.l.b16 %v253
  %v276 = vunpack.c.h.b16 %v253
  %v277 = vunpack.c.l.b16 %v254
  %v278 = vunpack.c.h.b16 %v254
  %v279 = vpack.c.b16 %v263, %v263
  %v280 = vpack.c.b16 %v264, %v264
  %v281 = vpack.c.b16 %v265, %v265
  %v282 = vpack.c.b16 %v266, %v266
  %v283 = vpack.c.b16 %v267, %v267
  %v284 = vpack.c.b16 %v268, %v268
  %v285 = vpack.c.b16 %v269, %v269
  %v286 = vpack.c.b16 %v270, %v270
  %v287 = vpack.c.b16 %v271, %v271
  %v288 = vpack.c.b16 %v272, %v272
  %v289 = vpack.c.b16 %v273, %v273
  %v290 = vpack.c.b16 %v274, %v274
  %v291 = vpack.c.b16 %v275, %v275
  %v292 = vpack.c.b16 %v276, %v276
  %v293 = vpack.c.b16 %v277, %v277
  %v294 = vpack.c.b16 %v278, %v278
  %vm311 = vcmask 125952
  %312 = vst.msk [vmem:[%s4] sm:$0xf] %vm311, %v279
  %313 = vst.msk [vmem:[%s4 + $0x4] sm:$0xf] %vm311, %v280
  %314 = vst.msk [vmem:[%s4 + $0x8] sm:$0xf] %vm311, %v281
  %315 = vst.msk [vmem:[%s4 + $0xc] sm:$0xf] %vm311, %v282
  %316 = vst.msk [vmem:[%s4 + $0x10] sm:$0xf] %vm311, %v283
  %317 = vst.msk [vmem:[%s4 + $0x14] sm:$0xf] %vm311, %v284
  %318 = vst.msk [vmem:[%s4 + $0x18] sm:$0xf] %vm311, %v285
  %319 = vst.msk [vmem:[%s4 + $0x1c] sm:$0xf] %vm311, %v286
  %320 = vst.msk [vmem:[%s4 + $0x20] sm:$0xf] %vm311, %v287
  %321 = vst.msk [vmem:[%s4 + $0x24] sm:$0xf] %vm311, %v288
  %322 = vst.msk [vmem:[%s4 + $0x28] sm:$0xf] %vm311, %v289
  %323 = vst.msk [vmem:[%s4 + $0x2c] sm:$0xf] %vm311, %v290
  %324 = vst.msk [vmem:[%s4 + $0x30] sm:$0xf] %vm311, %v291
  %325 = vst.msk [vmem:[%s4 + $0x34] sm:$0xf] %vm311, %v292
  %326 = vst.msk [vmem:[%s4 + $0x38] sm:$0xf] %vm311, %v293
  %327 = vst.msk [vmem:[%s4 + $0x3c] sm:$0xf] %vm311, %v294
  // Predicated region
  $region18: #{_lambda_.29} parent=0 // pred_check
    _
  $region19: #{_lambda_.29} parent=0 // pred_check_branch
    %329 = sbr.rel (0) target = $region21
  $region20: #{_lambda_.29} parent=0 // pred_region
    _
  $region21: #{_lambda_.29} parent=0 // pred_fallthru
    _
  // Predicated region
  $region22: #{_lambda_.29} parent=0 // pred_check
    _
  $region23: #{_lambda_.29} parent=0 // pred_check_branch
    %331 = sbr.rel (0) target = $region25
  $region24: #{_lambda_.29} parent=0 // pred_region
    _
  $region25: #{_lambda_.29} parent=0 // pred_fallthru
    _

// kernel: _lambda_.30
$region0: #{_lambda_.30}
  #allocation0 [shape = 'u32[]', space=smem, size = 0x4, offset = 0x4, fixed_abs, tag = 'smem constant byte address 0x4 - core index']
  #allocation1 [shape = 'u32[144,128]{1,0:T(1,128)}', space=vmem, size = 0x12000, scoped, tag = 'internal scratch']
  %s0 = inlined_call_operand.vmem [shape: bf16[128,144], index: 0, kind: input, shape index: {}]
  %s1 = inlined_call_operand.vmem [shape: bf16[144,16], index: 1, kind: input, shape index: {}]
  %s2 = inlined_call_operand.vmem [shape: f32[1,16], index: 2, kind: input, shape index: {}]
  %s3 = inlined_call_operand.vmem [shape: f32[1,16], index: 3, kind: input, shape index: {}]
  %s4 = inlined_call_operand.vmem [shape: bf16[128,16], index: 4, kind: input, shape index: {}]
  %s5 = inlined_call_operand.vmem [shape: bf16[128,16], index: 5, kind: output, shape index: {}]
  %s6 = sld [smem:[#allocation0]]
  $region30: #{_lambda_.30} parent=0
    _
  %s8 = ssub.s32 1, %s6
  %s9 = scalar_select 0, %s8, %s6
  // Predicated region
  $region2: #{_lambda_.30} parent=0 // pred_check
    _
  $region3: #{_lambda_.30} parent=0 // pred_check_branch
    %11 = sbr.rel (0) target = $region5
  $region4: #{_lambda_.30} parent=0 // pred_region
    _
  $region5: #{_lambda_.30} parent=0 // pred_fallthru
    _
  // Predicated region
  $region6: #{_lambda_.30} parent=0 // pred_check
    _
  $region7: #{_lambda_.30} parent=0 // pred_check_branch
    %13 = sbr.rel (0) target = $region9
  $region8: #{_lambda_.30} parent=0 // pred_region
    _
  $region9: #{_lambda_.30} parent=0 // pred_fallthru
    _
  // Predicated region
  $region10: #{_lambda_.30} parent=0 // pred_check
    _
  $region11: #{_lambda_.30} parent=0 // pred_check_branch
    %15 = sbr.rel (0) target = $region13
  $region12: #{_lambda_.30} parent=0 // pred_region
    _
  $region13: #{_lambda_.30} parent=0 // pred_fallthru
    _
  // Predicated region
  $region14: #{_lambda_.30} parent=0 // pred_check
    _
  $region15: #{_lambda_.30} parent=0 // pred_check_branch
    %17 = sbr.rel (0) target = $region17
  $region16: #{_lambda_.30} parent=0 // pred_region
    _
  $region17: #{_lambda_.30} parent=0 // pred_fallthru
    _
  // Predicated region
  $region18: #{_lambda_.30} parent=0 // pred_check
    _
  $region19: #{_lambda_.30} parent=0 // pred_check_branch
    %19 = sbr.rel (0) target = $region21
  $region20: #{_lambda_.30} parent=0 // pred_region
    _
  $region21: #{_lambda_.30} parent=0 // pred_fallthru
    _
  %v21 = vld [vmem:[%s0] sm:$0xff]
  %v22 = vld [vmem:[%s0 + $0x8] sm:$0xff]
  %v23 = vld [vmem:[%s0 + $0x10] sm:$0xff]
  %v24 = vld [vmem:[%s0 + $0x18] sm:$0xff]
  %v25 = vld [vmem:[%s0 + $0x20] sm:$0xff]
  %v26 = vld [vmem:[%s0 + $0x28] sm:$0xff]
  %v27 = vld [vmem:[%s0 + $0x30] sm:$0xff]
  %v28 = vld [vmem:[%s0 + $0x38] sm:$0xff]
  %v29 = vld [vmem:[%s0 + $0x40] sm:$0xff]
  %v30 = vld [vmem:[%s0 + $0x48] sm:$0xff]
  %v31 = vld [vmem:[%s0 + $0x50] sm:$0xff]
  %v32 = vld [vmem:[%s0 + $0x58] sm:$0xff]
  %v33 = vld [vmem:[%s0 + $0x60] sm:$0xff]
  %v34 = vld [vmem:[%s0 + $0x68] sm:$0xff]
  %v35 = vld [vmem:[%s0 + $0x70] sm:$0xff]
  %v36 = vld [vmem:[%s0 + $0x78] sm:$0xff]
  %v37 = vld [vmem:[%s1] sm:$0xf]
  %v38 = vld [vmem:[%s1 + $0x4] sm:$0xf]
  %v39 = vld [vmem:[%s1 + $0x8] sm:$0xf]
  %v40 = vld [vmem:[%s1 + $0xc] sm:$0xf]
  %v41 = vld [vmem:[%s1 + $0x10] sm:$0xf]
  %v42 = vld [vmem:[%s1 + $0x14] sm:$0xf]
  %v43 = vld [vmem:[%s1 + $0x18] sm:$0xf]
  %v44 = vld [vmem:[%s1 + $0x1c] sm:$0xf]
  %v45 = vld [vmem:[%s1 + $0x20] sm:$0xf]
  %v46 = vld [vmem:[%s1 + $0x24] sm:$0xf]
  %v47 = vld [vmem:[%s1 + $0x28] sm:$0xf]
  %v48 = vld [vmem:[%s1 + $0x2c] sm:$0xf]
  %v49 = vld [vmem:[%s1 + $0x30] sm:$0xf]
  %v50 = vld [vmem:[%s1 + $0x34] sm:$0xf]
  %v51 = vld [vmem:[%s1 + $0x38] sm:$0xf]
  %v52 = vld [vmem:[%s1 + $0x3c] sm:$0xf]
  %v53 = vld [vmem:[%s1 + $0x40] sm:$0xf]
  %v54 = vld [vmem:[%s1 + $0x44] sm:$0xf]
  %v71 = vunpack.c.l.b16 %v21
  %v72 = vunpack.c.h.b16 %v21
  %v73 = vunpack.c.l.b16 %v22
  %v74 = vunpack.c.h.b16 %v22
  %v75 = vunpack.c.l.b16 %v23
  %v76 = vunpack.c.h.b16 %v23
  %v77 = vunpack.c.l.b16 %v24
  %v78 = vunpack.c.h.b16 %v24
  %v79 = vunpack.c.l.b16 %v25
  %v80 = vunpack.c.h.b16 %v25
  %v81 = vunpack.c.l.b16 %v26
  %v82 = vunpack.c.h.b16 %v26
  %v83 = vunpack.c.l.b16 %v27
  %v84 = vunpack.c.h.b16 %v27
  %v85 = vunpack.c.l.b16 %v28
  %v86 = vunpack.c.h.b16 %v28
  %v87 = vunpack.c.l.b16 %v29
  %v88 = vunpack.c.h.b16 %v29
  %v89 = vunpack.c.l.b16 %v30
  %v90 = vunpack.c.h.b16 %v30
  %v91 = vunpack.c.l.b16 %v31
  %v92 = vunpack.c.h.b16 %v31
  %v93 = vunpack.c.l.b16 %v32
  %v94 = vunpack.c.h.b16 %v32
  %v95 = vunpack.c.l.b16 %v33
  %v96 = vunpack.c.h.b16 %v33
  %v97 = vunpack.c.l.b16 %v34
  %v98 = vunpack.c.h.b16 %v34
  %v99 = vunpack.c.l.b16 %v35
  %v100 = vunpack.c.h.b16 %v35
  %v101 = vunpack.c.l.b16 %v36
  %v102 = vunpack.c.h.b16 %v36
  %v103 = vpack.c.b16 %v73, %v71
  %v104 = vpack.c.b16 %v74, %v72
  %v105 = vpack.c.b16 %v77, %v75
  %v106 = vpack.c.b16 %v78, %v76
  %v107 = vpack.c.b16 %v81, %v79
  %v108 = vpack.c.b16 %v82, %v80
  %v109 = vpack.c.b16 %v85, %v83
  %v110 = vpack.c.b16 %v86, %v84
  %v111 = vpack.c.b16 %v89, %v87
  %v112 = vpack.c.b16 %v90, %v88
  %v113 = vpack.c.b16 %v93, %v91
  %v114 = vpack.c.b16 %v94, %v92
  %v115 = vpack.c.b16 %v97, %v95
  %v116 = vpack.c.b16 %v98, %v96
  %v117 = vpack.c.b16 %v101, %v99
  %v118 = vpack.c.b16 %v102, %v100
  %v145 = vunpack.c.l.b16 %v37
  %v146 = vunpack.c.l.b16 %v38
  %v147 = vunpack.c.l.b16 %v39
  %v148 = vunpack.c.l.b16 %v40
  %v149 = vunpack.c.l.b16 %v41
  %v150 = vunpack.c.l.b16 %v42
  %v151 = vunpack.c.l.b16 %v43
  %v152 = vunpack.c.l.b16 %v44
  %v153 = vunpack.c.l.b16 %v45
  %v154 = vunpack.c.l.b16 %v46
  %v155 = vunpack.c.l.b16 %v47
  %v156 = vunpack.c.l.b16 %v48
  %v157 = vunpack.c.l.b16 %v49
  %v158 = vunpack.c.l.b16 %v50
  %v159 = vunpack.c.l.b16 %v51
  %v160 = vunpack.c.l.b16 %v52
  %v161 = vunpack.c.l.b16 %v53
  %v162 = vunpack.c.l.b16 %v54
  %v163 = vpack.c.b16 %v146, %v145
  %v164 = vpack.c.b16 %v148, %v147
  %v165 = vpack.c.b16 %v150, %v149
  %v166 = vpack.c.b16 %v152, %v151
  %v167 = vpack.c.b16 %v154, %v153
  %v168 = vpack.c.b16 %v156, %v155
  %v169 = vpack.c.b16 %v158, %v157
  %v170 = vpack.c.b16 %v160, %v159
  %v171 = vpack.c.b16 %v162, %v161
  %vm181 = vcmask 130048
  %v183 = vsel %vm181, %v104, 0
  %v186 = vsel %vm181, %v106, 0
  %v189 = vsel %vm181, %v108, 0
  %v192 = vsel %vm181, %v110, 0
  %v195 = vsel %vm181, %v112, 0
  %v198 = vsel %vm181, %v114, 0
  %v201 = vsel %vm181, %v116, 0
  %v204 = vsel %vm181, %v118, 0
  %206 = vmatprep.subr.bf16.mxu0 0
  %207 = vmatpush1.bf16.msra.mxu0 %v163
  %208 = vmatprep.subr.bf16.mxu0 0
  %209 = vmatpush1.bf16.msra.mxu0 %v164
  %210 = vmatprep.subr.bf16.mxu0 0
  %211 = vmatpush1.bf16.msra.mxu0 %v165
  %212 = vmatprep.subr.bf16.mxu0 0
  %213 = vmatpush1.bf16.msra.mxu0 %v166
  %214 = vmatprep.subr.bf16.mxu0 0
  %215 = vmatpush1.bf16.msra.mxu0 %v167
  %216 = vmatprep.subr.bf16.mxu0 0
  %217 = vmatpush1.bf16.msra.mxu0 %v168
  %218 = vmatprep.subr.bf16.mxu0 0
  %219 = vmatpush1.bf16.msra.mxu0 %v169
  %220 = vmatprep.subr.bf16.mxu0 0
  %221 = vmatpush1.bf16.msra.mxu0 %v170
  %222 = vmatprep.subr.bf16.mxu0 0
  %223 = vmatpush1.bf16.msra.mxu0 %v171
  %224 = vmatprep.subr.bf16.mxu0 0
  %225 = vmatpush1.bf16.msra.mxu0 0
  %226 = vmatprep.subr.bf16.mxu0 0
  %227 = vmatpush1.bf16.msra.mxu0 0
  %228 = vmatprep.subr.bf16.mxu0 0
  %229 = vmatpush1.bf16.msra.mxu0 0
  %230 = vmatprep.subr.bf16.mxu0 0
  %231 = vmatpush1.bf16.msra.mxu0 0
  %232 = vmatprep.subr.bf16.mxu0 0
  %233 = vmatpush1.bf16.msra.mxu0 0
  %234 = vmatprep.subr.bf16.mxu0 0
  %235 = vmatpush1.bf16.msra.mxu0 0
  %236 = vmatprep.subr.bf16.mxu0 0
  %237 = vmatpush1.bf16.msra.mxu0 0
  %238 = vmatprep.mubr.bf16.mxu0 %v183
  %239 = vmatmul.mubr.bf16.gmra.mrb[0].mxu0 %v103
  %v240 = vpop.f32.mrb[0].mxu0
  %v241 = vadd.f32 0.0, %v240
  %v242 = vpop.f32.mrb[0].mxu0
  %v243 = vpop.f32.mrb[0].mxu0
  %v244 = vadd.f32 0.0, %v243
  %v245 = vpop.f32.mrb[0].mxu0
  %246 = vmatprep.mubr.bf16.mxu0 %v186
  %247 = vmatmul.mubr.bf16.gmra.mrb[0].mxu0 %v105
  %v248 = vpop.f32.mrb[0].mxu0
  %v249 = vadd.f32 0.0, %v248
  %v250 = vpop.f32.mrb[0].mxu0
  %v251 = vpop.f32.mrb[0].mxu0
  %v252 = vadd.f32 0.0, %v251
  %v253 = vpop.f32.mrb[0].mxu0
  %254 = vmatprep.mubr.bf16.mxu0 %v189
  %255 = vmatmul.mubr.bf16.gmra.mrb[0].mxu0 %v107
  %v256 = vpop.f32.mrb[0].mxu0
  %v257 = vadd.f32 0.0, %v256
  %v258 = vpop.f32.mrb[0].mxu0
  %v259 = vpop.f32.mrb[0].mxu0
  %v260 = vadd.f32 0.0, %v259
  %v261 = vpop.f32.mrb[0].mxu0
  %262 = vmatprep.mubr.bf16.mxu0 %v192
  %263 = vmatmul.mubr.bf16.gmra.mrb[0].mxu0 %v109
  %v264 = vpop.f32.mrb[0].mxu0
  %v265 = vadd.f32 0.0, %v264
  %v266 = vpop.f32.mrb[0].mxu0
  %v267 = vpop.f32.mrb[0].mxu0
  %v268 = vadd.f32 0.0, %v267
  %v269 = vpop.f32.mrb[0].mxu0
  %270 = vmatprep.mubr.bf16.mxu0 %v195
  %271 = vmatmul.mubr.bf16.gmra.mrb[0].mxu0 %v111
  %v272 = vpop.f32.mrb[0].mxu0
  %v273 = vadd.f32 0.0, %v272
  %v274 = vpop.f32.mrb[0].mxu0
  %v275 = vpop.f32.mrb[0].mxu0
  %v276 = vadd.f32 0.0, %v275
  %v277 = vpop.f32.mrb[0].mxu0
  %278 = vmatprep.mubr.bf16.mxu0 %v198
  %279 = vmatmul.mubr.bf16.gmra.mrb[0].mxu0 %v113
  %v280 = vpop.f32.mrb[0].mxu0
  %v281 = vadd.f32 0.0, %v280
  %v282 = vpop.f32.mrb[0].mxu0
  %v283 = vpop.f32.mrb[0].mxu0
  %v284 = vadd.f32 0.0, %v283
  %v285 = vpop.f32.mrb[0].mxu0
  %286 = vmatprep.mubr.bf16.mxu0 %v201
  %287 = vmatmul.mubr.bf16.gmra.mrb[0].mxu0 %v115
  %v288 = vpop.f32.mrb[0].mxu0
  %v289 = vadd.f32 0.0, %v288
  %v290 = vpop.f32.mrb[0].mxu0
  %v291 = vpop.f32.mrb[0].mxu0
  %v292 = vadd.f32 0.0, %v291
  %v293 = vpop.f32.mrb[0].mxu0
  %294 = vmatprep.mubr.bf16.mxu0 %v204
  %295 = vmatmul.mubr.bf16.gmra.mrb[0].mxu0 %v117
  %v296 = vpop.f32.mrb[0].mxu0
  %v297 = vadd.f32 0.0, %v296
  %v298 = vpop.f32.mrb[0].mxu0
  %v299 = vpop.f32.mrb[0].mxu0
  %v300 = vadd.f32 0.0, %v299
  %v301 = vpop.f32.mrb[0].mxu0
  %302 = vdwg.mxu0
  %v303 = vld [vmem:[%s2] sm:$0x1]
  %v305 = vlaneseq
  %v306 = vshrl.u32 %v305, 7
  %v307 = vsub.s32 0, %v306
  %v308 = vrot.slane %v303, %v307
  %v310 = vmul.f32 %v241, %v308
  %v311 = vmul.f32 %v244, %v308
  %v312 = vmul.f32 %v249, %v308
  %v313 = vmul.f32 %v252, %v308
  %v314 = vmul.f32 %v257, %v308
  %v315 = vmul.f32 %v260, %v308
  %v316 = vmul.f32 %v265, %v308
  %v317 = vmul.f32 %v268, %v308
  %v318 = vmul.f32 %v273, %v308
  %v319 = vmul.f32 %v276, %v308
  %v320 = vmul.f32 %v281, %v308
  %v321 = vmul.f32 %v284, %v308
  %v322 = vmul.f32 %v289, %v308
  %v323 = vmul.f32 %v292, %v308
  %v324 = vmul.f32 %v297, %v308
  %v325 = vmul.f32 %v300, %v308
  %v326 = vld [vmem:[%s3] sm:$0x1]
  %v328 = vlaneseq
  %v329 = vshrl.u32 %v328, 7
  %v330 = vsub.s32 0, %v329
  %v331 = vrot.slane %v326, %v330
  %v333 = vadd.f32 %v310, %v331
  %v334 = vadd.f32 %v311, %v331
  %v335 = vadd.f32 %v312, %v331
  %v336 = vadd.f32 %v313, %v331
  %v337 = vadd.f32 %v314, %v331
  %v338 = vadd.f32 %v315, %v331
  %v339 = vadd.f32 %v316, %v331
  %v340 = vadd.f32 %v317, %v331
  %v341 = vadd.f32 %v318, %v331
  %v342 = vadd.f32 %v319, %v331
  %v343 = vadd.f32 %v320, %v331
  %v344 = vadd.f32 %v321, %v331
  %v345 = vadd.f32 %v322, %v331
  %v346 = vadd.f32 %v323, %v331
  %v347 = vadd.f32 %v324, %v331
  %v348 = vadd.f32 %v325, %v331
  %v349 = vld [vmem:[%s4] sm:$0xf]
  %v350 = vld [vmem:[%s4 + $0x4] sm:$0xf]
  %v351 = vld [vmem:[%s4 + $0x8] sm:$0xf]
  %v352 = vld [vmem:[%s4 + $0xc] sm:$0xf]
  %v353 = vld [vmem:[%s4 + $0x10] sm:$0xf]
  %v354 = vld [vmem:[%s4 + $0x14] sm:$0xf]
  %v355 = vld [vmem:[%s4 + $0x18] sm:$0xf]
  %v356 = vld [vmem:[%s4 + $0x1c] sm:$0xf]
  %v357 = vld [vmem:[%s4 + $0x20] sm:$0xf]
  %v358 = vld [vmem:[%s4 + $0x24] sm:$0xf]
  %v359 = vld [vmem:[%s4 + $0x28] sm:$0xf]
  %v360 = vld [vmem:[%s4 + $0x2c] sm:$0xf]
  %v361 = vld [vmem:[%s4 + $0x30] sm:$0xf]
  %v362 = vld [vmem:[%s4 + $0x34] sm:$0xf]
  %v363 = vld [vmem:[%s4 + $0x38] sm:$0xf]
  %v364 = vld [vmem:[%s4 + $0x3c] sm:$0xf]
  %v365 = vunpack.c.l.bf16 %v349
  %v366 = vunpack.c.l.bf16 %v350
  %v367 = vunpack.c.l.bf16 %v351
  %v368 = vunpack.c.l.bf16 %v352
  %v369 = vunpack.c.l.bf16 %v353
  %v370 = vunpack.c.l.bf16 %v354
  %v371 = vunpack.c.l.bf16 %v355
  %v372 = vunpack.c.l.bf16 %v356
  %v373 = vunpack.c.l.bf16 %v357
  %v374 = vunpack.c.l.bf16 %v358
  %v375 = vunpack.c.l.bf16 %v359
  %v376 = vunpack.c.l.bf16 %v360
  %v377 = vunpack.c.l.bf16 %v361
  %v378 = vunpack.c.l.bf16 %v362
  %v379 = vunpack.c.l.bf16 %v363
  %v380 = vunpack.c.l.bf16 %v364
  %v381 = vadd.f32 %v333, %v365
  %v382 = vadd.f32 %v334, %v366
  %v383 = vadd.f32 %v335, %v367
  %v384 = vadd.f32 %v336, %v368
  %v385 = vadd.f32 %v337, %v369
  %v386 = vadd.f32 %v338, %v370
  %v387 = vadd.f32 %v339, %v371
  %v388 = vadd.f32 %v340, %v372
  %v389 = vadd.f32 %v341, %v373
  %v390 = vadd.f32 %v342, %v374
  %v391 = vadd.f32 %v343, %v375
  %v392 = vadd.f32 %v344, %v376
  %v393 = vadd.f32 %v345, %v377
  %v394 = vadd.f32 %v346, %v378
  %v395 = vadd.f32 %v347, %v379
  %v396 = vadd.f32 %v348, %v380
  %v397 = vmax.f32 %v381, 0.0
  %v398 = vmax.f32 %v382, 0.0
  %v399 = vmax.f32 %v383, 0.0
  %v400 = vmax.f32 %v384, 0.0
  %v401 = vmax.f32 %v385, 0.0
  %v402 = vmax.f32 %v386, 0.0
  %v403 = vmax.f32 %v387, 0.0
  %v404 = vmax.f32 %v388, 0.0
  %v405 = vmax.f32 %v389, 0.0
  %v406 = vmax.f32 %v390, 0.0
  %v407 = vmax.f32 %v391, 0.0
  %v408 = vmax.f32 %v392, 0.0
  %v409 = vmax.f32 %v393, 0.0
  %v410 = vmax.f32 %v394, 0.0
  %v411 = vmax.f32 %v395, 0.0
  %v412 = vmax.f32 %v396, 0.0
  %v413 = vpack.c.bf16 %v398, %v397
  %v414 = vpack.c.bf16 %v400, %v399
  %v415 = vpack.c.bf16 %v402, %v401
  %v416 = vpack.c.bf16 %v404, %v403
  %v417 = vpack.c.bf16 %v406, %v405
  %v418 = vpack.c.bf16 %v408, %v407
  %v419 = vpack.c.bf16 %v410, %v409
  %v420 = vpack.c.bf16 %v412, %v411
  %v429 = vunpack.c.l.b16 %v413
  %v430 = vunpack.c.h.b16 %v413
  %v431 = vunpack.c.l.b16 %v414
  %v432 = vunpack.c.h.b16 %v414
  %v433 = vunpack.c.l.b16 %v415
  %v434 = vunpack.c.h.b16 %v415
  %v435 = vunpack.c.l.b16 %v416
  %v436 = vunpack.c.h.b16 %v416
  %v437 = vunpack.c.l.b16 %v417
  %v438 = vunpack.c.h.b16 %v417
  %v439 = vunpack.c.l.b16 %v418
  %v440 = vunpack.c.h.b16 %v418
  %v441 = vunpack.c.l.b16 %v419
  %v442 = vunpack.c.h.b16 %v419
  %v443 = vunpack.c.l.b16 %v420
  %v444 = vunpack.c.h.b16 %v420
  %v445 = vpack.c.b16 %v429, %v429
  %v446 = vpack.c.b16 %v430, %v430
  %v447 = vpack.c.b16 %v431, %v431
  %v448 = vpack.c.b16 %v432, %v432
  %v449 = vpack.c.b16 %v433, %v433
  %v450 = vpack.c.b16 %v434, %v434
  %v451 = vpack.c.b16 %v435, %v435
  %v452 = vpack.c.b16 %v436, %v436
  %v453 = vpack.c.b16 %v437, %v437
  %v454 = vpack.c.b16 %v438, %v438
  %v455 = vpack.c.b16 %v439, %v439
  %v456 = vpack.c.b16 %v440, %v440
  %v457 = vpack.c.b16 %v441, %v441
  %v458 = vpack.c.b16 %v442, %v442
  %v459 = vpack.c.b16 %v443, %v443
  %v460 = vpack.c.b16 %v444, %v444
  %vm477 = vcmask 125952
  %478 = vst.msk [vmem:[%s5] sm:$0xf] %vm477, %v445
  %479 = vst.msk [vmem:[%s5 + $0x4] sm:$0xf] %vm477, %v446
  %480 = vst.msk [vmem:[%s5 + $0x8] sm:$0xf] %vm477, %v447
  %481 = vst.msk [vmem:[%s5 + $0xc] sm:$0xf] %vm477, %v448
  %482 = vst.msk [vmem:[%s5 + $0x10] sm:$0xf] %vm477, %v449
  %483 = vst.msk [vmem:[%s5 + $0x14] sm:$0xf] %vm477, %v450
  %484 = vst.msk [vmem:[%s5 + $0x18] sm:$0xf] %vm477, %v451
  %485 = vst.msk [vmem:[%s5 + $0x1c] sm:$0xf] %vm477, %v452
  %486 = vst.msk [vmem:[%s5 + $0x20] sm:$0xf] %vm477, %v453
  %487 = vst.msk [vmem:[%s5 + $0x24] sm:$0xf] %vm477, %v454
  %488 = vst.msk [vmem:[%s5 + $0x28] sm:$0xf] %vm477, %v455
  %489 = vst.msk [vmem:[%s5 + $0x2c] sm:$0xf] %vm477, %v456
  %490 = vst.msk [vmem:[%s5 + $0x30] sm:$0xf] %vm477, %v457
  %491 = vst.msk [vmem:[%s5 + $0x34] sm:$0xf] %vm477, %v458
  %492 = vst.msk [vmem:[%s5 + $0x38] sm:$0xf] %vm477, %v459
  %493 = vst.msk [vmem:[%s5 + $0x3c] sm:$0xf] %vm477, %v460
  // Predicated region
  $region22: #{_lambda_.30} parent=0 // pred_check
    _
  $region23: #{_lambda_.30} parent=0 // pred_check_branch
    %495 = sbr.rel (0) target = $region25
  $region24: #{_lambda_.30} parent=0 // pred_region
    _
  $region25: #{_lambda_.30} parent=0 // pred_fallthru
    _
  // Predicated region
  $region26: #{_lambda_.30} parent=0 // pred_check
    _
  $region27: #{_lambda_.30} parent=0 // pred_check_branch
    %497 = sbr.rel (0) target = $region29
  $region28: #{_lambda_.30} parent=0 // pred_region
    _
  $region29: #{_lambda_.30} parent=0 // pred_fallthru
    _

// kernel: _lambda_.31
$region0: #{_lambda_.31}
  #allocation0 [shape = 'u32[]', space=smem, size = 0x4, offset = 0x4, fixed_abs, tag = 'smem constant byte address 0x4 - core index']
  #allocation1 [shape = 'u32[144,128]{1,0:T(1,128)}', space=vmem, size = 0x12000, scoped, tag = 'internal scratch']
  %s0 = inlined_call_operand.vmem [shape: bf16[128,144], index: 0, kind: input, shape index: {}]
  %s1 = inlined_call_operand.vmem [shape: bf16[144,16], index: 1, kind: input, shape index: {}]
  %s2 = inlined_call_operand.vmem [shape: f32[1,16], index: 2, kind: input, shape index: {}]
  %s3 = inlined_call_operand.vmem [shape: f32[1,16], index: 3, kind: input, shape index: {}]
  %s4 = inlined_call_operand.vmem [shape: bf16[128,16], index: 4, kind: output, shape index: {}]
  %s5 = sld [smem:[#allocation0]]
  $region26: #{_lambda_.31} parent=0
    _
  %s7 = ssub.s32 1, %s5
  %s8 = scalar_select 0, %s7, %s5
  // Predicated region
  $region2: #{_lambda_.31} parent=0 // pred_check
    _
  $region3: #{_lambda_.31} parent=0 // pred_check_branch
    %10 = sbr.rel (0) target = $region5
  $region4: #{_lambda_.31} parent=0 // pred_region
    _
  $region5: #{_lambda_.31} parent=0 // pred_fallthru
    _
  // Predicated region
  $region6: #{_lambda_.31} parent=0 // pred_check
    _
  $region7: #{_lambda_.31} parent=0 // pred_check_branch
    %12 = sbr.rel (0) target = $region9
  $region8: #{_lambda_.31} parent=0 // pred_region
    _
  $region9: #{_lambda_.31} parent=0 // pred_fallthru
    _
  // Predicated region
  $region10: #{_lambda_.31} parent=0 // pred_check
    _
  $region11: #{_lambda_.31} parent=0 // pred_check_branch
    %14 = sbr.rel (0) target = $region13
  $region12: #{_lambda_.31} parent=0 // pred_region
    _
  $region13: #{_lambda_.31} parent=0 // pred_fallthru
    _
  // Predicated region
  $region14: #{_lambda_.31} parent=0 // pred_check
    _
  $region15: #{_lambda_.31} parent=0 // pred_check_branch
    %16 = sbr.rel (0) target = $region17
  $region16: #{_lambda_.31} parent=0 // pred_region
    _
  $region17: #{_lambda_.31} parent=0 // pred_fallthru
    _
  %v18 = vld [vmem:[%s0] sm:$0xff]
  %v19 = vld [vmem:[%s0 + $0x8] sm:$0xff]
  %v20 = vld [vmem:[%s0 + $0x10] sm:$0xff]
  %v21 = vld [vmem:[%s0 + $0x18] sm:$0xff]
  %v22 = vld [vmem:[%s0 + $0x20] sm:$0xff]
  %v23 = vld [vmem:[%s0 + $0x28] sm:$0xff]
  %v24 = vld [vmem:[%s0 + $0x30] sm:$0xff]
  %v25 = vld [vmem:[%s0 + $0x38] sm:$0xff]
  %v26 = vld [vmem:[%s0 + $0x40] sm:$0xff]
  %v27 = vld [vmem:[%s0 + $0x48] sm:$0xff]
  %v28 = vld [vmem:[%s0 + $0x50] sm:$0xff]
  %v29 = vld [vmem:[%s0 + $0x58] sm:$0xff]
  %v30 = vld [vmem:[%s0 + $0x60] sm:$0xff]
  %v31 = vld [vmem:[%s0 + $0x68] sm:$0xff]
  %v32 = vld [vmem:[%s0 + $0x70] sm:$0xff]
  %v33 = vld [vmem:[%s0 + $0x78] sm:$0xff]
  %v34 = vld [vmem:[%s1] sm:$0xf]
  %v35 = vld [vmem:[%s1 + $0x4] sm:$0xf]
  %v36 = vld [vmem:[%s1 + $0x8] sm:$0xf]
  %v37 = vld [vmem:[%s1 + $0xc] sm:$0xf]
  %v38 = vld [vmem:[%s1 + $0x10] sm:$0xf]
  %v39 = vld [vmem:[%s1 + $0x14] sm:$0xf]
  %v40 = vld [vmem:[%s1 + $0x18] sm:$0xf]
  %v41 = vld [vmem:[%s1 + $0x1c] sm:$0xf]
  %v42 = vld [vmem:[%s1 + $0x20] sm:$0xf]
  %v43 = vld [vmem:[%s1 + $0x24] sm:$0xf]
  %v44 = vld [vmem:[%s1 + $0x28] sm:$0xf]
  %v45 = vld [vmem:[%s1 + $0x2c] sm:$0xf]
  %v46 = vld [vmem:[%s1 + $0x30] sm:$0xf]
  %v47 = vld [vmem:[%s1 + $0x34] sm:$0xf]
  %v48 = vld [vmem:[%s1 + $0x38] sm:$0xf]
  %v49 = vld [vmem:[%s1 + $0x3c] sm:$0xf]
  %v50 = vld [vmem:[%s1 + $0x40] sm:$0xf]
  %v51 = vld [vmem:[%s1 + $0x44] sm:$0xf]
  %v68 = vunpack.c.l.b16 %v18
  %v69 = vunpack.c.h.b16 %v18
  %v70 = vunpack.c.l.b16 %v19
  %v71 = vunpack.c.h.b16 %v19
  %v72 = vunpack.c.l.b16 %v20
  %v73 = vunpack.c.h.b16 %v20
  %v74 = vunpack.c.l.b16 %v21
  %v75 = vunpack.c.h.b16 %v21
  %v76 = vunpack.c.l.b16 %v22
  %v77 = vunpack.c.h.b16 %v22
  %v78 = vunpack.c.l.b16 %v23
  %v79 = vunpack.c.h.b16 %v23
  %v80 = vunpack.c.l.b16 %v24
  %v81 = vunpack.c.h.b16 %v24
  %v82 = vunpack.c.l.b16 %v25
  %v83 = vunpack.c.h.b16 %v25
  %v84 = vunpack.c.l.b16 %v26
  %v85 = vunpack.c.h.b16 %v26
  %v86 = vunpack.c.l.b16 %v27
  %v87 = vunpack.c.h.b16 %v27
  %v88 = vunpack.c.l.b16 %v28
  %v89 = vunpack.c.h.b16 %v28
  %v90 = vunpack.c.l.b16 %v29
  %v91 = vunpack.c.h.b16 %v29
  %v92 = vunpack.c.l.b16 %v30
  %v93 = vunpack.c.h.b16 %v30
  %v94 = vunpack.c.l.b16 %v31
  %v95 = vunpack.c.h.b16 %v31
  %v96 = vunpack.c.l.b16 %v32
  %v97 = vunpack.c.h.b16 %v32
  %v98 = vunpack.c.l.b16 %v33
  %v99 = vunpack.c.h.b16 %v33
  %v100 = vpack.c.b16 %v70, %v68
  %v101 = vpack.c.b16 %v71, %v69
  %v102 = vpack.c.b16 %v74, %v72
  %v103 = vpack.c.b16 %v75, %v73
  %v104 = vpack.c.b16 %v78, %v76
  %v105 = vpack.c.b16 %v79, %v77
  %v106 = vpack.c.b16 %v82, %v80
  %v107 = vpack.c.b16 %v83, %v81
  %v108 = vpack.c.b16 %v86, %v84
  %v109 = vpack.c.b16 %v87, %v85
  %v110 = vpack.c.b16 %v90, %v88
  %v111 = vpack.c.b16 %v91, %v89
  %v112 = vpack.c.b16 %v94, %v92
  %v113 = vpack.c.b16 %v95, %v93
  %v114 = vpack.c.b16 %v98, %v96
  %v115 = vpack.c.b16 %v99, %v97
  %v142 = vunpack.c.l.b16 %v34
  %v143 = vunpack.c.l.b16 %v35
  %v144 = vunpack.c.l.b16 %v36
  %v145 = vunpack.c.l.b16 %v37
  %v146 = vunpack.c.l.b16 %v38
  %v147 = vunpack.c.l.b16 %v39
  %v148 = vunpack.c.l.b16 %v40
  %v149 = vunpack.c.l.b16 %v41
  %v150 = vunpack.c.l.b16 %v42
  %v151 = vunpack.c.l.b16 %v43
  %v152 = vunpack.c.l.b16 %v44
  %v153 = vunpack.c.l.b16 %v45
  %v154 = vunpack.c.l.b16 %v46
  %v155 = vunpack.c.l.b16 %v47
  %v156 = vunpack.c.l.b16 %v48
  %v157 = vunpack.c.l.b16 %v49
  %v158 = vunpack.c.l.b16 %v50
  %v159 = vunpack.c.l.b16 %v51
  %v160 = vpack.c.b16 %v143, %v142
  %v161 = vpack.c.b16 %v145, %v144
  %v162 = vpack.c.b16 %v147, %v146
  %v163 = vpack.c.b16 %v149, %v148
  %v164 = vpack.c.b16 %v151, %v150
  %v165 = vpack.c.b16 %v153, %v152
  %v166 = vpack.c.b16 %v155, %v154
  %v167 = vpack.c.b16 %v157, %v156
  %v168 = vpack.c.b16 %v159, %v158
  %vm178 = vcmask 130048
  %v180 = vsel %vm178, %v101, 0
  %v183 = vsel %vm178, %v103, 0
  %v186 = vsel %vm178, %v105, 0
  %v189 = vsel %vm178, %v107, 0
  %v192 = vsel %vm178, %v109, 0
  %v195 = vsel %vm178, %v111, 0
  %v198 = vsel %vm178, %v113, 0
  %v201 = vsel %vm178, %v115, 0
  %203 = vmatprep.subr.bf16.mxu0 0
  %204 = vmatpush1.bf16.msra.mxu0 %v160
  %205 = vmatprep.subr.bf16.mxu0 0
  %206 = vmatpush1.bf16.msra.mxu0 %v161
  %207 = vmatprep.subr.bf16.mxu0 0
  %208 = vmatpush1.bf16.msra.mxu0 %v162
  %209 = vmatprep.subr.bf16.mxu0 0
  %210 = vmatpush1.bf16.msra.mxu0 %v163
  %211 = vmatprep.subr.bf16.mxu0 0
  %212 = vmatpush1.bf16.msra.mxu0 %v164
  %213 = vmatprep.subr.bf16.mxu0 0
  %214 = vmatpush1.bf16.msra.mxu0 %v165
  %215 = vmatprep.subr.bf16.mxu0 0
  %216 = vmatpush1.bf16.msra.mxu0 %v166
  %217 = vmatprep.subr.bf16.mxu0 0
  %218 = vmatpush1.bf16.msra.mxu0 %v167
  %219 = vmatprep.subr.bf16.mxu0 0
  %220 = vmatpush1.bf16.msra.mxu0 %v168
  %221 = vmatprep.subr.bf16.mxu0 0
  %222 = vmatpush1.bf16.msra.mxu0 0
  %223 = vmatprep.subr.bf16.mxu0 0
  %224 = vmatpush1.bf16.msra.mxu0 0
  %225 = vmatprep.subr.bf16.mxu0 0
  %226 = vmatpush1.bf16.msra.mxu0 0
  %227 = vmatprep.subr.bf16.mxu0 0
  %228 = vmatpush1.bf16.msra.mxu0 0
  %229 = vmatprep.subr.bf16.mxu0 0
  %230 = vmatpush1.bf16.msra.mxu0 0
  %231 = vmatprep.subr.bf16.mxu0 0
  %232 = vmatpush1.bf16.msra.mxu0 0
  %233 = vmatprep.subr.bf16.mxu0 0
  %234 = vmatpush1.bf16.msra.mxu0 0
  %235 = vmatprep.mubr.bf16.mxu0 %v180
  %236 = vmatmul.mubr.bf16.gmra.mrb[0].mxu0 %v100
  %v237 = vpop.f32.mrb[0].mxu0
  %v238 = vadd.f32 0.0, %v237
  %v239 = vpop.f32.mrb[0].mxu0
  %v240 = vpop.f32.mrb[0].mxu0
  %v241 = vadd.f32 0.0, %v240
  %v242 = vpop.f32.mrb[0].mxu0
  %243 = vmatprep.mubr.bf16.mxu0 %v183
  %244 = vmatmul.mubr.bf16.gmra.mrb[0].mxu0 %v102
  %v245 = vpop.f32.mrb[0].mxu0
  %v246 = vadd.f32 0.0, %v245
  %v247 = vpop.f32.mrb[0].mxu0
  %v248 = vpop.f32.mrb[0].mxu0
  %v249 = vadd.f32 0.0, %v248
  %v250 = vpop.f32.mrb[0].mxu0
  %251 = vmatprep.mubr.bf16.mxu0 %v186
  %252 = vmatmul.mubr.bf16.gmra.mrb[0].mxu0 %v104
  %v253 = vpop.f32.mrb[0].mxu0
  %v254 = vadd.f32 0.0, %v253
  %v255 = vpop.f32.mrb[0].mxu0
  %v256 = vpop.f32.mrb[0].mxu0
  %v257 = vadd.f32 0.0, %v256
  %v258 = vpop.f32.mrb[0].mxu0
  %259 = vmatprep.mubr.bf16.mxu0 %v189
  %260 = vmatmul.mubr.bf16.gmra.mrb[0].mxu0 %v106
  %v261 = vpop.f32.mrb[0].mxu0
  %v262 = vadd.f32 0.0, %v261
  %v263 = vpop.f32.mrb[0].mxu0
  %v264 = vpop.f32.mrb[0].mxu0
  %v265 = vadd.f32 0.0, %v264
  %v266 = vpop.f32.mrb[0].mxu0
  %267 = vmatprep.mubr.bf16.mxu0 %v192
  %268 = vmatmul.mubr.bf16.gmra.mrb[0].mxu0 %v108
  %v269 = vpop.f32.mrb[0].mxu0
  %v270 = vadd.f32 0.0, %v269
  %v271 = vpop.f32.mrb[0].mxu0
  %v272 = vpop.f32.mrb[0].mxu0
  %v273 = vadd.f32 0.0, %v272
  %v274 = vpop.f32.mrb[0].mxu0
  %275 = vmatprep.mubr.bf16.mxu0 %v195
  %276 = vmatmul.mubr.bf16.gmra.mrb[0].mxu0 %v110
  %v277 = vpop.f32.mrb[0].mxu0
  %v278 = vadd.f32 0.0, %v277
  %v279 = vpop.f32.mrb[0].mxu0
  %v280 = vpop.f32.mrb[0].mxu0
  %v281 = vadd.f32 0.0, %v280
  %v282 = vpop.f32.mrb[0].mxu0
  %283 = vmatprep.mubr.bf16.mxu0 %v198
  %284 = vmatmul.mubr.bf16.gmra.mrb[0].mxu0 %v112
  %v285 = vpop.f32.mrb[0].mxu0
  %v286 = vadd.f32 0.0, %v285
  %v287 = vpop.f32.mrb[0].mxu0
  %v288 = vpop.f32.mrb[0].mxu0
  %v289 = vadd.f32 0.0, %v288
  %v290 = vpop.f32.mrb[0].mxu0
  %291 = vmatprep.mubr.bf16.mxu0 %v201
  %292 = vmatmul.mubr.bf16.gmra.mrb[0].mxu0 %v114
  %v293 = vpop.f32.mrb[0].mxu0
  %v294 = vadd.f32 0.0, %v293
  %v295 = vpop.f32.mrb[0].mxu0
  %v296 = vpop.f32.mrb[0].mxu0
  %v297 = vadd.f32 0.0, %v296
  %v298 = vpop.f32.mrb[0].mxu0
  %299 = vdwg.mxu0
  %v300 = vld [vmem:[%s2] sm:$0x1]
  %v302 = vlaneseq
  %v303 = vshrl.u32 %v302, 7
  %v304 = vsub.s32 0, %v303
  %v305 = vrot.slane %v300, %v304
  %v307 = vmul.f32 %v238, %v305
  %v308 = vmul.f32 %v241, %v305
  %v309 = vmul.f32 %v246, %v305
  %v310 = vmul.f32 %v249, %v305
  %v311 = vmul.f32 %v254, %v305
  %v312 = vmul.f32 %v257, %v305
  %v313 = vmul.f32 %v262, %v305
  %v314 = vmul.f32 %v265, %v305
  %v315 = vmul.f32 %v270, %v305
  %v316 = vmul.f32 %v273, %v305
  %v317 = vmul.f32 %v278, %v305
  %v318 = vmul.f32 %v281, %v305
  %v319 = vmul.f32 %v286, %v305
  %v320 = vmul.f32 %v289, %v305
  %v321 = vmul.f32 %v294, %v305
  %v322 = vmul.f32 %v297, %v305
  %v323 = vld [vmem:[%s3] sm:$0x1]
  %v325 = vlaneseq
  %v326 = vshrl.u32 %v325, 7
  %v327 = vsub.s32 0, %v326
  %v328 = vrot.slane %v323, %v327
  %v330 = vadd.f32 %v307, %v328
  %v331 = vadd.f32 %v308, %v328
  %v332 = vadd.f32 %v309, %v328
  %v333 = vadd.f32 %v310, %v328
  %v334 = vadd.f32 %v311, %v328
  %v335 = vadd.f32 %v312, %v328
  %v336 = vadd.f32 %v313, %v328
  %v337 = vadd.f32 %v314, %v328
  %v338 = vadd.f32 %v315, %v328
  %v339 = vadd.f32 %v316, %v328
  %v340 = vadd.f32 %v317, %v328
  %v341 = vadd.f32 %v318, %v328
  %v342 = vadd.f32 %v319, %v328
  %v343 = vadd.f32 %v320, %v328
  %v344 = vadd.f32 %v321, %v328
  %v345 = vadd.f32 %v322, %v328
  %v346 = vmax.f32 %v330, 0.0
  %v347 = vmax.f32 %v331, 0.0
  %v348 = vmax.f32 %v332, 0.0
  %v349 = vmax.f32 %v333, 0.0
  %v350 = vmax.f32 %v334, 0.0
  %v351 = vmax.f32 %v335, 0.0
  %v352 = vmax.f32 %v336, 0.0
  %v353 = vmax.f32 %v337, 0.0
  %v354 = vmax.f32 %v338, 0.0
  %v355 = vmax.f32 %v339, 0.0
  %v356 = vmax.f32 %v340, 0.0
  %v357 = vmax.f32 %v341, 0.0
  %v358 = vmax.f32 %v342, 0.0
  %v359 = vmax.f32 %v343, 0.0
  %v360 = vmax.f32 %v344, 0.0
  %v361 = vmax.f32 %v345, 0.0
  %v362 = vpack.c.bf16 %v347, %v346
  %v363 = vpack.c.bf16 %v349, %v348
  %v364 = vpack.c.bf16 %v351, %v350
  %v365 = vpack.c.bf16 %v353, %v352
  %v366 = vpack.c.bf16 %v355, %v354
  %v367 = vpack.c.bf16 %v357, %v356
  %v368 = vpack.c.bf16 %v359, %v358
  %v369 = vpack.c.bf16 %v361, %v360
  %v378 = vunpack.c.l.b16 %v362
  %v379 = vunpack.c.h.b16 %v362
  %v380 = vunpack.c.l.b16 %v363
  %v381 = vunpack.c.h.b16 %v363
  %v382 = vunpack.c.l.b16 %v364
  %v383 = vunpack.c.h.b16 %v364
  %v384 = vunpack.c.l.b16 %v365
  %v385 = vunpack.c.h.b16 %v365
  %v386 = vunpack.c.l.b16 %v366
  %v387 = vunpack.c.h.b16 %v366
  %v388 = vunpack.c.l.b16 %v367
  %v389 = vunpack.c.h.b16 %v367
  %v390 = vunpack.c.l.b16 %v368
  %v391 = vunpack.c.h.b16 %v368
  %v392 = vunpack.c.l.b16 %v369
  %v393 = vunpack.c.h.b16 %v369
  %v394 = vpack.c.b16 %v378, %v378
  %v395 = vpack.c.b16 %v379, %v379
  %v396 = vpack.c.b16 %v380, %v380
  %v397 = vpack.c.b16 %v381, %v381
  %v398 = vpack.c.b16 %v382, %v382
  %v399 = vpack.c.b16 %v383, %v383
  %v400 = vpack.c.b16 %v384, %v384
  %v401 = vpack.c.b16 %v385, %v385
  %v402 = vpack.c.b16 %v386, %v386
  %v403 = vpack.c.b16 %v387, %v387
  %v404 = vpack.c.b16 %v388, %v388
  %v405 = vpack.c.b16 %v389, %v389
  %v406 = vpack.c.b16 %v390, %v390
  %v407 = vpack.c.b16 %v391, %v391
  %v408 = vpack.c.b16 %v392, %v392
  %v409 = vpack.c.b16 %v393, %v393
  %vm426 = vcmask 125952
  %427 = vst.msk [vmem:[%s4] sm:$0xf] %vm426, %v394
  %428 = vst.msk [vmem:[%s4 + $0x4] sm:$0xf] %vm426, %v395
  %429 = vst.msk [vmem:[%s4 + $0x8] sm:$0xf] %vm426, %v396
  %430 = vst.msk [vmem:[%s4 + $0xc] sm:$0xf] %vm426, %v397
  %431 = vst.msk [vmem:[%s4 + $0x10] sm:$0xf] %vm426, %v398
  %432 = vst.msk [vmem:[%s4 + $0x14] sm:$0xf] %vm426, %v399
  %433 = vst.msk [vmem:[%s4 + $0x18] sm:$0xf] %vm426, %v400
  %434 = vst.msk [vmem:[%s4 + $0x1c] sm:$0xf] %vm426, %v401
  %435 = vst.msk [vmem:[%s4 + $0x20] sm:$0xf] %vm426, %v402
  %436 = vst.msk [vmem:[%s4 + $0x24] sm:$0xf] %vm426, %v403
  %437 = vst.msk [vmem:[%s4 + $0x28] sm:$0xf] %vm426, %v404
  %438 = vst.msk [vmem:[%s4 + $0x2c] sm:$0xf] %vm426, %v405
  %439 = vst.msk [vmem:[%s4 + $0x30] sm:$0xf] %vm426, %v406
  %440 = vst.msk [vmem:[%s4 + $0x34] sm:$0xf] %vm426, %v407
  %441 = vst.msk [vmem:[%s4 + $0x38] sm:$0xf] %vm426, %v408
  %442 = vst.msk [vmem:[%s4 + $0x3c] sm:$0xf] %vm426, %v409
  // Predicated region
  $region18: #{_lambda_.31} parent=0 // pred_check
    _
  $region19: #{_lambda_.31} parent=0 // pred_check_branch
    %444 = sbr.rel (0) target = $region21
  $region20: #{_lambda_.31} parent=0 // pred_region
    _
  $region21: #{_lambda_.31} parent=0 // pred_fallthru
    _
  // Predicated region
  $region22: #{_lambda_.31} parent=0 // pred_check
    _
  $region23: #{_lambda_.31} parent=0 // pred_check_branch
    %446 = sbr.rel (0) target = $region25
  $region24: #{_lambda_.31} parent=0 // pred_region
    _
  $region25: #{_lambda_.31} parent=0 // pred_fallthru
    _

// kernel: _lambda_.33
$region0: #{_lambda_.33}
  #allocation0 [shape = 'u32[]', space=smem, size = 0x4, offset = 0x4, fixed_abs, tag = 'smem constant byte address 0x4 - core index']
  #allocation1 [shape = 'u32[144,128]{1,0:T(1,128)}', space=vmem, size = 0x12000, scoped, tag = 'internal scratch']
  %s0 = inlined_call_operand.vmem [shape: bf16[32,144], index: 0, kind: input, shape index: {}]
  %s1 = inlined_call_operand.vmem [shape: bf16[144,32], index: 1, kind: input, shape index: {}]
  %s2 = inlined_call_operand.vmem [shape: f32[1,32], index: 2, kind: input, shape index: {}]
  %s3 = inlined_call_operand.vmem [shape: f32[1,32], index: 3, kind: input, shape index: {}]
  %s4 = inlined_call_operand.vmem [shape: bf16[32,32], index: 4, kind: output, shape index: {}]
  %s5 = sld [smem:[#allocation0]]
  $region26: #{_lambda_.33} parent=0
    _
  %s7 = ssub.s32 1, %s5
  %s8 = scalar_select 0, %s7, %s5
  // Predicated region
  $region2: #{_lambda_.33} parent=0 // pred_check
    _
  $region3: #{_lambda_.33} parent=0 // pred_check_branch
    %10 = sbr.rel (0) target = $region5
  $region4: #{_lambda_.33} parent=0 // pred_region
    _
  $region5: #{_lambda_.33} parent=0 // pred_fallthru
    _
  // Predicated region
  $region6: #{_lambda_.33} parent=0 // pred_check
    _
  $region7: #{_lambda_.33} parent=0 // pred_check_branch
    %12 = sbr.rel (0) target = $region9
  $region8: #{_lambda_.33} parent=0 // pred_region
    _
  $region9: #{_lambda_.33} parent=0 // pred_fallthru
    _
  // Predicated region
  $region10: #{_lambda_.33} parent=0 // pred_check
    _
  $region11: #{_lambda_.33} parent=0 // pred_check_branch
    %14 = sbr.rel (0) target = $region13
  $region12: #{_lambda_.33} parent=0 // pred_region
    _
  $region13: #{_lambda_.33} parent=0 // pred_fallthru
    _
  // Predicated region
  $region14: #{_lambda_.33} parent=0 // pred_check
    _
  $region15: #{_lambda_.33} parent=0 // pred_check_branch
    %16 = sbr.rel (0) target = $region17
  $region16: #{_lambda_.33} parent=0 // pred_region
    _
  $region17: #{_lambda_.33} parent=0 // pred_fallthru
    _
  %v18 = vld [vmem:[%s0] sm:$0xff]
  %v19 = vld [vmem:[%s0 + $0x8] sm:$0xff]
  %v20 = vld [vmem:[%s0 + $0x10] sm:$0xff]
  %v21 = vld [vmem:[%s0 + $0x18] sm:$0xff]
  %v22 = vld [vmem:[%s1] sm:$0xf]
  %v23 = vld [vmem:[%s1 + $0x4] sm:$0xf]
  %v24 = vld [vmem:[%s1 + $0x8] sm:$0xf]
  %v25 = vld [vmem:[%s1 + $0xc] sm:$0xf]
  %v26 = vld [vmem:[%s1 + $0x10] sm:$0xf]
  %v27 = vld [vmem:[%s1 + $0x14] sm:$0xf]
  %v28 = vld [vmem:[%s1 + $0x18] sm:$0xf]
  %v29 = vld [vmem:[%s1 + $0x1c] sm:$0xf]
  %v30 = vld [vmem:[%s1 + $0x20] sm:$0xf]
  %v31 = vld [vmem:[%s1 + $0x24] sm:$0xf]
  %v32 = vld [vmem:[%s1 + $0x28] sm:$0xf]
  %v33 = vld [vmem:[%s1 + $0x2c] sm:$0xf]
  %v34 = vld [vmem:[%s1 + $0x30] sm:$0xf]
  %v35 = vld [vmem:[%s1 + $0x34] sm:$0xf]
  %v36 = vld [vmem:[%s1 + $0x38] sm:$0xf]
  %v37 = vld [vmem:[%s1 + $0x3c] sm:$0xf]
  %v38 = vld [vmem:[%s1 + $0x40] sm:$0xf]
  %v39 = vld [vmem:[%s1 + $0x44] sm:$0xf]
  %v44 = vunpack.c.l.b16 %v18
  %v45 = vunpack.c.h.b16 %v18
  %v46 = vunpack.c.l.b16 %v19
  %v47 = vunpack.c.h.b16 %v19
  %v48 = vunpack.c.l.b16 %v20
  %v49 = vunpack.c.h.b16 %v20
  %v50 = vunpack.c.l.b16 %v21
  %v51 = vunpack.c.h.b16 %v21
  %v52 = vpack.c.b16 %v46, %v44
  %v53 = vpack.c.b16 %v47, %v45
  %v54 = vpack.c.b16 %v50, %v48
  %v55 = vpack.c.b16 %v51, %v49
  %v76 = vunpack.c.l.b16 %v22
  %v77 = vunpack.c.l.b16 %v23
  %v78 = vunpack.c.l.b16 %v24
  %v79 = vunpack.c.l.b16 %v25
  %v80 = vunpack.c.l.b16 %v26
  %v81 = vunpack.c.l.b16 %v27
  %v82 = vunpack.c.l.b16 %v28
  %v83 = vunpack.c.l.b16 %v29
  %v84 = vunpack.c.l.b16 %v30
  %v85 = vunpack.c.l.b16 %v31
  %v86 = vunpack.c.l.b16 %v32
  %v87 = vunpack.c.l.b16 %v33
  %v88 = vunpack.c.l.b16 %v34
  %v89 = vunpack.c.l.b16 %v35
  %v90 = vunpack.c.l.b16 %v36
  %v91 = vunpack.c.l.b16 %v37
  %v92 = vunpack.c.l.b16 %v38
  %v93 = vunpack.c.l.b16 %v39
  %v94 = vpack.c.b16 %v77, %v76
  %v95 = vpack.c.b16 %v79, %v78
  %v96 = vpack.c.b16 %v81, %v80
  %v97 = vpack.c.b16 %v83, %v82
  %v98 = vpack.c.b16 %v85, %v84
  %v99 = vpack.c.b16 %v87, %v86
  %v100 = vpack.c.b16 %v89, %v88
  %v101 = vpack.c.b16 %v91, %v90
  %v102 = vpack.c.b16 %v93, %v92
  %vm112 = vcmask 130048
  %v114 = vsel %vm112, %v53, 0
  %v117 = vsel %vm112, %v55, 0
  %119 = vmatprep.subr.bf16.mxu0 0
  %120 = vmatpush1.bf16.msra.mxu0 %v94
  %121 = vmatprep.subr.bf16.mxu0 0
  %122 = vmatpush1.bf16.msra.mxu0 %v95
  %123 = vmatprep.subr.bf16.mxu0 0
  %124 = vmatpush1.bf16.msra.mxu0 %v96
  %125 = vmatprep.subr.bf16.mxu0 0
  %126 = vmatpush1.bf16.msra.mxu0 %v97
  %127 = vmatprep.subr.bf16.mxu0 0
  %128 = vmatpush1.bf16.msra.mxu0 %v98
  %129 = vmatprep.subr.bf16.mxu0 0
  %130 = vmatpush1.bf16.msra.mxu0 %v99
  %131 = vmatprep.subr.bf16.mxu0 0
  %132 = vmatpush1.bf16.msra.mxu0 %v100
  %133 = vmatprep.subr.bf16.mxu0 0
  %134 = vmatpush1.bf16.msra.mxu0 %v101
  %135 = vmatprep.subr.bf16.mxu0 0
  %136 = vmatpush1.bf16.msra.mxu0 %v102
  %137 = vmatprep.subr.bf16.mxu0 0
  %138 = vmatpush1.bf16.msra.mxu0 0
  %139 = vmatprep.subr.bf16.mxu0 0
  %140 = vmatpush1.bf16.msra.mxu0 0
  %141 = vmatprep.subr.bf16.mxu0 0
  %142 = vmatpush1.bf16.msra.mxu0 0
  %143 = vmatprep.subr.bf16.mxu0 0
  %144 = vmatpush1.bf16.msra.mxu0 0
  %145 = vmatprep.subr.bf16.mxu0 0
  %146 = vmatpush1.bf16.msra.mxu0 0
  %147 = vmatprep.subr.bf16.mxu0 0
  %148 = vmatpush1.bf16.msra.mxu0 0
  %149 = vmatprep.subr.bf16.mxu0 0
  %150 = vmatpush1.bf16.msra.mxu0 0
  %151 = vmatprep.mubr.bf16.mxu0 %v114
  %152 = vmatmul.mubr.bf16.gmra.mrb[0].mxu0 %v52
  %v153 = vpop.f32.mrb[0].mxu0
  %v154 = vadd.f32 0.0, %v153
  %v155 = vpop.f32.mrb[0].mxu0
  %v156 = vpop.f32.mrb[0].mxu0
  %v157 = vadd.f32 0.0, %v156
  %v158 = vpop.f32.mrb[0].mxu0
  %159 = vmatprep.mubr.bf16.mxu0 %v117
  %160 = vmatmul.mubr.bf16.gmra.mrb[0].mxu0 %v54
  %v161 = vpop.f32.mrb[0].mxu0
  %v162 = vadd.f32 0.0, %v161
  %v163 = vpop.f32.mrb[0].mxu0
  %v164 = vpop.f32.mrb[0].mxu0
  %v165 = vadd.f32 0.0, %v164
  %v166 = vpop.f32.mrb[0].mxu0
  %167 = vdwg.mxu0
  %v168 = vld [vmem:[%s2] sm:$0x1]
  %v170 = vlaneseq
  %v171 = vshrl.u32 %v170, 7
  %v172 = vsub.s32 0, %v171
  %v173 = vrot.slane %v168, %v172
  %v175 = vmul.f32 %v154, %v173
  %v176 = vmul.f32 %v157, %v173
  %v177 = vmul.f32 %v162, %v173
  %v178 = vmul.f32 %v165, %v173
  %v179 = vld [vmem:[%s3] sm:$0x1]
  %v181 = vlaneseq
  %v182 = vshrl.u32 %v181, 7
  %v183 = vsub.s32 0, %v182
  %v184 = vrot.slane %v179, %v183
  %v186 = vadd.f32 %v175, %v184
  %v187 = vadd.f32 %v176, %v184
  %v188 = vadd.f32 %v177, %v184
  %v189 = vadd.f32 %v178, %v184
  %v190 = vmax.f32 %v186, 0.0
  %v191 = vmax.f32 %v187, 0.0
  %v192 = vmax.f32 %v188, 0.0
  %v193 = vmax.f32 %v189, 0.0
  %v194 = vpack.c.bf16 %v191, %v190
  %v195 = vpack.c.bf16 %v193, %v192
  %v198 = vunpack.c.l.b16 %v194
  %v199 = vunpack.c.h.b16 %v194
  %v200 = vunpack.c.l.b16 %v195
  %v201 = vunpack.c.h.b16 %v195
  %v202 = vpack.c.b16 %v198, %v198
  %v203 = vpack.c.b16 %v199, %v199
  %v204 = vpack.c.b16 %v200, %v200
  %v205 = vpack.c.b16 %v201, %v201
  %vm210 = vcmask 257024
  %211 = vst.msk [vmem:[%s4] sm:$0xf] %vm210, %v202
  %212 = vst.msk [vmem:[%s4 + $0x4] sm:$0xf] %vm210, %v203
  %213 = vst.msk [vmem:[%s4 + $0x8] sm:$0xf] %vm210, %v204
  %214 = vst.msk [vmem:[%s4 + $0xc] sm:$0xf] %vm210, %v205
  // Predicated region
  $region18: #{_lambda_.33} parent=0 // pred_check
    _
  $region19: #{_lambda_.33} parent=0 // pred_check_branch
    %216 = sbr.rel (0) target = $region21
  $region20: #{_lambda_.33} parent=0 // pred_region
    _
  $region21: #{_lambda_.33} parent=0 // pred_fallthru
    _
  // Predicated region
  $region22: #{_lambda_.33} parent=0 // pred_check
    _
  $region23: #{_lambda_.33} parent=0 // pred_check_branch
    %218 = sbr.rel (0) target = $region25
  $region24: #{_lambda_.33} parent=0 // pred_region
    _
  $region25: #{_lambda_.33} parent=0 // pred_fallthru
    _

// kernel: _lambda_.34
$region0: #{_lambda_.34}
  #allocation0 [shape = 'u32[]', space=smem, size = 0x4, offset = 0x4, fixed_abs, tag = 'smem constant byte address 0x4 - core index']
  #allocation1 [shape = 'u32[144,128]{1,0:T(1,128)}', space=vmem, size = 0x12000, scoped, tag = 'internal scratch']
  %s0 = inlined_call_operand.vmem [shape: bf16[32,16], index: 0, kind: input, shape index: {}]
  %s1 = inlined_call_operand.vmem [shape: bf16[16,32], index: 1, kind: input, shape index: {}]
  %s2 = inlined_call_operand.vmem [shape: f32[1,32], index: 2, kind: input, shape index: {}]
  %s3 = inlined_call_operand.vmem [shape: f32[1,32], index: 3, kind: input, shape index: {}]
  %s4 = inlined_call_operand.vmem [shape: bf16[32,32], index: 4, kind: output, shape index: {}]
  %s5 = sld [smem:[#allocation0]]
  $region26: #{_lambda_.34} parent=0
    _
  %s7 = ssub.s32 1, %s5
  %s8 = scalar_select 0, %s7, %s5
  // Predicated region
  $region2: #{_lambda_.34} parent=0 // pred_check
    _
  $region3: #{_lambda_.34} parent=0 // pred_check_branch
    %10 = sbr.rel (0) target = $region5
  $region4: #{_lambda_.34} parent=0 // pred_region
    _
  $region5: #{_lambda_.34} parent=0 // pred_fallthru
    _
  // Predicated region
  $region6: #{_lambda_.34} parent=0 // pred_check
    _
  $region7: #{_lambda_.34} parent=0 // pred_check_branch
    %12 = sbr.rel (0) target = $region9
  $region8: #{_lambda_.34} parent=0 // pred_region
    _
  $region9: #{_lambda_.34} parent=0 // pred_fallthru
    _
  // Predicated region
  $region10: #{_lambda_.34} parent=0 // pred_check
    _
  $region11: #{_lambda_.34} parent=0 // pred_check_branch
    %14 = sbr.rel (0) target = $region13
  $region12: #{_lambda_.34} parent=0 // pred_region
    _
  $region13: #{_lambda_.34} parent=0 // pred_fallthru
    _
  // Predicated region
  $region14: #{_lambda_.34} parent=0 // pred_check
    _
  $region15: #{_lambda_.34} parent=0 // pred_check_branch
    %16 = sbr.rel (0) target = $region17
  $region16: #{_lambda_.34} parent=0 // pred_region
    _
  $region17: #{_lambda_.34} parent=0 // pred_fallthru
    _
  %v18 = vld [vmem:[%s0] sm:$0xf]
  %v19 = vld [vmem:[%s0 + $0x4] sm:$0xf]
  %v20 = vld [vmem:[%s0 + $0x8] sm:$0xf]
  %v21 = vld [vmem:[%s0 + $0xc] sm:$0xf]
  %v22 = vld [vmem:[%s1] sm:$0xf]
  %v23 = vld [vmem:[%s1 + $0x4] sm:$0xf]
  %v28 = vunpack.c.l.b16 %v18
  %v29 = vunpack.c.l.b16 %v19
  %v30 = vunpack.c.l.b16 %v20
  %v31 = vunpack.c.l.b16 %v21
  %v32 = vpack.c.b16 %v29, %v28
  %v33 = vpack.c.b16 %v31, %v30
  %v36 = vunpack.c.l.b16 %v22
  %v37 = vunpack.c.l.b16 %v23
  %v38 = vpack.c.b16 %v37, %v36
  %vm40 = vcmask 130048
  %v42 = vsel %vm40, %v32, 0
  %v45 = vsel %vm40, %v33, 0
  %47 = vmatprep.subr.bf16.mxu0 0
  %48 = vmatpush1.bf16.msra.mxu0 %v38
  %49 = vmatprep.subr.bf16.mxu0 0
  %50 = vmatpush1.bf16.msra.mxu0 0
  %51 = vmatprep.subr.bf16.mxu0 0
  %52 = vmatpush1.bf16.msra.mxu0 0
  %53 = vmatprep.subr.bf16.mxu0 0
  %54 = vmatpush1.bf16.msra.mxu0 0
  %55 = vmatprep.subr.bf16.mxu0 0
  %56 = vmatpush1.bf16.msra.mxu0 0
  %57 = vmatprep.subr.bf16.mxu0 0
  %58 = vmatpush1.bf16.msra.mxu0 0
  %59 = vmatprep.subr.bf16.mxu0 0
  %60 = vmatpush1.bf16.msra.mxu0 0
  %61 = vmatprep.subr.bf16.mxu0 0
  %62 = vmatpush1.bf16.msra.mxu0 0
  %63 = vmatprep.subr.bf16.mxu0 0
  %64 = vmatpush1.bf16.msra.mxu0 0
  %65 = vmatprep.subr.bf16.mxu0 0
  %66 = vmatpush1.bf16.msra.mxu0 0
  %67 = vmatprep.subr.bf16.mxu0 0
  %68 = vmatpush1.bf16.msra.mxu0 0
  %69 = vmatprep.subr.bf16.mxu0 0
  %70 = vmatpush1.bf16.msra.mxu0 0
  %71 = vmatprep.subr.bf16.mxu0 0
  %72 = vmatpush1.bf16.msra.mxu0 0
  %73 = vmatprep.subr.bf16.mxu0 0
  %74 = vmatpush1.bf16.msra.mxu0 0
  %75 = vmatprep.subr.bf16.mxu0 0
  %76 = vmatpush1.bf16.msra.mxu0 0
  %77 = vmatprep.subr.bf16.mxu0 0
  %78 = vmatpush1.bf16.msra.mxu0 0
  %79 = vmatprep.mubr.bf16.mxu0 0
  %80 = vmatmul.mubr.bf16.gmra.mrb[0].mxu0 %v42
  %v81 = vpop.f32.mrb[0].mxu0
  %v82 = vadd.f32 0.0, %v81
  %v83 = vpop.f32.mrb[0].mxu0
  %v84 = vpop.f32.mrb[0].mxu0
  %v85 = vadd.f32 0.0, %v84
  %v86 = vpop.f32.mrb[0].mxu0
  %87 = vmatprep.mubr.bf16.mxu0 0
  %88 = vmatmul.mubr.bf16.gmra.mrb[0].mxu0 %v45
  %v89 = vpop.f32.mrb[0].mxu0
  %v90 = vadd.f32 0.0, %v89
  %v91 = vpop.f32.mrb[0].mxu0
  %v92 = vpop.f32.mrb[0].mxu0
  %v93 = vadd.f32 0.0, %v92
  %v94 = vpop.f32.mrb[0].mxu0
  %95 = vdwg.mxu0
  %v96 = vld [vmem:[%s2] sm:$0x1]
  %v98 = vlaneseq
  %v99 = vshrl.u32 %v98, 7
  %v100 = vsub.s32 0, %v99
  %v101 = vrot.slane %v96, %v100
  %v103 = vmul.f32 %v82, %v101
  %v104 = vmul.f32 %v85, %v101
  %v105 = vmul.f32 %v90, %v101
  %v106 = vmul.f32 %v93, %v101
  %v107 = vld [vmem:[%s3] sm:$0x1]
  %v109 = vlaneseq
  %v110 = vshrl.u32 %v109, 7
  %v111 = vsub.s32 0, %v110
  %v112 = vrot.slane %v107, %v111
  %v114 = vadd.f32 %v103, %v112
  %v115 = vadd.f32 %v104, %v112
  %v116 = vadd.f32 %v105, %v112
  %v117 = vadd.f32 %v106, %v112
  %v118 = vpack.c.bf16 %v115, %v114
  %v119 = vpack.c.bf16 %v117, %v116
  %v122 = vunpack.c.l.b16 %v118
  %v123 = vunpack.c.h.b16 %v118
  %v124 = vunpack.c.l.b16 %v119
  %v125 = vunpack.c.h.b16 %v119
  %v126 = vpack.c.b16 %v122, %v122
  %v127 = vpack.c.b16 %v123, %v123
  %v128 = vpack.c.b16 %v124, %v124
  %v129 = vpack.c.b16 %v125, %v125
  %vm134 = vcmask 257024
  %135 = vst.msk [vmem:[%s4] sm:$0xf] %vm134, %v126
  %136 = vst.msk [vmem:[%s4 + $0x4] sm:$0xf] %vm134, %v127
  %137 = vst.msk [vmem:[%s4 + $0x8] sm:$0xf] %vm134, %v128
  %138 = vst.msk [vmem:[%s4 + $0xc] sm:$0xf] %vm134, %v129
  // Predicated region
  $region18: #{_lambda_.34} parent=0 // pred_check
    _
  $region19: #{_lambda_.34} parent=0 // pred_check_branch
    %140 = sbr.rel (0) target = $region21
  $region20: #{_lambda_.34} parent=0 // pred_region
    _
  $region21: #{_lambda_.34} parent=0 // pred_fallthru
    _
  // Predicated region
  $region22: #{_lambda_.34} parent=0 // pred_check
    _
  $region23: #{_lambda_.34} parent=0 // pred_check_branch
    %142 = sbr.rel (0) target = $region25
  $region24: #{_lambda_.34} parent=0 // pred_region
    _
  $region25: #{_lambda_.34} parent=0 // pred_fallthru
    _

// kernel: _lambda_.35
$region0: #{_lambda_.35}
  #allocation0 [shape = 'u32[]', space=smem, size = 0x4, offset = 0x4, fixed_abs, tag = 'smem constant byte address 0x4 - core index']
  #allocation1 [shape = 'u32[144,128]{1,0:T(1,128)}', space=vmem, size = 0x12000, scoped, tag = 'internal scratch']
  %s0 = inlined_call_operand.vmem [shape: bf16[32,288], index: 0, kind: input, shape index: {}]
  %s1 = inlined_call_operand.vmem [shape: bf16[288,32], index: 1, kind: input, shape index: {}]
  %s2 = inlined_call_operand.vmem [shape: f32[1,32], index: 2, kind: input, shape index: {}]
  %s3 = inlined_call_operand.vmem [shape: f32[1,32], index: 3, kind: input, shape index: {}]
  %s4 = inlined_call_operand.vmem [shape: bf16[32,32], index: 4, kind: input, shape index: {}]
  %s5 = inlined_call_operand.vmem [shape: bf16[32,32], index: 5, kind: output, shape index: {}]
  %s6 = sld [smem:[#allocation0]]
  $region30: #{_lambda_.35} parent=0
    _
  %s8 = ssub.s32 1, %s6
  %s9 = scalar_select 0, %s8, %s6
  // Predicated region
  $region2: #{_lambda_.35} parent=0 // pred_check
    _
  $region3: #{_lambda_.35} parent=0 // pred_check_branch
    %11 = sbr.rel (0) target = $region5
  $region4: #{_lambda_.35} parent=0 // pred_region
    _
  $region5: #{_lambda_.35} parent=0 // pred_fallthru
    _
  // Predicated region
  $region6: #{_lambda_.35} parent=0 // pred_check
    _
  $region7: #{_lambda_.35} parent=0 // pred_check_branch
    %13 = sbr.rel (0) target = $region9
  $region8: #{_lambda_.35} parent=0 // pred_region
    _
  $region9: #{_lambda_.35} parent=0 // pred_fallthru
    _
  // Predicated region
  $region10: #{_lambda_.35} parent=0 // pred_check
    _
  $region11: #{_lambda_.35} parent=0 // pred_check_branch
    %15 = sbr.rel (0) target = $region13
  $region12: #{_lambda_.35} parent=0 // pred_region
    _
  $region13: #{_lambda_.35} parent=0 // pred_fallthru
    _
  // Predicated region
  $region14: #{_lambda_.35} parent=0 // pred_check
    _
  $region15: #{_lambda_.35} parent=0 // pred_check_branch
    %17 = sbr.rel (0) target = $region17
  $region16: #{_lambda_.35} parent=0 // pred_region
    _
  $region17: #{_lambda_.35} parent=0 // pred_fallthru
    _
  // Predicated region
  $region18: #{_lambda_.35} parent=0 // pred_check
    _
  $region19: #{_lambda_.35} parent=0 // pred_check_branch
    %19 = sbr.rel (0) target = $region21
  $region20: #{_lambda_.35} parent=0 // pred_region
    _
  $region21: #{_lambda_.35} parent=0 // pred_fallthru
    _
  %v21 = vld [vmem:[%s0] sm:$0xff]
  %v22 = vld [vmem:[%s0 + $0x8] sm:$0xf]
  %v23 = vld [vmem:[%s0 + $0xc] sm:$0xff]
  %v24 = vld [vmem:[%s0 + $0x14] sm:$0xf]
  %v25 = vld [vmem:[%s0 + $0x18] sm:$0xff]
  %v26 = vld [vmem:[%s0 + $0x20] sm:$0xf]
  %v27 = vld [vmem:[%s0 + $0x24] sm:$0xff]
  %v28 = vld [vmem:[%s0 + $0x2c] sm:$0xf]
  %v29 = vld [vmem:[%s1] sm:$0xf]
  %v30 = vld [vmem:[%s1 + $0x4] sm:$0xf]
  %v31 = vld [vmem:[%s1 + $0x8] sm:$0xf]
  %v32 = vld [vmem:[%s1 + $0xc] sm:$0xf]
  %v33 = vld [vmem:[%s1 + $0x10] sm:$0xf]
  %v34 = vld [vmem:[%s1 + $0x14] sm:$0xf]
  %v35 = vld [vmem:[%s1 + $0x18] sm:$0xf]
  %v36 = vld [vmem:[%s1 + $0x1c] sm:$0xf]
  %v37 = vld [vmem:[%s1 + $0x20] sm:$0xf]
  %v38 = vld [vmem:[%s1 + $0x24] sm:$0xf]
  %v39 = vld [vmem:[%s1 + $0x28] sm:$0xf]
  %v40 = vld [vmem:[%s1 + $0x2c] sm:$0xf]
  %v41 = vld [vmem:[%s1 + $0x30] sm:$0xf]
  %v42 = vld [vmem:[%s1 + $0x34] sm:$0xf]
  %v43 = vld [vmem:[%s1 + $0x38] sm:$0xf]
  %v44 = vld [vmem:[%s1 + $0x3c] sm:$0xf]
  %v45 = vld [vmem:[%s1 + $0x40] sm:$0xf]
  %v46 = vld [vmem:[%s1 + $0x44] sm:$0xf]
  %v47 = vld [vmem:[%s1 + $0x48] sm:$0xf]
  %v48 = vld [vmem:[%s1 + $0x4c] sm:$0xf]
  %v49 = vld [vmem:[%s1 + $0x50] sm:$0xf]
  %v50 = vld [vmem:[%s1 + $0x54] sm:$0xf]
  %v51 = vld [vmem:[%s1 + $0x58] sm:$0xf]
  %v52 = vld [vmem:[%s1 + $0x5c] sm:$0xf]
  %v53 = vld [vmem:[%s1 + $0x60] sm:$0xf]
  %v54 = vld [vmem:[%s1 + $0x64] sm:$0xf]
  %v55 = vld [vmem:[%s1 + $0x68] sm:$0xf]
  %v56 = vld [vmem:[%s1 + $0x6c] sm:$0xf]
  %v57 = vld [vmem:[%s1 + $0x70] sm:$0xf]
  %v58 = vld [vmem:[%s1 + $0x74] sm:$0xf]
  %v59 = vld [vmem:[%s1 + $0x78] sm:$0xf]
  %v60 = vld [vmem:[%s1 + $0x7c] sm:$0xf]
  %v61 = vld [vmem:[%s1 + $0x80] sm:$0xf]
  %v62 = vld [vmem:[%s1 + $0x84] sm:$0xf]
  %v63 = vld [vmem:[%s1 + $0x88] sm:$0xf]
  %v64 = vld [vmem:[%s1 + $0x8c] sm:$0xf]
  %v73 = vunpack.c.l.b16 %v21
  %v74 = vunpack.c.h.b16 %v21
  %v75 = vunpack.c.l.b16 %v22
  %v76 = vunpack.c.l.b16 %v23
  %v77 = vunpack.c.h.b16 %v23
  %v78 = vunpack.c.l.b16 %v24
  %v79 = vunpack.c.l.b16 %v25
  %v80 = vunpack.c.h.b16 %v25
  %v81 = vunpack.c.l.b16 %v26
  %v82 = vunpack.c.l.b16 %v27
  %v83 = vunpack.c.h.b16 %v27
  %v84 = vunpack.c.l.b16 %v28
  %v85 = vpack.c.b16 %v76, %v73
  %v86 = vpack.c.b16 %v77, %v74
  %v87 = vpack.c.b16 %v78, %v75
  %v88 = vpack.c.b16 %v82, %v79
  %v89 = vpack.c.b16 %v83, %v80
  %v90 = vpack.c.b16 %v84, %v81
  %v131 = vunpack.c.l.b16 %v29
  %v132 = vunpack.c.l.b16 %v30
  %v133 = vunpack.c.l.b16 %v31
  %v134 = vunpack.c.l.b16 %v32
  %v135 = vunpack.c.l.b16 %v33
  %v136 = vunpack.c.l.b16 %v34
  %v137 = vunpack.c.l.b16 %v35
  %v138 = vunpack.c.l.b16 %v36
  %v139 = vunpack.c.l.b16 %v37
  %v140 = vunpack.c.l.b16 %v38
  %v141 = vunpack.c.l.b16 %v39
  %v142 = vunpack.c.l.b16 %v40
  %v143 = vunpack.c.l.b16 %v41
  %v144 = vunpack.c.l.b16 %v42
  %v145 = vunpack.c.l.b16 %v43
  %v146 = vunpack.c.l.b16 %v44
  %v147 = vunpack.c.l.b16 %v45
  %v148 = vunpack.c.l.b16 %v46
  %v149 = vunpack.c.l.b16 %v47
  %v150 = vunpack.c.l.b16 %v48
  %v151 = vunpack.c.l.b16 %v49
  %v152 = vunpack.c.l.b16 %v50
  %v153 = vunpack.c.l.b16 %v51
  %v154 = vunpack.c.l.b16 %v52
  %v155 = vunpack.c.l.b16 %v53
  %v156 = vunpack.c.l.b16 %v54
  %v157 = vunpack.c.l.b16 %v55
  %v158 = vunpack.c.l.b16 %v56
  %v159 = vunpack.c.l.b16 %v57
  %v160 = vunpack.c.l.b16 %v58
  %v161 = vunpack.c.l.b16 %v59
  %v162 = vunpack.c.l.b16 %v60
  %v163 = vunpack.c.l.b16 %v61
  %v164 = vunpack.c.l.b16 %v62
  %v165 = vunpack.c.l.b16 %v63
  %v166 = vunpack.c.l.b16 %v64
  %v167 = vpack.c.b16 %v132, %v131
  %v168 = vpack.c.b16 %v134, %v133
  %v169 = vpack.c.b16 %v136, %v135
  %v170 = vpack.c.b16 %v138, %v137
  %v171 = vpack.c.b16 %v140, %v139
  %v172 = vpack.c.b16 %v142, %v141
  %v173 = vpack.c.b16 %v144, %v143
  %v174 = vpack.c.b16 %v146, %v145
  %v175 = vpack.c.b16 %v148, %v147
  %v176 = vpack.c.b16 %v150, %v149
  %v177 = vpack.c.b16 %v152, %v151
  %v178 = vpack.c.b16 %v154, %v153
  %v179 = vpack.c.b16 %v156, %v155
  %v180 = vpack.c.b16 %v158, %v157
  %v181 = vpack.c.b16 %v160, %v159
  %v182 = vpack.c.b16 %v162, %v161
  %v183 = vpack.c.b16 %v164, %v163
  %v184 = vpack.c.b16 %v166, %v165
  %vm203 = vcmask 261120
  %v205 = vsel %vm203, %v87, 0
  %v208 = vsel %vm203, %v90, 0
  %210 = vmatprep.subr.bf16.mxu0 0
  %211 = vmatpush1.bf16.msra.mxu0 %v167
  %212 = vmatprep.subr.bf16.mxu0 0
  %213 = vmatpush1.bf16.msra.mxu0 %v168
  %214 = vmatprep.subr.bf16.mxu0 0
  %215 = vmatpush1.bf16.msra.mxu0 %v169
  %216 = vmatprep.subr.bf16.mxu0 0
  %217 = vmatpush1.bf16.msra.mxu0 %v170
  %218 = vmatprep.subr.bf16.mxu0 0
  %219 = vmatpush1.bf16.msra.mxu0 %v171
  %220 = vmatprep.subr.bf16.mxu0 0
  %221 = vmatpush1.bf16.msra.mxu0 %v172
  %222 = vmatprep.subr.bf16.mxu0 0
  %223 = vmatpush1.bf16.msra.mxu0 %v173
  %224 = vmatprep.subr.bf16.mxu0 0
  %225 = vmatpush1.bf16.msra.mxu0 %v174
  %226 = vmatprep.subr.bf16.mxu0 0
  %227 = vmatpush1.bf16.msra.mxu0 %v175
  %228 = vmatprep.subr.bf16.mxu0 0
  %229 = vmatpush1.bf16.msra.mxu0 %v176
  %230 = vmatprep.subr.bf16.mxu0 0
  %231 = vmatpush1.bf16.msra.mxu0 %v177
  %232 = vmatprep.subr.bf16.mxu0 0
  %233 = vmatpush1.bf16.msra.mxu0 %v178
  %234 = vmatprep.subr.bf16.mxu0 0
  %235 = vmatpush1.bf16.msra.mxu0 %v179
  %236 = vmatprep.subr.bf16.mxu0 0
  %237 = vmatpush1.bf16.msra.mxu0 %v180
  %238 = vmatprep.subr.bf16.mxu0 0
  %239 = vmatpush1.bf16.msra.mxu0 %v181
  %240 = vmatprep.subr.bf16.mxu0 0
  %241 = vmatpush1.bf16.msra.mxu0 %v182
  %242 = vmatprep.mubr.bf16.mxu0 %v86
  %243 = vmatmul.mubr.bf16.gmra.mrb[0].mxu0 %v85
  %v244 = vpop.f32.mrb[0].mxu0
  %v245 = vadd.f32 0.0, %v244
  %v246 = vpop.f32.mrb[0].mxu0
  %v247 = vpop.f32.mrb[0].mxu0
  %v248 = vadd.f32 0.0, %v247
  %v249 = vpop.f32.mrb[0].mxu0
  %250 = vmatprep.mubr.bf16.mxu0 %v89
  %251 = vmatmul.mubr.bf16.gmra.mrb[0].mxu0 %v88
  %v252 = vpop.f32.mrb[0].mxu0
  %v253 = vadd.f32 0.0, %v252
  %v254 = vpop.f32.mrb[0].mxu0
  %v255 = vpop.f32.mrb[0].mxu0
  %v256 = vadd.f32 0.0, %v255
  %v257 = vpop.f32.mrb[0].mxu0
  %258 = vdwg.mxu0
  %259 = vmatprep.subr.bf16.mxu0 0
  %260 = vmatpush1.bf16.msra.mxu0 %v183
  %261 = vmatprep.subr.bf16.mxu0 0
  %262 = vmatpush1.bf16.msra.mxu0 %v184
  %263 = vmatprep.subr.bf16.mxu0 0
  %264 = vmatpush1.bf16.msra.mxu0 0
  %265 = vmatprep.subr.bf16.mxu0 0
  %266 = vmatpush1.bf16.msra.mxu0 0
  %267 = vmatprep.subr.bf16.mxu0 0
  %268 = vmatpush1.bf16.msra.mxu0 0
  %269 = vmatprep.subr.bf16.mxu0 0
  %270 = vmatpush1.bf16.msra.mxu0 0
  %271 = vmatprep.subr.bf16.mxu0 0
  %272 = vmatpush1.bf16.msra.mxu0 0
  %273 = vmatprep.subr.bf16.mxu0 0
  %274 = vmatpush1.bf16.msra.mxu0 0
  %275 = vmatprep.subr.bf16.mxu0 0
  %276 = vmatpush1.bf16.msra.mxu0 0
  %277 = vmatprep.subr.bf16.mxu0 0
  %278 = vmatpush1.bf16.msra.mxu0 0
  %279 = vmatprep.subr.bf16.mxu0 0
  %280 = vmatpush1.bf16.msra.mxu0 0
  %281 = vmatprep.subr.bf16.mxu0 0
  %282 = vmatpush1.bf16.msra.mxu0 0
  %283 = vmatprep.subr.bf16.mxu0 0
  %284 = vmatpush1.bf16.msra.mxu0 0
  %285 = vmatprep.subr.bf16.mxu0 0
  %286 = vmatpush1.bf16.msra.mxu0 0
  %287 = vmatprep.subr.bf16.mxu0 0
  %288 = vmatpush1.bf16.msra.mxu0 0
  %289 = vmatprep.subr.bf16.mxu0 0
  %290 = vmatpush1.bf16.msra.mxu0 0
  %291 = vmatprep.mubr.bf16.mxu0 0
  %292 = vmatmul.mubr.bf16.gmra.mrb[0].mxu0 %v205
  %v293 = vpop.f32.mrb[0].mxu0
  %v294 = vadd.f32 %v245, %v293
  %v295 = vpop.f32.mrb[0].mxu0
  %v296 = vpop.f32.mrb[0].mxu0
  %v297 = vadd.f32 %v248, %v296
  %v298 = vpop.f32.mrb[0].mxu0
  %299 = vmatprep.mubr.bf16.mxu0 0
  %300 = vmatmul.mubr.bf16.gmra.mrb[0].mxu0 %v208
  %v301 = vpop.f32.mrb[0].mxu0
  %v302 = vadd.f32 %v253, %v301
  %v303 = vpop.f32.mrb[0].mxu0
  %v304 = vpop.f32.mrb[0].mxu0
  %v305 = vadd.f32 %v256, %v304
  %v306 = vpop.f32.mrb[0].mxu0
  %307 = vdwg.mxu0
  %v308 = vld [vmem:[%s2] sm:$0x1]
  %v310 = vlaneseq
  %v311 = vshrl.u32 %v310, 7
  %v312 = vsub.s32 0, %v311
  %v313 = vrot.slane %v308, %v312
  %v315 = vmul.f32 %v294, %v313
  %v316 = vmul.f32 %v297, %v313
  %v317 = vmul.f32 %v302, %v313
  %v318 = vmul.f32 %v305, %v313
  %v319 = vld [vmem:[%s3] sm:$0x1]
  %v321 = vlaneseq
  %v322 = vshrl.u32 %v321, 7
  %v323 = vsub.s32 0, %v322
  %v324 = vrot.slane %v319, %v323
  %v326 = vadd.f32 %v315, %v324
  %v327 = vadd.f32 %v316, %v324
  %v328 = vadd.f32 %v317, %v324
  %v329 = vadd.f32 %v318, %v324
  %v330 = vld [vmem:[%s4] sm:$0xf]
  %v331 = vld [vmem:[%s4 + $0x4] sm:$0xf]
  %v332 = vld [vmem:[%s4 + $0x8] sm:$0xf]
  %v333 = vld [vmem:[%s4 + $0xc] sm:$0xf]
  %v334 = vunpack.c.l.bf16 %v330
  %v335 = vunpack.c.l.bf16 %v331
  %v336 = vunpack.c.l.bf16 %v332
  %v337 = vunpack.c.l.bf16 %v333
  %v338 = vadd.f32 %v326, %v334
  %v339 = vadd.f32 %v327, %v335
  %v340 = vadd.f32 %v328, %v336
  %v341 = vadd.f32 %v329, %v337
  %v342 = vmax.f32 %v338, 0.0
  %v343 = vmax.f32 %v339, 0.0
  %v344 = vmax.f32 %v340, 0.0
  %v345 = vmax.f32 %v341, 0.0
  %v346 = vpack.c.bf16 %v343, %v342
  %v347 = vpack.c.bf16 %v345, %v344
  %v350 = vunpack.c.l.b16 %v346
  %v351 = vunpack.c.h.b16 %v346
  %v352 = vunpack.c.l.b16 %v347
  %v353 = vunpack.c.h.b16 %v347
  %v354 = vpack.c.b16 %v350, %v350
  %v355 = vpack.c.b16 %v351, %v351
  %v356 = vpack.c.b16 %v352, %v352
  %v357 = vpack.c.b16 %v353, %v353
  %vm362 = vcmask 257024
  %363 = vst.msk [vmem:[%s5] sm:$0xf] %vm362, %v354
  %364 = vst.msk [vmem:[%s5 + $0x4] sm:$0xf] %vm362, %v355
  %365 = vst.msk [vmem:[%s5 + $0x8] sm:$0xf] %vm362, %v356
  %366 = vst.msk [vmem:[%s5 + $0xc] sm:$0xf] %vm362, %v357
  // Predicated region
  $region22: #{_lambda_.35} parent=0 // pred_check
    _
  $region23: #{_lambda_.35} parent=0 // pred_check_branch
    %368 = sbr.rel (0) target = $region25
  $region24: #{_lambda_.35} parent=0 // pred_region
    _
  $region25: #{_lambda_.35} parent=0 // pred_fallthru
    _
  // Predicated region
  $region26: #{_lambda_.35} parent=0 // pred_check
    _
  $region27: #{_lambda_.35} parent=0 // pred_check_branch
    %370 = sbr.rel (0) target = $region29
  $region28: #{_lambda_.35} parent=0 // pred_region
    _
  $region29: #{_lambda_.35} parent=0 // pred_fallthru
    _

// kernel: _lambda_.36
$region0: #{_lambda_.36}
  #allocation0 [shape = 'u32[]', space=smem, size = 0x4, offset = 0x4, fixed_abs, tag = 'smem constant byte address 0x4 - core index']
  #allocation1 [shape = 'u32[144,128]{1,0:T(1,128)}', space=vmem, size = 0x12000, scoped, tag = 'internal scratch']
  %s0 = inlined_call_operand.vmem [shape: bf16[32,288], index: 0, kind: input, shape index: {}]
  %s1 = inlined_call_operand.vmem [shape: bf16[288,32], index: 1, kind: input, shape index: {}]
  %s2 = inlined_call_operand.vmem [shape: f32[1,32], index: 2, kind: input, shape index: {}]
  %s3 = inlined_call_operand.vmem [shape: f32[1,32], index: 3, kind: input, shape index: {}]
  %s4 = inlined_call_operand.vmem [shape: bf16[32,32], index: 4, kind: output, shape index: {}]
  %s5 = sld [smem:[#allocation0]]
  $region26: #{_lambda_.36} parent=0
    _
  %s7 = ssub.s32 1, %s5
  %s8 = scalar_select 0, %s7, %s5
  // Predicated region
  $region2: #{_lambda_.36} parent=0 // pred_check
    _
  $region3: #{_lambda_.36} parent=0 // pred_check_branch
    %10 = sbr.rel (0) target = $region5
  $region4: #{_lambda_.36} parent=0 // pred_region
    _
  $region5: #{_lambda_.36} parent=0 // pred_fallthru
    _
  // Predicated region
  $region6: #{_lambda_.36} parent=0 // pred_check
    _
  $region7: #{_lambda_.36} parent=0 // pred_check_branch
    %12 = sbr.rel (0) target = $region9
  $region8: #{_lambda_.36} parent=0 // pred_region
    _
  $region9: #{_lambda_.36} parent=0 // pred_fallthru
    _
  // Predicated region
  $region10: #{_lambda_.36} parent=0 // pred_check
    _
  $region11: #{_lambda_.36} parent=0 // pred_check_branch
    %14 = sbr.rel (0) target = $region13
  $region12: #{_lambda_.36} parent=0 // pred_region
    _
  $region13: #{_lambda_.36} parent=0 // pred_fallthru
    _
  // Predicated region
  $region14: #{_lambda_.36} parent=0 // pred_check
    _
  $region15: #{_lambda_.36} parent=0 // pred_check_branch
    %16 = sbr.rel (0) target = $region17
  $region16: #{_lambda_.36} parent=0 // pred_region
    _
  $region17: #{_lambda_.36} parent=0 // pred_fallthru
    _
  %v18 = vld [vmem:[%s0] sm:$0xff]
  %v19 = vld [vmem:[%s0 + $0x8] sm:$0xf]
  %v20 = vld [vmem:[%s0 + $0xc] sm:$0xff]
  %v21 = vld [vmem:[%s0 + $0x14] sm:$0xf]
  %v22 = vld [vmem:[%s0 + $0x18] sm:$0xff]
  %v23 = vld [vmem:[%s0 + $0x20] sm:$0xf]
  %v24 = vld [vmem:[%s0 + $0x24] sm:$0xff]
  %v25 = vld [vmem:[%s0 + $0x2c] sm:$0xf]
  %v26 = vld [vmem:[%s1] sm:$0xf]
  %v27 = vld [vmem:[%s1 + $0x4] sm:$0xf]
  %v28 = vld [vmem:[%s1 + $0x8] sm:$0xf]
  %v29 = vld [vmem:[%s1 + $0xc] sm:$0xf]
  %v30 = vld [vmem:[%s1 + $0x10] sm:$0xf]
  %v31 = vld [vmem:[%s1 + $0x14] sm:$0xf]
  %v32 = vld [vmem:[%s1 + $0x18] sm:$0xf]
  %v33 = vld [vmem:[%s1 + $0x1c] sm:$0xf]
  %v34 = vld [vmem:[%s1 + $0x20] sm:$0xf]
  %v35 = vld [vmem:[%s1 + $0x24] sm:$0xf]
  %v36 = vld [vmem:[%s1 + $0x28] sm:$0xf]
  %v37 = vld [vmem:[%s1 + $0x2c] sm:$0xf]
  %v38 = vld [vmem:[%s1 + $0x30] sm:$0xf]
  %v39 = vld [vmem:[%s1 + $0x34] sm:$0xf]
  %v40 = vld [vmem:[%s1 + $0x38] sm:$0xf]
  %v41 = vld [vmem:[%s1 + $0x3c] sm:$0xf]
  %v42 = vld [vmem:[%s1 + $0x40] sm:$0xf]
  %v43 = vld [vmem:[%s1 + $0x44] sm:$0xf]
  %v44 = vld [vmem:[%s1 + $0x48] sm:$0xf]
  %v45 = vld [vmem:[%s1 + $0x4c] sm:$0xf]
  %v46 = vld [vmem:[%s1 + $0x50] sm:$0xf]
  %v47 = vld [vmem:[%s1 + $0x54] sm:$0xf]
  %v48 = vld [vmem:[%s1 + $0x58] sm:$0xf]
  %v49 = vld [vmem:[%s1 + $0x5c] sm:$0xf]
  %v50 = vld [vmem:[%s1 + $0x60] sm:$0xf]
  %v51 = vld [vmem:[%s1 + $0x64] sm:$0xf]
  %v52 = vld [vmem:[%s1 + $0x68] sm:$0xf]
  %v53 = vld [vmem:[%s1 + $0x6c] sm:$0xf]
  %v54 = vld [vmem:[%s1 + $0x70] sm:$0xf]
  %v55 = vld [vmem:[%s1 + $0x74] sm:$0xf]
  %v56 = vld [vmem:[%s1 + $0x78] sm:$0xf]
  %v57 = vld [vmem:[%s1 + $0x7c] sm:$0xf]
  %v58 = vld [vmem:[%s1 + $0x80] sm:$0xf]
  %v59 = vld [vmem:[%s1 + $0x84] sm:$0xf]
  %v60 = vld [vmem:[%s1 + $0x88] sm:$0xf]
  %v61 = vld [vmem:[%s1 + $0x8c] sm:$0xf]
  %v70 = vunpack.c.l.b16 %v18
  %v71 = vunpack.c.h.b16 %v18
  %v72 = vunpack.c.l.b16 %v19
  %v73 = vunpack.c.l.b16 %v20
  %v74 = vunpack.c.h.b16 %v20
  %v75 = vunpack.c.l.b16 %v21
  %v76 = vunpack.c.l.b16 %v22
  %v77 = vunpack.c.h.b16 %v22
  %v78 = vunpack.c.l.b16 %v23
  %v79 = vunpack.c.l.b16 %v24
  %v80 = vunpack.c.h.b16 %v24
  %v81 = vunpack.c.l.b16 %v25
  %v82 = vpack.c.b16 %v73, %v70
  %v83 = vpack.c.b16 %v74, %v71
  %v84 = vpack.c.b16 %v75, %v72
  %v85 = vpack.c.b16 %v79, %v76
  %v86 = vpack.c.b16 %v80, %v77
  %v87 = vpack.c.b16 %v81, %v78
  %v128 = vunpack.c.l.b16 %v26
  %v129 = vunpack.c.l.b16 %v27
  %v130 = vunpack.c.l.b16 %v28
  %v131 = vunpack.c.l.b16 %v29
  %v132 = vunpack.c.l.b16 %v30
  %v133 = vunpack.c.l.b16 %v31
  %v134 = vunpack.c.l.b16 %v32
  %v135 = vunpack.c.l.b16 %v33
  %v136 = vunpack.c.l.b16 %v34
  %v137 = vunpack.c.l.b16 %v35
  %v138 = vunpack.c.l.b16 %v36
  %v139 = vunpack.c.l.b16 %v37
  %v140 = vunpack.c.l.b16 %v38
  %v141 = vunpack.c.l.b16 %v39
  %v142 = vunpack.c.l.b16 %v40
  %v143 = vunpack.c.l.b16 %v41
  %v144 = vunpack.c.l.b16 %v42
  %v145 = vunpack.c.l.b16 %v43
  %v146 = vunpack.c.l.b16 %v44
  %v147 = vunpack.c.l.b16 %v45
  %v148 = vunpack.c.l.b16 %v46
  %v149 = vunpack.c.l.b16 %v47
  %v150 = vunpack.c.l.b16 %v48
  %v151 = vunpack.c.l.b16 %v49
  %v152 = vunpack.c.l.b16 %v50
  %v153 = vunpack.c.l.b16 %v51
  %v154 = vunpack.c.l.b16 %v52
  %v155 = vunpack.c.l.b16 %v53
  %v156 = vunpack.c.l.b16 %v54
  %v157 = vunpack.c.l.b16 %v55
  %v158 = vunpack.c.l.b16 %v56
  %v159 = vunpack.c.l.b16 %v57
  %v160 = vunpack.c.l.b16 %v58
  %v161 = vunpack.c.l.b16 %v59
  %v162 = vunpack.c.l.b16 %v60
  %v163 = vunpack.c.l.b16 %v61
  %v164 = vpack.c.b16 %v129, %v128
  %v165 = vpack.c.b16 %v131, %v130
  %v166 = vpack.c.b16 %v133, %v132
  %v167 = vpack.c.b16 %v135, %v134
  %v168 = vpack.c.b16 %v137, %v136
  %v169 = vpack.c.b16 %v139, %v138
  %v170 = vpack.c.b16 %v141, %v140
  %v171 = vpack.c.b16 %v143, %v142
  %v172 = vpack.c.b16 %v145, %v144
  %v173 = vpack.c.b16 %v147, %v146
  %v174 = vpack.c.b16 %v149, %v148
  %v175 = vpack.c.b16 %v151, %v150
  %v176 = vpack.c.b16 %v153, %v152
  %v177 = vpack.c.b16 %v155, %v154
  %v178 = vpack.c.b16 %v157, %v156
  %v179 = vpack.c.b16 %v159, %v158
  %v180 = vpack.c.b16 %v161, %v160
  %v181 = vpack.c.b16 %v163, %v162
  %vm200 = vcmask 261120
  %v202 = vsel %vm200, %v84, 0
  %v205 = vsel %vm200, %v87, 0
  %207 = vmatprep.subr.bf16.mxu0 0
  %208 = vmatpush1.bf16.msra.mxu0 %v164
  %209 = vmatprep.subr.bf16.mxu0 0
  %210 = vmatpush1.bf16.msra.mxu0 %v165
  %211 = vmatprep.subr.bf16.mxu0 0
  %212 = vmatpush1.bf16.msra.mxu0 %v166
  %213 = vmatprep.subr.bf16.mxu0 0
  %214 = vmatpush1.bf16.msra.mxu0 %v167
  %215 = vmatprep.subr.bf16.mxu0 0
  %216 = vmatpush1.bf16.msra.mxu0 %v168
  %217 = vmatprep.subr.bf16.mxu0 0
  %218 = vmatpush1.bf16.msra.mxu0 %v169
  %219 = vmatprep.subr.bf16.mxu0 0
  %220 = vmatpush1.bf16.msra.mxu0 %v170
  %221 = vmatprep.subr.bf16.mxu0 0
  %222 = vmatpush1.bf16.msra.mxu0 %v171
  %223 = vmatprep.subr.bf16.mxu0 0
  %224 = vmatpush1.bf16.msra.mxu0 %v172
  %225 = vmatprep.subr.bf16.mxu0 0
  %226 = vmatpush1.bf16.msra.mxu0 %v173
  %227 = vmatprep.subr.bf16.mxu0 0
  %228 = vmatpush1.bf16.msra.mxu0 %v174
  %229 = vmatprep.subr.bf16.mxu0 0
  %230 = vmatpush1.bf16.msra.mxu0 %v175
  %231 = vmatprep.subr.bf16.mxu0 0
  %232 = vmatpush1.bf16.msra.mxu0 %v176
  %233 = vmatprep.subr.bf16.mxu0 0
  %234 = vmatpush1.bf16.msra.mxu0 %v177
  %235 = vmatprep.subr.bf16.mxu0 0
  %236 = vmatpush1.bf16.msra.mxu0 %v178
  %237 = vmatprep.subr.bf16.mxu0 0
  %238 = vmatpush1.bf16.msra.mxu0 %v179
  %239 = vmatprep.mubr.bf16.mxu0 %v83
  %240 = vmatmul.mubr.bf16.gmra.mrb[0].mxu0 %v82
  %v241 = vpop.f32.mrb[0].mxu0
  %v242 = vadd.f32 0.0, %v241
  %v243 = vpop.f32.mrb[0].mxu0
  %v244 = vpop.f32.mrb[0].mxu0
  %v245 = vadd.f32 0.0, %v244
  %v246 = vpop.f32.mrb[0].mxu0
  %247 = vmatprep.mubr.bf16.mxu0 %v86
  %248 = vmatmul.mubr.bf16.gmra.mrb[0].mxu0 %v85
  %v249 = vpop.f32.mrb[0].mxu0
  %v250 = vadd.f32 0.0, %v249
  %v251 = vpop.f32.mrb[0].mxu0
  %v252 = vpop.f32.mrb[0].mxu0
  %v253 = vadd.f32 0.0, %v252
  %v254 = vpop.f32.mrb[0].mxu0
  %255 = vdwg.mxu0
  %256 = vmatprep.subr.bf16.mxu0 0
  %257 = vmatpush1.bf16.msra.mxu0 %v180
  %258 = vmatprep.subr.bf16.mxu0 0
  %259 = vmatpush1.bf16.msra.mxu0 %v181
  %260 = vmatprep.subr.bf16.mxu0 0
  %261 = vmatpush1.bf16.msra.mxu0 0
  %262 = vmatprep.subr.bf16.mxu0 0
  %263 = vmatpush1.bf16.msra.mxu0 0
  %264 = vmatprep.subr.bf16.mxu0 0
  %265 = vmatpush1.bf16.msra.mxu0 0
  %266 = vmatprep.subr.bf16.mxu0 0
  %267 = vmatpush1.bf16.msra.mxu0 0
  %268 = vmatprep.subr.bf16.mxu0 0
  %269 = vmatpush1.bf16.msra.mxu0 0
  %270 = vmatprep.subr.bf16.mxu0 0
  %271 = vmatpush1.bf16.msra.mxu0 0
  %272 = vmatprep.subr.bf16.mxu0 0
  %273 = vmatpush1.bf16.msra.mxu0 0
  %274 = vmatprep.subr.bf16.mxu0 0
  %275 = vmatpush1.bf16.msra.mxu0 0
  %276 = vmatprep.subr.bf16.mxu0 0
  %277 = vmatpush1.bf16.msra.mxu0 0
  %278 = vmatprep.subr.bf16.mxu0 0
  %279 = vmatpush1.bf16.msra.mxu0 0
  %280 = vmatprep.subr.bf16.mxu0 0
  %281 = vmatpush1.bf16.msra.mxu0 0
  %282 = vmatprep.subr.bf16.mxu0 0
  %283 = vmatpush1.bf16.msra.mxu0 0
  %284 = vmatprep.subr.bf16.mxu0 0
  %285 = vmatpush1.bf16.msra.mxu0 0
  %286 = vmatprep.subr.bf16.mxu0 0
  %287 = vmatpush1.bf16.msra.mxu0 0
  %288 = vmatprep.mubr.bf16.mxu0 0
  %289 = vmatmul.mubr.bf16.gmra.mrb[0].mxu0 %v202
  %v290 = vpop.f32.mrb[0].mxu0
  %v291 = vadd.f32 %v242, %v290
  %v292 = vpop.f32.mrb[0].mxu0
  %v293 = vpop.f32.mrb[0].mxu0
  %v294 = vadd.f32 %v245, %v293
  %v295 = vpop.f32.mrb[0].mxu0
  %296 = vmatprep.mubr.bf16.mxu0 0
  %297 = vmatmul.mubr.bf16.gmra.mrb[0].mxu0 %v205
  %v298 = vpop.f32.mrb[0].mxu0
  %v299 = vadd.f32 %v250, %v298
  %v300 = vpop.f32.mrb[0].mxu0
  %v301 = vpop.f32.mrb[0].mxu0
  %v302 = vadd.f32 %v253, %v301
  %v303 = vpop.f32.mrb[0].mxu0
  %304 = vdwg.mxu0
  %v305 = vld [vmem:[%s2] sm:$0x1]
  %v307 = vlaneseq
  %v308 = vshrl.u32 %v307, 7
  %v309 = vsub.s32 0, %v308
  %v310 = vrot.slane %v305, %v309
  %v312 = vmul.f32 %v291, %v310
  %v313 = vmul.f32 %v294, %v310
  %v314 = vmul.f32 %v299, %v310
  %v315 = vmul.f32 %v302, %v310
  %v316 = vld [vmem:[%s3] sm:$0x1]
  %v318 = vlaneseq
  %v319 = vshrl.u32 %v318, 7
  %v320 = vsub.s32 0, %v319
  %v321 = vrot.slane %v316, %v320
  %v323 = vadd.f32 %v312, %v321
  %v324 = vadd.f32 %v313, %v321
  %v325 = vadd.f32 %v314, %v321
  %v326 = vadd.f32 %v315, %v321
  %v327 = vmax.f32 %v323, 0.0
  %v328 = vmax.f32 %v324, 0.0
  %v329 = vmax.f32 %v325, 0.0
  %v330 = vmax.f32 %v326, 0.0
  %v331 = vpack.c.bf16 %v328, %v327
  %v332 = vpack.c.bf16 %v330, %v329
  %v335 = vunpack.c.l.b16 %v331
  %v336 = vunpack.c.h.b16 %v331
  %v337 = vunpack.c.l.b16 %v332
  %v338 = vunpack.c.h.b16 %v332
  %v339 = vpack.c.b16 %v335, %v335
  %v340 = vpack.c.b16 %v336, %v336
  %v341 = vpack.c.b16 %v337, %v337
  %v342 = vpack.c.b16 %v338, %v338
  %vm347 = vcmask 257024
  %348 = vst.msk [vmem:[%s4] sm:$0xf] %vm347, %v339
  %349 = vst.msk [vmem:[%s4 + $0x4] sm:$0xf] %vm347, %v340
  %350 = vst.msk [vmem:[%s4 + $0x8] sm:$0xf] %vm347, %v341
  %351 = vst.msk [vmem:[%s4 + $0xc] sm:$0xf] %vm347, %v342
  // Predicated region
  $region18: #{_lambda_.36} parent=0 // pred_check
    _
  $region19: #{_lambda_.36} parent=0 // pred_check_branch
    %353 = sbr.rel (0) target = $region21
  $region20: #{_lambda_.36} parent=0 // pred_region
    _
  $region21: #{_lambda_.36} parent=0 // pred_fallthru
    _
  // Predicated region
  $region22: #{_lambda_.36} parent=0 // pred_check
    _
  $region23: #{_lambda_.36} parent=0 // pred_check_branch
    %355 = sbr.rel (0) target = $region25
  $region24: #{_lambda_.36} parent=0 // pred_region
    _
  $region25: #{_lambda_.36} parent=0 // pred_fallthru
    _

// kernel: _lambda_.38
$region0: #{_lambda_.38}
  #allocation0 [shape = 'u32[]', space=smem, size = 0x4, offset = 0x4, fixed_abs, tag = 'smem constant byte address 0x4 - core index']
  #allocation1 [shape = 'u32[144,128]{1,0:T(1,128)}', space=vmem, size = 0x12000, scoped, tag = 'internal scratch']
  %s0 = inlined_call_operand.vmem [shape: bf16[8,288], index: 0, kind: input, shape index: {}]
  %s1 = inlined_call_operand.vmem [shape: bf16[288,64], index: 1, kind: input, shape index: {}]
  %s2 = inlined_call_operand.vmem [shape: f32[1,64], index: 2, kind: input, shape index: {}]
  %s3 = inlined_call_operand.vmem [shape: f32[1,64], index: 3, kind: input, shape index: {}]
  %s4 = inlined_call_operand.vmem [shape: bf16[8,64], index: 4, kind: output, shape index: {}]
  %s5 = sld [smem:[#allocation0]]
  $region26: #{_lambda_.38} parent=0
    _
  %s7 = ssub.s32 1, %s5
  %s8 = scalar_select 0, %s7, %s5
  // Predicated region
  $region2: #{_lambda_.38} parent=0 // pred_check
    _
  $region3: #{_lambda_.38} parent=0 // pred_check_branch
    %10 = sbr.rel (0) target = $region5
  $region4: #{_lambda_.38} parent=0 // pred_region
    _
  $region5: #{_lambda_.38} parent=0 // pred_fallthru
    _
  // Predicated region
  $region6: #{_lambda_.38} parent=0 // pred_check
    _
  $region7: #{_lambda_.38} parent=0 // pred_check_branch
    %12 = sbr.rel (0) target = $region9
  $region8: #{_lambda_.38} parent=0 // pred_region
    _
  $region9: #{_lambda_.38} parent=0 // pred_fallthru
    _
  // Predicated region
  $region10: #{_lambda_.38} parent=0 // pred_check
    _
  $region11: #{_lambda_.38} parent=0 // pred_check_branch
    %14 = sbr.rel (0) target = $region13
  $region12: #{_lambda_.38} parent=0 // pred_region
    _
  $region13: #{_lambda_.38} parent=0 // pred_fallthru
    _
  // Predicated region
  $region14: #{_lambda_.38} parent=0 // pred_check
    _
  $region15: #{_lambda_.38} parent=0 // pred_check_branch
    %16 = sbr.rel (0) target = $region17
  $region16: #{_lambda_.38} parent=0 // pred_region
    _
  $region17: #{_lambda_.38} parent=0 // pred_fallthru
    _
  %v18 = vld [vmem:[%s0] sm:$0xff]
  %v19 = vld [vmem:[%s0 + $0x8] sm:$0xf]
  %v20 = vld [vmem:[%s1] sm:$0xf]
  %v21 = vld [vmem:[%s1 + $0x4] sm:$0xf]
  %v22 = vld [vmem:[%s1 + $0x8] sm:$0xf]
  %v23 = vld [vmem:[%s1 + $0xc] sm:$0xf]
  %v24 = vld [vmem:[%s1 + $0x10] sm:$0xf]
  %v25 = vld [vmem:[%s1 + $0x14] sm:$0xf]
  %v26 = vld [vmem:[%s1 + $0x18] sm:$0xf]
  %v27 = vld [vmem:[%s1 + $0x1c] sm:$0xf]
  %v28 = vld [vmem:[%s1 + $0x20] sm:$0xf]
  %v29 = vld [vmem:[%s1 + $0x24] sm:$0xf]
  %v30 = vld [vmem:[%s1 + $0x28] sm:$0xf]
  %v31 = vld [vmem:[%s1 + $0x2c] sm:$0xf]
  %v32 = vld [vmem:[%s1 + $0x30] sm:$0xf]
  %v33 = vld [vmem:[%s1 + $0x34] sm:$0xf]
  %v34 = vld [vmem:[%s1 + $0x38] sm:$0xf]
  %v35 = vld [vmem:[%s1 + $0x3c] sm:$0xf]
  %v36 = vld [vmem:[%s1 + $0x40] sm:$0xf]
  %v37 = vld [vmem:[%s1 + $0x44] sm:$0xf]
  %v38 = vld [vmem:[%s1 + $0x48] sm:$0xf]
  %v39 = vld [vmem:[%s1 + $0x4c] sm:$0xf]
  %v40 = vld [vmem:[%s1 + $0x50] sm:$0xf]
  %v41 = vld [vmem:[%s1 + $0x54] sm:$0xf]
  %v42 = vld [vmem:[%s1 + $0x58] sm:$0xf]
  %v43 = vld [vmem:[%s1 + $0x5c] sm:$0xf]
  %v44 = vld [vmem:[%s1 + $0x60] sm:$0xf]
  %v45 = vld [vmem:[%s1 + $0x64] sm:$0xf]
  %v46 = vld [vmem:[%s1 + $0x68] sm:$0xf]
  %v47 = vld [vmem:[%s1 + $0x6c] sm:$0xf]
  %v48 = vld [vmem:[%s1 + $0x70] sm:$0xf]
  %v49 = vld [vmem:[%s1 + $0x74] sm:$0xf]
  %v50 = vld [vmem:[%s1 + $0x78] sm:$0xf]
  %v51 = vld [vmem:[%s1 + $0x7c] sm:$0xf]
  %v52 = vld [vmem:[%s1 + $0x80] sm:$0xf]
  %v53 = vld [vmem:[%s1 + $0x84] sm:$0xf]
  %v54 = vld [vmem:[%s1 + $0x88] sm:$0xf]
  %v55 = vld [vmem:[%s1 + $0x8c] sm:$0xf]
  %v58 = vunpack.c.l.b16 %v18
  %v59 = vunpack.c.h.b16 %v18
  %v60 = vunpack.c.l.b16 %v19
  %v61 = vpack.c.b16 %v58, %v58
  %v62 = vpack.c.b16 %v59, %v59
  %v63 = vpack.c.b16 %v60, %v60
  %v102 = vunpack.c.l.b16 %v20
  %v103 = vunpack.c.l.b16 %v21
  %v104 = vunpack.c.l.b16 %v22
  %v105 = vunpack.c.l.b16 %v23
  %v106 = vunpack.c.l.b16 %v24
  %v107 = vunpack.c.l.b16 %v25
  %v108 = vunpack.c.l.b16 %v26
  %v109 = vunpack.c.l.b16 %v27
  %v110 = vunpack.c.l.b16 %v28
  %v111 = vunpack.c.l.b16 %v29
  %v112 = vunpack.c.l.b16 %v30
  %v113 = vunpack.c.l.b16 %v31
  %v114 = vunpack.c.l.b16 %v32
  %v115 = vunpack.c.l.b16 %v33
  %v116 = vunpack.c.l.b16 %v34
  %v117 = vunpack.c.l.b16 %v35
  %v118 = vunpack.c.l.b16 %v36
  %v119 = vunpack.c.l.b16 %v37
  %v120 = vunpack.c.l.b16 %v38
  %v121 = vunpack.c.l.b16 %v39
  %v122 = vunpack.c.l.b16 %v40
  %v123 = vunpack.c.l.b16 %v41
  %v124 = vunpack.c.l.b16 %v42
  %v125 = vunpack.c.l.b16 %v43
  %v126 = vunpack.c.l.b16 %v44
  %v127 = vunpack.c.l.b16 %v45
  %v128 = vunpack.c.l.b16 %v46
  %v129 = vunpack.c.l.b16 %v47
  %v130 = vunpack.c.l.b16 %v48
  %v131 = vunpack.c.l.b16 %v49
  %v132 = vunpack.c.l.b16 %v50
  %v133 = vunpack.c.l.b16 %v51
  %v134 = vunpack.c.l.b16 %v52
  %v135 = vunpack.c.l.b16 %v53
  %v136 = vunpack.c.l.b16 %v54
  %v137 = vunpack.c.l.b16 %v55
  %v138 = vpack.c.b16 %v103, %v102
  %v139 = vpack.c.b16 %v105, %v104
  %v140 = vpack.c.b16 %v107, %v106
  %v141 = vpack.c.b16 %v109, %v108
  %v142 = vpack.c.b16 %v111, %v110
  %v143 = vpack.c.b16 %v113, %v112
  %v144 = vpack.c.b16 %v115, %v114
  %v145 = vpack.c.b16 %v117, %v116
  %v146 = vpack.c.b16 %v119, %v118
  %v147 = vpack.c.b16 %v121, %v120
  %v148 = vpack.c.b16 %v123, %v122
  %v149 = vpack.c.b16 %v125, %v124
  %v150 = vpack.c.b16 %v127, %v126
  %v151 = vpack.c.b16 %v129, %v128
  %v152 = vpack.c.b16 %v131, %v130
  %v153 = vpack.c.b16 %v133, %v132
  %v154 = vpack.c.b16 %v135, %v134
  %v155 = vpack.c.b16 %v137, %v136
  %vm174 = vcmask 261120
  %v176 = vsel %vm174, %v63, 0
  %178 = vmatprep.subr.bf16.mxu0 0
  %179 = vmatpush1.bf16.msra.mxu0 %v138
  %180 = vmatprep.subr.bf16.mxu0 0
  %181 = vmatpush1.bf16.msra.mxu0 %v139
  %182 = vmatprep.subr.bf16.mxu0 0
  %183 = vmatpush1.bf16.msra.mxu0 %v140
  %184 = vmatprep.subr.bf16.mxu0 0
  %185 = vmatpush1.bf16.msra.mxu0 %v141
  %186 = vmatprep.subr.bf16.mxu0 0
  %187 = vmatpush1.bf16.msra.mxu0 %v142
  %188 = vmatprep.subr.bf16.mxu0 0
  %189 = vmatpush1.bf16.msra.mxu0 %v143
  %190 = vmatprep.subr.bf16.mxu0 0
  %191 = vmatpush1.bf16.msra.mxu0 %v144
  %192 = vmatprep.subr.bf16.mxu0 0
  %193 = vmatpush1.bf16.msra.mxu0 %v145
  %194 = vmatprep.subr.bf16.mxu0 0
  %195 = vmatpush1.bf16.msra.mxu0 %v146
  %196 = vmatprep.subr.bf16.mxu0 0
  %197 = vmatpush1.bf16.msra.mxu0 %v147
  %198 = vmatprep.subr.bf16.mxu0 0
  %199 = vmatpush1.bf16.msra.mxu0 %v148
  %200 = vmatprep.subr.bf16.mxu0 0
  %201 = vmatpush1.bf16.msra.mxu0 %v149
  %202 = vmatprep.subr.bf16.mxu0 0
  %203 = vmatpush1.bf16.msra.mxu0 %v150
  %204 = vmatprep.subr.bf16.mxu0 0
  %205 = vmatpush1.bf16.msra.mxu0 %v151
  %206 = vmatprep.subr.bf16.mxu0 0
  %207 = vmatpush1.bf16.msra.mxu0 %v152
  %208 = vmatprep.subr.bf16.mxu0 0
  %209 = vmatpush1.bf16.msra.mxu0 %v153
  %210 = vmatprep.mubr.bf16.mxu0 %v62
  %211 = vmatmul.mubr.bf16.gmra.mrb[0].mxu0 %v61
  %v212 = vpop.f32.mrb[0].mxu0
  %v213 = vadd.f32 0.0, %v212
  %v214 = vpop.f32.mrb[0].mxu0
  %v215 = vpop.f32.mrb[0].mxu0
  %v216 = vpop.f32.mrb[0].mxu0
  %217 = vdwg.mxu0
  %218 = vmatprep.subr.bf16.mxu0 0
  %219 = vmatpush1.bf16.msra.mxu0 %v154
  %220 = vmatprep.subr.bf16.mxu0 0
  %221 = vmatpush1.bf16.msra.mxu0 %v155
  %222 = vmatprep.subr.bf16.mxu0 0
  %223 = vmatpush1.bf16.msra.mxu0 0
  %224 = vmatprep.subr.bf16.mxu0 0
  %225 = vmatpush1.bf16.msra.mxu0 0
  %226 = vmatprep.subr.bf16.mxu0 0
  %227 = vmatpush1.bf16.msra.mxu0 0
  %228 = vmatprep.subr.bf16.mxu0 0
  %229 = vmatpush1.bf16.msra.mxu0 0
  %230 = vmatprep.subr.bf16.mxu0 0
  %231 = vmatpush1.bf16.msra.mxu0 0
  %232 = vmatprep.subr.bf16.mxu0 0
  %233 = vmatpush1.bf16.msra.mxu0 0
  %234 = vmatprep.subr.bf16.mxu0 0
  %235 = vmatpush1.bf16.msra.mxu0 0
  %236 = vmatprep.subr.bf16.mxu0 0
  %237 = vmatpush1.bf16.msra.mxu0 0
  %238 = vmatprep.subr.bf16.mxu0 0
  %239 = vmatpush1.bf16.msra.mxu0 0
  %240 = vmatprep.subr.bf16.mxu0 0
  %241 = vmatpush1.bf16.msra.mxu0 0
  %242 = vmatprep.subr.bf16.mxu0 0
  %243 = vmatpush1.bf16.msra.mxu0 0
  %244 = vmatprep.subr.bf16.mxu0 0
  %245 = vmatpush1.bf16.msra.mxu0 0
  %246 = vmatprep.subr.bf16.mxu0 0
  %247 = vmatpush1.bf16.msra.mxu0 0
  %248 = vmatprep.subr.bf16.mxu0 0
  %249 = vmatpush1.bf16.msra.mxu0 0
  %250 = vmatprep.mubr.bf16.mxu0 0
  %251 = vmatmul.mubr.bf16.gmra.mrb[0].mxu0 %v176
  %v252 = vpop.f32.mrb[0].mxu0
  %v253 = vadd.f32 %v213, %v252
  %v254 = vpop.f32.mrb[0].mxu0
  %v255 = vpop.f32.mrb[0].mxu0
  %v256 = vpop.f32.mrb[0].mxu0
  %257 = vdwg.mxu0
  %v258 = vld [vmem:[%s2] sm:$0x1]
  %v260 = vlaneseq
  %v261 = vshrl.u32 %v260, 7
  %v262 = vsub.s32 0, %v261
  %v263 = vrot.slane %v258, %v262
  %v265 = vmul.f32 %v253, %v263
  %v266 = vld [vmem:[%s3] sm:$0x1]
  %v268 = vlaneseq
  %v269 = vshrl.u32 %v268, 7
  %v270 = vsub.s32 0, %v269
  %v271 = vrot.slane %v266, %v270
  %v273 = vadd.f32 %v265, %v271
  %v274 = vmax.f32 %v273, 0.0
  %v275 = vpack.c.bf16 %v274, %v274
  %vm276 = vcmask 519168
  %277 = vst.msk [vmem:[%s4] sm:$0xf] %vm276, %v275
  // Predicated region
  $region18: #{_lambda_.38} parent=0 // pred_check
    _
  $region19: #{_lambda_.38} parent=0 // pred_check_branch
    %279 = sbr.rel (0) target = $region21
  $region20: #{_lambda_.38} parent=0 // pred_region
    _
  $region21: #{_lambda_.38} parent=0 // pred_fallthru
    _
  // Predicated region
  $region22: #{_lambda_.38} parent=0 // pred_check
    _
  $region23: #{_lambda_.38} parent=0 // pred_check_branch
    %281 = sbr.rel (0) target = $region25
  $region24: #{_lambda_.38} parent=0 // pred_region
    _
  $region25: #{_lambda_.38} parent=0 // pred_fallthru
    _

// kernel: _lambda_.39
$region0: #{_lambda_.39}
  #allocation0 [shape = 'u32[]', space=smem, size = 0x4, offset = 0x4, fixed_abs, tag = 'smem constant byte address 0x4 - core index']
  #allocation1 [shape = 'u32[144,128]{1,0:T(1,128)}', space=vmem, size = 0x12000, scoped, tag = 'internal scratch']
  %s0 = inlined_call_operand.vmem [shape: bf16[8,32], index: 0, kind: input, shape index: {}]
  %s1 = inlined_call_operand.vmem [shape: bf16[32,64], index: 1, kind: input, shape index: {}]
  %s2 = inlined_call_operand.vmem [shape: f32[1,64], index: 2, kind: input, shape index: {}]
  %s3 = inlined_call_operand.vmem [shape: f32[1,64], index: 3, kind: input, shape index: {}]
  %s4 = inlined_call_operand.vmem [shape: bf16[8,64], index: 4, kind: output, shape index: {}]
  %s5 = sld [smem:[#allocation0]]
  $region26: #{_lambda_.39} parent=0
    _
  %s7 = ssub.s32 1, %s5
  %s8 = scalar_select 0, %s7, %s5
  // Predicated region
  $region2: #{_lambda_.39} parent=0 // pred_check
    _
  $region3: #{_lambda_.39} parent=0 // pred_check_branch
    %10 = sbr.rel (0) target = $region5
  $region4: #{_lambda_.39} parent=0 // pred_region
    _
  $region5: #{_lambda_.39} parent=0 // pred_fallthru
    _
  // Predicated region
  $region6: #{_lambda_.39} parent=0 // pred_check
    _
  $region7: #{_lambda_.39} parent=0 // pred_check_branch
    %12 = sbr.rel (0) target = $region9
  $region8: #{_lambda_.39} parent=0 // pred_region
    _
  $region9: #{_lambda_.39} parent=0 // pred_fallthru
    _
  // Predicated region
  $region10: #{_lambda_.39} parent=0 // pred_check
    _
  $region11: #{_lambda_.39} parent=0 // pred_check_branch
    %14 = sbr.rel (0) target = $region13
  $region12: #{_lambda_.39} parent=0 // pred_region
    _
  $region13: #{_lambda_.39} parent=0 // pred_fallthru
    _
  // Predicated region
  $region14: #{_lambda_.39} parent=0 // pred_check
    _
  $region15: #{_lambda_.39} parent=0 // pred_check_branch
    %16 = sbr.rel (0) target = $region17
  $region16: #{_lambda_.39} parent=0 // pred_region
    _
  $region17: #{_lambda_.39} parent=0 // pred_fallthru
    _
  %v18 = vld [vmem:[%s0] sm:$0xf]
  %v19 = vld [vmem:[%s1] sm:$0xf]
  %v20 = vld [vmem:[%s1 + $0x4] sm:$0xf]
  %v21 = vld [vmem:[%s1 + $0x8] sm:$0xf]
  %v22 = vld [vmem:[%s1 + $0xc] sm:$0xf]
  %v27 = vunpack.c.l.b16 %v19
  %v28 = vunpack.c.l.b16 %v20
  %v29 = vunpack.c.l.b16 %v21
  %v30 = vunpack.c.l.b16 %v22
  %v31 = vpack.c.b16 %v28, %v27
  %v32 = vpack.c.b16 %v30, %v29
  %vm35 = vcmask 261120
  %v37 = vsel %vm35, %v18, 0
  %39 = vmatprep.subr.bf16.mxu0 0
  %40 = vmatpush1.bf16.msra.mxu0 %v31
  %41 = vmatprep.subr.bf16.mxu0 0
  %42 = vmatpush1.bf16.msra.mxu0 %v32
  %43 = vmatprep.subr.bf16.mxu0 0
  %44 = vmatpush1.bf16.msra.mxu0 0
  %45 = vmatprep.subr.bf16.mxu0 0
  %46 = vmatpush1.bf16.msra.mxu0 0
  %47 = vmatprep.subr.bf16.mxu0 0
  %48 = vmatpush1.bf16.msra.mxu0 0
  %49 = vmatprep.subr.bf16.mxu0 0
  %50 = vmatpush1.bf16.msra.mxu0 0
  %51 = vmatprep.subr.bf16.mxu0 0
  %52 = vmatpush1.bf16.msra.mxu0 0
  %53 = vmatprep.subr.bf16.mxu0 0
  %54 = vmatpush1.bf16.msra.mxu0 0
  %55 = vmatprep.subr.bf16.mxu0 0
  %56 = vmatpush1.bf16.msra.mxu0 0
  %57 = vmatprep.subr.bf16.mxu0 0
  %58 = vmatpush1.bf16.msra.mxu0 0
  %59 = vmatprep.subr.bf16.mxu0 0
  %60 = vmatpush1.bf16.msra.mxu0 0
  %61 = vmatprep.subr.bf16.mxu0 0
  %62 = vmatpush1.bf16.msra.mxu0 0
  %63 = vmatprep.subr.bf16.mxu0 0
  %64 = vmatpush1.bf16.msra.mxu0 0
  %65 = vmatprep.subr.bf16.mxu0 0
  %66 = vmatpush1.bf16.msra.mxu0 0
  %67 = vmatprep.subr.bf16.mxu0 0
  %68 = vmatpush1.bf16.msra.mxu0 0
  %69 = vmatprep.subr.bf16.mxu0 0
  %70 = vmatpush1.bf16.msra.mxu0 0
  %71 = vmatprep.mubr.bf16.mxu0 0
  %72 = vmatmul.mubr.bf16.gmra.mrb[0].mxu0 %v37
  %v73 = vpop.f32.mrb[0].mxu0
  %v74 = vadd.f32 0.0, %v73
  %v75 = vpop.f32.mrb[0].mxu0
  %v76 = vpop.f32.mrb[0].mxu0
  %v77 = vpop.f32.mrb[0].mxu0
  %78 = vdwg.mxu0
  %v79 = vld [vmem:[%s2] sm:$0x1]
  %v81 = vlaneseq
  %v82 = vshrl.u32 %v81, 7
  %v83 = vsub.s32 0, %v82
  %v84 = vrot.slane %v79, %v83
  %v86 = vmul.f32 %v74, %v84
  %v87 = vld [vmem:[%s3] sm:$0x1]
  %v89 = vlaneseq
  %v90 = vshrl.u32 %v89, 7
  %v91 = vsub.s32 0, %v90
  %v92 = vrot.slane %v87, %v91
  %v94 = vadd.f32 %v86, %v92
  %v95 = vpack.c.bf16 %v94, %v94
  %vm96 = vcmask 519168
  %97 = vst.msk [vmem:[%s4] sm:$0xf] %vm96, %v95
  // Predicated region
  $region18: #{_lambda_.39} parent=0 // pred_check
    _
  $region19: #{_lambda_.39} parent=0 // pred_check_branch
    %99 = sbr.rel (0) target = $region21
  $region20: #{_lambda_.39} parent=0 // pred_region
    _
  $region21: #{_lambda_.39} parent=0 // pred_fallthru
    _
  // Predicated region
  $region22: #{_lambda_.39} parent=0 // pred_check
    _
  $region23: #{_lambda_.39} parent=0 // pred_check_branch
    %101 = sbr.rel (0) target = $region25
  $region24: #{_lambda_.39} parent=0 // pred_region
    _
  $region25: #{_lambda_.39} parent=0 // pred_fallthru
    _

// kernel: _lambda_.40
$region0: #{_lambda_.40}
  #allocation0 [shape = 'u32[]', space=smem, size = 0x4, offset = 0x4, fixed_abs, tag = 'smem constant byte address 0x4 - core index']
  #allocation1 [shape = 'u32[144,128]{1,0:T(1,128)}', space=vmem, size = 0x12000, scoped, tag = 'internal scratch']
  %s0 = inlined_call_operand.vmem [shape: bf16[8,576], index: 0, kind: input, shape index: {}]
  %s1 = inlined_call_operand.vmem [shape: bf16[576,64], index: 1, kind: input, shape index: {}]
  %s2 = inlined_call_operand.vmem [shape: f32[1,64], index: 2, kind: input, shape index: {}]
  %s3 = inlined_call_operand.vmem [shape: f32[1,64], index: 3, kind: input, shape index: {}]
  %s4 = inlined_call_operand.vmem [shape: bf16[8,64], index: 4, kind: input, shape index: {}]
  %s5 = inlined_call_operand.vmem [shape: bf16[8,64], index: 5, kind: output, shape index: {}]
  %s6 = sld [smem:[#allocation0]]
  $region30: #{_lambda_.40} parent=0
    _
  %s8 = ssub.s32 1, %s6
  %s9 = scalar_select 0, %s8, %s6
  // Predicated region
  $region2: #{_lambda_.40} parent=0 // pred_check
    _
  $region3: #{_lambda_.40} parent=0 // pred_check_branch
    %11 = sbr.rel (0) target = $region5
  $region4: #{_lambda_.40} parent=0 // pred_region
    _
  $region5: #{_lambda_.40} parent=0 // pred_fallthru
    _
  // Predicated region
  $region6: #{_lambda_.40} parent=0 // pred_check
    _
  $region7: #{_lambda_.40} parent=0 // pred_check_branch
    %13 = sbr.rel (0) target = $region9
  $region8: #{_lambda_.40} parent=0 // pred_region
    _
  $region9: #{_lambda_.40} parent=0 // pred_fallthru
    _
  // Predicated region
  $region10: #{_lambda_.40} parent=0 // pred_check
    _
  $region11: #{_lambda_.40} parent=0 // pred_check_branch
    %15 = sbr.rel (0) target = $region13
  $region12: #{_lambda_.40} parent=0 // pred_region
    _
  $region13: #{_lambda_.40} parent=0 // pred_fallthru
    _
  // Predicated region
  $region14: #{_lambda_.40} parent=0 // pred_check
    _
  $region15: #{_lambda_.40} parent=0 // pred_check_branch
    %17 = sbr.rel (0) target = $region17
  $region16: #{_lambda_.40} parent=0 // pred_region
    _
  $region17: #{_lambda_.40} parent=0 // pred_fallthru
    _
  // Predicated region
  $region18: #{_lambda_.40} parent=0 // pred_check
    _
  $region19: #{_lambda_.40} parent=0 // pred_check_branch
    %19 = sbr.rel (0) target = $region21
  $region20: #{_lambda_.40} parent=0 // pred_region
    _
  $region21: #{_lambda_.40} parent=0 // pred_fallthru
    _
  %v21 = vld [vmem:[%s0] sm:$0xff]
  %v22 = vld [vmem:[%s0 + $0x8] sm:$0xff]
  %v23 = vld [vmem:[%s0 + $0x10] sm:$0xf]
  %v24 = vld [vmem:[%s1] sm:$0xf]
  %v25 = vld [vmem:[%s1 + $0x4] sm:$0xf]
  %v26 = vld [vmem:[%s1 + $0x8] sm:$0xf]
  %v27 = vld [vmem:[%s1 + $0xc] sm:$0xf]
  %v28 = vld [vmem:[%s1 + $0x10] sm:$0xf]
  %v29 = vld [vmem:[%s1 + $0x14] sm:$0xf]
  %v30 = vld [vmem:[%s1 + $0x18] sm:$0xf]
  %v31 = vld [vmem:[%s1 + $0x1c] sm:$0xf]
  %v32 = vld [vmem:[%s1 + $0x20] sm:$0xf]
  %v33 = vld [vmem:[%s1 + $0x24] sm:$0xf]
  %v34 = vld [vmem:[%s1 + $0x28] sm:$0xf]
  %v35 = vld [vmem:[%s1 + $0x2c] sm:$0xf]
  %v36 = vld [vmem:[%s1 + $0x30] sm:$0xf]
  %v37 = vld [vmem:[%s1 + $0x34] sm:$0xf]
  %v38 = vld [vmem:[%s1 + $0x38] sm:$0xf]
  %v39 = vld [vmem:[%s1 + $0x3c] sm:$0xf]
  %v40 = vld [vmem:[%s1 + $0x40] sm:$0xf]
  %v41 = vld [vmem:[%s1 + $0x44] sm:$0xf]
  %v42 = vld [vmem:[%s1 + $0x48] sm:$0xf]
  %v43 = vld [vmem:[%s1 + $0x4c] sm:$0xf]
  %v44 = vld [vmem:[%s1 + $0x50] sm:$0xf]
  %v45 = vld [vmem:[%s1 + $0x54] sm:$0xf]
  %v46 = vld [vmem:[%s1 + $0x58] sm:$0xf]
  %v47 = vld [vmem:[%s1 + $0x5c] sm:$0xf]
  %v48 = vld [vmem:[%s1 + $0x60] sm:$0xf]
  %v49 = vld [vmem:[%s1 + $0x64] sm:$0xf]
  %v50 = vld [vmem:[%s1 + $0x68] sm:$0xf]
  %v51 = vld [vmem:[%s1 + $0x6c] sm:$0xf]
  %v52 = vld [vmem:[%s1 + $0x70] sm:$0xf]
  %v53 = vld [vmem:[%s1 + $0x74] sm:$0xf]
  %v54 = vld [vmem:[%s1 + $0x78] sm:$0xf]
  %v55 = vld [vmem:[%s1 + $0x7c] sm:$0xf]
  %v56 = vld [vmem:[%s1 + $0x80] sm:$0xf]
  %v57 = vld [vmem:[%s1 + $0x84] sm:$0xf]
  %v58 = vld [vmem:[%s1 + $0x88] sm:$0xf]
  %v59 = vld [vmem:[%s1 + $0x8c] sm:$0xf]
  %v60 = vld [vmem:[%s1 + $0x90] sm:$0xf]
  %v61 = vld [vmem:[%s1 + $0x94] sm:$0xf]
  %v62 = vld [vmem:[%s1 + $0x98] sm:$0xf]
  %v63 = vld [vmem:[%s1 + $0x9c] sm:$0xf]
  %v64 = vld [vmem:[%s1 + $0xa0] sm:$0xf]
  %v65 = vld [vmem:[%s1 + $0xa4] sm:$0xf]
  %v66 = vld [vmem:[%s1 + $0xa8] sm:$0xf]
  %v67 = vld [vmem:[%s1 + $0xac] sm:$0xf]
  %v68 = vld [vmem:[%s1 + $0xb0] sm:$0xf]
  %v69 = vld [vmem:[%s1 + $0xb4] sm:$0xf]
  %v70 = vld [vmem:[%s1 + $0xb8] sm:$0xf]
  %v71 = vld [vmem:[%s1 + $0xbc] sm:$0xf]
  %v72 = vld [vmem:[%s1 + $0xc0] sm:$0xf]
  %v73 = vld [vmem:[%s1 + $0xc4] sm:$0xf]
  %v74 = vld [vmem:[%s1 + $0xc8] sm:$0xf]
  %v75 = vld [vmem:[%s1 + $0xcc] sm:$0xf]
  %v76 = vld [vmem:[%s1 + $0xd0] sm:$0xf]
  %v77 = vld [vmem:[%s1 + $0xd4] sm:$0xf]
  %v78 = vld [vmem:[%s1 + $0xd8] sm:$0xf]
  %v79 = vld [vmem:[%s1 + $0xdc] sm:$0xf]
  %v80 = vld [vmem:[%s1 + $0xe0] sm:$0xf]
  %v81 = vld [vmem:[%s1 + $0xe4] sm:$0xf]
  %v82 = vld [vmem:[%s1 + $0xe8] sm:$0xf]
  %v83 = vld [vmem:[%s1 + $0xec] sm:$0xf]
  %v84 = vld [vmem:[%s1 + $0xf0] sm:$0xf]
  %v85 = vld [vmem:[%s1 + $0xf4] sm:$0xf]
  %v86 = vld [vmem:[%s1 + $0xf8] sm:$0xf]
  %v87 = vld [vmem:[%s1 + $0xfc] sm:$0xf]
  %v88 = vld [vmem:[%s1 + $0x100] sm:$0xf]
  %v89 = vld [vmem:[%s1 + $0x104] sm:$0xf]
  %v90 = vld [vmem:[%s1 + $0x108] sm:$0xf]
  %v91 = vld [vmem:[%s1 + $0x10c] sm:$0xf]
  %v92 = vld [vmem:[%s1 + $0x110] sm:$0xf]
  %v93 = vld [vmem:[%s1 + $0x114] sm:$0xf]
  %v94 = vld [vmem:[%s1 + $0x118] sm:$0xf]
  %v95 = vld [vmem:[%s1 + $0x11c] sm:$0xf]
  %v99 = vunpack.c.l.b16 %v21
  %v100 = vunpack.c.h.b16 %v21
  %v101 = vunpack.c.l.b16 %v22
  %v102 = vunpack.c.h.b16 %v22
  %v103 = vunpack.c.l.b16 %v23
  %v104 = vpack.c.b16 %v99, %v99
  %v105 = vpack.c.b16 %v100, %v100
  %v106 = vpack.c.b16 %v101, %v101
  %v107 = vpack.c.b16 %v102, %v102
  %v108 = vpack.c.b16 %v103, %v103
  %v185 = vunpack.c.l.b16 %v24
  %v186 = vunpack.c.l.b16 %v25
  %v187 = vunpack.c.l.b16 %v26
  %v188 = vunpack.c.l.b16 %v27
  %v189 = vunpack.c.l.b16 %v28
  %v190 = vunpack.c.l.b16 %v29
  %v191 = vunpack.c.l.b16 %v30
  %v192 = vunpack.c.l.b16 %v31
  %v193 = vunpack.c.l.b16 %v32
  %v194 = vunpack.c.l.b16 %v33
  %v195 = vunpack.c.l.b16 %v34
  %v196 = vunpack.c.l.b16 %v35
  %v197 = vunpack.c.l.b16 %v36
  %v198 = vunpack.c.l.b16 %v37
  %v199 = vunpack.c.l.b16 %v38
  %v200 = vunpack.c.l.b16 %v39
  %v201 = vunpack.c.l.b16 %v40
  %v202 = vunpack.c.l.b16 %v41
  %v203 = vunpack.c.l.b16 %v42
  %v204 = vunpack.c.l.b16 %v43
  %v205 = vunpack.c.l.b16 %v44
  %v206 = vunpack.c.l.b16 %v45
  %v207 = vunpack.c.l.b16 %v46
  %v208 = vunpack.c.l.b16 %v47
  %v209 = vunpack.c.l.b16 %v48
  %v210 = vunpack.c.l.b16 %v49
  %v211 = vunpack.c.l.b16 %v50
  %v212 = vunpack.c.l.b16 %v51
  %v213 = vunpack.c.l.b16 %v52
  %v214 = vunpack.c.l.b16 %v53
  %v215 = vunpack.c.l.b16 %v54
  %v216 = vunpack.c.l.b16 %v55
  %v217 = vunpack.c.l.b16 %v56
  %v218 = vunpack.c.l.b16 %v57
  %v219 = vunpack.c.l.b16 %v58
  %v220 = vunpack.c.l.b16 %v59
  %v221 = vunpack.c.l.b16 %v60
  %v222 = vunpack.c.l.b16 %v61
  %v223 = vunpack.c.l.b16 %v62
  %v224 = vunpack.c.l.b16 %v63
  %v225 = vunpack.c.l.b16 %v64
  %v226 = vunpack.c.l.b16 %v65
  %v227 = vunpack.c.l.b16 %v66
  %v228 = vunpack.c.l.b16 %v67
  %v229 = vunpack.c.l.b16 %v68
  %v230 = vunpack.c.l.b16 %v69
  %v231 = vunpack.c.l.b16 %v70
  %v232 = vunpack.c.l.b16 %v71
  %v233 = vunpack.c.l.b16 %v72
  %v234 = vunpack.c.l.b16 %v73
  %v235 = vunpack.c.l.b16 %v74
  %v236 = vunpack.c.l.b16 %v75
  %v237 = vunpack.c.l.b16 %v76
  %v238 = vunpack.c.l.b16 %v77
  %v239 = vunpack.c.l.b16 %v78
  %v240 = vunpack.c.l.b16 %v79
  %v241 = vunpack.c.l.b16 %v80
  %v242 = vunpack.c.l.b16 %v81
  %v243 = vunpack.c.l.b16 %v82
  %v244 = vunpack.c.l.b16 %v83
  %v245 = vunpack.c.l.b16 %v84
  %v246 = vunpack.c.l.b16 %v85
  %v247 = vunpack.c.l.b16 %v86
  %v248 = vunpack.c.l.b16 %v87
  %v249 = vunpack.c.l.b16 %v88
  %v250 = vunpack.c.l.b16 %v89
  %v251 = vunpack.c.l.b16 %v90
  %v252 = vunpack.c.l.b16 %v91
  %v253 = vunpack.c.l.b16 %v92
  %v254 = vunpack.c.l.b16 %v93
  %v255 = vunpack.c.l.b16 %v94
  %v256 = vunpack.c.l.b16 %v95
  %v257 = vpack.c.b16 %v186, %v185
  %v258 = vpack.c.b16 %v188, %v187
  %v259 = vpack.c.b16 %v190, %v189
  %v260 = vpack.c.b16 %v192, %v191
  %v261 = vpack.c.b16 %v194, %v193
  %v262 = vpack.c.b16 %v196, %v195
  %v263 = vpack.c.b16 %v198, %v197
  %v264 = vpack.c.b16 %v200, %v199
  %v265 = vpack.c.b16 %v202, %v201
  %v266 = vpack.c.b16 %v204, %v203
  %v267 = vpack.c.b16 %v206, %v205
  %v268 = vpack.c.b16 %v208, %v207
  %v269 = vpack.c.b16 %v210, %v209
  %v270 = vpack.c.b16 %v212, %v211
  %v271 = vpack.c.b16 %v214, %v213
  %v272 = vpack.c.b16 %v216, %v215
  %v273 = vpack.c.b16 %v218, %v217
  %v274 = vpack.c.b16 %v220, %v219
  %v275 = vpack.c.b16 %v222, %v221
  %v276 = vpack.c.b16 %v224, %v223
  %v277 = vpack.c.b16 %v226, %v225
  %v278 = vpack.c.b16 %v228, %v227
  %v279 = vpack.c.b16 %v230, %v229
  %v280 = vpack.c.b16 %v232, %v231
  %v281 = vpack.c.b16 %v234, %v233
  %v282 = vpack.c.b16 %v236, %v235
  %v283 = vpack.c.b16 %v238, %v237
  %v284 = vpack.c.b16 %v240, %v239
  %v285 = vpack.c.b16 %v242, %v241
  %v286 = vpack.c.b16 %v244, %v243
  %v287 = vpack.c.b16 %v246, %v245
  %v288 = vpack.c.b16 %v248, %v247
  %v289 = vpack.c.b16 %v250, %v249
  %v290 = vpack.c.b16 %v252, %v251
  %v291 = vpack.c.b16 %v254, %v253
  %v292 = vpack.c.b16 %v256, %v255
  %vm329 = vcmask 523264
  %v331 = vsel %vm329, %v108, 0
  %333 = vmatprep.subr.bf16.mxu0 0
  %334 = vmatpush1.bf16.msra.mxu0 %v257
  %335 = vmatprep.subr.bf16.mxu0 0
  %336 = vmatpush1.bf16.msra.mxu0 %v258
  %337 = vmatprep.subr.bf16.mxu0 0
  %338 = vmatpush1.bf16.msra.mxu0 %v259
  %339 = vmatprep.subr.bf16.mxu0 0
  %340 = vmatpush1.bf16.msra.mxu0 %v260
  %341 = vmatprep.subr.bf16.mxu0 0
  %342 = vmatpush1.bf16.msra.mxu0 %v261
  %343 = vmatprep.subr.bf16.mxu0 0
  %344 = vmatpush1.bf16.msra.mxu0 %v262
  %345 = vmatprep.subr.bf16.mxu0 0
  %346 = vmatpush1.bf16.msra.mxu0 %v263
  %347 = vmatprep.subr.bf16.mxu0 0
  %348 = vmatpush1.bf16.msra.mxu0 %v264
  %349 = vmatprep.subr.bf16.mxu0 0
  %350 = vmatpush1.bf16.msra.mxu0 %v265
  %351 = vmatprep.subr.bf16.mxu0 0
  %352 = vmatpush1.bf16.msra.mxu0 %v266
  %353 = vmatprep.subr.bf16.mxu0 0
  %354 = vmatpush1.bf16.msra.mxu0 %v267
  %355 = vmatprep.subr.bf16.mxu0 0
  %356 = vmatpush1.bf16.msra.mxu0 %v268
  %357 = vmatprep.subr.bf16.mxu0 0
  %358 = vmatpush1.bf16.msra.mxu0 %v269
  %359 = vmatprep.subr.bf16.mxu0 0
  %360 = vmatpush1.bf16.msra.mxu0 %v270
  %361 = vmatprep.subr.bf16.mxu0 0
  %362 = vmatpush1.bf16.msra.mxu0 %v271
  %363 = vmatprep.subr.bf16.mxu0 0
  %364 = vmatpush1.bf16.msra.mxu0 %v272
  %365 = vmatprep.mubr.bf16.mxu0 %v105
  %366 = vmatmul.mubr.bf16.gmra.mrb[0].mxu0 %v104
  %v367 = vpop.f32.mrb[0].mxu0
  %v368 = vadd.f32 0.0, %v367
  %v369 = vpop.f32.mrb[0].mxu0
  %v370 = vpop.f32.mrb[0].mxu0
  %v371 = vpop.f32.mrb[0].mxu0
  %372 = vdwg.mxu0
  %373 = vmatprep.subr.bf16.mxu0 0
  %374 = vmatpush1.bf16.msra.mxu0 %v273
  %375 = vmatprep.subr.bf16.mxu0 0
  %376 = vmatpush1.bf16.msra.mxu0 %v274
  %377 = vmatprep.subr.bf16.mxu0 0
  %378 = vmatpush1.bf16.msra.mxu0 %v275
  %379 = vmatprep.subr.bf16.mxu0 0
  %380 = vmatpush1.bf16.msra.mxu0 %v276
  %381 = vmatprep.subr.bf16.mxu0 0
  %382 = vmatpush1.bf16.msra.mxu0 %v277
  %383 = vmatprep.subr.bf16.mxu0 0
  %384 = vmatpush1.bf16.msra.mxu0 %v278
  %385 = vmatprep.subr.bf16.mxu0 0
  %386 = vmatpush1.bf16.msra.mxu0 %v279
  %387 = vmatprep.subr.bf16.mxu0 0
  %388 = vmatpush1.bf16.msra.mxu0 %v280
  %389 = vmatprep.subr.bf16.mxu0 0
  %390 = vmatpush1.bf16.msra.mxu0 %v281
  %391 = vmatprep.subr.bf16.mxu0 0
  %392 = vmatpush1.bf16.msra.mxu0 %v282
  %393 = vmatprep.subr.bf16.mxu0 0
  %394 = vmatpush1.bf16.msra.mxu0 %v283
  %395 = vmatprep.subr.bf16.mxu0 0
  %396 = vmatpush1.bf16.msra.mxu0 %v284
  %397 = vmatprep.subr.bf16.mxu0 0
  %398 = vmatpush1.bf16.msra.mxu0 %v285
  %399 = vmatprep.subr.bf16.mxu0 0
  %400 = vmatpush1.bf16.msra.mxu0 %v286
  %401 = vmatprep.subr.bf16.mxu0 0
  %402 = vmatpush1.bf16.msra.mxu0 %v287
  %403 = vmatprep.subr.bf16.mxu0 0
  %404 = vmatpush1.bf16.msra.mxu0 %v288
  %405 = vmatprep.mubr.bf16.mxu0 %v107
  %406 = vmatmul.mubr.bf16.gmra.mrb[0].mxu0 %v106
  %v407 = vpop.f32.mrb[0].mxu0
  %v408 = vadd.f32 %v368, %v407
  %v409 = vpop.f32.mrb[0].mxu0
  %v410 = vpop.f32.mrb[0].mxu0
  %v411 = vpop.f32.mrb[0].mxu0
  %412 = vdwg.mxu0
  %413 = vmatprep.subr.bf16.mxu0 0
  %414 = vmatpush1.bf16.msra.mxu0 %v289
  %415 = vmatprep.subr.bf16.mxu0 0
  %416 = vmatpush1.bf16.msra.mxu0 %v290
  %417 = vmatprep.subr.bf16.mxu0 0
  %418 = vmatpush1.bf16.msra.mxu0 %v291
  %419 = vmatprep.subr.bf16.mxu0 0
  %420 = vmatpush1.bf16.msra.mxu0 %v292
  %421 = vmatprep.subr.bf16.mxu0 0
  %422 = vmatpush1.bf16.msra.mxu0 0
  %423 = vmatprep.subr.bf16.mxu0 0
  %424 = vmatpush1.bf16.msra.mxu0 0
  %425 = vmatprep.subr.bf16.mxu0 0
  %426 = vmatpush1.bf16.msra.mxu0 0
  %427 = vmatprep.subr.bf16.mxu0 0
  %428 = vmatpush1.bf16.msra.mxu0 0
  %429 = vmatprep.subr.bf16.mxu0 0
  %430 = vmatpush1.bf16.msra.mxu0 0
  %431 = vmatprep.subr.bf16.mxu0 0
  %432 = vmatpush1.bf16.msra.mxu0 0
  %433 = vmatprep.subr.bf16.mxu0 0
  %434 = vmatpush1.bf16.msra.mxu0 0
  %435 = vmatprep.subr.bf16.mxu0 0
  %436 = vmatpush1.bf16.msra.mxu0 0
  %437 = vmatprep.subr.bf16.mxu0 0
  %438 = vmatpush1.bf16.msra.mxu0 0
  %439 = vmatprep.subr.bf16.mxu0 0
  %440 = vmatpush1.bf16.msra.mxu0 0
  %441 = vmatprep.subr.bf16.mxu0 0
  %442 = vmatpush1.bf16.msra.mxu0 0
  %443 = vmatprep.subr.bf16.mxu0 0
  %444 = vmatpush1.bf16.msra.mxu0 0
  %445 = vmatprep.mubr.bf16.mxu0 0
  %446 = vmatmul.mubr.bf16.gmra.mrb[0].mxu0 %v331
  %v447 = vpop.f32.mrb[0].mxu0
  %v448 = vadd.f32 %v408, %v447
  %v449 = vpop.f32.mrb[0].mxu0
  %v450 = vpop.f32.mrb[0].mxu0
  %v451 = vpop.f32.mrb[0].mxu0
  %452 = vdwg.mxu0
  %v453 = vld [vmem:[%s2] sm:$0x1]
  %v455 = vlaneseq
  %v456 = vshrl.u32 %v455, 7
  %v457 = vsub.s32 0, %v456
  %v458 = vrot.slane %v453, %v457
  %v460 = vmul.f32 %v448, %v458
  %v461 = vld [vmem:[%s3] sm:$0x1]
  %v463 = vlaneseq
  %v464 = vshrl.u32 %v463, 7
  %v465 = vsub.s32 0, %v464
  %v466 = vrot.slane %v461, %v465
  %v468 = vadd.f32 %v460, %v466
  %v469 = vld [vmem:[%s4] sm:$0xf]
  %v470 = vunpack.c.l.bf16 %v469
  %v471 = vadd.f32 %v468, %v470
  %v472 = vmax.f32 %v471, 0.0
  %v473 = vpack.c.bf16 %v472, %v472
  %vm474 = vcmask 519168
  %475 = vst.msk [vmem:[%s5] sm:$0xf] %vm474, %v473
  // Predicated region
  $region22: #{_lambda_.40} parent=0 // pred_check
    _
  $region23: #{_lambda_.40} parent=0 // pred_check_branch
    %477 = sbr.rel (0) target = $region25
  $region24: #{_lambda_.40} parent=0 // pred_region
    _
  $region25: #{_lambda_.40} parent=0 // pred_fallthru
    _
  // Predicated region
  $region26: #{_lambda_.40} parent=0 // pred_check
    _
  $region27: #{_lambda_.40} parent=0 // pred_check_branch
    %479 = sbr.rel (0) target = $region29
  $region28: #{_lambda_.40} parent=0 // pred_region
    _
  $region29: #{_lambda_.40} parent=0 // pred_fallthru
    _

// kernel: _lambda_.41
$region0: #{_lambda_.41}
  #allocation0 [shape = 'u32[]', space=smem, size = 0x4, offset = 0x4, fixed_abs, tag = 'smem constant byte address 0x4 - core index']
  #allocation1 [shape = 'u32[144,128]{1,0:T(1,128)}', space=vmem, size = 0x12000, scoped, tag = 'internal scratch']
  %s0 = inlined_call_operand.vmem [shape: bf16[8,576], index: 0, kind: input, shape index: {}]
  %s1 = inlined_call_operand.vmem [shape: bf16[576,64], index: 1, kind: input, shape index: {}]
  %s2 = inlined_call_operand.vmem [shape: f32[1,64], index: 2, kind: input, shape index: {}]
  %s3 = inlined_call_operand.vmem [shape: f32[1,64], index: 3, kind: input, shape index: {}]
  %s4 = inlined_call_operand.vmem [shape: bf16[8,64], index: 4, kind: output, shape index: {}]
  %s5 = sld [smem:[#allocation0]]
  $region26: #{_lambda_.41} parent=0
    _
  %s7 = ssub.s32 1, %s5
  %s8 = scalar_select 0, %s7, %s5
  // Predicated region
  $region2: #{_lambda_.41} parent=0 // pred_check
    _
  $region3: #{_lambda_.41} parent=0 // pred_check_branch
    %10 = sbr.rel (0) target = $region5
  $region4: #{_lambda_.41} parent=0 // pred_region
    _
  $region5: #{_lambda_.41} parent=0 // pred_fallthru
    _
  // Predicated region
  $region6: #{_lambda_.41} parent=0 // pred_check
    _
  $region7: #{_lambda_.41} parent=0 // pred_check_branch
    %12 = sbr.rel (0) target = $region9
  $region8: #{_lambda_.41} parent=0 // pred_region
    _
  $region9: #{_lambda_.41} parent=0 // pred_fallthru
    _
  // Predicated region
  $region10: #{_lambda_.41} parent=0 // pred_check
    _
  $region11: #{_lambda_.41} parent=0 // pred_check_branch
    %14 = sbr.rel (0) target = $region13
  $region12: #{_lambda_.41} parent=0 // pred_region
    _
  $region13: #{_lambda_.41} parent=0 // pred_fallthru
    _
  // Predicated region
  $region14: #{_lambda_.41} parent=0 // pred_check
    _
  $region15: #{_lambda_.41} parent=0 // pred_check_branch
    %16 = sbr.rel (0) target = $region17
  $region16: #{_lambda_.41} parent=0 // pred_region
    _
  $region17: #{_lambda_.41} parent=0 // pred_fallthru
    _
  %v18 = vld [vmem:[%s0] sm:$0xff]
  %v19 = vld [vmem:[%s0 + $0x8] sm:$0xff]
  %v20 = vld [vmem:[%s0 + $0x10] sm:$0xf]
  %v21 = vld [vmem:[%s1] sm:$0xf]
  %v22 = vld [vmem:[%s1 + $0x4] sm:$0xf]
  %v23 = vld [vmem:[%s1 + $0x8] sm:$0xf]
  %v24 = vld [vmem:[%s1 + $0xc] sm:$0xf]
  %v25 = vld [vmem:[%s1 + $0x10] sm:$0xf]
  %v26 = vld [vmem:[%s1 + $0x14] sm:$0xf]
  %v27 = vld [vmem:[%s1 + $0x18] sm:$0xf]
  %v28 = vld [vmem:[%s1 + $0x1c] sm:$0xf]
  %v29 = vld [vmem:[%s1 + $0x20] sm:$0xf]
  %v30 = vld [vmem:[%s1 + $0x24] sm:$0xf]
  %v31 = vld [vmem:[%s1 + $0x28] sm:$0xf]
  %v32 = vld [vmem:[%s1 + $0x2c] sm:$0xf]
  %v33 = vld [vmem:[%s1 + $0x30] sm:$0xf]
  %v34 = vld [vmem:[%s1 + $0x34] sm:$0xf]
  %v35 = vld [vmem:[%s1 + $0x38] sm:$0xf]
  %v36 = vld [vmem:[%s1 + $0x3c] sm:$0xf]
  %v37 = vld [vmem:[%s1 + $0x40] sm:$0xf]
  %v38 = vld [vmem:[%s1 + $0x44] sm:$0xf]
  %v39 = vld [vmem:[%s1 + $0x48] sm:$0xf]
  %v40 = vld [vmem:[%s1 + $0x4c] sm:$0xf]
  %v41 = vld [vmem:[%s1 + $0x50] sm:$0xf]
  %v42 = vld [vmem:[%s1 + $0x54] sm:$0xf]
  %v43 = vld [vmem:[%s1 + $0x58] sm:$0xf]
  %v44 = vld [vmem:[%s1 + $0x5c] sm:$0xf]
  %v45 = vld [vmem:[%s1 + $0x60] sm:$0xf]
  %v46 = vld [vmem:[%s1 + $0x64] sm:$0xf]
  %v47 = vld [vmem:[%s1 + $0x68] sm:$0xf]
  %v48 = vld [vmem:[%s1 + $0x6c] sm:$0xf]
  %v49 = vld [vmem:[%s1 + $0x70] sm:$0xf]
  %v50 = vld [vmem:[%s1 + $0x74] sm:$0xf]
  %v51 = vld [vmem:[%s1 + $0x78] sm:$0xf]
  %v52 = vld [vmem:[%s1 + $0x7c] sm:$0xf]
  %v53 = vld [vmem:[%s1 + $0x80] sm:$0xf]
  %v54 = vld [vmem:[%s1 + $0x84] sm:$0xf]
  %v55 = vld [vmem:[%s1 + $0x88] sm:$0xf]
  %v56 = vld [vmem:[%s1 + $0x8c] sm:$0xf]
  %v57 = vld [vmem:[%s1 + $0x90] sm:$0xf]
  %v58 = vld [vmem:[%s1 + $0x94] sm:$0xf]
  %v59 = vld [vmem:[%s1 + $0x98] sm:$0xf]
  %v60 = vld [vmem:[%s1 + $0x9c] sm:$0xf]
  %v61 = vld [vmem:[%s1 + $0xa0] sm:$0xf]
  %v62 = vld [vmem:[%s1 + $0xa4] sm:$0xf]
  %v63 = vld [vmem:[%s1 + $0xa8] sm:$0xf]
  %v64 = vld [vmem:[%s1 + $0xac] sm:$0xf]
  %v65 = vld [vmem:[%s1 + $0xb0] sm:$0xf]
  %v66 = vld [vmem:[%s1 + $0xb4] sm:$0xf]
  %v67 = vld [vmem:[%s1 + $0xb8] sm:$0xf]
  %v68 = vld [vmem:[%s1 + $0xbc] sm:$0xf]
  %v69 = vld [vmem:[%s1 + $0xc0] sm:$0xf]
  %v70 = vld [vmem:[%s1 + $0xc4] sm:$0xf]
  %v71 = vld [vmem:[%s1 + $0xc8] sm:$0xf]
  %v72 = vld [vmem:[%s1 + $0xcc] sm:$0xf]
  %v73 = vld [vmem:[%s1 + $0xd0] sm:$0xf]
  %v74 = vld [vmem:[%s1 + $0xd4] sm:$0xf]
  %v75 = vld [vmem:[%s1 + $0xd8] sm:$0xf]
  %v76 = vld [vmem:[%s1 + $0xdc] sm:$0xf]
  %v77 = vld [vmem:[%s1 + $0xe0] sm:$0xf]
  %v78 = vld [vmem:[%s1 + $0xe4] sm:$0xf]
  %v79 = vld [vmem:[%s1 + $0xe8] sm:$0xf]
  %v80 = vld [vmem:[%s1 + $0xec] sm:$0xf]
  %v81 = vld [vmem:[%s1 + $0xf0] sm:$0xf]
  %v82 = vld [vmem:[%s1 + $0xf4] sm:$0xf]
  %v83 = vld [vmem:[%s1 + $0xf8] sm:$0xf]
  %v84 = vld [vmem:[%s1 + $0xfc] sm:$0xf]
  %v85 = vld [vmem:[%s1 + $0x100] sm:$0xf]
  %v86 = vld [vmem:[%s1 + $0x104] sm:$0xf]
  %v87 = vld [vmem:[%s1 + $0x108] sm:$0xf]
  %v88 = vld [vmem:[%s1 + $0x10c] sm:$0xf]
  %v89 = vld [vmem:[%s1 + $0x110] sm:$0xf]
  %v90 = vld [vmem:[%s1 + $0x114] sm:$0xf]
  %v91 = vld [vmem:[%s1 + $0x118] sm:$0xf]
  %v92 = vld [vmem:[%s1 + $0x11c] sm:$0xf]
  %v96 = vunpack.c.l.b16 %v18
  %v97 = vunpack.c.h.b16 %v18
  %v98 = vunpack.c.l.b16 %v19
  %v99 = vunpack.c.h.b16 %v19
  %v100 = vunpack.c.l.b16 %v20
  %v101 = vpack.c.b16 %v96, %v96
  %v102 = vpack.c.b16 %v97, %v97
  %v103 = vpack.c.b16 %v98, %v98
  %v104 = vpack.c.b16 %v99, %v99
  %v105 = vpack.c.b16 %v100, %v100
  %v182 = vunpack.c.l.b16 %v21
  %v183 = vunpack.c.l.b16 %v22
  %v184 = vunpack.c.l.b16 %v23
  %v185 = vunpack.c.l.b16 %v24
  %v186 = vunpack.c.l.b16 %v25
  %v187 = vunpack.c.l.b16 %v26
  %v188 = vunpack.c.l.b16 %v27
  %v189 = vunpack.c.l.b16 %v28
  %v190 = vunpack.c.l.b16 %v29
  %v191 = vunpack.c.l.b16 %v30
  %v192 = vunpack.c.l.b16 %v31
  %v193 = vunpack.c.l.b16 %v32
  %v194 = vunpack.c.l.b16 %v33
  %v195 = vunpack.c.l.b16 %v34
  %v196 = vunpack.c.l.b16 %v35
  %v197 = vunpack.c.l.b16 %v36
  %v198 = vunpack.c.l.b16 %v37
  %v199 = vunpack.c.l.b16 %v38
  %v200 = vunpack.c.l.b16 %v39
  %v201 = vunpack.c.l.b16 %v40
  %v202 = vunpack.c.l.b16 %v41
  %v203 = vunpack.c.l.b16 %v42
  %v204 = vunpack.c.l.b16 %v43
  %v205 = vunpack.c.l.b16 %v44
  %v206 = vunpack.c.l.b16 %v45
  %v207 = vunpack.c.l.b16 %v46
  %v208 = vunpack.c.l.b16 %v47
  %v209 = vunpack.c.l.b16 %v48
  %v210 = vunpack.c.l.b16 %v49
  %v211 = vunpack.c.l.b16 %v50
  %v212 = vunpack.c.l.b16 %v51
  %v213 = vunpack.c.l.b16 %v52
  %v214 = vunpack.c.l.b16 %v53
  %v215 = vunpack.c.l.b16 %v54
  %v216 = vunpack.c.l.b16 %v55
  %v217 = vunpack.c.l.b16 %v56
  %v218 = vunpack.c.l.b16 %v57
  %v219 = vunpack.c.l.b16 %v58
  %v220 = vunpack.c.l.b16 %v59
  %v221 = vunpack.c.l.b16 %v60
  %v222 = vunpack.c.l.b16 %v61
  %v223 = vunpack.c.l.b16 %v62
  %v224 = vunpack.c.l.b16 %v63
  %v225 = vunpack.c.l.b16 %v64
  %v226 = vunpack.c.l.b16 %v65
  %v227 = vunpack.c.l.b16 %v66
  %v228 = vunpack.c.l.b16 %v67
  %v229 = vunpack.c.l.b16 %v68
  %v230 = vunpack.c.l.b16 %v69
  %v231 = vunpack.c.l.b16 %v70
  %v232 = vunpack.c.l.b16 %v71
  %v233 = vunpack.c.l.b16 %v72
  %v234 = vunpack.c.l.b16 %v73
  %v235 = vunpack.c.l.b16 %v74
  %v236 = vunpack.c.l.b16 %v75
  %v237 = vunpack.c.l.b16 %v76
  %v238 = vunpack.c.l.b16 %v77
  %v239 = vunpack.c.l.b16 %v78
  %v240 = vunpack.c.l.b16 %v79
  %v241 = vunpack.c.l.b16 %v80
  %v242 = vunpack.c.l.b16 %v81
  %v243 = vunpack.c.l.b16 %v82
  %v244 = vunpack.c.l.b16 %v83
  %v245 = vunpack.c.l.b16 %v84
  %v246 = vunpack.c.l.b16 %v85
  %v247 = vunpack.c.l.b16 %v86
  %v248 = vunpack.c.l.b16 %v87
  %v249 = vunpack.c.l.b16 %v88
  %v250 = vunpack.c.l.b16 %v89
  %v251 = vunpack.c.l.b16 %v90
  %v252 = vunpack.c.l.b16 %v91
  %v253 = vunpack.c.l.b16 %v92
  %v254 = vpack.c.b16 %v183, %v182
  %v255 = vpack.c.b16 %v185, %v184
  %v256 = vpack.c.b16 %v187, %v186
  %v257 = vpack.c.b16 %v189, %v188
  %v258 = vpack.c.b16 %v191, %v190
  %v259 = vpack.c.b16 %v193, %v192
  %v260 = vpack.c.b16 %v195, %v194
  %v261 = vpack.c.b16 %v197, %v196
  %v262 = vpack.c.b16 %v199, %v198
  %v263 = vpack.c.b16 %v201, %v200
  %v264 = vpack.c.b16 %v203, %v202
  %v265 = vpack.c.b16 %v205, %v204
  %v266 = vpack.c.b16 %v207, %v206
  %v267 = vpack.c.b16 %v209, %v208
  %v268 = vpack.c.b16 %v211, %v210
  %v269 = vpack.c.b16 %v213, %v212
  %v270 = vpack.c.b16 %v215, %v214
  %v271 = vpack.c.b16 %v217, %v216
  %v272 = vpack.c.b16 %v219, %v218
  %v273 = vpack.c.b16 %v221, %v220
  %v274 = vpack.c.b16 %v223, %v222
  %v275 = vpack.c.b16 %v225, %v224
  %v276 = vpack.c.b16 %v227, %v226
  %v277 = vpack.c.b16 %v229, %v228
  %v278 = vpack.c.b16 %v231, %v230
  %v279 = vpack.c.b16 %v233, %v232
  %v280 = vpack.c.b16 %v235, %v234
  %v281 = vpack.c.b16 %v237, %v236
  %v282 = vpack.c.b16 %v239, %v238
  %v283 = vpack.c.b16 %v241, %v240
  %v284 = vpack.c.b16 %v243, %v242
  %v285 = vpack.c.b16 %v245, %v244
  %v286 = vpack.c.b16 %v247, %v246
  %v287 = vpack.c.b16 %v249, %v248
  %v288 = vpack.c.b16 %v251, %v250
  %v289 = vpack.c.b16 %v253, %v252
  %vm326 = vcmask 523264
  %v328 = vsel %vm326, %v105, 0
  %330 = vmatprep.subr.bf16.mxu0 0
  %331 = vmatpush1.bf16.msra.mxu0 %v254
  %332 = vmatprep.subr.bf16.mxu0 0
  %333 = vmatpush1.bf16.msra.mxu0 %v255
  %334 = vmatprep.subr.bf16.mxu0 0
  %335 = vmatpush1.bf16.msra.mxu0 %v256
  %336 = vmatprep.subr.bf16.mxu0 0
  %337 = vmatpush1.bf16.msra.mxu0 %v257
  %338 = vmatprep.subr.bf16.mxu0 0
  %339 = vmatpush1.bf16.msra.mxu0 %v258
  %340 = vmatprep.subr.bf16.mxu0 0
  %341 = vmatpush1.bf16.msra.mxu0 %v259
  %342 = vmatprep.subr.bf16.mxu0 0
  %343 = vmatpush1.bf16.msra.mxu0 %v260
  %344 = vmatprep.subr.bf16.mxu0 0
  %345 = vmatpush1.bf16.msra.mxu0 %v261
  %346 = vmatprep.subr.bf16.mxu0 0
  %347 = vmatpush1.bf16.msra.mxu0 %v262
  %348 = vmatprep.subr.bf16.mxu0 0
  %349 = vmatpush1.bf16.msra.mxu0 %v263
  %350 = vmatprep.subr.bf16.mxu0 0
  %351 = vmatpush1.bf16.msra.mxu0 %v264
  %352 = vmatprep.subr.bf16.mxu0 0
  %353 = vmatpush1.bf16.msra.mxu0 %v265
  %354 = vmatprep.subr.bf16.mxu0 0
  %355 = vmatpush1.bf16.msra.mxu0 %v266
  %356 = vmatprep.subr.bf16.mxu0 0
  %357 = vmatpush1.bf16.msra.mxu0 %v267
  %358 = vmatprep.subr.bf16.mxu0 0
  %359 = vmatpush1.bf16.msra.mxu0 %v268
  %360 = vmatprep.subr.bf16.mxu0 0
  %361 = vmatpush1.bf16.msra.mxu0 %v269
  %362 = vmatprep.mubr.bf16.mxu0 %v102
  %363 = vmatmul.mubr.bf16.gmra.mrb[0].mxu0 %v101
  %v364 = vpop.f32.mrb[0].mxu0
  %v365 = vadd.f32 0.0, %v364
  %v366 = vpop.f32.mrb[0].mxu0
  %v367 = vpop.f32.mrb[0].mxu0
  %v368 = vpop.f32.mrb[0].mxu0
  %369 = vdwg.mxu0
  %370 = vmatprep.subr.bf16.mxu0 0
  %371 = vmatpush1.bf16.msra.mxu0 %v270
  %372 = vmatprep.subr.bf16.mxu0 0
  %373 = vmatpush1.bf16.msra.mxu0 %v271
  %374 = vmatprep.subr.bf16.mxu0 0
  %375 = vmatpush1.bf16.msra.mxu0 %v272
  %376 = vmatprep.subr.bf16.mxu0 0
  %377 = vmatpush1.bf16.msra.mxu0 %v273
  %378 = vmatprep.subr.bf16.mxu0 0
  %379 = vmatpush1.bf16.msra.mxu0 %v274
  %380 = vmatprep.subr.bf16.mxu0 0
  %381 = vmatpush1.bf16.msra.mxu0 %v275
  %382 = vmatprep.subr.bf16.mxu0 0
  %383 = vmatpush1.bf16.msra.mxu0 %v276
  %384 = vmatprep.subr.bf16.mxu0 0
  %385 = vmatpush1.bf16.msra.mxu0 %v277
  %386 = vmatprep.subr.bf16.mxu0 0
  %387 = vmatpush1.bf16.msra.mxu0 %v278
  %388 = vmatprep.subr.bf16.mxu0 0
  %389 = vmatpush1.bf16.msra.mxu0 %v279
  %390 = vmatprep.subr.bf16.mxu0 0
  %391 = vmatpush1.bf16.msra.mxu0 %v280
  %392 = vmatprep.subr.bf16.mxu0 0
  %393 = vmatpush1.bf16.msra.mxu0 %v281
  %394 = vmatprep.subr.bf16.mxu0 0
  %395 = vmatpush1.bf16.msra.mxu0 %v282
  %396 = vmatprep.subr.bf16.mxu0 0
  %397 = vmatpush1.bf16.msra.mxu0 %v283
  %398 = vmatprep.subr.bf16.mxu0 0
  %399 = vmatpush1.bf16.msra.mxu0 %v284
  %400 = vmatprep.subr.bf16.mxu0 0
  %401 = vmatpush1.bf16.msra.mxu0 %v285
  %402 = vmatprep.mubr.bf16.mxu0 %v104
  %403 = vmatmul.mubr.bf16.gmra.mrb[0].mxu0 %v103
  %v404 = vpop.f32.mrb[0].mxu0
  %v405 = vadd.f32 %v365, %v404
  %v406 = vpop.f32.mrb[0].mxu0
  %v407 = vpop.f32.mrb[0].mxu0
  %v408 = vpop.f32.mrb[0].mxu0
  %409 = vdwg.mxu0
  %410 = vmatprep.subr.bf16.mxu0 0
  %411 = vmatpush1.bf16.msra.mxu0 %v286
  %412 = vmatprep.subr.bf16.mxu0 0
  %413 = vmatpush1.bf16.msra.mxu0 %v287
  %414 = vmatprep.subr.bf16.mxu0 0
  %415 = vmatpush1.bf16.msra.mxu0 %v288
  %416 = vmatprep.subr.bf16.mxu0 0
  %417 = vmatpush1.bf16.msra.mxu0 %v289
  %418 = vmatprep.subr.bf16.mxu0 0
  %419 = vmatpush1.bf16.msra.mxu0 0
  %420 = vmatprep.subr.bf16.mxu0 0
  %421 = vmatpush1.bf16.msra.mxu0 0
  %422 = vmatprep.subr.bf16.mxu0 0
  %423 = vmatpush1.bf16.msra.mxu0 0
  %424 = vmatprep.subr.bf16.mxu0 0
  %425 = vmatpush1.bf16.msra.mxu0 0
  %426 = vmatprep.subr.bf16.mxu0 0
  %427 = vmatpush1.bf16.msra.mxu0 0
  %428 = vmatprep.subr.bf16.mxu0 0
  %429 = vmatpush1.bf16.msra.mxu0 0
  %430 = vmatprep.subr.bf16.mxu0 0
  %431 = vmatpush1.bf16.msra.mxu0 0
  %432 = vmatprep.subr.bf16.mxu0 0
  %433 = vmatpush1.bf16.msra.mxu0 0
  %434 = vmatprep.subr.bf16.mxu0 0
  %435 = vmatpush1.bf16.msra.mxu0 0
  %436 = vmatprep.subr.bf16.mxu0 0
  %437 = vmatpush1.bf16.msra.mxu0 0
  %438 = vmatprep.subr.bf16.mxu0 0
  %439 = vmatpush1.bf16.msra.mxu0 0
  %440 = vmatprep.subr.bf16.mxu0 0
  %441 = vmatpush1.bf16.msra.mxu0 0
  %442 = vmatprep.mubr.bf16.mxu0 0
  %443 = vmatmul.mubr.bf16.gmra.mrb[0].mxu0 %v328
  %v444 = vpop.f32.mrb[0].mxu0
  %v445 = vadd.f32 %v405, %v444
  %v446 = vpop.f32.mrb[0].mxu0
  %v447 = vpop.f32.mrb[0].mxu0
  %v448 = vpop.f32.mrb[0].mxu0
  %449 = vdwg.mxu0
  %v450 = vld [vmem:[%s2] sm:$0x1]
  %v452 = vlaneseq
  %v453 = vshrl.u32 %v452, 7
  %v454 = vsub.s32 0, %v453
  %v455 = vrot.slane %v450, %v454
  %v457 = vmul.f32 %v445, %v455
  %v458 = vld [vmem:[%s3] sm:$0x1]
  %v460 = vlaneseq
  %v461 = vshrl.u32 %v460, 7
  %v462 = vsub.s32 0, %v461
  %v463 = vrot.slane %v458, %v462
  %v465 = vadd.f32 %v457, %v463
  %v466 = vmax.f32 %v465, 0.0
  %v467 = vpack.c.bf16 %v466, %v466
  %vm468 = vcmask 519168
  %469 = vst.msk [vmem:[%s4] sm:$0xf] %vm468, %v467
  // Predicated region
  $region18: #{_lambda_.41} parent=0 // pred_check
    _
  $region19: #{_lambda_.41} parent=0 // pred_check_branch
    %471 = sbr.rel (0) target = $region21
  $region20: #{_lambda_.41} parent=0 // pred_region
    _
  $region21: #{_lambda_.41} parent=0 // pred_fallthru
    _
  // Predicated region
  $region22: #{_lambda_.41} parent=0 // pred_check
    _
  $region23: #{_lambda_.41} parent=0 // pred_check_branch
    %473 = sbr.rel (0) target = $region25
  $region24: #{_lambda_.41} parent=0 // pred_region
    _
  $region25: #{_lambda_.41} parent=0 // pred_fallthru
    _

// kernel: _lambda_.43
$region0: #{_lambda_.43}
  #allocation0 [shape = 'u32[]', space=smem, size = 0x4, offset = 0x4, fixed_abs, tag = 'smem constant byte address 0x4 - core index']
  #allocation1 [shape = 'u32[144,128]{1,0:T(1,128)}', space=vmem, size = 0x12000, scoped, tag = 'internal scratch']
  %s0 = inlined_call_operand.vmem [shape: bf16[8,8,64], index: 0, kind: input, shape index: {}]
  %s1 = inlined_call_operand.vmem [shape: f32[64,10], index: 1, kind: input, shape index: {}]
  %s2 = inlined_call_operand.vmem [shape: f32[1,10], index: 2, kind: input, shape index: {}]
  %s3 = inlined_call_operand.vmem [shape: f32[8,10], index: 3, kind: output, shape index: {}]
  %s4 = sld [smem:[#allocation0]]
  $region22: #{_lambda_.43} parent=0
    _
  %s6 = ssub.s32 1, %s4
  %s7 = scalar_select 0, %s6, %s4
  // Predicated region
  $region2: #{_lambda_.43} parent=0 // pred_check
    _
  $region3: #{_lambda_.43} parent=0 // pred_check_branch
    %9 = sbr.rel (0) target = $region5
  $region4: #{_lambda_.43} parent=0 // pred_region
    _
  $region5: #{_lambda_.43} parent=0 // pred_fallthru
    _
  // Predicated region
  $region6: #{_lambda_.43} parent=0 // pred_check
    _
  $region7: #{_lambda_.43} parent=0 // pred_check_branch
    %11 = sbr.rel (0) target = $region9
  $region8: #{_lambda_.43} parent=0 // pred_region
    _
  $region9: #{_lambda_.43} parent=0 // pred_fallthru
    _
  // Predicated region
  $region10: #{_lambda_.43} parent=0 // pred_check
    _
  $region11: #{_lambda_.43} parent=0 // pred_check_branch
    %13 = sbr.rel (0) target = $region13
  $region12: #{_lambda_.43} parent=0 // pred_region
    _
  $region13: #{_lambda_.43} parent=0 // pred_fallthru
    _
  %v14 = vld [vmem:[%s0] sm:$0xf]
  %v15 = vld [vmem:[%s0 + $0x4] sm:$0xf]
  %v16 = vld [vmem:[%s0 + $0x8] sm:$0xf]
  %v17 = vld [vmem:[%s0 + $0xc] sm:$0xf]
  %v18 = vld [vmem:[%s0 + $0x10] sm:$0xf]
  %v19 = vld [vmem:[%s0 + $0x14] sm:$0xf]
  %v20 = vld [vmem:[%s0 + $0x18] sm:$0xf]
  %v21 = vld [vmem:[%s0 + $0x1c] sm:$0xf]
  %v22 = vunpack.c.l.bf16 %v14
  %v23 = vunpack.c.l.bf16 %v15
  %v24 = vunpack.c.l.bf16 %v16
  %v25 = vunpack.c.l.bf16 %v17
  %v26 = vunpack.c.l.bf16 %v18
  %v27 = vunpack.c.l.bf16 %v19
  %v28 = vunpack.c.l.bf16 %v20
  %v29 = vunpack.c.l.bf16 %v21
  %vm30 = vcmask 523264
  %v31 = vsel %vm30, %v22, 0.0
  %v32 = vrot.slane %v31, 4
  %v33 = vadd.f32 %v31, %v32
  %v34 = vrot.slane %v33, 2
  %v35 = vadd.f32 %v33, %v34
  %v36 = vrot.slane %v35, 1
  %v37 = vadd.f32 %v35, %v36
  %v38 = vsel %vm30, %v23, 0.0
  %v39 = vrot.slane %v38, 4
  %v40 = vadd.f32 %v38, %v39
  %v41 = vrot.slane %v40, 2
  %v42 = vadd.f32 %v40, %v41
  %v43 = vrot.slane %v42, 1
  %v44 = vadd.f32 %v42, %v43
  %v45 = vsel %vm30, %v24, 0.0
  %v46 = vrot.slane %v45, 4
  %v47 = vadd.f32 %v45, %v46
  %v48 = vrot.slane %v47, 2
  %v49 = vadd.f32 %v47, %v48
  %v50 = vrot.slane %v49, 1
  %v51 = vadd.f32 %v49, %v50
  %v52 = vsel %vm30, %v25, 0.0
  %v53 = vrot.slane %v52, 4
  %v54 = vadd.f32 %v52, %v53
  %v55 = vrot.slane %v54, 2
  %v56 = vadd.f32 %v54, %v55
  %v57 = vrot.slane %v56, 1
  %v58 = vadd.f32 %v56, %v57
  %v59 = vsel %vm30, %v26, 0.0
  %v60 = vrot.slane %v59, 4
  %v61 = vadd.f32 %v59, %v60
  %v62 = vrot.slane %v61, 2
  %v63 = vadd.f32 %v61, %v62
  %v64 = vrot.slane %v63, 1
  %v65 = vadd.f32 %v63, %v64
  %v66 = vsel %vm30, %v27, 0.0
  %v67 = vrot.slane %v66, 4
  %v68 = vadd.f32 %v66, %v67
  %v69 = vrot.slane %v68, 2
  %v70 = vadd.f32 %v68, %v69
  %v71 = vrot.slane %v70, 1
  %v72 = vadd.f32 %v70, %v71
  %v73 = vsel %vm30, %v28, 0.0
  %v74 = vrot.slane %v73, 4
  %v75 = vadd.f32 %v73, %v74
  %v76 = vrot.slane %v75, 2
  %v77 = vadd.f32 %v75, %v76
  %v78 = vrot.slane %v77, 1
  %v79 = vadd.f32 %v77, %v78
  %v80 = vsel %vm30, %v29, 0.0
  %v81 = vrot.slane %v80, 4
  %v82 = vadd.f32 %v80, %v81
  %v83 = vrot.slane %v82, 2
  %v84 = vadd.f32 %v82, %v83
  %v85 = vrot.slane %v84, 1
  %v86 = vadd.f32 %v84, %v85
  %v87 = vmul.f32 %v37, 0.25
  %v88 = vmul.f32 %v44, 0.25
  %v89 = vmul.f32 %v51, 0.25
  %v90 = vmul.f32 %v58, 0.25
  %v91 = vmul.f32 %v65, 0.25
  %v92 = vmul.f32 %v72, 0.25
  %v93 = vmul.f32 %v79, 0.25
  %v94 = vmul.f32 %v86, 0.25
  %v95 = vld [vmem:[%s1] sm:$0xff]
  %v96 = vld [vmem:[%s1 + $0x8] sm:$0xff]
  %v97 = vld [vmem:[%s1 + $0x10] sm:$0xff]
  %v98 = vld [vmem:[%s1 + $0x18] sm:$0xff]
  %v99 = vld [vmem:[%s1 + $0x20] sm:$0xff]
  %v100 = vld [vmem:[%s1 + $0x28] sm:$0xff]
  %v101 = vld [vmem:[%s1 + $0x30] sm:$0xff]
  %v102 = vld [vmem:[%s1 + $0x38] sm:$0xff]
  %v103 = vld [vmem:[%s2] sm:$0x1]
  %v105 = vlaneseq
  %v106 = vshrl.u32 %v105, 7
  %v107 = vsub.s32 0, %v106
  %v108 = vrot.slane %v103, %v107
  %vm118 = vcmask 1041409
  %v119 = vsel %vm118, %v88, %v87
  %vm120 = vcmask 1042434
  %v121 = vsel %vm120, %v89, %v119
  %vm122 = vcmask 1043459
  %v123 = vsel %vm122, %v90, %v121
  %vm124 = vcmask 1044484
  %v125 = vsel %vm124, %v91, %v123
  %vm126 = vcmask 1045509
  %v127 = vsel %vm126, %v92, %v125
  %vm128 = vcmask 1046534
  %v129 = vsel %vm128, %v93, %v127
  %vm130 = vcmask 1047559
  %v131 = vsel %vm130, %v94, %v129
  %v132 = vsel %vm30, %v131, 0
  %134 = vmatprep.subr.mxu0 0.0
  %135 = vmatpush1.msra.mxu0 %v95
  %136 = vmatprep.subr.mxu0 0.0
  %137 = vmatpush1.msra.mxu0 %v96
  %138 = vmatprep.subr.mxu0 0.0
  %139 = vmatpush1.msra.mxu0 %v97
  %140 = vmatprep.subr.mxu0 0.0
  %141 = vmatpush1.msra.mxu0 %v98
  %142 = vmatprep.subr.mxu0 0.0
  %143 = vmatpush1.msra.mxu0 %v99
  %144 = vmatprep.subr.mxu0 0.0
  %145 = vmatpush1.msra.mxu0 %v100
  %146 = vmatprep.subr.mxu0 0.0
  %147 = vmatpush1.msra.mxu0 %v101
  %148 = vmatprep.subr.mxu0 0.0
  %149 = vmatpush1.msra.mxu0 %v102
  %150 = vmatprep.subr.mxu0 0.0
  %151 = vmatpush1.msra.mxu0 0.0
  %152 = vmatprep.subr.mxu0 0.0
  %153 = vmatpush1.msra.mxu0 0.0
  %154 = vmatprep.subr.mxu0 0.0
  %155 = vmatpush1.msra.mxu0 0.0
  %156 = vmatprep.subr.mxu0 0.0
  %157 = vmatpush1.msra.mxu0 0.0
  %158 = vmatprep.subr.mxu0 0.0
  %159 = vmatpush1.msra.mxu0 0.0
  %160 = vmatprep.subr.mxu0 0.0
  %161 = vmatpush1.msra.mxu0 0.0
  %162 = vmatprep.subr.mxu0 0.0
  %163 = vmatpush1.msra.mxu0 0.0
  %164 = vmatprep.subr.mxu0 0.0
  %165 = vmatpush1.msra.mxu0 0.0
  %166 = vmatprep.subr.mxu0 0.0
  %167 = vmatpush1.msra.mxu0 0.0
  %168 = vmatprep.subr.mxu0 0.0
  %169 = vmatpush1.msra.mxu0 0.0
  %170 = vmatprep.subr.mxu0 0.0
  %171 = vmatpush1.msra.mxu0 0.0
  %172 = vmatprep.subr.mxu0 0.0
  %173 = vmatpush1.msra.mxu0 0.0
  %174 = vmatprep.subr.mxu0 0.0
  %175 = vmatpush1.msra.mxu0 0.0
  %176 = vmatprep.subr.mxu0 0.0
  %177 = vmatpush1.msra.mxu0 0.0
  %178 = vmatprep.subr.mxu0 0.0
  %179 = vmatpush1.msra.mxu0 0.0
  %180 = vmatprep.subr.mxu0 0.0
  %181 = vmatpush1.msra.mxu0 0.0
  %182 = vmatprep.subr.mxu0 0.0
  %183 = vmatpush1.msra.mxu0 0.0
  %184 = vmatprep.subr.mxu0 0.0
  %185 = vmatpush1.msra.mxu0 0.0
  %186 = vmatprep.subr.mxu0 0.0
  %187 = vmatpush1.msra.mxu0 0.0
  %188 = vmatprep.subr.mxu0 0.0
  %189 = vmatpush1.msra.mxu0 0.0
  %190 = vmatprep.subr.mxu0 0.0
  %191 = vmatpush1.msra.mxu0 0.0
  %192 = vmatprep.subr.mxu0 0.0
  %193 = vmatpush1.msra.mxu0 0.0
  %194 = vmatprep.subr.mxu0 0.0
  %195 = vmatpush1.msra.mxu0 0.0
  %196 = vmatprep.subr.mxu0 0.0
  %197 = vmatpush1.msra.mxu0 0.0
  %198 = vmatprep.mubr.f32.mxu0 0.0
  %199 = vmatmul.mubr.f32.gmra.mrb[0].mxu0 %v132
  %v200 = vpop.f32.mrb[0].mxu0
  %v201 = vadd.f32 %v108, %v200
  %v202 = vpop.f32.mrb[0].mxu0
  %203 = vdwg.mxu0
  %vm204 = vcmask 80896
  %205 = vst.msk [vmem:[%s3] sm:$0xff] %vm204, %v201
  // Predicated region
  $region14: #{_lambda_.43} parent=0 // pred_check
    _
  $region15: #{_lambda_.43} parent=0 // pred_check_branch
    %207 = sbr.rel (0) target = $region17
  $region16: #{_lambda_.43} parent=0 // pred_region
    _
  $region17: #{_lambda_.43} parent=0 // pred_fallthru
    _
  // Predicated region
  $region18: #{_lambda_.43} parent=0 // pred_check
    _
  $region19: #{_lambda_.43} parent=0 // pred_check_branch
    %209 = sbr.rel (0) target = $region21
  $region20: #{_lambda_.43} parent=0 // pred_region
    _
  $region21: #{_lambda_.43} parent=0 // pred_fallthru
    _

</llo_original>
